<compile_context>
chip_gen: v5e
topology: v5e:2x2
jax: 0.10.0
libtpu: 0.0.40
codegen_flags: <defaults>
</compile_context>

<pallas_src>
import math
import jax
import jax.numpy as jnp
from jax.experimental import pallas as pl
from jax.experimental.pallas import tpu as pltpu

# ---------------- small, forward-consistent config ----------------
B, T, D, K = 2, 16, 8, 2
INPUT_SIZE = D * K            # 16   (133*2 in the real model)
HIDDEN     = 32               # 512
H2         = HIDDEN // 2      # 16   (256)
OUTPUT     = 64               # 3072
NHEAD      = 4                # 8
FF_DIM     = 64               # 1024
N_LAYERS   = 2
MAX_SEQ    = 8                # 30
POOL       = 32               # 256
LN_EPS     = 1e-5
NEG_BIG    = -1e30

HEAD_DIM    = HIDDEN // NHEAD     # 8   self-attention head dim
CA_HEAD_DIM = OUTPUT // NHEAD     # 16  cross-attention head dim
ROPE_HALF   = HEAD_DIM // 2       # 4

BF16 = jnp.bfloat16
F32  = jnp.float32


# ---------------- in-kernel math helpers (f32 elementwise) ----------------
def _ln(x, g, b):
    m = jnp.mean(x, axis=-1, keepdims=True)
    v = jnp.mean(jnp.square(x - m), axis=-1, keepdims=True)
    return (x - m) * jax.lax.rsqrt(v + LN_EPS) * g + b


def _gelu(x):
    # tanh-approx GELU (EUP slot). PyTorch nn.GELU() default is exact erf (~1e-3 diff).
    c = 0.7978845608028654
    return 0.5 * x * (1.0 + jnp.tanh(c * (x + 0.044715 * x * x * x)))


def _softmax_rows(s):
    s = s - jnp.max(s, axis=-1, keepdims=True)
    p = jnp.exp(s)
    denom = jnp.maximum(jnp.sum(p, axis=-1, keepdims=True), 1e-30)
    return p * pl.reciprocal(denom, approx=True)


# ---------------- the single fused kernel ----------------
def _imitator_kernel(
        # per-batch operands
        x_ref, bias_ref,
        # frontend: linear_feat (Linear-GELU-LN x2)
        lf_w1, lf_b1, lf_g1, lf_be1, lf_w2, lf_b2, lf_g2, lf_be2,
        # frontend: conv1(k=3) / ln1 / conv2(k=1) / linear_hidden
        sh_prev, sh_next, c1_wp, c1_wt, c1_wn, c1_b, ln1_g, ln1_b,
        c2_w, c2_b, lh_w, lh_b,
        # RoPE tables
        cosf, sins,
        # encoder layers, stacked over (N_LAYERS, NHEAD, ...)
        n1_g, n1_b, wq, bq, wqr, bqr, wk, bk, wkr, bkr, wv, bv, wo, bo,
        n2_g, n2_b, wf1, bf1, wf2, bf2,
        # proj + cross-attention + norm_attn
        proj_w, proj_b, tq, ca_q, ca_wk, ca_bk, ca_wv, ca_bv, ca_wo, ca_bo,
        na_g, na_b,
        # output
        out_ref):
    x = x_ref[...].reshape(T, INPUT_SIZE).astype(F32)
    bias = bias_ref[...].reshape(1, T)          # additive key-padding bias (already * NEG_BIG)

    # ---------- frontend: linear_feat ----------
    h = jnp.dot(x.astype(BF16), lf_w1[...], preferred_element_type=F32) + lf_b1[...]
    h = _ln(_gelu(h), lf_g1[...], lf_be1[...])
    h = jnp.dot(h.astype(BF16), lf_w2[...], preferred_element_type=F32) + lf_b2[...]
    h = _ln(_gelu(h), lf_g2[...], lf_be2[...])                              # (T, H2)

    # ---------- Conv1d(k=3,pad=1) -> ln1 -> GELU -> Conv1d(k=1) -> linear_hidden ----------
    h_bf = h.astype(BF16)
    h_prev = jnp.dot(sh_prev[...], h_bf, preferred_element_type=F32).astype(BF16)
    h_next = jnp.dot(sh_next[...], h_bf, preferred_element_type=F32).astype(BF16)
    y = (jnp.dot(h_prev, c1_wp[...], preferred_element_type=F32)
         + jnp.dot(h_bf,  c1_wt[...], preferred_element_type=F32)
         + jnp.dot(h_next, c1_wn[...], preferred_element_type=F32)
         + c1_b[...])
    y = _gelu(_ln(y, ln1_g[...], ln1_b[...]))
    # conv2 (k=1) == per-timestep linear; ln2/act2 are NOT applied in forward()
    y = jnp.dot(y.astype(BF16), c2_w[...], preferred_element_type=F32) + c2_b[...]
    xx = jnp.dot(y.astype(BF16), lh_w[...], preferred_element_type=F32) + lh_b[...]   # (T, HIDDEN)

    cosF = cosf[...]
    sinS = sins[...]

    # ---------- transformer encoder: pre-norm RoPE layers (static unroll) ----------
    for l in range(N_LAYERS):
        xn = _ln(xx, n1_g[l], n1_b[l]).astype(BF16)
        attn = jnp.zeros((T, HIDDEN), F32)
        for hh in range(NHEAD):
            # rotate-half RoPE folded into prep-time permuted weight copies:
            #   rope(q) = (xn@Wq + bq)*[cos,cos] + (xn@Wq_rot + bq_rot)*[-sin,sin]
            ql = jnp.dot(xn, wq[l, hh], preferred_element_type=F32) + bq[l, hh]
            qr = jnp.dot(xn, wqr[l, hh], preferred_element_type=F32) + bqr[l, hh]
            qh = (ql * cosF + qr * sinS).astype(BF16)          # 1/sqrt(hd) folded into Wq/bq
            kl = jnp.dot(xn, wk[l, hh], preferred_element_type=F32) + bk[l, hh]
            kr = jnp.dot(xn, wkr[l, hh], preferred_element_type=F32) + bkr[l, hh]
            kh = (kl * cosF + kr * sinS).astype(BF16)
            vh = (jnp.dot(xn, wv[l, hh], preferred_element_type=F32) + bv[l, hh]).astype(BF16)
            s = jax.lax.dot_general(qh, kh, (((1,), (1,)), ((), ())),
                                    preferred_element_type=F32) + bias
            p = _softmax_rows(s).astype(BF16)
            oh = jnp.dot(p, vh, preferred_element_type=F32).astype(BF16)
            # per-head out-projection accumulate (no lane concat)
            attn = attn + jnp.dot(oh, wo[l, hh], preferred_element_type=F32)
        xx = xx + attn + bo[l]
        xn2 = _ln(xx, n2_g[l], n2_b[l]).astype(BF16)
        ff = _gelu(jnp.dot(xn2, wf1[l], preferred_element_type=F32) + bf1[l])
        xx = xx + jnp.dot(ff.astype(BF16), wf2[l], preferred_element_type=F32) + bf2[l]

    # ---------- proj -> token-query cross-attention -> norm_attn ----------
    m = (jnp.dot(xx.astype(BF16), proj_w[...], preferred_element_type=F32) + proj_b[...]).astype(BF16)
    q_res = tq[...]                                            # (MAX_SEQ, OUTPUT) residual
    acc = jnp.zeros((MAX_SEQ, OUTPUT), F32)
    for hh in range(NHEAD):
        kh = (jnp.dot(m, ca_wk[hh], preferred_element_type=F32) + ca_bk[hh]).astype(BF16)
        vh = (jnp.dot(m, ca_wv[hh], preferred_element_type=F32) + ca_bv[hh]).astype(BF16)
        qh = ca_q[hh].astype(BF16)                             # prep-time projected & scaled queries
        s = jax.lax.dot_general(qh, kh, (((1,), (1,)), ((), ())),
                                preferred_element_type=F32) + bias
        p = _softmax_rows(s).astype(BF16)
        oh = jnp.dot(p, vh, preferred_element_type=F32).astype(BF16)
        acc = acc + jnp.dot(oh, ca_wo[hh], preferred_element_type=F32)
    out = _ln(q_res + acc + ca_bo[...], na_g[...], na_b[...])
    out_ref[...] = out.reshape(1, MAX_SEQ, OUTPUT).astype(out_ref.dtype)


# ---------------- BlockSpec helpers ----------------
def _const_index_map(nd):
    def im(b):
        return (0,) * nd
    return im


def _full_spec(arr):
    # weights: full-array block, same tile for every grid step (no re-DMA)
    return pl.BlockSpec(tuple(arr.shape), _const_index_map(arr.ndim))


# ---------------- deterministic raw parameter init ----------------
def init_params(seed=0):
    key = jax.random.PRNGKey(seed)
    counter = [0]

    def nrm(shape, scale=0.05):
        counter[0] += 1
        return scale * jax.random.normal(jax.random.fold_in(key, counter[0]),
                                         shape, dtype=F32)

    def zeros(shape):
        return jnp.zeros(shape, F32)

    def ones(shape):
        return jnp.ones(shape, F32)

    p = {
        "lf_w1": nrm((INPUT_SIZE, HIDDEN)), "lf_b1": zeros((HIDDEN,)),
        "lf_g1": ones((HIDDEN,)), "lf_be1": zeros((HIDDEN,)),
        "lf_w2": nrm((HIDDEN, H2)), "lf_b2": zeros((H2,)),
        "lf_g2": ones((H2,)), "lf_be2": zeros((H2,)),
        # conv1 weight stored tap-major (3, Cin, Cout): tap 0 = t-1, 1 = t, 2 = t+1
        # (real PyTorch Conv1d weights (Cout,Cin,3) must be permuted to this layout)
        "c1_w": nrm((3, H2, POOL)), "c1_b": zeros((POOL,)),
        "ln1_g": ones((POOL,)), "ln1_b": zeros((POOL,)),
        "c2_w": nrm((POOL, POOL)), "c2_b": zeros((POOL,)),
        "lh_w": nrm((POOL, HIDDEN)), "lh_b": zeros((HIDDEN,)),
        "proj_w": nrm((HIDDEN, OUTPUT)), "proj_b": zeros((OUTPUT,)),
        "token_queries": nrm((MAX_SEQ, OUTPUT), scale=1.0),
        "ca_wq": nrm((OUTPUT, OUTPUT)), "ca_bq": zeros((OUTPUT,)),
        "ca_wk": nrm((OUTPUT, OUTPUT)), "ca_bk": zeros((OUTPUT,)),
        "ca_wv": nrm((OUTPUT, OUTPUT)), "ca_bv": zeros((OUTPUT,)),
        "ca_wo": nrm((OUTPUT, OUTPUT)), "ca_bo": zeros((OUTPUT,)),
        "na_g": ones((OUTPUT,)), "na_b": zeros((OUTPUT,)),
        "layers": [],
    }
    for _ in range(N_LAYERS):
        p["layers"].append({
            "n1_g": ones((HIDDEN,)), "n1_b": zeros((HIDDEN,)),
            "wq": nrm((HIDDEN, HIDDEN)), "bq": zeros((HIDDEN,)),
            "wk": nrm((HIDDEN, HIDDEN)), "bk": zeros((HIDDEN,)),
            "wv": nrm((HIDDEN, HIDDEN)), "bv": zeros((HIDDEN,)),
            "wo": nrm((HIDDEN, HIDDEN)), "bo": zeros((HIDDEN,)),
            "n2_g": ones((HIDDEN,)), "n2_b": zeros((HIDDEN,)),
            "wf1": nrm((HIDDEN, FF_DIM)), "bf1": zeros((FF_DIM,)),
            "wf2": nrm((FF_DIM, HIDDEN)), "bf2": zeros((HIDDEN,)),
        })
    return p


# ---------------- one-time parameter preparation (outside the jitted forward) ----------------
def prepare_params(p):
    """Fuse / split / permute / cast all weights once into the flat operand list
    consumed by the kernel (order must match _imitator_kernel's signature)."""

    def row(v):
        return v.reshape(1, -1).astype(F32)

    def bf(v):
        return v.astype(BF16)

    def split_heads(w, b_, nh, hd, scale=1.0):
        # (in, out), (out,) -> (nh, in, hd), (nh, 1, hd), optionally pre-scaled
        wsp = w.reshape(w.shape[0], nh, hd).transpose(1, 0, 2) * scale
        bsp = b_.reshape(nh, 1, hd) * scale
        return wsp, bsp

    # --- frontend: linear_feat ---
    ops = [
        bf(p["lf_w1"]), row(p["lf_b1"]), row(p["lf_g1"]), row(p["lf_be1"]),
        bf(p["lf_w2"]), row(p["lf_b2"]), row(p["lf_g2"]), row(p["lf_be2"]),
    ]
    # --- frontend: conv block (shift matrices built once; taps split) ---
    sh_prev = jnp.eye(T, k=-1, dtype=F32)     # row t selects h[t-1] (row 0 = zero pad)
    sh_next = jnp.eye(T, k=1, dtype=F32)      # row t selects h[t+1] (row T-1 = zero pad)
    ops += [
        bf(sh_prev), bf(sh_next),
        bf(p["c1_w"][0]), bf(p["c1_w"][1]), bf(p["c1_w"][2]),
        row(p["c1_b"]), row(p["ln1_g"]), row(p["ln1_b"]),
        bf(p["c2_w"]), row(p["c2_b"]), bf(p["lh_w"]), row(p["lh_b"]),
    ]
    # --- RoPE tables: full-width cos and sign-folded sin (rotate-half as mul/add) ---
    pos = jnp.arange(T, dtype=F32)
    inv_freq = 1.0 / (10000.0 ** (jnp.arange(ROPE_HALF, dtype=F32) / ROPE_HALF))
    ang = pos[:, None] * inv_freq[None, :]
    cos_t, sin_t = jnp.cos(ang), jnp.sin(ang)
    ops += [jnp.concatenate([cos_t, cos_t], axis=1),
            jnp.concatenate([-sin_t, sin_t], axis=1)]

    # --- encoder layers: stack per-layer / per-head weights ---
    scale = 1.0 / math.sqrt(HEAD_DIM)
    names = ("n1_g", "n1_b", "wq", "bq", "wqr", "bqr", "wk", "bk", "wkr", "bkr",
             "wv", "bv", "wo", "bo", "n2_g", "n2_b", "wf1", "bf1", "wf2", "bf2")
    st = {k: [] for k in names}
    for lyr in p["layers"]:
        st["n1_g"].append(row(lyr["n1_g"])); st["n1_b"].append(row(lyr["n1_b"]))
        wq_h, bq_h = split_heads(lyr["wq"], lyr["bq"], NHEAD, HEAD_DIM, scale)
        wk_h, bk_h = split_heads(lyr["wk"], lyr["bk"], NHEAD, HEAD_DIM)
        wv_h, bv_h = split_heads(lyr["wv"], lyr["bv"], NHEAD, HEAD_DIM)
        st["wq"].append(wq_h); st["bq"].append(bq_h)
        st["wqr"].append(jnp.roll(wq_h, -ROPE_HALF, axis=2))
        st["bqr"].append(jnp.roll(bq_h, -ROPE_HALF, axis=2))
        st["wk"].append(wk_h); st["bk"].append(bk_h)
        st["wkr"].append(jnp.roll(wk_h, -ROPE_HALF, axis=2))
        st["bkr"].append(jnp.roll(bk_h, -ROPE_HALF, axis=2))
        st["wv"].append(wv_h); st["bv"].append(bv_h)
        st["wo"].append(lyr["wo"].reshape(NHEAD, HEAD_DIM, HIDDEN))
        st["bo"].append(row(lyr["bo"]))
        st["n2_g"].append(row(lyr["n2_g"])); st["n2_b"].append(row(lyr["n2_b"]))
        st["wf1"].append(lyr["wf1"]); st["bf1"].append(row(lyr["bf1"]))
        st["wf2"].append(lyr["wf2"]); st["bf2"].append(row(lyr["bf2"]))

    def stack(name, weight=False):
        arr = jnp.stack(st[name], axis=0)
        return bf(arr) if weight else arr.astype(F32)

    ops += [stack("n1_g"), stack("n1_b"),
            stack("wq", True), stack("bq"), stack("wqr", True), stack("bqr"),
            stack("wk", True), stack("bk"), stack("wkr", True), stack("bkr"),
            stack("wv", True), stack("bv"), stack("wo", True), stack("bo"),
            stack("n2_g"), stack("n2_b"),
            stack("wf1", True), stack("bf1"), stack("wf2", True), stack("bf2")]

    # --- proj + cross-attention (query projection precomputed; scale folded) ---
    ca_scale = 1.0 / math.sqrt(CA_HEAD_DIM)
    ca_wq_h, ca_bq_h = split_heads(p["ca_wq"], p["ca_bq"], NHEAD, CA_HEAD_DIM, ca_scale)
    ca_q = jnp.einsum("sd,ndh->nsh", p["token_queries"], ca_wq_h) + ca_bq_h
    ca_wk_h, ca_bk_h = split_heads(p["ca_wk"], p["ca_bk"], NHEAD, CA_HEAD_DIM)
    ca_wv_h, ca_bv_h = split_heads(p["ca_wv"], p["ca_bv"], NHEAD, CA_HEAD_DIM)
    ops += [bf(p["proj_w"]), row(p["proj_b"]),
            p["token_queries"].astype(F32), ca_q.astype(F32),
            bf(ca_wk_h), ca_bk_h.astype(F32), bf(ca_wv_h), ca_bv_h.astype(F32),
            bf(p["ca_wo"].reshape(NHEAD, CA_HEAD_DIM, OUTPUT)), row(p["ca_bo"]),
            row(p["na_g"]), row(p["na_b"])]
    return ops


# ---------------- forward: ONE fused pallas_call ----------------
def imitator_forward(kernel_ops, x, frames_padding_mask):
    Bn, Tn, Dn, Kn = x.shape
    x2 = x.reshape(Bn, Tn, Dn * Kn).astype(F32)
    # key_padding_mask: True = padded key -> additive -1e30 bias, built once here.
    bias = (frames_padding_mask.astype(F32) * NEG_BIG).reshape(Bn, 1, Tn)

    in_ops = [x2, bias] + list(kernel_ops)
    in_specs = ([pl.BlockSpec((1, Tn, INPUT_SIZE), lambda b: (b, 0, 0)),
                 pl.BlockSpec((1, 1, Tn), lambda b: (b, 0, 0))]
                + [_full_spec(a) for a in kernel_ops])

    return pl.pallas_call(
        _imitator_kernel,
        out_shape=jax.ShapeDtypeStruct((Bn, MAX_SEQ, OUTPUT), F32),
        grid=(Bn,),
        in_specs=in_specs,
        out_specs=pl.BlockSpec((1, MAX_SEQ, OUTPUT), lambda b: (b, 0, 0)),
        compiler_params=pltpu.CompilerParams(dimension_semantics=("parallel",)),
    )(*in_ops)


if __name__ == "__main__":
    raw_params = init_params(seed=0)
    kernel_ops = prepare_params(raw_params)      # one-time weight fusion / stacking / bf16 cast

    key = jax.random.PRNGKey(0)
    kx, _ = jax.random.split(key)
    x = jax.random.normal(kx, (B, T, D, K), dtype=jnp.float32)
    # key_padding_mask convention: True = padded (ignored as attention key)
    frames_padding_mask = jnp.zeros((B, T), dtype=bool).at[1, T - 3:].set(True)

    fwd = jax.jit(imitator_forward)
    out = fwd(kernel_ops, x, frames_padding_mask)
    out = jax.block_until_ready(out)

    assert out.shape == (B, MAX_SEQ, OUTPUT), out.shape
    assert bool(jnp.all(jnp.isfinite(out)))
    print("KERNEL_OK")
</pallas_src>

<mosaic_0001>
module attributes {stable_mosaic.version = 11 : i64} {
  func.func @_imitator_kernel(%arg0: i32, %arg1: memref<1x16x16xf32, #tpu.memory_space<vmem>>, %arg2: memref<1x1x16xf32, #tpu.memory_space<vmem>>, %arg3: memref<16x32xbf16, #tpu.memory_space<vmem>>, %arg4: memref<1x32xf32, #tpu.memory_space<vmem>>, %arg5: memref<1x32xf32, #tpu.memory_space<vmem>>, %arg6: memref<1x32xf32, #tpu.memory_space<vmem>>, %arg7: memref<32x16xbf16, #tpu.memory_space<vmem>>, %arg8: memref<1x16xf32, #tpu.memory_space<vmem>>, %arg9: memref<1x16xf32, #tpu.memory_space<vmem>>, %arg10: memref<1x16xf32, #tpu.memory_space<vmem>>, %arg11: memref<16x16xbf16, #tpu.memory_space<vmem>>, %arg12: memref<16x16xbf16, #tpu.memory_space<vmem>>, %arg13: memref<16x32xbf16, #tpu.memory_space<vmem>>, %arg14: memref<16x32xbf16, #tpu.memory_space<vmem>>, %arg15: memref<16x32xbf16, #tpu.memory_space<vmem>>, %arg16: memref<1x32xf32, #tpu.memory_space<vmem>>, %arg17: memref<1x32xf32, #tpu.memory_space<vmem>>, %arg18: memref<1x32xf32, #tpu.memory_space<vmem>>, %arg19: memref<32x32xbf16, #tpu.memory_space<vmem>>, %arg20: memref<1x32xf32, #tpu.memory_space<vmem>>, %arg21: memref<32x32xbf16, #tpu.memory_space<vmem>>, %arg22: memref<1x32xf32, #tpu.memory_space<vmem>>, %arg23: memref<16x8xf32, #tpu.memory_space<vmem>>, %arg24: memref<16x8xf32, #tpu.memory_space<vmem>>, %arg25: memref<2x1x32xf32, #tpu.memory_space<vmem>>, %arg26: memref<2x1x32xf32, #tpu.memory_space<vmem>>, %arg27: memref<2x4x32x8xbf16, #tpu.memory_space<vmem>>, %arg28: memref<2x4x1x8xf32, #tpu.memory_space<vmem>>, %arg29: memref<2x4x32x8xbf16, #tpu.memory_space<vmem>>, %arg30: memref<2x4x1x8xf32, #tpu.memory_space<vmem>>, %arg31: memref<2x4x32x8xbf16, #tpu.memory_space<vmem>>, %arg32: memref<2x4x1x8xf32, #tpu.memory_space<vmem>>, %arg33: memref<2x4x32x8xbf16, #tpu.memory_space<vmem>>, %arg34: memref<2x4x1x8xf32, #tpu.memory_space<vmem>>, %arg35: memref<2x4x32x8xbf16, #tpu.memory_space<vmem>>, %arg36: memref<2x4x1x8xf32, #tpu.memory_space<vmem>>, %arg37: memref<2x4x8x32xbf16, #tpu.memory_space<vmem>>, %arg38: memref<2x1x32xf32, #tpu.memory_space<vmem>>, %arg39: memref<2x1x32xf32, #tpu.memory_space<vmem>>, %arg40: memref<2x1x32xf32, #tpu.memory_space<vmem>>, %arg41: memref<2x32x64xbf16, #tpu.memory_space<vmem>>, %arg42: memref<2x1x64xf32, #tpu.memory_space<vmem>>, %arg43: memref<2x64x32xbf16, #tpu.memory_space<vmem>>, %arg44: memref<2x1x32xf32, #tpu.memory_space<vmem>>, %arg45: memref<32x64xbf16, #tpu.memory_space<vmem>>, %arg46: memref<1x64xf32, #tpu.memory_space<vmem>>, %arg47: memref<8x64xf32, #tpu.memory_space<vmem>>, %arg48: memref<4x8x16xf32, #tpu.memory_space<vmem>>, %arg49: memref<4x64x16xbf16, #tpu.memory_space<vmem>>, %arg50: memref<4x1x16xf32, #tpu.memory_space<vmem>>, %arg51: memref<4x64x16xbf16, #tpu.memory_space<vmem>>, %arg52: memref<4x1x16xf32, #tpu.memory_space<vmem>>, %arg53: memref<4x16x64xbf16, #tpu.memory_space<vmem>>, %arg54: memref<1x64xf32, #tpu.memory_space<vmem>>, %arg55: memref<1x64xf32, #tpu.memory_space<vmem>>, %arg56: memref<1x64xf32, #tpu.memory_space<vmem>>, %arg57: memref<1x8x64xf32, #tpu.memory_space<vmem>>) attributes {dimension_semantics = [#tpu.dimension_semantics<parallel>], iteration_bounds = array<i64: 2>, scalar_prefetch = 0 : i64, scratch_operands = 0 : i64, tpu.core_type = #tpu.core_type<tc>, window_params = [{transform_indices = @transform_0, window_bounds = array<i64: 1, 16, 16>}, {transform_indices = @transform_1, window_bounds = array<i64: 1, 1, 16>}, {pipeline_mode = #tpu.pipeline_mode<synchronous>, transform_indices = @transform_2, window_bounds = array<i64: 16, 32>}, {pipeline_mode = #tpu.pipeline_mode<synchronous>, transform_indices = @transform_3, window_bounds = array<i64: 1, 32>}, {pipeline_mode = #tpu.pipeline_mode<synchronous>, transform_indices = @transform_4, window_bounds = array<i64: 1, 32>}, {pipeline_mode = #tpu.pipeline_mode<synchronous>, transform_indices = @transform_5, window_bounds = array<i64: 1, 32>}, {pipeline_mode = #tpu.pipeline_mode<synchronous>, transform_indices = @transform_6, window_bounds = array<i64: 32, 16>}, {pipeline_mode = #tpu.pipeline_mode<synchronous>, transform_indices = @transform_7, window_bounds = array<i64: 1, 16>}, {pipeline_mode = #tpu.pipeline_mode<synchronous>, transform_indices = @transform_8, window_bounds = array<i64: 1, 16>}, {pipeline_mode = #tpu.pipeline_mode<synchronous>, transform_indices = @transform_9, window_bounds = array<i64: 1, 16>}, {pipeline_mode = #tpu.pipeline_mode<synchronous>, transform_indices = @transform_10, window_bounds = array<i64: 16, 16>}, {pipeline_mode = #tpu.pipeline_mode<synchronous>, transform_indices = @transform_11, window_bounds = array<i64: 16, 16>}, {pipeline_mode = #tpu.pipeline_mode<synchronous>, transform_indices = @transform_12, window_bounds = array<i64: 16, 32>}, {pipeline_mode = #tpu.pipeline_mode<synchronous>, transform_indices = @transform_13, window_bounds = array<i64: 16, 32>}, {pipeline_mode = #tpu.pipeline_mode<synchronous>, transform_indices = @transform_14, window_bounds = array<i64: 16, 32>}, {pipeline_mode = #tpu.pipeline_mode<synchronous>, transform_indices = @transform_15, window_bounds = array<i64: 1, 32>}, {pipeline_mode = #tpu.pipeline_mode<synchronous>, transform_indices = @transform_16, window_bounds = array<i64: 1, 32>}, {pipeline_mode = #tpu.pipeline_mode<synchronous>, transform_indices = @transform_17, window_bounds = array<i64: 1, 32>}, {pipeline_mode = #tpu.pipeline_mode<synchronous>, transform_indices = @transform_18, window_bounds = array<i64: 32, 32>}, {pipeline_mode = #tpu.pipeline_mode<synchronous>, transform_indices = @transform_19, window_bounds = array<i64: 1, 32>}, {pipeline_mode = #tpu.pipeline_mode<synchronous>, transform_indices = @transform_20, window_bounds = array<i64: 32, 32>}, {pipeline_mode = #tpu.pipeline_mode<synchronous>, transform_indices = @transform_21, window_bounds = array<i64: 1, 32>}, {pipeline_mode = #tpu.pipeline_mode<synchronous>, transform_indices = @transform_22, window_bounds = array<i64: 16, 8>}, {pipeline_mode = #tpu.pipeline_mode<synchronous>, transform_indices = @transform_23, window_bounds = array<i64: 16, 8>}, {pipeline_mode = #tpu.pipeline_mode<synchronous>, transform_indices = @transform_24, window_bounds = array<i64: 2, 1, 32>}, {pipeline_mode = #tpu.pipeline_mode<synchronous>, transform_indices = @transform_25, window_bounds = array<i64: 2, 1, 32>}, {pipeline_mode = #tpu.pipeline_mode<synchronous>, transform_indices = @transform_26, window_bounds = array<i64: 2, 4, 32, 8>}, {pipeline_mode = #tpu.pipeline_mode<synchronous>, transform_indices = @transform_27, window_bounds = array<i64: 2, 4, 1, 8>}, {pipeline_mode = #tpu.pipeline_mode<synchronous>, transform_indices = @transform_28, window_bounds = array<i64: 2, 4, 32, 8>}, {pipeline_mode = #tpu.pipeline_mode<synchronous>, transform_indices = @transform_29, window_bounds = array<i64: 2, 4, 1, 8>}, {pipeline_mode = #tpu.pipeline_mode<synchronous>, transform_indices = @transform_30, window_bounds = array<i64: 2, 4, 32, 8>}, {pipeline_mode = #tpu.pipeline_mode<synchronous>, transform_indices = @transform_31, window_bounds = array<i64: 2, 4, 1, 8>}, {pipeline_mode = #tpu.pipeline_mode<synchronous>, transform_indices = @transform_32, window_bounds = array<i64: 2, 4, 32, 8>}, {pipeline_mode = #tpu.pipeline_mode<synchronous>, transform_indices = @transform_33, window_bounds = array<i64: 2, 4, 1, 8>}, {pipeline_mode = #tpu.pipeline_mode<synchronous>, transform_indices = @transform_34, window_bounds = array<i64: 2, 4, 32, 8>}, {pipeline_mode = #tpu.pipeline_mode<synchronous>, transform_indices = @transform_35, window_bounds = array<i64: 2, 4, 1, 8>}, {pipeline_mode = #tpu.pipeline_mode<synchronous>, transform_indices = @transform_36, window_bounds = array<i64: 2, 4, 8, 32>}, {pipeline_mode = #tpu.pipeline_mode<synchronous>, transform_indices = @transform_37, window_bounds = array<i64: 2, 1, 32>}, {pipeline_mode = #tpu.pipeline_mode<synchronous>, transform_indices = @transform_38, window_bounds = array<i64: 2, 1, 32>}, {pipeline_mode = #tpu.pipeline_mode<synchronous>, transform_indices = @transform_39, window_bounds = array<i64: 2, 1, 32>}, {pipeline_mode = #tpu.pipeline_mode<synchronous>, transform_indices = @transform_40, window_bounds = array<i64: 2, 32, 64>}, {pipeline_mode = #tpu.pipeline_mode<synchronous>, transform_indices = @transform_41, window_bounds = array<i64: 2, 1, 64>}, {pipeline_mode = #tpu.pipeline_mode<synchronous>, transform_indices = @transform_42, window_bounds = array<i64: 2, 64, 32>}, {pipeline_mode = #tpu.pipeline_mode<synchronous>, transform_indices = @transform_43, window_bounds = array<i64: 2, 1, 32>}, {pipeline_mode = #tpu.pipeline_mode<synchronous>, transform_indices = @transform_44, window_bounds = array<i64: 32, 64>}, {pipeline_mode = #tpu.pipeline_mode<synchronous>, transform_indices = @transform_45, window_bounds = array<i64: 1, 64>}, {pipeline_mode = #tpu.pipeline_mode<synchronous>, transform_indices = @transform_46, window_bounds = array<i64: 8, 64>}, {pipeline_mode = #tpu.pipeline_mode<synchronous>, transform_indices = @transform_47, window_bounds = array<i64: 4, 8, 16>}, {pipeline_mode = #tpu.pipeline_mode<synchronous>, transform_indices = @transform_48, window_bounds = array<i64: 4, 64, 16>}, {pipeline_mode = #tpu.pipeline_mode<synchronous>, transform_indices = @transform_49, window_bounds = array<i64: 4, 1, 16>}, {pipeline_mode = #tpu.pipeline_mode<synchronous>, transform_indices = @transform_50, window_bounds = array<i64: 4, 64, 16>}, {pipeline_mode = #tpu.pipeline_mode<synchronous>, transform_indices = @transform_51, window_bounds = array<i64: 4, 1, 16>}, {pipeline_mode = #tpu.pipeline_mode<synchronous>, transform_indices = @transform_52, window_bounds = array<i64: 4, 16, 64>}, {pipeline_mode = #tpu.pipeline_mode<synchronous>, transform_indices = @transform_53, window_bounds = array<i64: 1, 64>}, {pipeline_mode = #tpu.pipeline_mode<synchronous>, transform_indices = @transform_54, window_bounds = array<i64: 1, 64>}, {pipeline_mode = #tpu.pipeline_mode<synchronous>, transform_indices = @transform_55, window_bounds = array<i64: 1, 64>}, {transform_indices = @transform_56, window_bounds = array<i64: 1, 8, 64>}]} {
    %c0 = arith.constant 0 : index
    %c0_0 = arith.constant 0 : index
    %c0_1 = arith.constant 0 : index
    %0 = vector.load %arg1[%c0, %c0_0, %c0_1] : memref<1x16x16xf32, #tpu.memory_space<vmem>>, vector<1x16x16xf32>
    %1 = vector.shape_cast %0 : vector<1x16x16xf32> to vector<16x16xf32>
    %c0_2 = arith.constant 0 : index
    %c0_3 = arith.constant 0 : index
    %c0_4 = arith.constant 0 : index
    %2 = vector.load %arg2[%c0_2, %c0_3, %c0_4] : memref<1x1x16xf32, #tpu.memory_space<vmem>>, vector<1x1x16xf32>
    %3 = vector.shape_cast %2 : vector<1x1x16xf32> to vector<1x16xf32>
    %4 = arith.truncf %1 : vector<16x16xf32> to vector<16x16xbf16>
    %c0_5 = arith.constant 0 : index
    %c0_6 = arith.constant 0 : index
    %5 = vector.load %arg3[%c0_5, %c0_6] : memref<16x32xbf16, #tpu.memory_space<vmem>>, vector<16x32xbf16>
    %cst = arith.constant dense<0.000000e+00> : vector<16x32xf32>
    %6 = tpu.matmul %4, %5, %cst {dimension_numbers = #tpu.dot_dimension_numbers<[1], [0], [0], [1], [0, 0, 1, 1], [], []>} : vector<16x16xbf16>, vector<16x32xbf16>, vector<16x32xf32> -> vector<16x32xf32>
    %c0_7 = arith.constant 0 : index
    %c0_8 = arith.constant 0 : index
    %7 = vector.load %arg4[%c0_7, %c0_8] : memref<1x32xf32, #tpu.memory_space<vmem>>, vector<1x32xf32>
    %8 = vector.broadcast %7 : vector<1x32xf32> to vector<16x32xf32>
    %9 = arith.addf %6, %8 : vector<16x32xf32>
    %cst_9 = arith.constant 5.000000e-01 : f32
    %10 = vector.broadcast %cst_9 : f32 to vector<16x32xf32>
    %11 = arith.mulf %10, %9 : vector<16x32xf32>
    %cst_10 = arith.constant 4.471500e-02 : f32
    %12 = vector.broadcast %cst_10 : f32 to vector<16x32xf32>
    %13 = arith.mulf %12, %9 : vector<16x32xf32>
    %14 = arith.mulf %13, %9 : vector<16x32xf32>
    %15 = arith.mulf %14, %9 : vector<16x32xf32>
    %16 = arith.addf %9, %15 : vector<16x32xf32>
    %cst_11 = arith.constant 0.797884583 : f32
    %17 = vector.broadcast %cst_11 : f32 to vector<16x32xf32>
    %18 = arith.mulf %17, %16 : vector<16x32xf32>
    %19 = math.tanh %18 : vector<16x32xf32>
    %cst_12 = arith.constant 1.000000e+00 : f32
    %20 = vector.broadcast %cst_12 : f32 to vector<16x32xf32>
    %21 = arith.addf %20, %19 : vector<16x32xf32>
    %22 = arith.mulf %11, %21 : vector<16x32xf32>
    %c0_13 = arith.constant 0 : index
    %c0_14 = arith.constant 0 : index
    %23 = vector.load %arg5[%c0_13, %c0_14] : memref<1x32xf32, #tpu.memory_space<vmem>>, vector<1x32xf32>
    %c0_15 = arith.constant 0 : index
    %c0_16 = arith.constant 0 : index
    %24 = vector.load %arg6[%c0_15, %c0_16] : memref<1x32xf32, #tpu.memory_space<vmem>>, vector<1x32xf32>
    %cst_17 = arith.constant dense<0.000000e+00> : vector<16xf32>
    %25 = vector.multi_reduction <add>, %22, %cst_17 [1] : vector<16x32xf32> to vector<16xf32>
    %26 = vector.shape_cast %25 : vector<16xf32> to vector<16x1xf32>
    %cst_18 = arith.constant 3.200000e+01 : f32
    %27 = vector.broadcast %cst_18 : f32 to vector<16x1xf32>
    %28 = arith.divf %26, %27 : vector<16x1xf32>
    %29 = vector.broadcast %28 : vector<16x1xf32> to vector<16x32xf32>
    %30 = arith.subf %22, %29 : vector<16x32xf32>
    %31 = arith.mulf %30, %30 : vector<16x32xf32>
    %cst_19 = arith.constant dense<0.000000e+00> : vector<16xf32>
    %32 = vector.multi_reduction <add>, %31, %cst_19 [1] : vector<16x32xf32> to vector<16xf32>
    %33 = vector.shape_cast %32 : vector<16xf32> to vector<16x1xf32>
    %cst_20 = arith.constant 3.200000e+01 : f32
    %34 = vector.broadcast %cst_20 : f32 to vector<16x1xf32>
    %35 = arith.divf %33, %34 : vector<16x1xf32>
    %36 = vector.broadcast %28 : vector<16x1xf32> to vector<16x32xf32>
    %37 = arith.subf %22, %36 : vector<16x32xf32>
    %cst_21 = arith.constant 9.99999974E-6 : f32
    %38 = vector.broadcast %cst_21 : f32 to vector<16x1xf32>
    %39 = arith.addf %35, %38 : vector<16x1xf32>
    %40 = math.rsqrt %39 : vector<16x1xf32>
    %41 = vector.broadcast %40 : vector<16x1xf32> to vector<16x32xf32>
    %42 = arith.mulf %37, %41 : vector<16x32xf32>
    %43 = vector.broadcast %23 : vector<1x32xf32> to vector<16x32xf32>
    %44 = arith.mulf %42, %43 : vector<16x32xf32>
    %45 = vector.broadcast %24 : vector<1x32xf32> to vector<16x32xf32>
    %46 = arith.addf %44, %45 : vector<16x32xf32>
    %47 = arith.truncf %46 : vector<16x32xf32> to vector<16x32xbf16>
    %c0_22 = arith.constant 0 : index
    %c0_23 = arith.constant 0 : index
    %48 = vector.load %arg7[%c0_22, %c0_23] : memref<32x16xbf16, #tpu.memory_space<vmem>>, vector<32x16xbf16>
    %cst_24 = arith.constant dense<0.000000e+00> : vector<16x16xf32>
    %49 = tpu.matmul %47, %48, %cst_24 {dimension_numbers = #tpu.dot_dimension_numbers<[1], [0], [0], [1], [0, 0, 1, 1], [], []>} : vector<16x32xbf16>, vector<32x16xbf16>, vector<16x16xf32> -> vector<16x16xf32>
    %c0_25 = arith.constant 0 : index
    %c0_26 = arith.constant 0 : index
    %50 = vector.load %arg8[%c0_25, %c0_26] : memref<1x16xf32, #tpu.memory_space<vmem>>, vector<1x16xf32>
    %51 = vector.broadcast %50 : vector<1x16xf32> to vector<16x16xf32>
    %52 = arith.addf %49, %51 : vector<16x16xf32>
    %cst_27 = arith.constant 5.000000e-01 : f32
    %53 = vector.broadcast %cst_27 : f32 to vector<16x16xf32>
    %54 = arith.mulf %53, %52 : vector<16x16xf32>
    %cst_28 = arith.constant 4.471500e-02 : f32
    %55 = vector.broadcast %cst_28 : f32 to vector<16x16xf32>
    %56 = arith.mulf %55, %52 : vector<16x16xf32>
    %57 = arith.mulf %56, %52 : vector<16x16xf32>
    %58 = arith.mulf %57, %52 : vector<16x16xf32>
    %59 = arith.addf %52, %58 : vector<16x16xf32>
    %cst_29 = arith.constant 0.797884583 : f32
    %60 = vector.broadcast %cst_29 : f32 to vector<16x16xf32>
    %61 = arith.mulf %60, %59 : vector<16x16xf32>
    %62 = math.tanh %61 : vector<16x16xf32>
    %cst_30 = arith.constant 1.000000e+00 : f32
    %63 = vector.broadcast %cst_30 : f32 to vector<16x16xf32>
    %64 = arith.addf %63, %62 : vector<16x16xf32>
    %65 = arith.mulf %54, %64 : vector<16x16xf32>
    %c0_31 = arith.constant 0 : index
    %c0_32 = arith.constant 0 : index
    %66 = vector.load %arg9[%c0_31, %c0_32] : memref<1x16xf32, #tpu.memory_space<vmem>>, vector<1x16xf32>
    %c0_33 = arith.constant 0 : index
    %c0_34 = arith.constant 0 : index
    %67 = vector.load %arg10[%c0_33, %c0_34] : memref<1x16xf32, #tpu.memory_space<vmem>>, vector<1x16xf32>
    %cst_35 = arith.constant dense<0.000000e+00> : vector<16xf32>
    %68 = vector.multi_reduction <add>, %65, %cst_35 [1] : vector<16x16xf32> to vector<16xf32>
    %69 = vector.shape_cast %68 : vector<16xf32> to vector<16x1xf32>
    %cst_36 = arith.constant 1.600000e+01 : f32
    %70 = vector.broadcast %cst_36 : f32 to vector<16x1xf32>
    %71 = arith.divf %69, %70 : vector<16x1xf32>
    %72 = vector.broadcast %71 : vector<16x1xf32> to vector<16x16xf32>
    %73 = arith.subf %65, %72 : vector<16x16xf32>
    %74 = arith.mulf %73, %73 : vector<16x16xf32>
    %cst_37 = arith.constant dense<0.000000e+00> : vector<16xf32>
    %75 = vector.multi_reduction <add>, %74, %cst_37 [1] : vector<16x16xf32> to vector<16xf32>
    %76 = vector.shape_cast %75 : vector<16xf32> to vector<16x1xf32>
    %cst_38 = arith.constant 1.600000e+01 : f32
    %77 = vector.broadcast %cst_38 : f32 to vector<16x1xf32>
    %78 = arith.divf %76, %77 : vector<16x1xf32>
    %79 = vector.broadcast %71 : vector<16x1xf32> to vector<16x16xf32>
    %80 = arith.subf %65, %79 : vector<16x16xf32>
    %cst_39 = arith.constant 9.99999974E-6 : f32
    %81 = vector.broadcast %cst_39 : f32 to vector<16x1xf32>
    %82 = arith.addf %78, %81 : vector<16x1xf32>
    %83 = math.rsqrt %82 : vector<16x1xf32>
    %84 = vector.broadcast %83 : vector<16x1xf32> to vector<16x16xf32>
    %85 = arith.mulf %80, %84 : vector<16x16xf32>
    %86 = vector.broadcast %66 : vector<1x16xf32> to vector<16x16xf32>
    %87 = arith.mulf %85, %86 : vector<16x16xf32>
    %88 = vector.broadcast %67 : vector<1x16xf32> to vector<16x16xf32>
    %89 = arith.addf %87, %88 : vector<16x16xf32>
    %90 = arith.truncf %89 : vector<16x16xf32> to vector<16x16xbf16>
    %c0_40 = arith.constant 0 : index
    %c0_41 = arith.constant 0 : index
    %91 = vector.load %arg11[%c0_40, %c0_41] : memref<16x16xbf16, #tpu.memory_space<vmem>>, vector<16x16xbf16>
    %cst_42 = arith.constant dense<0.000000e+00> : vector<16x16xf32>
    %92 = tpu.matmul %91, %90, %cst_42 {dimension_numbers = #tpu.dot_dimension_numbers<[1], [0], [0], [1], [0, 0, 1, 1], [], []>} : vector<16x16xbf16>, vector<16x16xbf16>, vector<16x16xf32> -> vector<16x16xf32>
    %93 = arith.truncf %92 : vector<16x16xf32> to vector<16x16xbf16>
    %c0_43 = arith.constant 0 : index
    %c0_44 = arith.constant 0 : index
    %94 = vector.load %arg12[%c0_43, %c0_44] : memref<16x16xbf16, #tpu.memory_space<vmem>>, vector<16x16xbf16>
    %cst_45 = arith.constant dense<0.000000e+00> : vector<16x16xf32>
    %95 = tpu.matmul %94, %90, %cst_45 {dimension_numbers = #tpu.dot_dimension_numbers<[1], [0], [0], [1], [0, 0, 1, 1], [], []>} : vector<16x16xbf16>, vector<16x16xbf16>, vector<16x16xf32> -> vector<16x16xf32>
    %96 = arith.truncf %95 : vector<16x16xf32> to vector<16x16xbf16>
    %c0_46 = arith.constant 0 : index
    %c0_47 = arith.constant 0 : index
    %97 = vector.load %arg13[%c0_46, %c0_47] : memref<16x32xbf16, #tpu.memory_space<vmem>>, vector<16x32xbf16>
    %cst_48 = arith.constant dense<0.000000e+00> : vector<16x32xf32>
    %98 = tpu.matmul %93, %97, %cst_48 {dimension_numbers = #tpu.dot_dimension_numbers<[1], [0], [0], [1], [0, 0, 1, 1], [], []>} : vector<16x16xbf16>, vector<16x32xbf16>, vector<16x32xf32> -> vector<16x32xf32>
    %c0_49 = arith.constant 0 : index
    %c0_50 = arith.constant 0 : index
    %99 = vector.load %arg14[%c0_49, %c0_50] : memref<16x32xbf16, #tpu.memory_space<vmem>>, vector<16x32xbf16>
    %cst_51 = arith.constant dense<0.000000e+00> : vector<16x32xf32>
    %100 = tpu.matmul %90, %99, %cst_51 {dimension_numbers = #tpu.dot_dimension_numbers<[1], [0], [0], [1], [0, 0, 1, 1], [], []>} : vector<16x16xbf16>, vector<16x32xbf16>, vector<16x32xf32> -> vector<16x32xf32>
    %101 = arith.addf %98, %100 : vector<16x32xf32>
    %c0_52 = arith.constant 0 : index
    %c0_53 = arith.constant 0 : index
    %102 = vector.load %arg15[%c0_52, %c0_53] : memref<16x32xbf16, #tpu.memory_space<vmem>>, vector<16x32xbf16>
    %cst_54 = arith.constant dense<0.000000e+00> : vector<16x32xf32>
    %103 = tpu.matmul %96, %102, %cst_54 {dimension_numbers = #tpu.dot_dimension_numbers<[1], [0], [0], [1], [0, 0, 1, 1], [], []>} : vector<16x16xbf16>, vector<16x32xbf16>, vector<16x32xf32> -> vector<16x32xf32>
    %104 = arith.addf %101, %103 : vector<16x32xf32>
    %c0_55 = arith.constant 0 : index
    %c0_56 = arith.constant 0 : index
    %105 = vector.load %arg16[%c0_55, %c0_56] : memref<1x32xf32, #tpu.memory_space<vmem>>, vector<1x32xf32>
    %106 = vector.broadcast %105 : vector<1x32xf32> to vector<16x32xf32>
    %107 = arith.addf %104, %106 : vector<16x32xf32>
    %c0_57 = arith.constant 0 : index
    %c0_58 = arith.constant 0 : index
    %108 = vector.load %arg17[%c0_57, %c0_58] : memref<1x32xf32, #tpu.memory_space<vmem>>, vector<1x32xf32>
    %c0_59 = arith.constant 0 : index
    %c0_60 = arith.constant 0 : index
    %109 = vector.load %arg18[%c0_59, %c0_60] : memref<1x32xf32, #tpu.memory_space<vmem>>, vector<1x32xf32>
    %cst_61 = arith.constant dense<0.000000e+00> : vector<16xf32>
    %110 = vector.multi_reduction <add>, %107, %cst_61 [1] : vector<16x32xf32> to vector<16xf32>
    %111 = vector.shape_cast %110 : vector<16xf32> to vector<16x1xf32>
    %cst_62 = arith.constant 3.200000e+01 : f32
    %112 = vector.broadcast %cst_62 : f32 to vector<16x1xf32>
    %113 = arith.divf %111, %112 : vector<16x1xf32>
    %114 = vector.broadcast %113 : vector<16x1xf32> to vector<16x32xf32>
    %115 = arith.subf %107, %114 : vector<16x32xf32>
    %116 = arith.mulf %115, %115 : vector<16x32xf32>
    %cst_63 = arith.constant dense<0.000000e+00> : vector<16xf32>
    %117 = vector.multi_reduction <add>, %116, %cst_63 [1] : vector<16x32xf32> to vector<16xf32>
    %118 = vector.shape_cast %117 : vector<16xf32> to vector<16x1xf32>
    %cst_64 = arith.constant 3.200000e+01 : f32
    %119 = vector.broadcast %cst_64 : f32 to vector<16x1xf32>
    %120 = arith.divf %118, %119 : vector<16x1xf32>
    %121 = vector.broadcast %113 : vector<16x1xf32> to vector<16x32xf32>
    %122 = arith.subf %107, %121 : vector<16x32xf32>
    %cst_65 = arith.constant 9.99999974E-6 : f32
    %123 = vector.broadcast %cst_65 : f32 to vector<16x1xf32>
    %124 = arith.addf %120, %123 : vector<16x1xf32>
    %125 = math.rsqrt %124 : vector<16x1xf32>
    %126 = vector.broadcast %125 : vector<16x1xf32> to vector<16x32xf32>
    %127 = arith.mulf %122, %126 : vector<16x32xf32>
    %128 = vector.broadcast %108 : vector<1x32xf32> to vector<16x32xf32>
    %129 = arith.mulf %127, %128 : vector<16x32xf32>
    %130 = vector.broadcast %109 : vector<1x32xf32> to vector<16x32xf32>
    %131 = arith.addf %129, %130 : vector<16x32xf32>
    %cst_66 = arith.constant 5.000000e-01 : f32
    %132 = vector.broadcast %cst_66 : f32 to vector<16x32xf32>
    %133 = arith.mulf %132, %131 : vector<16x32xf32>
    %cst_67 = arith.constant 4.471500e-02 : f32
    %134 = vector.broadcast %cst_67 : f32 to vector<16x32xf32>
    %135 = arith.mulf %134, %131 : vector<16x32xf32>
    %136 = arith.mulf %135, %131 : vector<16x32xf32>
    %137 = arith.mulf %136, %131 : vector<16x32xf32>
    %138 = arith.addf %131, %137 : vector<16x32xf32>
    %cst_68 = arith.constant 0.797884583 : f32
    %139 = vector.broadcast %cst_68 : f32 to vector<16x32xf32>
    %140 = arith.mulf %139, %138 : vector<16x32xf32>
    %141 = math.tanh %140 : vector<16x32xf32>
    %cst_69 = arith.constant 1.000000e+00 : f32
    %142 = vector.broadcast %cst_69 : f32 to vector<16x32xf32>
    %143 = arith.addf %142, %141 : vector<16x32xf32>
    %144 = arith.mulf %133, %143 : vector<16x32xf32>
    %145 = arith.truncf %144 : vector<16x32xf32> to vector<16x32xbf16>
    %c0_70 = arith.constant 0 : index
    %c0_71 = arith.constant 0 : index
    %146 = vector.load %arg19[%c0_70, %c0_71] : memref<32x32xbf16, #tpu.memory_space<vmem>>, vector<32x32xbf16>
    %cst_72 = arith.constant dense<0.000000e+00> : vector<16x32xf32>
    %147 = tpu.matmul %145, %146, %cst_72 {dimension_numbers = #tpu.dot_dimension_numbers<[1], [0], [0], [1], [0, 0, 1, 1], [], []>} : vector<16x32xbf16>, vector<32x32xbf16>, vector<16x32xf32> -> vector<16x32xf32>
    %c0_73 = arith.constant 0 : index
    %c0_74 = arith.constant 0 : index
    %148 = vector.load %arg20[%c0_73, %c0_74] : memref<1x32xf32, #tpu.memory_space<vmem>>, vector<1x32xf32>
    %149 = vector.broadcast %148 : vector<1x32xf32> to vector<16x32xf32>
    %150 = arith.addf %147, %149 : vector<16x32xf32>
    %151 = arith.truncf %150 : vector<16x32xf32> to vector<16x32xbf16>
    %c0_75 = arith.constant 0 : index
    %c0_76 = arith.constant 0 : index
    %152 = vector.load %arg21[%c0_75, %c0_76] : memref<32x32xbf16, #tpu.memory_space<vmem>>, vector<32x32xbf16>
    %cst_77 = arith.constant dense<0.000000e+00> : vector<16x32xf32>
    %153 = tpu.matmul %151, %152, %cst_77 {dimension_numbers = #tpu.dot_dimension_numbers<[1], [0], [0], [1], [0, 0, 1, 1], [], []>} : vector<16x32xbf16>, vector<32x32xbf16>, vector<16x32xf32> -> vector<16x32xf32>
    %c0_78 = arith.constant 0 : index
    %c0_79 = arith.constant 0 : index
    %154 = vector.load %arg22[%c0_78, %c0_79] : memref<1x32xf32, #tpu.memory_space<vmem>>, vector<1x32xf32>
    %155 = vector.broadcast %154 : vector<1x32xf32> to vector<16x32xf32>
    %156 = arith.addf %153, %155 : vector<16x32xf32>
    %c0_80 = arith.constant 0 : index
    %c0_81 = arith.constant 0 : index
    %157 = vector.load %arg23[%c0_80, %c0_81] : memref<16x8xf32, #tpu.memory_space<vmem>>, vector<16x8xf32>
    %c0_82 = arith.constant 0 : index
    %c0_83 = arith.constant 0 : index
    %158 = vector.load %arg24[%c0_82, %c0_83] : memref<16x8xf32, #tpu.memory_space<vmem>>, vector<16x8xf32>
    %c0_84 = arith.constant 0 : index
    %c0_85 = arith.constant 0 : index
    %c0_86 = arith.constant 0 : index
    %159 = vector.load %arg25[%c0_84, %c0_85, %c0_86] : memref<2x1x32xf32, #tpu.memory_space<vmem>>, vector<1x1x32xf32>
    %160 = vector.shape_cast %159 : vector<1x1x32xf32> to vector<1x32xf32>
    %c0_87 = arith.constant 0 : index
    %c0_88 = arith.constant 0 : index
    %c0_89 = arith.constant 0 : index
    %161 = vector.load %arg26[%c0_87, %c0_88, %c0_89] : memref<2x1x32xf32, #tpu.memory_space<vmem>>, vector<1x1x32xf32>
    %162 = vector.shape_cast %161 : vector<1x1x32xf32> to vector<1x32xf32>
    %cst_90 = arith.constant dense<0.000000e+00> : vector<16xf32>
    %163 = vector.multi_reduction <add>, %156, %cst_90 [1] : vector<16x32xf32> to vector<16xf32>
    %164 = vector.shape_cast %163 : vector<16xf32> to vector<16x1xf32>
    %cst_91 = arith.constant 3.200000e+01 : f32
    %165 = vector.broadcast %cst_91 : f32 to vector<16x1xf32>
    %166 = arith.divf %164, %165 : vector<16x1xf32>
    %167 = vector.broadcast %166 : vector<16x1xf32> to vector<16x32xf32>
    %168 = arith.subf %156, %167 : vector<16x32xf32>
    %169 = arith.mulf %168, %168 : vector<16x32xf32>
    %cst_92 = arith.constant dense<0.000000e+00> : vector<16xf32>
    %170 = vector.multi_reduction <add>, %169, %cst_92 [1] : vector<16x32xf32> to vector<16xf32>
    %171 = vector.shape_cast %170 : vector<16xf32> to vector<16x1xf32>
    %cst_93 = arith.constant 3.200000e+01 : f32
    %172 = vector.broadcast %cst_93 : f32 to vector<16x1xf32>
    %173 = arith.divf %171, %172 : vector<16x1xf32>
    %174 = vector.broadcast %166 : vector<16x1xf32> to vector<16x32xf32>
    %175 = arith.subf %156, %174 : vector<16x32xf32>
    %cst_94 = arith.constant 9.99999974E-6 : f32
    %176 = vector.broadcast %cst_94 : f32 to vector<16x1xf32>
    %177 = arith.addf %173, %176 : vector<16x1xf32>
    %178 = math.rsqrt %177 : vector<16x1xf32>
    %179 = vector.broadcast %178 : vector<16x1xf32> to vector<16x32xf32>
    %180 = arith.mulf %175, %179 : vector<16x32xf32>
    %181 = vector.broadcast %160 : vector<1x32xf32> to vector<16x32xf32>
    %182 = arith.mulf %180, %181 : vector<16x32xf32>
    %183 = vector.broadcast %162 : vector<1x32xf32> to vector<16x32xf32>
    %184 = arith.addf %182, %183 : vector<16x32xf32>
    %185 = arith.truncf %184 : vector<16x32xf32> to vector<16x32xbf16>
    %cst_95 = arith.constant 0.000000e+00 : f32
    %186 = vector.broadcast %cst_95 : f32 to vector<16x32xf32>
    %c0_96 = arith.constant 0 : index
    %c0_97 = arith.constant 0 : index
    %c0_98 = arith.constant 0 : index
    %c0_99 = arith.constant 0 : index
    %187 = vector.load %arg27[%c0_96, %c0_97, %c0_98, %c0_99] : memref<2x4x32x8xbf16, #tpu.memory_space<vmem>>, vector<1x1x32x8xbf16>
    %188 = vector.shape_cast %187 : vector<1x1x32x8xbf16> to vector<32x8xbf16>
    %cst_100 = arith.constant dense<0.000000e+00> : vector<16x8xf32>
    %189 = tpu.matmul %185, %188, %cst_100 {dimension_numbers = #tpu.dot_dimension_numbers<[1], [0], [0], [1], [0, 0, 1, 1], [], []>} : vector<16x32xbf16>, vector<32x8xbf16>, vector<16x8xf32> -> vector<16x8xf32>
    %c0_101 = arith.constant 0 : index
    %c0_102 = arith.constant 0 : index
    %c0_103 = arith.constant 0 : index
    %c0_104 = arith.constant 0 : index
    %190 = vector.load %arg28[%c0_101, %c0_102, %c0_103, %c0_104] : memref<2x4x1x8xf32, #tpu.memory_space<vmem>>, vector<1x1x1x8xf32>
    %191 = vector.shape_cast %190 : vector<1x1x1x8xf32> to vector<1x8xf32>
    %192 = vector.broadcast %191 : vector<1x8xf32> to vector<16x8xf32>
    %193 = arith.addf %189, %192 : vector<16x8xf32>
    %c0_105 = arith.constant 0 : index
    %c0_106 = arith.constant 0 : index
    %c0_107 = arith.constant 0 : index
    %c0_108 = arith.constant 0 : index
    %194 = vector.load %arg29[%c0_105, %c0_106, %c0_107, %c0_108] : memref<2x4x32x8xbf16, #tpu.memory_space<vmem>>, vector<1x1x32x8xbf16>
    %195 = vector.shape_cast %194 : vector<1x1x32x8xbf16> to vector<32x8xbf16>
    %cst_109 = arith.constant dense<0.000000e+00> : vector<16x8xf32>
    %196 = tpu.matmul %185, %195, %cst_109 {dimension_numbers = #tpu.dot_dimension_numbers<[1], [0], [0], [1], [0, 0, 1, 1], [], []>} : vector<16x32xbf16>, vector<32x8xbf16>, vector<16x8xf32> -> vector<16x8xf32>
    %c0_110 = arith.constant 0 : index
    %c0_111 = arith.constant 0 : index
    %c0_112 = arith.constant 0 : index
    %c0_113 = arith.constant 0 : index
    %197 = vector.load %arg30[%c0_110, %c0_111, %c0_112, %c0_113] : memref<2x4x1x8xf32, #tpu.memory_space<vmem>>, vector<1x1x1x8xf32>
    %198 = vector.shape_cast %197 : vector<1x1x1x8xf32> to vector<1x8xf32>
    %199 = vector.broadcast %198 : vector<1x8xf32> to vector<16x8xf32>
    %200 = arith.addf %196, %199 : vector<16x8xf32>
    %201 = arith.mulf %193, %157 : vector<16x8xf32>
    %202 = arith.mulf %200, %158 : vector<16x8xf32>
    %203 = arith.addf %201, %202 : vector<16x8xf32>
    %204 = arith.truncf %203 : vector<16x8xf32> to vector<16x8xbf16>
    %c0_114 = arith.constant 0 : index
    %c0_115 = arith.constant 0 : index
    %c0_116 = arith.constant 0 : index
    %c0_117 = arith.constant 0 : index
    %205 = vector.load %arg31[%c0_114, %c0_115, %c0_116, %c0_117] : memref<2x4x32x8xbf16, #tpu.memory_space<vmem>>, vector<1x1x32x8xbf16>
    %206 = vector.shape_cast %205 : vector<1x1x32x8xbf16> to vector<32x8xbf16>
    %cst_118 = arith.constant dense<0.000000e+00> : vector<16x8xf32>
    %207 = tpu.matmul %185, %206, %cst_118 {dimension_numbers = #tpu.dot_dimension_numbers<[1], [0], [0], [1], [0, 0, 1, 1], [], []>} : vector<16x32xbf16>, vector<32x8xbf16>, vector<16x8xf32> -> vector<16x8xf32>
    %c0_119 = arith.constant 0 : index
    %c0_120 = arith.constant 0 : index
    %c0_121 = arith.constant 0 : index
    %c0_122 = arith.constant 0 : index
    %208 = vector.load %arg32[%c0_119, %c0_120, %c0_121, %c0_122] : memref<2x4x1x8xf32, #tpu.memory_space<vmem>>, vector<1x1x1x8xf32>
    %209 = vector.shape_cast %208 : vector<1x1x1x8xf32> to vector<1x8xf32>
    %210 = vector.broadcast %209 : vector<1x8xf32> to vector<16x8xf32>
    %211 = arith.addf %207, %210 : vector<16x8xf32>
    %c0_123 = arith.constant 0 : index
    %c0_124 = arith.constant 0 : index
    %c0_125 = arith.constant 0 : index
    %c0_126 = arith.constant 0 : index
    %212 = vector.load %arg33[%c0_123, %c0_124, %c0_125, %c0_126] : memref<2x4x32x8xbf16, #tpu.memory_space<vmem>>, vector<1x1x32x8xbf16>
    %213 = vector.shape_cast %212 : vector<1x1x32x8xbf16> to vector<32x8xbf16>
    %cst_127 = arith.constant dense<0.000000e+00> : vector<16x8xf32>
    %214 = tpu.matmul %185, %213, %cst_127 {dimension_numbers = #tpu.dot_dimension_numbers<[1], [0], [0], [1], [0, 0, 1, 1], [], []>} : vector<16x32xbf16>, vector<32x8xbf16>, vector<16x8xf32> -> vector<16x8xf32>
    %c0_128 = arith.constant 0 : index
    %c0_129 = arith.constant 0 : index
    %c0_130 = arith.constant 0 : index
    %c0_131 = arith.constant 0 : index
    %215 = vector.load %arg34[%c0_128, %c0_129, %c0_130, %c0_131] : memref<2x4x1x8xf32, #tpu.memory_space<vmem>>, vector<1x1x1x8xf32>
    %216 = vector.shape_cast %215 : vector<1x1x1x8xf32> to vector<1x8xf32>
    %217 = vector.broadcast %216 : vector<1x8xf32> to vector<16x8xf32>
    %218 = arith.addf %214, %217 : vector<16x8xf32>
    %219 = arith.mulf %211, %157 : vector<16x8xf32>
    %220 = arith.mulf %218, %158 : vector<16x8xf32>
    %221 = arith.addf %219, %220 : vector<16x8xf32>
    %222 = arith.truncf %221 : vector<16x8xf32> to vector<16x8xbf16>
    %c0_132 = arith.constant 0 : index
    %c0_133 = arith.constant 0 : index
    %c0_134 = arith.constant 0 : index
    %c0_135 = arith.constant 0 : index
    %223 = vector.load %arg35[%c0_132, %c0_133, %c0_134, %c0_135] : memref<2x4x32x8xbf16, #tpu.memory_space<vmem>>, vector<1x1x32x8xbf16>
    %224 = vector.shape_cast %223 : vector<1x1x32x8xbf16> to vector<32x8xbf16>
    %cst_136 = arith.constant dense<0.000000e+00> : vector<16x8xf32>
    %225 = tpu.matmul %185, %224, %cst_136 {dimension_numbers = #tpu.dot_dimension_numbers<[1], [0], [0], [1], [0, 0, 1, 1], [], []>} : vector<16x32xbf16>, vector<32x8xbf16>, vector<16x8xf32> -> vector<16x8xf32>
    %c0_137 = arith.constant 0 : index
    %c0_138 = arith.constant 0 : index
    %c0_139 = arith.constant 0 : index
    %c0_140 = arith.constant 0 : index
    %226 = vector.load %arg36[%c0_137, %c0_138, %c0_139, %c0_140] : memref<2x4x1x8xf32, #tpu.memory_space<vmem>>, vector<1x1x1x8xf32>
    %227 = vector.shape_cast %226 : vector<1x1x1x8xf32> to vector<1x8xf32>
    %228 = vector.broadcast %227 : vector<1x8xf32> to vector<16x8xf32>
    %229 = arith.addf %225, %228 : vector<16x8xf32>
    %230 = arith.truncf %229 : vector<16x8xf32> to vector<16x8xbf16>
    %cst_141 = arith.constant dense<0.000000e+00> : vector<16x16xf32>
    %231 = tpu.matmul %204, %222, %cst_141 {dimension_numbers = #tpu.dot_dimension_numbers<[1], [1], [0], [0], [0, 0, 1, 0], [], []>} : vector<16x8xbf16>, vector<16x8xbf16>, vector<16x16xf32> -> vector<16x16xf32>
    %232 = vector.broadcast %3 : vector<1x16xf32> to vector<16x16xf32>
    %233 = arith.addf %231, %232 : vector<16x16xf32>
    %cst_142 = arith.constant dense<0xFF800000> : vector<16xf32>
    %234 = vector.multi_reduction <maximumf>, %233, %cst_142 [1] : vector<16x16xf32> to vector<16xf32>
    %235 = vector.shape_cast %234 : vector<16xf32> to vector<16x1xf32>
    %236 = vector.broadcast %235 : vector<16x1xf32> to vector<16x16xf32>
    %237 = arith.subf %233, %236 : vector<16x16xf32>
    %238 = math.exp %237 : vector<16x16xf32>
    %cst_143 = arith.constant dense<0.000000e+00> : vector<16xf32>
    %239 = vector.multi_reduction <add>, %238, %cst_143 [1] : vector<16x16xf32> to vector<16xf32>
    %240 = vector.shape_cast %239 : vector<16xf32> to vector<16x1xf32>
    %cst_144 = arith.constant 1.000000e-30 : f32
    %241 = vector.broadcast %cst_144 : f32 to vector<16x1xf32>
    %242 = arith.maximumf %240, %241 : vector<16x1xf32>
    %243 = tpu.reciprocal %242 {approx = true} : vector<16x1xf32> -> vector<16x1xf32>
    %244 = vector.broadcast %243 : vector<16x1xf32> to vector<16x16xf32>
    %245 = arith.mulf %238, %244 : vector<16x16xf32>
    %246 = arith.truncf %245 : vector<16x16xf32> to vector<16x16xbf16>
    %cst_145 = arith.constant dense<0.000000e+00> : vector<16x8xf32>
    %247 = tpu.matmul %246, %230, %cst_145 {dimension_numbers = #tpu.dot_dimension_numbers<[1], [0], [0], [1], [0, 0, 1, 1], [], []>} : vector<16x16xbf16>, vector<16x8xbf16>, vector<16x8xf32> -> vector<16x8xf32>
    %248 = arith.truncf %247 : vector<16x8xf32> to vector<16x8xbf16>
    %c0_146 = arith.constant 0 : index
    %c0_147 = arith.constant 0 : index
    %c0_148 = arith.constant 0 : index
    %c0_149 = arith.constant 0 : index
    %249 = vector.load %arg37[%c0_146, %c0_147, %c0_148, %c0_149] : memref<2x4x8x32xbf16, #tpu.memory_space<vmem>>, vector<1x1x8x32xbf16>
    %250 = vector.shape_cast %249 : vector<1x1x8x32xbf16> to vector<8x32xbf16>
    %cst_150 = arith.constant dense<0.000000e+00> : vector<16x32xf32>
    %251 = tpu.matmul %248, %250, %cst_150 {dimension_numbers = #tpu.dot_dimension_numbers<[1], [0], [0], [1], [0, 0, 1, 1], [], []>} : vector<16x8xbf16>, vector<8x32xbf16>, vector<16x32xf32> -> vector<16x32xf32>
    %252 = arith.addf %186, %251 : vector<16x32xf32>
    %c0_151 = arith.constant 0 : index
    %c1 = arith.constant 1 : index
    %c0_152 = arith.constant 0 : index
    %c0_153 = arith.constant 0 : index
    %253 = vector.load %arg27[%c0_151, %c1, %c0_152, %c0_153] : memref<2x4x32x8xbf16, #tpu.memory_space<vmem>>, vector<1x1x32x8xbf16>
    %254 = vector.shape_cast %253 : vector<1x1x32x8xbf16> to vector<32x8xbf16>
    %cst_154 = arith.constant dense<0.000000e+00> : vector<16x8xf32>
    %255 = tpu.matmul %185, %254, %cst_154 {dimension_numbers = #tpu.dot_dimension_numbers<[1], [0], [0], [1], [0, 0, 1, 1], [], []>} : vector<16x32xbf16>, vector<32x8xbf16>, vector<16x8xf32> -> vector<16x8xf32>
    %c0_155 = arith.constant 0 : index
    %c1_156 = arith.constant 1 : index
    %c0_157 = arith.constant 0 : index
    %c0_158 = arith.constant 0 : index
    %256 = vector.load %arg28[%c0_155, %c1_156, %c0_157, %c0_158] : memref<2x4x1x8xf32, #tpu.memory_space<vmem>>, vector<1x1x1x8xf32>
    %257 = vector.shape_cast %256 : vector<1x1x1x8xf32> to vector<1x8xf32>
    %258 = vector.broadcast %257 : vector<1x8xf32> to vector<16x8xf32>
    %259 = arith.addf %255, %258 : vector<16x8xf32>
    %c0_159 = arith.constant 0 : index
    %c1_160 = arith.constant 1 : index
    %c0_161 = arith.constant 0 : index
    %c0_162 = arith.constant 0 : index
    %260 = vector.load %arg29[%c0_159, %c1_160, %c0_161, %c0_162] : memref<2x4x32x8xbf16, #tpu.memory_space<vmem>>, vector<1x1x32x8xbf16>
    %261 = vector.shape_cast %260 : vector<1x1x32x8xbf16> to vector<32x8xbf16>
    %cst_163 = arith.constant dense<0.000000e+00> : vector<16x8xf32>
    %262 = tpu.matmul %185, %261, %cst_163 {dimension_numbers = #tpu.dot_dimension_numbers<[1], [0], [0], [1], [0, 0, 1, 1], [], []>} : vector<16x32xbf16>, vector<32x8xbf16>, vector<16x8xf32> -> vector<16x8xf32>
    %c0_164 = arith.constant 0 : index
    %c1_165 = arith.constant 1 : index
    %c0_166 = arith.constant 0 : index
    %c0_167 = arith.constant 0 : index
    %263 = vector.load %arg30[%c0_164, %c1_165, %c0_166, %c0_167] : memref<2x4x1x8xf32, #tpu.memory_space<vmem>>, vector<1x1x1x8xf32>
    %264 = vector.shape_cast %263 : vector<1x1x1x8xf32> to vector<1x8xf32>
    %265 = vector.broadcast %264 : vector<1x8xf32> to vector<16x8xf32>
    %266 = arith.addf %262, %265 : vector<16x8xf32>
    %267 = arith.mulf %259, %157 : vector<16x8xf32>
    %268 = arith.mulf %266, %158 : vector<16x8xf32>
    %269 = arith.addf %267, %268 : vector<16x8xf32>
    %270 = arith.truncf %269 : vector<16x8xf32> to vector<16x8xbf16>
    %c0_168 = arith.constant 0 : index
    %c1_169 = arith.constant 1 : index
    %c0_170 = arith.constant 0 : index
    %c0_171 = arith.constant 0 : index
    %271 = vector.load %arg31[%c0_168, %c1_169, %c0_170, %c0_171] : memref<2x4x32x8xbf16, #tpu.memory_space<vmem>>, vector<1x1x32x8xbf16>
    %272 = vector.shape_cast %271 : vector<1x1x32x8xbf16> to vector<32x8xbf16>
    %cst_172 = arith.constant dense<0.000000e+00> : vector<16x8xf32>
    %273 = tpu.matmul %185, %272, %cst_172 {dimension_numbers = #tpu.dot_dimension_numbers<[1], [0], [0], [1], [0, 0, 1, 1], [], []>} : vector<16x32xbf16>, vector<32x8xbf16>, vector<16x8xf32> -> vector<16x8xf32>
    %c0_173 = arith.constant 0 : index
    %c1_174 = arith.constant 1 : index
    %c0_175 = arith.constant 0 : index
    %c0_176 = arith.constant 0 : index
    %274 = vector.load %arg32[%c0_173, %c1_174, %c0_175, %c0_176] : memref<2x4x1x8xf32, #tpu.memory_space<vmem>>, vector<1x1x1x8xf32>
    %275 = vector.shape_cast %274 : vector<1x1x1x8xf32> to vector<1x8xf32>
    %276 = vector.broadcast %275 : vector<1x8xf32> to vector<16x8xf32>
    %277 = arith.addf %273, %276 : vector<16x8xf32>
    %c0_177 = arith.constant 0 : index
    %c1_178 = arith.constant 1 : index
    %c0_179 = arith.constant 0 : index
    %c0_180 = arith.constant 0 : index
    %278 = vector.load %arg33[%c0_177, %c1_178, %c0_179, %c0_180] : memref<2x4x32x8xbf16, #tpu.memory_space<vmem>>, vector<1x1x32x8xbf16>
    %279 = vector.shape_cast %278 : vector<1x1x32x8xbf16> to vector<32x8xbf16>
    %cst_181 = arith.constant dense<0.000000e+00> : vector<16x8xf32>
    %280 = tpu.matmul %185, %279, %cst_181 {dimension_numbers = #tpu.dot_dimension_numbers<[1], [0], [0], [1], [0, 0, 1, 1], [], []>} : vector<16x32xbf16>, vector<32x8xbf16>, vector<16x8xf32> -> vector<16x8xf32>
    %c0_182 = arith.constant 0 : index
    %c1_183 = arith.constant 1 : index
    %c0_184 = arith.constant 0 : index
    %c0_185 = arith.constant 0 : index
    %281 = vector.load %arg34[%c0_182, %c1_183, %c0_184, %c0_185] : memref<2x4x1x8xf32, #tpu.memory_space<vmem>>, vector<1x1x1x8xf32>
    %282 = vector.shape_cast %281 : vector<1x1x1x8xf32> to vector<1x8xf32>
    %283 = vector.broadcast %282 : vector<1x8xf32> to vector<16x8xf32>
    %284 = arith.addf %280, %283 : vector<16x8xf32>
    %285 = arith.mulf %277, %157 : vector<16x8xf32>
    %286 = arith.mulf %284, %158 : vector<16x8xf32>
    %287 = arith.addf %285, %286 : vector<16x8xf32>
    %288 = arith.truncf %287 : vector<16x8xf32> to vector<16x8xbf16>
    %c0_186 = arith.constant 0 : index
    %c1_187 = arith.constant 1 : index
    %c0_188 = arith.constant 0 : index
    %c0_189 = arith.constant 0 : index
    %289 = vector.load %arg35[%c0_186, %c1_187, %c0_188, %c0_189] : memref<2x4x32x8xbf16, #tpu.memory_space<vmem>>, vector<1x1x32x8xbf16>
    %290 = vector.shape_cast %289 : vector<1x1x32x8xbf16> to vector<32x8xbf16>
    %cst_190 = arith.constant dense<0.000000e+00> : vector<16x8xf32>
    %291 = tpu.matmul %185, %290, %cst_190 {dimension_numbers = #tpu.dot_dimension_numbers<[1], [0], [0], [1], [0, 0, 1, 1], [], []>} : vector<16x32xbf16>, vector<32x8xbf16>, vector<16x8xf32> -> vector<16x8xf32>
    %c0_191 = arith.constant 0 : index
    %c1_192 = arith.constant 1 : index
    %c0_193 = arith.constant 0 : index
    %c0_194 = arith.constant 0 : index
    %292 = vector.load %arg36[%c0_191, %c1_192, %c0_193, %c0_194] : memref<2x4x1x8xf32, #tpu.memory_space<vmem>>, vector<1x1x1x8xf32>
    %293 = vector.shape_cast %292 : vector<1x1x1x8xf32> to vector<1x8xf32>
    %294 = vector.broadcast %293 : vector<1x8xf32> to vector<16x8xf32>
    %295 = arith.addf %291, %294 : vector<16x8xf32>
    %296 = arith.truncf %295 : vector<16x8xf32> to vector<16x8xbf16>
    %cst_195 = arith.constant dense<0.000000e+00> : vector<16x16xf32>
    %297 = tpu.matmul %270, %288, %cst_195 {dimension_numbers = #tpu.dot_dimension_numbers<[1], [1], [0], [0], [0, 0, 1, 0], [], []>} : vector<16x8xbf16>, vector<16x8xbf16>, vector<16x16xf32> -> vector<16x16xf32>
    %298 = vector.broadcast %3 : vector<1x16xf32> to vector<16x16xf32>
    %299 = arith.addf %297, %298 : vector<16x16xf32>
    %cst_196 = arith.constant dense<0xFF800000> : vector<16xf32>
    %300 = vector.multi_reduction <maximumf>, %299, %cst_196 [1] : vector<16x16xf32> to vector<16xf32>
    %301 = vector.shape_cast %300 : vector<16xf32> to vector<16x1xf32>
    %302 = vector.broadcast %301 : vector<16x1xf32> to vector<16x16xf32>
    %303 = arith.subf %299, %302 : vector<16x16xf32>
    %304 = math.exp %303 : vector<16x16xf32>
    %cst_197 = arith.constant dense<0.000000e+00> : vector<16xf32>
    %305 = vector.multi_reduction <add>, %304, %cst_197 [1] : vector<16x16xf32> to vector<16xf32>
    %306 = vector.shape_cast %305 : vector<16xf32> to vector<16x1xf32>
    %cst_198 = arith.constant 1.000000e-30 : f32
    %307 = vector.broadcast %cst_198 : f32 to vector<16x1xf32>
    %308 = arith.maximumf %306, %307 : vector<16x1xf32>
    %309 = tpu.reciprocal %308 {approx = true} : vector<16x1xf32> -> vector<16x1xf32>
    %310 = vector.broadcast %309 : vector<16x1xf32> to vector<16x16xf32>
    %311 = arith.mulf %304, %310 : vector<16x16xf32>
    %312 = arith.truncf %311 : vector<16x16xf32> to vector<16x16xbf16>
    %cst_199 = arith.constant dense<0.000000e+00> : vector<16x8xf32>
    %313 = tpu.matmul %312, %296, %cst_199 {dimension_numbers = #tpu.dot_dimension_numbers<[1], [0], [0], [1], [0, 0, 1, 1], [], []>} : vector<16x16xbf16>, vector<16x8xbf16>, vector<16x8xf32> -> vector<16x8xf32>
    %314 = arith.truncf %313 : vector<16x8xf32> to vector<16x8xbf16>
    %c0_200 = arith.constant 0 : index
    %c1_201 = arith.constant 1 : index
    %c0_202 = arith.constant 0 : index
    %c0_203 = arith.constant 0 : index
    %315 = vector.load %arg37[%c0_200, %c1_201, %c0_202, %c0_203] : memref<2x4x8x32xbf16, #tpu.memory_space<vmem>>, vector<1x1x8x32xbf16>
    %316 = vector.shape_cast %315 : vector<1x1x8x32xbf16> to vector<8x32xbf16>
    %cst_204 = arith.constant dense<0.000000e+00> : vector<16x32xf32>
    %317 = tpu.matmul %314, %316, %cst_204 {dimension_numbers = #tpu.dot_dimension_numbers<[1], [0], [0], [1], [0, 0, 1, 1], [], []>} : vector<16x8xbf16>, vector<8x32xbf16>, vector<16x32xf32> -> vector<16x32xf32>
    %318 = arith.addf %252, %317 : vector<16x32xf32>
    %c0_205 = arith.constant 0 : index
    %c2 = arith.constant 2 : index
    %c0_206 = arith.constant 0 : index
    %c0_207 = arith.constant 0 : index
    %319 = vector.load %arg27[%c0_205, %c2, %c0_206, %c0_207] : memref<2x4x32x8xbf16, #tpu.memory_space<vmem>>, vector<1x1x32x8xbf16>
    %320 = vector.shape_cast %319 : vector<1x1x32x8xbf16> to vector<32x8xbf16>
    %cst_208 = arith.constant dense<0.000000e+00> : vector<16x8xf32>
    %321 = tpu.matmul %185, %320, %cst_208 {dimension_numbers = #tpu.dot_dimension_numbers<[1], [0], [0], [1], [0, 0, 1, 1], [], []>} : vector<16x32xbf16>, vector<32x8xbf16>, vector<16x8xf32> -> vector<16x8xf32>
    %c0_209 = arith.constant 0 : index
    %c2_210 = arith.constant 2 : index
    %c0_211 = arith.constant 0 : index
    %c0_212 = arith.constant 0 : index
    %322 = vector.load %arg28[%c0_209, %c2_210, %c0_211, %c0_212] : memref<2x4x1x8xf32, #tpu.memory_space<vmem>>, vector<1x1x1x8xf32>
    %323 = vector.shape_cast %322 : vector<1x1x1x8xf32> to vector<1x8xf32>
    %324 = vector.broadcast %323 : vector<1x8xf32> to vector<16x8xf32>
    %325 = arith.addf %321, %324 : vector<16x8xf32>
    %c0_213 = arith.constant 0 : index
    %c2_214 = arith.constant 2 : index
    %c0_215 = arith.constant 0 : index
    %c0_216 = arith.constant 0 : index
    %326 = vector.load %arg29[%c0_213, %c2_214, %c0_215, %c0_216] : memref<2x4x32x8xbf16, #tpu.memory_space<vmem>>, vector<1x1x32x8xbf16>
    %327 = vector.shape_cast %326 : vector<1x1x32x8xbf16> to vector<32x8xbf16>
    %cst_217 = arith.constant dense<0.000000e+00> : vector<16x8xf32>
    %328 = tpu.matmul %185, %327, %cst_217 {dimension_numbers = #tpu.dot_dimension_numbers<[1], [0], [0], [1], [0, 0, 1, 1], [], []>} : vector<16x32xbf16>, vector<32x8xbf16>, vector<16x8xf32> -> vector<16x8xf32>
    %c0_218 = arith.constant 0 : index
    %c2_219 = arith.constant 2 : index
    %c0_220 = arith.constant 0 : index
    %c0_221 = arith.constant 0 : index
    %329 = vector.load %arg30[%c0_218, %c2_219, %c0_220, %c0_221] : memref<2x4x1x8xf32, #tpu.memory_space<vmem>>, vector<1x1x1x8xf32>
    %330 = vector.shape_cast %329 : vector<1x1x1x8xf32> to vector<1x8xf32>
    %331 = vector.broadcast %330 : vector<1x8xf32> to vector<16x8xf32>
    %332 = arith.addf %328, %331 : vector<16x8xf32>
    %333 = arith.mulf %325, %157 : vector<16x8xf32>
    %334 = arith.mulf %332, %158 : vector<16x8xf32>
    %335 = arith.addf %333, %334 : vector<16x8xf32>
    %336 = arith.truncf %335 : vector<16x8xf32> to vector<16x8xbf16>
    %c0_222 = arith.constant 0 : index
    %c2_223 = arith.constant 2 : index
    %c0_224 = arith.constant 0 : index
    %c0_225 = arith.constant 0 : index
    %337 = vector.load %arg31[%c0_222, %c2_223, %c0_224, %c0_225] : memref<2x4x32x8xbf16, #tpu.memory_space<vmem>>, vector<1x1x32x8xbf16>
    %338 = vector.shape_cast %337 : vector<1x1x32x8xbf16> to vector<32x8xbf16>
    %cst_226 = arith.constant dense<0.000000e+00> : vector<16x8xf32>
    %339 = tpu.matmul %185, %338, %cst_226 {dimension_numbers = #tpu.dot_dimension_numbers<[1], [0], [0], [1], [0, 0, 1, 1], [], []>} : vector<16x32xbf16>, vector<32x8xbf16>, vector<16x8xf32> -> vector<16x8xf32>
    %c0_227 = arith.constant 0 : index
    %c2_228 = arith.constant 2 : index
    %c0_229 = arith.constant 0 : index
    %c0_230 = arith.constant 0 : index
    %340 = vector.load %arg32[%c0_227, %c2_228, %c0_229, %c0_230] : memref<2x4x1x8xf32, #tpu.memory_space<vmem>>, vector<1x1x1x8xf32>
    %341 = vector.shape_cast %340 : vector<1x1x1x8xf32> to vector<1x8xf32>
    %342 = vector.broadcast %341 : vector<1x8xf32> to vector<16x8xf32>
    %343 = arith.addf %339, %342 : vector<16x8xf32>
    %c0_231 = arith.constant 0 : index
    %c2_232 = arith.constant 2 : index
    %c0_233 = arith.constant 0 : index
    %c0_234 = arith.constant 0 : index
    %344 = vector.load %arg33[%c0_231, %c2_232, %c0_233, %c0_234] : memref<2x4x32x8xbf16, #tpu.memory_space<vmem>>, vector<1x1x32x8xbf16>
    %345 = vector.shape_cast %344 : vector<1x1x32x8xbf16> to vector<32x8xbf16>
    %cst_235 = arith.constant dense<0.000000e+00> : vector<16x8xf32>
    %346 = tpu.matmul %185, %345, %cst_235 {dimension_numbers = #tpu.dot_dimension_numbers<[1], [0], [0], [1], [0, 0, 1, 1], [], []>} : vector<16x32xbf16>, vector<32x8xbf16>, vector<16x8xf32> -> vector<16x8xf32>
    %c0_236 = arith.constant 0 : index
    %c2_237 = arith.constant 2 : index
    %c0_238 = arith.constant 0 : index
    %c0_239 = arith.constant 0 : index
    %347 = vector.load %arg34[%c0_236, %c2_237, %c0_238, %c0_239] : memref<2x4x1x8xf32, #tpu.memory_space<vmem>>, vector<1x1x1x8xf32>
    %348 = vector.shape_cast %347 : vector<1x1x1x8xf32> to vector<1x8xf32>
    %349 = vector.broadcast %348 : vector<1x8xf32> to vector<16x8xf32>
    %350 = arith.addf %346, %349 : vector<16x8xf32>
    %351 = arith.mulf %343, %157 : vector<16x8xf32>
    %352 = arith.mulf %350, %158 : vector<16x8xf32>
    %353 = arith.addf %351, %352 : vector<16x8xf32>
    %354 = arith.truncf %353 : vector<16x8xf32> to vector<16x8xbf16>
    %c0_240 = arith.constant 0 : index
    %c2_241 = arith.constant 2 : index
    %c0_242 = arith.constant 0 : index
    %c0_243 = arith.constant 0 : index
    %355 = vector.load %arg35[%c0_240, %c2_241, %c0_242, %c0_243] : memref<2x4x32x8xbf16, #tpu.memory_space<vmem>>, vector<1x1x32x8xbf16>
    %356 = vector.shape_cast %355 : vector<1x1x32x8xbf16> to vector<32x8xbf16>
    %cst_244 = arith.constant dense<0.000000e+00> : vector<16x8xf32>
    %357 = tpu.matmul %185, %356, %cst_244 {dimension_numbers = #tpu.dot_dimension_numbers<[1], [0], [0], [1], [0, 0, 1, 1], [], []>} : vector<16x32xbf16>, vector<32x8xbf16>, vector<16x8xf32> -> vector<16x8xf32>
    %c0_245 = arith.constant 0 : index
    %c2_246 = arith.constant 2 : index
    %c0_247 = arith.constant 0 : index
    %c0_248 = arith.constant 0 : index
    %358 = vector.load %arg36[%c0_245, %c2_246, %c0_247, %c0_248] : memref<2x4x1x8xf32, #tpu.memory_space<vmem>>, vector<1x1x1x8xf32>
    %359 = vector.shape_cast %358 : vector<1x1x1x8xf32> to vector<1x8xf32>
    %360 = vector.broadcast %359 : vector<1x8xf32> to vector<16x8xf32>
    %361 = arith.addf %357, %360 : vector<16x8xf32>
    %362 = arith.truncf %361 : vector<16x8xf32> to vector<16x8xbf16>
    %cst_249 = arith.constant dense<0.000000e+00> : vector<16x16xf32>
    %363 = tpu.matmul %336, %354, %cst_249 {dimension_numbers = #tpu.dot_dimension_numbers<[1], [1], [0], [0], [0, 0, 1, 0], [], []>} : vector<16x8xbf16>, vector<16x8xbf16>, vector<16x16xf32> -> vector<16x16xf32>
    %364 = vector.broadcast %3 : vector<1x16xf32> to vector<16x16xf32>
    %365 = arith.addf %363, %364 : vector<16x16xf32>
    %cst_250 = arith.constant dense<0xFF800000> : vector<16xf32>
    %366 = vector.multi_reduction <maximumf>, %365, %cst_250 [1] : vector<16x16xf32> to vector<16xf32>
    %367 = vector.shape_cast %366 : vector<16xf32> to vector<16x1xf32>
    %368 = vector.broadcast %367 : vector<16x1xf32> to vector<16x16xf32>
    %369 = arith.subf %365, %368 : vector<16x16xf32>
    %370 = math.exp %369 : vector<16x16xf32>
    %cst_251 = arith.constant dense<0.000000e+00> : vector<16xf32>
    %371 = vector.multi_reduction <add>, %370, %cst_251 [1] : vector<16x16xf32> to vector<16xf32>
    %372 = vector.shape_cast %371 : vector<16xf32> to vector<16x1xf32>
    %cst_252 = arith.constant 1.000000e-30 : f32
    %373 = vector.broadcast %cst_252 : f32 to vector<16x1xf32>
    %374 = arith.maximumf %372, %373 : vector<16x1xf32>
    %375 = tpu.reciprocal %374 {approx = true} : vector<16x1xf32> -> vector<16x1xf32>
    %376 = vector.broadcast %375 : vector<16x1xf32> to vector<16x16xf32>
    %377 = arith.mulf %370, %376 : vector<16x16xf32>
    %378 = arith.truncf %377 : vector<16x16xf32> to vector<16x16xbf16>
    %cst_253 = arith.constant dense<0.000000e+00> : vector<16x8xf32>
    %379 = tpu.matmul %378, %362, %cst_253 {dimension_numbers = #tpu.dot_dimension_numbers<[1], [0], [0], [1], [0, 0, 1, 1], [], []>} : vector<16x16xbf16>, vector<16x8xbf16>, vector<16x8xf32> -> vector<16x8xf32>
    %380 = arith.truncf %379 : vector<16x8xf32> to vector<16x8xbf16>
    %c0_254 = arith.constant 0 : index
    %c2_255 = arith.constant 2 : index
    %c0_256 = arith.constant 0 : index
    %c0_257 = arith.constant 0 : index
    %381 = vector.load %arg37[%c0_254, %c2_255, %c0_256, %c0_257] : memref<2x4x8x32xbf16, #tpu.memory_space<vmem>>, vector<1x1x8x32xbf16>
    %382 = vector.shape_cast %381 : vector<1x1x8x32xbf16> to vector<8x32xbf16>
    %cst_258 = arith.constant dense<0.000000e+00> : vector<16x32xf32>
    %383 = tpu.matmul %380, %382, %cst_258 {dimension_numbers = #tpu.dot_dimension_numbers<[1], [0], [0], [1], [0, 0, 1, 1], [], []>} : vector<16x8xbf16>, vector<8x32xbf16>, vector<16x32xf32> -> vector<16x32xf32>
    %384 = arith.addf %318, %383 : vector<16x32xf32>
    %c0_259 = arith.constant 0 : index
    %c3 = arith.constant 3 : index
    %c0_260 = arith.constant 0 : index
    %c0_261 = arith.constant 0 : index
    %385 = vector.load %arg27[%c0_259, %c3, %c0_260, %c0_261] : memref<2x4x32x8xbf16, #tpu.memory_space<vmem>>, vector<1x1x32x8xbf16>
    %386 = vector.shape_cast %385 : vector<1x1x32x8xbf16> to vector<32x8xbf16>
    %cst_262 = arith.constant dense<0.000000e+00> : vector<16x8xf32>
    %387 = tpu.matmul %185, %386, %cst_262 {dimension_numbers = #tpu.dot_dimension_numbers<[1], [0], [0], [1], [0, 0, 1, 1], [], []>} : vector<16x32xbf16>, vector<32x8xbf16>, vector<16x8xf32> -> vector<16x8xf32>
    %c0_263 = arith.constant 0 : index
    %c3_264 = arith.constant 3 : index
    %c0_265 = arith.constant 0 : index
    %c0_266 = arith.constant 0 : index
    %388 = vector.load %arg28[%c0_263, %c3_264, %c0_265, %c0_266] : memref<2x4x1x8xf32, #tpu.memory_space<vmem>>, vector<1x1x1x8xf32>
    %389 = vector.shape_cast %388 : vector<1x1x1x8xf32> to vector<1x8xf32>
    %390 = vector.broadcast %389 : vector<1x8xf32> to vector<16x8xf32>
    %391 = arith.addf %387, %390 : vector<16x8xf32>
    %c0_267 = arith.constant 0 : index
    %c3_268 = arith.constant 3 : index
    %c0_269 = arith.constant 0 : index
    %c0_270 = arith.constant 0 : index
    %392 = vector.load %arg29[%c0_267, %c3_268, %c0_269, %c0_270] : memref<2x4x32x8xbf16, #tpu.memory_space<vmem>>, vector<1x1x32x8xbf16>
    %393 = vector.shape_cast %392 : vector<1x1x32x8xbf16> to vector<32x8xbf16>
    %cst_271 = arith.constant dense<0.000000e+00> : vector<16x8xf32>
    %394 = tpu.matmul %185, %393, %cst_271 {dimension_numbers = #tpu.dot_dimension_numbers<[1], [0], [0], [1], [0, 0, 1, 1], [], []>} : vector<16x32xbf16>, vector<32x8xbf16>, vector<16x8xf32> -> vector<16x8xf32>
    %c0_272 = arith.constant 0 : index
    %c3_273 = arith.constant 3 : index
    %c0_274 = arith.constant 0 : index
    %c0_275 = arith.constant 0 : index
    %395 = vector.load %arg30[%c0_272, %c3_273, %c0_274, %c0_275] : memref<2x4x1x8xf32, #tpu.memory_space<vmem>>, vector<1x1x1x8xf32>
    %396 = vector.shape_cast %395 : vector<1x1x1x8xf32> to vector<1x8xf32>
    %397 = vector.broadcast %396 : vector<1x8xf32> to vector<16x8xf32>
    %398 = arith.addf %394, %397 : vector<16x8xf32>
    %399 = arith.mulf %391, %157 : vector<16x8xf32>
    %400 = arith.mulf %398, %158 : vector<16x8xf32>
    %401 = arith.addf %399, %400 : vector<16x8xf32>
    %402 = arith.truncf %401 : vector<16x8xf32> to vector<16x8xbf16>
    %c0_276 = arith.constant 0 : index
    %c3_277 = arith.constant 3 : index
    %c0_278 = arith.constant 0 : index
    %c0_279 = arith.constant 0 : index
    %403 = vector.load %arg31[%c0_276, %c3_277, %c0_278, %c0_279] : memref<2x4x32x8xbf16, #tpu.memory_space<vmem>>, vector<1x1x32x8xbf16>
    %404 = vector.shape_cast %403 : vector<1x1x32x8xbf16> to vector<32x8xbf16>
    %cst_280 = arith.constant dense<0.000000e+00> : vector<16x8xf32>
    %405 = tpu.matmul %185, %404, %cst_280 {dimension_numbers = #tpu.dot_dimension_numbers<[1], [0], [0], [1], [0, 0, 1, 1], [], []>} : vector<16x32xbf16>, vector<32x8xbf16>, vector<16x8xf32> -> vector<16x8xf32>
    %c0_281 = arith.constant 0 : index
    %c3_282 = arith.constant 3 : index
    %c0_283 = arith.constant 0 : index
    %c0_284 = arith.constant 0 : index
    %406 = vector.load %arg32[%c0_281, %c3_282, %c0_283, %c0_284] : memref<2x4x1x8xf32, #tpu.memory_space<vmem>>, vector<1x1x1x8xf32>
    %407 = vector.shape_cast %406 : vector<1x1x1x8xf32> to vector<1x8xf32>
    %408 = vector.broadcast %407 : vector<1x8xf32> to vector<16x8xf32>
    %409 = arith.addf %405, %408 : vector<16x8xf32>
    %c0_285 = arith.constant 0 : index
    %c3_286 = arith.constant 3 : index
    %c0_287 = arith.constant 0 : index
    %c0_288 = arith.constant 0 : index
    %410 = vector.load %arg33[%c0_285, %c3_286, %c0_287, %c0_288] : memref<2x4x32x8xbf16, #tpu.memory_space<vmem>>, vector<1x1x32x8xbf16>
    %411 = vector.shape_cast %410 : vector<1x1x32x8xbf16> to vector<32x8xbf16>
    %cst_289 = arith.constant dense<0.000000e+00> : vector<16x8xf32>
    %412 = tpu.matmul %185, %411, %cst_289 {dimension_numbers = #tpu.dot_dimension_numbers<[1], [0], [0], [1], [0, 0, 1, 1], [], []>} : vector<16x32xbf16>, vector<32x8xbf16>, vector<16x8xf32> -> vector<16x8xf32>
    %c0_290 = arith.constant 0 : index
    %c3_291 = arith.constant 3 : index
    %c0_292 = arith.constant 0 : index
    %c0_293 = arith.constant 0 : index
    %413 = vector.load %arg34[%c0_290, %c3_291, %c0_292, %c0_293] : memref<2x4x1x8xf32, #tpu.memory_space<vmem>>, vector<1x1x1x8xf32>
    %414 = vector.shape_cast %413 : vector<1x1x1x8xf32> to vector<1x8xf32>
    %415 = vector.broadcast %414 : vector<1x8xf32> to vector<16x8xf32>
    %416 = arith.addf %412, %415 : vector<16x8xf32>
    %417 = arith.mulf %409, %157 : vector<16x8xf32>
    %418 = arith.mulf %416, %158 : vector<16x8xf32>
    %419 = arith.addf %417, %418 : vector<16x8xf32>
    %420 = arith.truncf %419 : vector<16x8xf32> to vector<16x8xbf16>
    %c0_294 = arith.constant 0 : index
    %c3_295 = arith.constant 3 : index
    %c0_296 = arith.constant 0 : index
    %c0_297 = arith.constant 0 : index
    %421 = vector.load %arg35[%c0_294, %c3_295, %c0_296, %c0_297] : memref<2x4x32x8xbf16, #tpu.memory_space<vmem>>, vector<1x1x32x8xbf16>
    %422 = vector.shape_cast %421 : vector<1x1x32x8xbf16> to vector<32x8xbf16>
    %cst_298 = arith.constant dense<0.000000e+00> : vector<16x8xf32>
    %423 = tpu.matmul %185, %422, %cst_298 {dimension_numbers = #tpu.dot_dimension_numbers<[1], [0], [0], [1], [0, 0, 1, 1], [], []>} : vector<16x32xbf16>, vector<32x8xbf16>, vector<16x8xf32> -> vector<16x8xf32>
    %c0_299 = arith.constant 0 : index
    %c3_300 = arith.constant 3 : index
    %c0_301 = arith.constant 0 : index
    %c0_302 = arith.constant 0 : index
    %424 = vector.load %arg36[%c0_299, %c3_300, %c0_301, %c0_302] : memref<2x4x1x8xf32, #tpu.memory_space<vmem>>, vector<1x1x1x8xf32>
    %425 = vector.shape_cast %424 : vector<1x1x1x8xf32> to vector<1x8xf32>
    %426 = vector.broadcast %425 : vector<1x8xf32> to vector<16x8xf32>
    %427 = arith.addf %423, %426 : vector<16x8xf32>
    %428 = arith.truncf %427 : vector<16x8xf32> to vector<16x8xbf16>
    %cst_303 = arith.constant dense<0.000000e+00> : vector<16x16xf32>
    %429 = tpu.matmul %402, %420, %cst_303 {dimension_numbers = #tpu.dot_dimension_numbers<[1], [1], [0], [0], [0, 0, 1, 0], [], []>} : vector<16x8xbf16>, vector<16x8xbf16>, vector<16x16xf32> -> vector<16x16xf32>
    %430 = vector.broadcast %3 : vector<1x16xf32> to vector<16x16xf32>
    %431 = arith.addf %429, %430 : vector<16x16xf32>
    %cst_304 = arith.constant dense<0xFF800000> : vector<16xf32>
    %432 = vector.multi_reduction <maximumf>, %431, %cst_304 [1] : vector<16x16xf32> to vector<16xf32>
    %433 = vector.shape_cast %432 : vector<16xf32> to vector<16x1xf32>
    %434 = vector.broadcast %433 : vector<16x1xf32> to vector<16x16xf32>
    %435 = arith.subf %431, %434 : vector<16x16xf32>
    %436 = math.exp %435 : vector<16x16xf32>
    %cst_305 = arith.constant dense<0.000000e+00> : vector<16xf32>
    %437 = vector.multi_reduction <add>, %436, %cst_305 [1] : vector<16x16xf32> to vector<16xf32>
    %438 = vector.shape_cast %437 : vector<16xf32> to vector<16x1xf32>
    %cst_306 = arith.constant 1.000000e-30 : f32
    %439 = vector.broadcast %cst_306 : f32 to vector<16x1xf32>
    %440 = arith.maximumf %438, %439 : vector<16x1xf32>
    %441 = tpu.reciprocal %440 {approx = true} : vector<16x1xf32> -> vector<16x1xf32>
    %442 = vector.broadcast %441 : vector<16x1xf32> to vector<16x16xf32>
    %443 = arith.mulf %436, %442 : vector<16x16xf32>
    %444 = arith.truncf %443 : vector<16x16xf32> to vector<16x16xbf16>
    %cst_307 = arith.constant dense<0.000000e+00> : vector<16x8xf32>
    %445 = tpu.matmul %444, %428, %cst_307 {dimension_numbers = #tpu.dot_dimension_numbers<[1], [0], [0], [1], [0, 0, 1, 1], [], []>} : vector<16x16xbf16>, vector<16x8xbf16>, vector<16x8xf32> -> vector<16x8xf32>
    %446 = arith.truncf %445 : vector<16x8xf32> to vector<16x8xbf16>
    %c0_308 = arith.constant 0 : index
    %c3_309 = arith.constant 3 : index
    %c0_310 = arith.constant 0 : index
    %c0_311 = arith.constant 0 : index
    %447 = vector.load %arg37[%c0_308, %c3_309, %c0_310, %c0_311] : memref<2x4x8x32xbf16, #tpu.memory_space<vmem>>, vector<1x1x8x32xbf16>
    %448 = vector.shape_cast %447 : vector<1x1x8x32xbf16> to vector<8x32xbf16>
    %cst_312 = arith.constant dense<0.000000e+00> : vector<16x32xf32>
    %449 = tpu.matmul %446, %448, %cst_312 {dimension_numbers = #tpu.dot_dimension_numbers<[1], [0], [0], [1], [0, 0, 1, 1], [], []>} : vector<16x8xbf16>, vector<8x32xbf16>, vector<16x32xf32> -> vector<16x32xf32>
    %450 = arith.addf %384, %449 : vector<16x32xf32>
    %451 = arith.addf %156, %450 : vector<16x32xf32>
    %c0_313 = arith.constant 0 : index
    %c0_314 = arith.constant 0 : index
    %c0_315 = arith.constant 0 : index
    %452 = vector.load %arg38[%c0_313, %c0_314, %c0_315] : memref<2x1x32xf32, #tpu.memory_space<vmem>>, vector<1x1x32xf32>
    %453 = vector.shape_cast %452 : vector<1x1x32xf32> to vector<1x32xf32>
    %454 = vector.broadcast %453 : vector<1x32xf32> to vector<16x32xf32>
    %455 = arith.addf %451, %454 : vector<16x32xf32>
    %c0_316 = arith.constant 0 : index
    %c0_317 = arith.constant 0 : index
    %c0_318 = arith.constant 0 : index
    %456 = vector.load %arg39[%c0_316, %c0_317, %c0_318] : memref<2x1x32xf32, #tpu.memory_space<vmem>>, vector<1x1x32xf32>
    %457 = vector.shape_cast %456 : vector<1x1x32xf32> to vector<1x32xf32>
    %c0_319 = arith.constant 0 : index
    %c0_320 = arith.constant 0 : index
    %c0_321 = arith.constant 0 : index
    %458 = vector.load %arg40[%c0_319, %c0_320, %c0_321] : memref<2x1x32xf32, #tpu.memory_space<vmem>>, vector<1x1x32xf32>
    %459 = vector.shape_cast %458 : vector<1x1x32xf32> to vector<1x32xf32>
    %cst_322 = arith.constant dense<0.000000e+00> : vector<16xf32>
    %460 = vector.multi_reduction <add>, %455, %cst_322 [1] : vector<16x32xf32> to vector<16xf32>
    %461 = vector.shape_cast %460 : vector<16xf32> to vector<16x1xf32>
    %cst_323 = arith.constant 3.200000e+01 : f32
    %462 = vector.broadcast %cst_323 : f32 to vector<16x1xf32>
    %463 = arith.divf %461, %462 : vector<16x1xf32>
    %464 = vector.broadcast %463 : vector<16x1xf32> to vector<16x32xf32>
    %465 = arith.subf %455, %464 : vector<16x32xf32>
    %466 = arith.mulf %465, %465 : vector<16x32xf32>
    %cst_324 = arith.constant dense<0.000000e+00> : vector<16xf32>
    %467 = vector.multi_reduction <add>, %466, %cst_324 [1] : vector<16x32xf32> to vector<16xf32>
    %468 = vector.shape_cast %467 : vector<16xf32> to vector<16x1xf32>
    %cst_325 = arith.constant 3.200000e+01 : f32
    %469 = vector.broadcast %cst_325 : f32 to vector<16x1xf32>
    %470 = arith.divf %468, %469 : vector<16x1xf32>
    %471 = vector.broadcast %463 : vector<16x1xf32> to vector<16x32xf32>
    %472 = arith.subf %455, %471 : vector<16x32xf32>
    %cst_326 = arith.constant 9.99999974E-6 : f32
    %473 = vector.broadcast %cst_326 : f32 to vector<16x1xf32>
    %474 = arith.addf %470, %473 : vector<16x1xf32>
    %475 = math.rsqrt %474 : vector<16x1xf32>
    %476 = vector.broadcast %475 : vector<16x1xf32> to vector<16x32xf32>
    %477 = arith.mulf %472, %476 : vector<16x32xf32>
    %478 = vector.broadcast %457 : vector<1x32xf32> to vector<16x32xf32>
    %479 = arith.mulf %477, %478 : vector<16x32xf32>
    %480 = vector.broadcast %459 : vector<1x32xf32> to vector<16x32xf32>
    %481 = arith.addf %479, %480 : vector<16x32xf32>
    %482 = arith.truncf %481 : vector<16x32xf32> to vector<16x32xbf16>
    %c0_327 = arith.constant 0 : index
    %c0_328 = arith.constant 0 : index
    %c0_329 = arith.constant 0 : index
    %483 = vector.load %arg41[%c0_327, %c0_328, %c0_329] : memref<2x32x64xbf16, #tpu.memory_space<vmem>>, vector<1x32x64xbf16>
    %484 = vector.shape_cast %483 : vector<1x32x64xbf16> to vector<32x64xbf16>
    %cst_330 = arith.constant dense<0.000000e+00> : vector<16x64xf32>
    %485 = tpu.matmul %482, %484, %cst_330 {dimension_numbers = #tpu.dot_dimension_numbers<[1], [0], [0], [1], [0, 0, 1, 1], [], []>} : vector<16x32xbf16>, vector<32x64xbf16>, vector<16x64xf32> -> vector<16x64xf32>
    %c0_331 = arith.constant 0 : index
    %c0_332 = arith.constant 0 : index
    %c0_333 = arith.constant 0 : index
    %486 = vector.load %arg42[%c0_331, %c0_332, %c0_333] : memref<2x1x64xf32, #tpu.memory_space<vmem>>, vector<1x1x64xf32>
    %487 = vector.shape_cast %486 : vector<1x1x64xf32> to vector<1x64xf32>
    %488 = vector.broadcast %487 : vector<1x64xf32> to vector<16x64xf32>
    %489 = arith.addf %485, %488 : vector<16x64xf32>
    %cst_334 = arith.constant 5.000000e-01 : f32
    %490 = vector.broadcast %cst_334 : f32 to vector<16x64xf32>
    %491 = arith.mulf %490, %489 : vector<16x64xf32>
    %cst_335 = arith.constant 4.471500e-02 : f32
    %492 = vector.broadcast %cst_335 : f32 to vector<16x64xf32>
    %493 = arith.mulf %492, %489 : vector<16x64xf32>
    %494 = arith.mulf %493, %489 : vector<16x64xf32>
    %495 = arith.mulf %494, %489 : vector<16x64xf32>
    %496 = arith.addf %489, %495 : vector<16x64xf32>
    %cst_336 = arith.constant 0.797884583 : f32
    %497 = vector.broadcast %cst_336 : f32 to vector<16x64xf32>
    %498 = arith.mulf %497, %496 : vector<16x64xf32>
    %499 = math.tanh %498 : vector<16x64xf32>
    %cst_337 = arith.constant 1.000000e+00 : f32
    %500 = vector.broadcast %cst_337 : f32 to vector<16x64xf32>
    %501 = arith.addf %500, %499 : vector<16x64xf32>
    %502 = arith.mulf %491, %501 : vector<16x64xf32>
    %503 = arith.truncf %502 : vector<16x64xf32> to vector<16x64xbf16>
    %c0_338 = arith.constant 0 : index
    %c0_339 = arith.constant 0 : index
    %c0_340 = arith.constant 0 : index
    %504 = vector.load %arg43[%c0_338, %c0_339, %c0_340] : memref<2x64x32xbf16, #tpu.memory_space<vmem>>, vector<1x64x32xbf16>
    %505 = vector.shape_cast %504 : vector<1x64x32xbf16> to vector<64x32xbf16>
    %cst_341 = arith.constant dense<0.000000e+00> : vector<16x32xf32>
    %506 = tpu.matmul %503, %505, %cst_341 {dimension_numbers = #tpu.dot_dimension_numbers<[1], [0], [0], [1], [0, 0, 1, 1], [], []>} : vector<16x64xbf16>, vector<64x32xbf16>, vector<16x32xf32> -> vector<16x32xf32>
    %507 = arith.addf %455, %506 : vector<16x32xf32>
    %c0_342 = arith.constant 0 : index
    %c0_343 = arith.constant 0 : index
    %c0_344 = arith.constant 0 : index
    %508 = vector.load %arg44[%c0_342, %c0_343, %c0_344] : memref<2x1x32xf32, #tpu.memory_space<vmem>>, vector<1x1x32xf32>
    %509 = vector.shape_cast %508 : vector<1x1x32xf32> to vector<1x32xf32>
    %510 = vector.broadcast %509 : vector<1x32xf32> to vector<16x32xf32>
    %511 = arith.addf %507, %510 : vector<16x32xf32>
    %c1_345 = arith.constant 1 : index
    %c0_346 = arith.constant 0 : index
    %c0_347 = arith.constant 0 : index
    %512 = vector.load %arg25[%c1_345, %c0_346, %c0_347] : memref<2x1x32xf32, #tpu.memory_space<vmem>>, vector<1x1x32xf32>
    %513 = vector.shape_cast %512 : vector<1x1x32xf32> to vector<1x32xf32>
    %c1_348 = arith.constant 1 : index
    %c0_349 = arith.constant 0 : index
    %c0_350 = arith.constant 0 : index
    %514 = vector.load %arg26[%c1_348, %c0_349, %c0_350] : memref<2x1x32xf32, #tpu.memory_space<vmem>>, vector<1x1x32xf32>
    %515 = vector.shape_cast %514 : vector<1x1x32xf32> to vector<1x32xf32>
    %cst_351 = arith.constant dense<0.000000e+00> : vector<16xf32>
    %516 = vector.multi_reduction <add>, %511, %cst_351 [1] : vector<16x32xf32> to vector<16xf32>
    %517 = vector.shape_cast %516 : vector<16xf32> to vector<16x1xf32>
    %cst_352 = arith.constant 3.200000e+01 : f32
    %518 = vector.broadcast %cst_352 : f32 to vector<16x1xf32>
    %519 = arith.divf %517, %518 : vector<16x1xf32>
    %520 = vector.broadcast %519 : vector<16x1xf32> to vector<16x32xf32>
    %521 = arith.subf %511, %520 : vector<16x32xf32>
    %522 = arith.mulf %521, %521 : vector<16x32xf32>
    %cst_353 = arith.constant dense<0.000000e+00> : vector<16xf32>
    %523 = vector.multi_reduction <add>, %522, %cst_353 [1] : vector<16x32xf32> to vector<16xf32>
    %524 = vector.shape_cast %523 : vector<16xf32> to vector<16x1xf32>
    %cst_354 = arith.constant 3.200000e+01 : f32
    %525 = vector.broadcast %cst_354 : f32 to vector<16x1xf32>
    %526 = arith.divf %524, %525 : vector<16x1xf32>
    %527 = vector.broadcast %519 : vector<16x1xf32> to vector<16x32xf32>
    %528 = arith.subf %511, %527 : vector<16x32xf32>
    %cst_355 = arith.constant 9.99999974E-6 : f32
    %529 = vector.broadcast %cst_355 : f32 to vector<16x1xf32>
    %530 = arith.addf %526, %529 : vector<16x1xf32>
    %531 = math.rsqrt %530 : vector<16x1xf32>
    %532 = vector.broadcast %531 : vector<16x1xf32> to vector<16x32xf32>
    %533 = arith.mulf %528, %532 : vector<16x32xf32>
    %534 = vector.broadcast %513 : vector<1x32xf32> to vector<16x32xf32>
    %535 = arith.mulf %533, %534 : vector<16x32xf32>
    %536 = vector.broadcast %515 : vector<1x32xf32> to vector<16x32xf32>
    %537 = arith.addf %535, %536 : vector<16x32xf32>
    %538 = arith.truncf %537 : vector<16x32xf32> to vector<16x32xbf16>
    %cst_356 = arith.constant 0.000000e+00 : f32
    %539 = vector.broadcast %cst_356 : f32 to vector<16x32xf32>
    %c1_357 = arith.constant 1 : index
    %c0_358 = arith.constant 0 : index
    %c0_359 = arith.constant 0 : index
    %c0_360 = arith.constant 0 : index
    %540 = vector.load %arg27[%c1_357, %c0_358, %c0_359, %c0_360] : memref<2x4x32x8xbf16, #tpu.memory_space<vmem>>, vector<1x1x32x8xbf16>
    %541 = vector.shape_cast %540 : vector<1x1x32x8xbf16> to vector<32x8xbf16>
    %cst_361 = arith.constant dense<0.000000e+00> : vector<16x8xf32>
    %542 = tpu.matmul %538, %541, %cst_361 {dimension_numbers = #tpu.dot_dimension_numbers<[1], [0], [0], [1], [0, 0, 1, 1], [], []>} : vector<16x32xbf16>, vector<32x8xbf16>, vector<16x8xf32> -> vector<16x8xf32>
    %c1_362 = arith.constant 1 : index
    %c0_363 = arith.constant 0 : index
    %c0_364 = arith.constant 0 : index
    %c0_365 = arith.constant 0 : index
    %543 = vector.load %arg28[%c1_362, %c0_363, %c0_364, %c0_365] : memref<2x4x1x8xf32, #tpu.memory_space<vmem>>, vector<1x1x1x8xf32>
    %544 = vector.shape_cast %543 : vector<1x1x1x8xf32> to vector<1x8xf32>
    %545 = vector.broadcast %544 : vector<1x8xf32> to vector<16x8xf32>
    %546 = arith.addf %542, %545 : vector<16x8xf32>
    %c1_366 = arith.constant 1 : index
    %c0_367 = arith.constant 0 : index
    %c0_368 = arith.constant 0 : index
    %c0_369 = arith.constant 0 : index
    %547 = vector.load %arg29[%c1_366, %c0_367, %c0_368, %c0_369] : memref<2x4x32x8xbf16, #tpu.memory_space<vmem>>, vector<1x1x32x8xbf16>
    %548 = vector.shape_cast %547 : vector<1x1x32x8xbf16> to vector<32x8xbf16>
    %cst_370 = arith.constant dense<0.000000e+00> : vector<16x8xf32>
    %549 = tpu.matmul %538, %548, %cst_370 {dimension_numbers = #tpu.dot_dimension_numbers<[1], [0], [0], [1], [0, 0, 1, 1], [], []>} : vector<16x32xbf16>, vector<32x8xbf16>, vector<16x8xf32> -> vector<16x8xf32>
    %c1_371 = arith.constant 1 : index
    %c0_372 = arith.constant 0 : index
    %c0_373 = arith.constant 0 : index
    %c0_374 = arith.constant 0 : index
    %550 = vector.load %arg30[%c1_371, %c0_372, %c0_373, %c0_374] : memref<2x4x1x8xf32, #tpu.memory_space<vmem>>, vector<1x1x1x8xf32>
    %551 = vector.shape_cast %550 : vector<1x1x1x8xf32> to vector<1x8xf32>
    %552 = vector.broadcast %551 : vector<1x8xf32> to vector<16x8xf32>
    %553 = arith.addf %549, %552 : vector<16x8xf32>
    %554 = arith.mulf %546, %157 : vector<16x8xf32>
    %555 = arith.mulf %553, %158 : vector<16x8xf32>
    %556 = arith.addf %554, %555 : vector<16x8xf32>
    %557 = arith.truncf %556 : vector<16x8xf32> to vector<16x8xbf16>
    %c1_375 = arith.constant 1 : index
    %c0_376 = arith.constant 0 : index
    %c0_377 = arith.constant 0 : index
    %c0_378 = arith.constant 0 : index
    %558 = vector.load %arg31[%c1_375, %c0_376, %c0_377, %c0_378] : memref<2x4x32x8xbf16, #tpu.memory_space<vmem>>, vector<1x1x32x8xbf16>
    %559 = vector.shape_cast %558 : vector<1x1x32x8xbf16> to vector<32x8xbf16>
    %cst_379 = arith.constant dense<0.000000e+00> : vector<16x8xf32>
    %560 = tpu.matmul %538, %559, %cst_379 {dimension_numbers = #tpu.dot_dimension_numbers<[1], [0], [0], [1], [0, 0, 1, 1], [], []>} : vector<16x32xbf16>, vector<32x8xbf16>, vector<16x8xf32> -> vector<16x8xf32>
    %c1_380 = arith.constant 1 : index
    %c0_381 = arith.constant 0 : index
    %c0_382 = arith.constant 0 : index
    %c0_383 = arith.constant 0 : index
    %561 = vector.load %arg32[%c1_380, %c0_381, %c0_382, %c0_383] : memref<2x4x1x8xf32, #tpu.memory_space<vmem>>, vector<1x1x1x8xf32>
    %562 = vector.shape_cast %561 : vector<1x1x1x8xf32> to vector<1x8xf32>
    %563 = vector.broadcast %562 : vector<1x8xf32> to vector<16x8xf32>
    %564 = arith.addf %560, %563 : vector<16x8xf32>
    %c1_384 = arith.constant 1 : index
    %c0_385 = arith.constant 0 : index
    %c0_386 = arith.constant 0 : index
    %c0_387 = arith.constant 0 : index
    %565 = vector.load %arg33[%c1_384, %c0_385, %c0_386, %c0_387] : memref<2x4x32x8xbf16, #tpu.memory_space<vmem>>, vector<1x1x32x8xbf16>
    %566 = vector.shape_cast %565 : vector<1x1x32x8xbf16> to vector<32x8xbf16>
    %cst_388 = arith.constant dense<0.000000e+00> : vector<16x8xf32>
    %567 = tpu.matmul %538, %566, %cst_388 {dimension_numbers = #tpu.dot_dimension_numbers<[1], [0], [0], [1], [0, 0, 1, 1], [], []>} : vector<16x32xbf16>, vector<32x8xbf16>, vector<16x8xf32> -> vector<16x8xf32>
    %c1_389 = arith.constant 1 : index
    %c0_390 = arith.constant 0 : index
    %c0_391 = arith.constant 0 : index
    %c0_392 = arith.constant 0 : index
    %568 = vector.load %arg34[%c1_389, %c0_390, %c0_391, %c0_392] : memref<2x4x1x8xf32, #tpu.memory_space<vmem>>, vector<1x1x1x8xf32>
    %569 = vector.shape_cast %568 : vector<1x1x1x8xf32> to vector<1x8xf32>
    %570 = vector.broadcast %569 : vector<1x8xf32> to vector<16x8xf32>
    %571 = arith.addf %567, %570 : vector<16x8xf32>
    %572 = arith.mulf %564, %157 : vector<16x8xf32>
    %573 = arith.mulf %571, %158 : vector<16x8xf32>
    %574 = arith.addf %572, %573 : vector<16x8xf32>
    %575 = arith.truncf %574 : vector<16x8xf32> to vector<16x8xbf16>
    %c1_393 = arith.constant 1 : index
    %c0_394 = arith.constant 0 : index
    %c0_395 = arith.constant 0 : index
    %c0_396 = arith.constant 0 : index
    %576 = vector.load %arg35[%c1_393, %c0_394, %c0_395, %c0_396] : memref<2x4x32x8xbf16, #tpu.memory_space<vmem>>, vector<1x1x32x8xbf16>
    %577 = vector.shape_cast %576 : vector<1x1x32x8xbf16> to vector<32x8xbf16>
    %cst_397 = arith.constant dense<0.000000e+00> : vector<16x8xf32>
    %578 = tpu.matmul %538, %577, %cst_397 {dimension_numbers = #tpu.dot_dimension_numbers<[1], [0], [0], [1], [0, 0, 1, 1], [], []>} : vector<16x32xbf16>, vector<32x8xbf16>, vector<16x8xf32> -> vector<16x8xf32>
    %c1_398 = arith.constant 1 : index
    %c0_399 = arith.constant 0 : index
    %c0_400 = arith.constant 0 : index
    %c0_401 = arith.constant 0 : index
    %579 = vector.load %arg36[%c1_398, %c0_399, %c0_400, %c0_401] : memref<2x4x1x8xf32, #tpu.memory_space<vmem>>, vector<1x1x1x8xf32>
    %580 = vector.shape_cast %579 : vector<1x1x1x8xf32> to vector<1x8xf32>
    %581 = vector.broadcast %580 : vector<1x8xf32> to vector<16x8xf32>
    %582 = arith.addf %578, %581 : vector<16x8xf32>
    %583 = arith.truncf %582 : vector<16x8xf32> to vector<16x8xbf16>
    %cst_402 = arith.constant dense<0.000000e+00> : vector<16x16xf32>
    %584 = tpu.matmul %557, %575, %cst_402 {dimension_numbers = #tpu.dot_dimension_numbers<[1], [1], [0], [0], [0, 0, 1, 0], [], []>} : vector<16x8xbf16>, vector<16x8xbf16>, vector<16x16xf32> -> vector<16x16xf32>
    %585 = vector.broadcast %3 : vector<1x16xf32> to vector<16x16xf32>
    %586 = arith.addf %584, %585 : vector<16x16xf32>
    %cst_403 = arith.constant dense<0xFF800000> : vector<16xf32>
    %587 = vector.multi_reduction <maximumf>, %586, %cst_403 [1] : vector<16x16xf32> to vector<16xf32>
    %588 = vector.shape_cast %587 : vector<16xf32> to vector<16x1xf32>
    %589 = vector.broadcast %588 : vector<16x1xf32> to vector<16x16xf32>
    %590 = arith.subf %586, %589 : vector<16x16xf32>
    %591 = math.exp %590 : vector<16x16xf32>
    %cst_404 = arith.constant dense<0.000000e+00> : vector<16xf32>
    %592 = vector.multi_reduction <add>, %591, %cst_404 [1] : vector<16x16xf32> to vector<16xf32>
    %593 = vector.shape_cast %592 : vector<16xf32> to vector<16x1xf32>
    %cst_405 = arith.constant 1.000000e-30 : f32
    %594 = vector.broadcast %cst_405 : f32 to vector<16x1xf32>
    %595 = arith.maximumf %593, %594 : vector<16x1xf32>
    %596 = tpu.reciprocal %595 {approx = true} : vector<16x1xf32> -> vector<16x1xf32>
    %597 = vector.broadcast %596 : vector<16x1xf32> to vector<16x16xf32>
    %598 = arith.mulf %591, %597 : vector<16x16xf32>
    %599 = arith.truncf %598 : vector<16x16xf32> to vector<16x16xbf16>
    %cst_406 = arith.constant dense<0.000000e+00> : vector<16x8xf32>
    %600 = tpu.matmul %599, %583, %cst_406 {dimension_numbers = #tpu.dot_dimension_numbers<[1], [0], [0], [1], [0, 0, 1, 1], [], []>} : vector<16x16xbf16>, vector<16x8xbf16>, vector<16x8xf32> -> vector<16x8xf32>
    %601 = arith.truncf %600 : vector<16x8xf32> to vector<16x8xbf16>
    %c1_407 = arith.constant 1 : index
    %c0_408 = arith.constant 0 : index
    %c0_409 = arith.constant 0 : index
    %c0_410 = arith.constant 0 : index
    %602 = vector.load %arg37[%c1_407, %c0_408, %c0_409, %c0_410] : memref<2x4x8x32xbf16, #tpu.memory_space<vmem>>, vector<1x1x8x32xbf16>
    %603 = vector.shape_cast %602 : vector<1x1x8x32xbf16> to vector<8x32xbf16>
    %cst_411 = arith.constant dense<0.000000e+00> : vector<16x32xf32>
    %604 = tpu.matmul %601, %603, %cst_411 {dimension_numbers = #tpu.dot_dimension_numbers<[1], [0], [0], [1], [0, 0, 1, 1], [], []>} : vector<16x8xbf16>, vector<8x32xbf16>, vector<16x32xf32> -> vector<16x32xf32>
    %605 = arith.addf %539, %604 : vector<16x32xf32>
    %c1_412 = arith.constant 1 : index
    %c1_413 = arith.constant 1 : index
    %c0_414 = arith.constant 0 : index
    %c0_415 = arith.constant 0 : index
    %606 = vector.load %arg27[%c1_412, %c1_413, %c0_414, %c0_415] : memref<2x4x32x8xbf16, #tpu.memory_space<vmem>>, vector<1x1x32x8xbf16>
    %607 = vector.shape_cast %606 : vector<1x1x32x8xbf16> to vector<32x8xbf16>
    %cst_416 = arith.constant dense<0.000000e+00> : vector<16x8xf32>
    %608 = tpu.matmul %538, %607, %cst_416 {dimension_numbers = #tpu.dot_dimension_numbers<[1], [0], [0], [1], [0, 0, 1, 1], [], []>} : vector<16x32xbf16>, vector<32x8xbf16>, vector<16x8xf32> -> vector<16x8xf32>
    %c1_417 = arith.constant 1 : index
    %c1_418 = arith.constant 1 : index
    %c0_419 = arith.constant 0 : index
    %c0_420 = arith.constant 0 : index
    %609 = vector.load %arg28[%c1_417, %c1_418, %c0_419, %c0_420] : memref<2x4x1x8xf32, #tpu.memory_space<vmem>>, vector<1x1x1x8xf32>
    %610 = vector.shape_cast %609 : vector<1x1x1x8xf32> to vector<1x8xf32>
    %611 = vector.broadcast %610 : vector<1x8xf32> to vector<16x8xf32>
    %612 = arith.addf %608, %611 : vector<16x8xf32>
    %c1_421 = arith.constant 1 : index
    %c1_422 = arith.constant 1 : index
    %c0_423 = arith.constant 0 : index
    %c0_424 = arith.constant 0 : index
    %613 = vector.load %arg29[%c1_421, %c1_422, %c0_423, %c0_424] : memref<2x4x32x8xbf16, #tpu.memory_space<vmem>>, vector<1x1x32x8xbf16>
    %614 = vector.shape_cast %613 : vector<1x1x32x8xbf16> to vector<32x8xbf16>
    %cst_425 = arith.constant dense<0.000000e+00> : vector<16x8xf32>
    %615 = tpu.matmul %538, %614, %cst_425 {dimension_numbers = #tpu.dot_dimension_numbers<[1], [0], [0], [1], [0, 0, 1, 1], [], []>} : vector<16x32xbf16>, vector<32x8xbf16>, vector<16x8xf32> -> vector<16x8xf32>
    %c1_426 = arith.constant 1 : index
    %c1_427 = arith.constant 1 : index
    %c0_428 = arith.constant 0 : index
    %c0_429 = arith.constant 0 : index
    %616 = vector.load %arg30[%c1_426, %c1_427, %c0_428, %c0_429] : memref<2x4x1x8xf32, #tpu.memory_space<vmem>>, vector<1x1x1x8xf32>
    %617 = vector.shape_cast %616 : vector<1x1x1x8xf32> to vector<1x8xf32>
    %618 = vector.broadcast %617 : vector<1x8xf32> to vector<16x8xf32>
    %619 = arith.addf %615, %618 : vector<16x8xf32>
    %620 = arith.mulf %612, %157 : vector<16x8xf32>
    %621 = arith.mulf %619, %158 : vector<16x8xf32>
    %622 = arith.addf %620, %621 : vector<16x8xf32>
    %623 = arith.truncf %622 : vector<16x8xf32> to vector<16x8xbf16>
    %c1_430 = arith.constant 1 : index
    %c1_431 = arith.constant 1 : index
    %c0_432 = arith.constant 0 : index
    %c0_433 = arith.constant 0 : index
    %624 = vector.load %arg31[%c1_430, %c1_431, %c0_432, %c0_433] : memref<2x4x32x8xbf16, #tpu.memory_space<vmem>>, vector<1x1x32x8xbf16>
    %625 = vector.shape_cast %624 : vector<1x1x32x8xbf16> to vector<32x8xbf16>
    %cst_434 = arith.constant dense<0.000000e+00> : vector<16x8xf32>
    %626 = tpu.matmul %538, %625, %cst_434 {dimension_numbers = #tpu.dot_dimension_numbers<[1], [0], [0], [1], [0, 0, 1, 1], [], []>} : vector<16x32xbf16>, vector<32x8xbf16>, vector<16x8xf32> -> vector<16x8xf32>
    %c1_435 = arith.constant 1 : index
    %c1_436 = arith.constant 1 : index
    %c0_437 = arith.constant 0 : index
    %c0_438 = arith.constant 0 : index
    %627 = vector.load %arg32[%c1_435, %c1_436, %c0_437, %c0_438] : memref<2x4x1x8xf32, #tpu.memory_space<vmem>>, vector<1x1x1x8xf32>
    %628 = vector.shape_cast %627 : vector<1x1x1x8xf32> to vector<1x8xf32>
    %629 = vector.broadcast %628 : vector<1x8xf32> to vector<16x8xf32>
    %630 = arith.addf %626, %629 : vector<16x8xf32>
    %c1_439 = arith.constant 1 : index
    %c1_440 = arith.constant 1 : index
    %c0_441 = arith.constant 0 : index
    %c0_442 = arith.constant 0 : index
    %631 = vector.load %arg33[%c1_439, %c1_440, %c0_441, %c0_442] : memref<2x4x32x8xbf16, #tpu.memory_space<vmem>>, vector<1x1x32x8xbf16>
    %632 = vector.shape_cast %631 : vector<1x1x32x8xbf16> to vector<32x8xbf16>
    %cst_443 = arith.constant dense<0.000000e+00> : vector<16x8xf32>
    %633 = tpu.matmul %538, %632, %cst_443 {dimension_numbers = #tpu.dot_dimension_numbers<[1], [0], [0], [1], [0, 0, 1, 1], [], []>} : vector<16x32xbf16>, vector<32x8xbf16>, vector<16x8xf32> -> vector<16x8xf32>
    %c1_444 = arith.constant 1 : index
    %c1_445 = arith.constant 1 : index
    %c0_446 = arith.constant 0 : index
    %c0_447 = arith.constant 0 : index
    %634 = vector.load %arg34[%c1_444, %c1_445, %c0_446, %c0_447] : memref<2x4x1x8xf32, #tpu.memory_space<vmem>>, vector<1x1x1x8xf32>
    %635 = vector.shape_cast %634 : vector<1x1x1x8xf32> to vector<1x8xf32>
    %636 = vector.broadcast %635 : vector<1x8xf32> to vector<16x8xf32>
    %637 = arith.addf %633, %636 : vector<16x8xf32>
    %638 = arith.mulf %630, %157 : vector<16x8xf32>
    %639 = arith.mulf %637, %158 : vector<16x8xf32>
    %640 = arith.addf %638, %639 : vector<16x8xf32>
    %641 = arith.truncf %640 : vector<16x8xf32> to vector<16x8xbf16>
    %c1_448 = arith.constant 1 : index
    %c1_449 = arith.constant 1 : index
    %c0_450 = arith.constant 0 : index
    %c0_451 = arith.constant 0 : index
    %642 = vector.load %arg35[%c1_448, %c1_449, %c0_450, %c0_451] : memref<2x4x32x8xbf16, #tpu.memory_space<vmem>>, vector<1x1x32x8xbf16>
    %643 = vector.shape_cast %642 : vector<1x1x32x8xbf16> to vector<32x8xbf16>
    %cst_452 = arith.constant dense<0.000000e+00> : vector<16x8xf32>
    %644 = tpu.matmul %538, %643, %cst_452 {dimension_numbers = #tpu.dot_dimension_numbers<[1], [0], [0], [1], [0, 0, 1, 1], [], []>} : vector<16x32xbf16>, vector<32x8xbf16>, vector<16x8xf32> -> vector<16x8xf32>
    %c1_453 = arith.constant 1 : index
    %c1_454 = arith.constant 1 : index
    %c0_455 = arith.constant 0 : index
    %c0_456 = arith.constant 0 : index
    %645 = vector.load %arg36[%c1_453, %c1_454, %c0_455, %c0_456] : memref<2x4x1x8xf32, #tpu.memory_space<vmem>>, vector<1x1x1x8xf32>
    %646 = vector.shape_cast %645 : vector<1x1x1x8xf32> to vector<1x8xf32>
    %647 = vector.broadcast %646 : vector<1x8xf32> to vector<16x8xf32>
    %648 = arith.addf %644, %647 : vector<16x8xf32>
    %649 = arith.truncf %648 : vector<16x8xf32> to vector<16x8xbf16>
    %cst_457 = arith.constant dense<0.000000e+00> : vector<16x16xf32>
    %650 = tpu.matmul %623, %641, %cst_457 {dimension_numbers = #tpu.dot_dimension_numbers<[1], [1], [0], [0], [0, 0, 1, 0], [], []>} : vector<16x8xbf16>, vector<16x8xbf16>, vector<16x16xf32> -> vector<16x16xf32>
    %651 = vector.broadcast %3 : vector<1x16xf32> to vector<16x16xf32>
    %652 = arith.addf %650, %651 : vector<16x16xf32>
    %cst_458 = arith.constant dense<0xFF800000> : vector<16xf32>
    %653 = vector.multi_reduction <maximumf>, %652, %cst_458 [1] : vector<16x16xf32> to vector<16xf32>
    %654 = vector.shape_cast %653 : vector<16xf32> to vector<16x1xf32>
    %655 = vector.broadcast %654 : vector<16x1xf32> to vector<16x16xf32>
    %656 = arith.subf %652, %655 : vector<16x16xf32>
    %657 = math.exp %656 : vector<16x16xf32>
    %cst_459 = arith.constant dense<0.000000e+00> : vector<16xf32>
    %658 = vector.multi_reduction <add>, %657, %cst_459 [1] : vector<16x16xf32> to vector<16xf32>
    %659 = vector.shape_cast %658 : vector<16xf32> to vector<16x1xf32>
    %cst_460 = arith.constant 1.000000e-30 : f32
    %660 = vector.broadcast %cst_460 : f32 to vector<16x1xf32>
    %661 = arith.maximumf %659, %660 : vector<16x1xf32>
    %662 = tpu.reciprocal %661 {approx = true} : vector<16x1xf32> -> vector<16x1xf32>
    %663 = vector.broadcast %662 : vector<16x1xf32> to vector<16x16xf32>
    %664 = arith.mulf %657, %663 : vector<16x16xf32>
    %665 = arith.truncf %664 : vector<16x16xf32> to vector<16x16xbf16>
    %cst_461 = arith.constant dense<0.000000e+00> : vector<16x8xf32>
    %666 = tpu.matmul %665, %649, %cst_461 {dimension_numbers = #tpu.dot_dimension_numbers<[1], [0], [0], [1], [0, 0, 1, 1], [], []>} : vector<16x16xbf16>, vector<16x8xbf16>, vector<16x8xf32> -> vector<16x8xf32>
    %667 = arith.truncf %666 : vector<16x8xf32> to vector<16x8xbf16>
    %c1_462 = arith.constant 1 : index
    %c1_463 = arith.constant 1 : index
    %c0_464 = arith.constant 0 : index
    %c0_465 = arith.constant 0 : index
    %668 = vector.load %arg37[%c1_462, %c1_463, %c0_464, %c0_465] : memref<2x4x8x32xbf16, #tpu.memory_space<vmem>>, vector<1x1x8x32xbf16>
    %669 = vector.shape_cast %668 : vector<1x1x8x32xbf16> to vector<8x32xbf16>
    %cst_466 = arith.constant dense<0.000000e+00> : vector<16x32xf32>
    %670 = tpu.matmul %667, %669, %cst_466 {dimension_numbers = #tpu.dot_dimension_numbers<[1], [0], [0], [1], [0, 0, 1, 1], [], []>} : vector<16x8xbf16>, vector<8x32xbf16>, vector<16x32xf32> -> vector<16x32xf32>
    %671 = arith.addf %605, %670 : vector<16x32xf32>
    %c1_467 = arith.constant 1 : index
    %c2_468 = arith.constant 2 : index
    %c0_469 = arith.constant 0 : index
    %c0_470 = arith.constant 0 : index
    %672 = vector.load %arg27[%c1_467, %c2_468, %c0_469, %c0_470] : memref<2x4x32x8xbf16, #tpu.memory_space<vmem>>, vector<1x1x32x8xbf16>
    %673 = vector.shape_cast %672 : vector<1x1x32x8xbf16> to vector<32x8xbf16>
    %cst_471 = arith.constant dense<0.000000e+00> : vector<16x8xf32>
    %674 = tpu.matmul %538, %673, %cst_471 {dimension_numbers = #tpu.dot_dimension_numbers<[1], [0], [0], [1], [0, 0, 1, 1], [], []>} : vector<16x32xbf16>, vector<32x8xbf16>, vector<16x8xf32> -> vector<16x8xf32>
    %c1_472 = arith.constant 1 : index
    %c2_473 = arith.constant 2 : index
    %c0_474 = arith.constant 0 : index
    %c0_475 = arith.constant 0 : index
    %675 = vector.load %arg28[%c1_472, %c2_473, %c0_474, %c0_475] : memref<2x4x1x8xf32, #tpu.memory_space<vmem>>, vector<1x1x1x8xf32>
    %676 = vector.shape_cast %675 : vector<1x1x1x8xf32> to vector<1x8xf32>
    %677 = vector.broadcast %676 : vector<1x8xf32> to vector<16x8xf32>
    %678 = arith.addf %674, %677 : vector<16x8xf32>
    %c1_476 = arith.constant 1 : index
    %c2_477 = arith.constant 2 : index
    %c0_478 = arith.constant 0 : index
    %c0_479 = arith.constant 0 : index
    %679 = vector.load %arg29[%c1_476, %c2_477, %c0_478, %c0_479] : memref<2x4x32x8xbf16, #tpu.memory_space<vmem>>, vector<1x1x32x8xbf16>
    %680 = vector.shape_cast %679 : vector<1x1x32x8xbf16> to vector<32x8xbf16>
    %cst_480 = arith.constant dense<0.000000e+00> : vector<16x8xf32>
    %681 = tpu.matmul %538, %680, %cst_480 {dimension_numbers = #tpu.dot_dimension_numbers<[1], [0], [0], [1], [0, 0, 1, 1], [], []>} : vector<16x32xbf16>, vector<32x8xbf16>, vector<16x8xf32> -> vector<16x8xf32>
    %c1_481 = arith.constant 1 : index
    %c2_482 = arith.constant 2 : index
    %c0_483 = arith.constant 0 : index
    %c0_484 = arith.constant 0 : index
    %682 = vector.load %arg30[%c1_481, %c2_482, %c0_483, %c0_484] : memref<2x4x1x8xf32, #tpu.memory_space<vmem>>, vector<1x1x1x8xf32>
    %683 = vector.shape_cast %682 : vector<1x1x1x8xf32> to vector<1x8xf32>
    %684 = vector.broadcast %683 : vector<1x8xf32> to vector<16x8xf32>
    %685 = arith.addf %681, %684 : vector<16x8xf32>
    %686 = arith.mulf %678, %157 : vector<16x8xf32>
    %687 = arith.mulf %685, %158 : vector<16x8xf32>
    %688 = arith.addf %686, %687 : vector<16x8xf32>
    %689 = arith.truncf %688 : vector<16x8xf32> to vector<16x8xbf16>
    %c1_485 = arith.constant 1 : index
    %c2_486 = arith.constant 2 : index
    %c0_487 = arith.constant 0 : index
    %c0_488 = arith.constant 0 : index
    %690 = vector.load %arg31[%c1_485, %c2_486, %c0_487, %c0_488] : memref<2x4x32x8xbf16, #tpu.memory_space<vmem>>, vector<1x1x32x8xbf16>
    %691 = vector.shape_cast %690 : vector<1x1x32x8xbf16> to vector<32x8xbf16>
    %cst_489 = arith.constant dense<0.000000e+00> : vector<16x8xf32>
    %692 = tpu.matmul %538, %691, %cst_489 {dimension_numbers = #tpu.dot_dimension_numbers<[1], [0], [0], [1], [0, 0, 1, 1], [], []>} : vector<16x32xbf16>, vector<32x8xbf16>, vector<16x8xf32> -> vector<16x8xf32>
    %c1_490 = arith.constant 1 : index
    %c2_491 = arith.constant 2 : index
    %c0_492 = arith.constant 0 : index
    %c0_493 = arith.constant 0 : index
    %693 = vector.load %arg32[%c1_490, %c2_491, %c0_492, %c0_493] : memref<2x4x1x8xf32, #tpu.memory_space<vmem>>, vector<1x1x1x8xf32>
    %694 = vector.shape_cast %693 : vector<1x1x1x8xf32> to vector<1x8xf32>
    %695 = vector.broadcast %694 : vector<1x8xf32> to vector<16x8xf32>
    %696 = arith.addf %692, %695 : vector<16x8xf32>
    %c1_494 = arith.constant 1 : index
    %c2_495 = arith.constant 2 : index
    %c0_496 = arith.constant 0 : index
    %c0_497 = arith.constant 0 : index
    %697 = vector.load %arg33[%c1_494, %c2_495, %c0_496, %c0_497] : memref<2x4x32x8xbf16, #tpu.memory_space<vmem>>, vector<1x1x32x8xbf16>
    %698 = vector.shape_cast %697 : vector<1x1x32x8xbf16> to vector<32x8xbf16>
    %cst_498 = arith.constant dense<0.000000e+00> : vector<16x8xf32>
    %699 = tpu.matmul %538, %698, %cst_498 {dimension_numbers = #tpu.dot_dimension_numbers<[1], [0], [0], [1], [0, 0, 1, 1], [], []>} : vector<16x32xbf16>, vector<32x8xbf16>, vector<16x8xf32> -> vector<16x8xf32>
    %c1_499 = arith.constant 1 : index
    %c2_500 = arith.constant 2 : index
    %c0_501 = arith.constant 0 : index
    %c0_502 = arith.constant 0 : index
    %700 = vector.load %arg34[%c1_499, %c2_500, %c0_501, %c0_502] : memref<2x4x1x8xf32, #tpu.memory_space<vmem>>, vector<1x1x1x8xf32>
    %701 = vector.shape_cast %700 : vector<1x1x1x8xf32> to vector<1x8xf32>
    %702 = vector.broadcast %701 : vector<1x8xf32> to vector<16x8xf32>
    %703 = arith.addf %699, %702 : vector<16x8xf32>
    %704 = arith.mulf %696, %157 : vector<16x8xf32>
    %705 = arith.mulf %703, %158 : vector<16x8xf32>
    %706 = arith.addf %704, %705 : vector<16x8xf32>
    %707 = arith.truncf %706 : vector<16x8xf32> to vector<16x8xbf16>
    %c1_503 = arith.constant 1 : index
    %c2_504 = arith.constant 2 : index
    %c0_505 = arith.constant 0 : index
    %c0_506 = arith.constant 0 : index
    %708 = vector.load %arg35[%c1_503, %c2_504, %c0_505, %c0_506] : memref<2x4x32x8xbf16, #tpu.memory_space<vmem>>, vector<1x1x32x8xbf16>
    %709 = vector.shape_cast %708 : vector<1x1x32x8xbf16> to vector<32x8xbf16>
    %cst_507 = arith.constant dense<0.000000e+00> : vector<16x8xf32>
    %710 = tpu.matmul %538, %709, %cst_507 {dimension_numbers = #tpu.dot_dimension_numbers<[1], [0], [0], [1], [0, 0, 1, 1], [], []>} : vector<16x32xbf16>, vector<32x8xbf16>, vector<16x8xf32> -> vector<16x8xf32>
    %c1_508 = arith.constant 1 : index
    %c2_509 = arith.constant 2 : index
    %c0_510 = arith.constant 0 : index
    %c0_511 = arith.constant 0 : index
    %711 = vector.load %arg36[%c1_508, %c2_509, %c0_510, %c0_511] : memref<2x4x1x8xf32, #tpu.memory_space<vmem>>, vector<1x1x1x8xf32>
    %712 = vector.shape_cast %711 : vector<1x1x1x8xf32> to vector<1x8xf32>
    %713 = vector.broadcast %712 : vector<1x8xf32> to vector<16x8xf32>
    %714 = arith.addf %710, %713 : vector<16x8xf32>
    %715 = arith.truncf %714 : vector<16x8xf32> to vector<16x8xbf16>
    %cst_512 = arith.constant dense<0.000000e+00> : vector<16x16xf32>
    %716 = tpu.matmul %689, %707, %cst_512 {dimension_numbers = #tpu.dot_dimension_numbers<[1], [1], [0], [0], [0, 0, 1, 0], [], []>} : vector<16x8xbf16>, vector<16x8xbf16>, vector<16x16xf32> -> vector<16x16xf32>
    %717 = vector.broadcast %3 : vector<1x16xf32> to vector<16x16xf32>
    %718 = arith.addf %716, %717 : vector<16x16xf32>
    %cst_513 = arith.constant dense<0xFF800000> : vector<16xf32>
    %719 = vector.multi_reduction <maximumf>, %718, %cst_513 [1] : vector<16x16xf32> to vector<16xf32>
    %720 = vector.shape_cast %719 : vector<16xf32> to vector<16x1xf32>
    %721 = vector.broadcast %720 : vector<16x1xf32> to vector<16x16xf32>
    %722 = arith.subf %718, %721 : vector<16x16xf32>
    %723 = math.exp %722 : vector<16x16xf32>
    %cst_514 = arith.constant dense<0.000000e+00> : vector<16xf32>
    %724 = vector.multi_reduction <add>, %723, %cst_514 [1] : vector<16x16xf32> to vector<16xf32>
    %725 = vector.shape_cast %724 : vector<16xf32> to vector<16x1xf32>
    %cst_515 = arith.constant 1.000000e-30 : f32
    %726 = vector.broadcast %cst_515 : f32 to vector<16x1xf32>
    %727 = arith.maximumf %725, %726 : vector<16x1xf32>
    %728 = tpu.reciprocal %727 {approx = true} : vector<16x1xf32> -> vector<16x1xf32>
    %729 = vector.broadcast %728 : vector<16x1xf32> to vector<16x16xf32>
    %730 = arith.mulf %723, %729 : vector<16x16xf32>
    %731 = arith.truncf %730 : vector<16x16xf32> to vector<16x16xbf16>
    %cst_516 = arith.constant dense<0.000000e+00> : vector<16x8xf32>
    %732 = tpu.matmul %731, %715, %cst_516 {dimension_numbers = #tpu.dot_dimension_numbers<[1], [0], [0], [1], [0, 0, 1, 1], [], []>} : vector<16x16xbf16>, vector<16x8xbf16>, vector<16x8xf32> -> vector<16x8xf32>
    %733 = arith.truncf %732 : vector<16x8xf32> to vector<16x8xbf16>
    %c1_517 = arith.constant 1 : index
    %c2_518 = arith.constant 2 : index
    %c0_519 = arith.constant 0 : index
    %c0_520 = arith.constant 0 : index
    %734 = vector.load %arg37[%c1_517, %c2_518, %c0_519, %c0_520] : memref<2x4x8x32xbf16, #tpu.memory_space<vmem>>, vector<1x1x8x32xbf16>
    %735 = vector.shape_cast %734 : vector<1x1x8x32xbf16> to vector<8x32xbf16>
    %cst_521 = arith.constant dense<0.000000e+00> : vector<16x32xf32>
    %736 = tpu.matmul %733, %735, %cst_521 {dimension_numbers = #tpu.dot_dimension_numbers<[1], [0], [0], [1], [0, 0, 1, 1], [], []>} : vector<16x8xbf16>, vector<8x32xbf16>, vector<16x32xf32> -> vector<16x32xf32>
    %737 = arith.addf %671, %736 : vector<16x32xf32>
    %c1_522 = arith.constant 1 : index
    %c3_523 = arith.constant 3 : index
    %c0_524 = arith.constant 0 : index
    %c0_525 = arith.constant 0 : index
    %738 = vector.load %arg27[%c1_522, %c3_523, %c0_524, %c0_525] : memref<2x4x32x8xbf16, #tpu.memory_space<vmem>>, vector<1x1x32x8xbf16>
    %739 = vector.shape_cast %738 : vector<1x1x32x8xbf16> to vector<32x8xbf16>
    %cst_526 = arith.constant dense<0.000000e+00> : vector<16x8xf32>
    %740 = tpu.matmul %538, %739, %cst_526 {dimension_numbers = #tpu.dot_dimension_numbers<[1], [0], [0], [1], [0, 0, 1, 1], [], []>} : vector<16x32xbf16>, vector<32x8xbf16>, vector<16x8xf32> -> vector<16x8xf32>
    %c1_527 = arith.constant 1 : index
    %c3_528 = arith.constant 3 : index
    %c0_529 = arith.constant 0 : index
    %c0_530 = arith.constant 0 : index
    %741 = vector.load %arg28[%c1_527, %c3_528, %c0_529, %c0_530] : memref<2x4x1x8xf32, #tpu.memory_space<vmem>>, vector<1x1x1x8xf32>
    %742 = vector.shape_cast %741 : vector<1x1x1x8xf32> to vector<1x8xf32>
    %743 = vector.broadcast %742 : vector<1x8xf32> to vector<16x8xf32>
    %744 = arith.addf %740, %743 : vector<16x8xf32>
    %c1_531 = arith.constant 1 : index
    %c3_532 = arith.constant 3 : index
    %c0_533 = arith.constant 0 : index
    %c0_534 = arith.constant 0 : index
    %745 = vector.load %arg29[%c1_531, %c3_532, %c0_533, %c0_534] : memref<2x4x32x8xbf16, #tpu.memory_space<vmem>>, vector<1x1x32x8xbf16>
    %746 = vector.shape_cast %745 : vector<1x1x32x8xbf16> to vector<32x8xbf16>
    %cst_535 = arith.constant dense<0.000000e+00> : vector<16x8xf32>
    %747 = tpu.matmul %538, %746, %cst_535 {dimension_numbers = #tpu.dot_dimension_numbers<[1], [0], [0], [1], [0, 0, 1, 1], [], []>} : vector<16x32xbf16>, vector<32x8xbf16>, vector<16x8xf32> -> vector<16x8xf32>
    %c1_536 = arith.constant 1 : index
    %c3_537 = arith.constant 3 : index
    %c0_538 = arith.constant 0 : index
    %c0_539 = arith.constant 0 : index
    %748 = vector.load %arg30[%c1_536, %c3_537, %c0_538, %c0_539] : memref<2x4x1x8xf32, #tpu.memory_space<vmem>>, vector<1x1x1x8xf32>
    %749 = vector.shape_cast %748 : vector<1x1x1x8xf32> to vector<1x8xf32>
    %750 = vector.broadcast %749 : vector<1x8xf32> to vector<16x8xf32>
    %751 = arith.addf %747, %750 : vector<16x8xf32>
    %752 = arith.mulf %744, %157 : vector<16x8xf32>
    %753 = arith.mulf %751, %158 : vector<16x8xf32>
    %754 = arith.addf %752, %753 : vector<16x8xf32>
    %755 = arith.truncf %754 : vector<16x8xf32> to vector<16x8xbf16>
    %c1_540 = arith.constant 1 : index
    %c3_541 = arith.constant 3 : index
    %c0_542 = arith.constant 0 : index
    %c0_543 = arith.constant 0 : index
    %756 = vector.load %arg31[%c1_540, %c3_541, %c0_542, %c0_543] : memref<2x4x32x8xbf16, #tpu.memory_space<vmem>>, vector<1x1x32x8xbf16>
    %757 = vector.shape_cast %756 : vector<1x1x32x8xbf16> to vector<32x8xbf16>
    %cst_544 = arith.constant dense<0.000000e+00> : vector<16x8xf32>
    %758 = tpu.matmul %538, %757, %cst_544 {dimension_numbers = #tpu.dot_dimension_numbers<[1], [0], [0], [1], [0, 0, 1, 1], [], []>} : vector<16x32xbf16>, vector<32x8xbf16>, vector<16x8xf32> -> vector<16x8xf32>
    %c1_545 = arith.constant 1 : index
    %c3_546 = arith.constant 3 : index
    %c0_547 = arith.constant 0 : index
    %c0_548 = arith.constant 0 : index
    %759 = vector.load %arg32[%c1_545, %c3_546, %c0_547, %c0_548] : memref<2x4x1x8xf32, #tpu.memory_space<vmem>>, vector<1x1x1x8xf32>
    %760 = vector.shape_cast %759 : vector<1x1x1x8xf32> to vector<1x8xf32>
    %761 = vector.broadcast %760 : vector<1x8xf32> to vector<16x8xf32>
    %762 = arith.addf %758, %761 : vector<16x8xf32>
    %c1_549 = arith.constant 1 : index
    %c3_550 = arith.constant 3 : index
    %c0_551 = arith.constant 0 : index
    %c0_552 = arith.constant 0 : index
    %763 = vector.load %arg33[%c1_549, %c3_550, %c0_551, %c0_552] : memref<2x4x32x8xbf16, #tpu.memory_space<vmem>>, vector<1x1x32x8xbf16>
    %764 = vector.shape_cast %763 : vector<1x1x32x8xbf16> to vector<32x8xbf16>
    %cst_553 = arith.constant dense<0.000000e+00> : vector<16x8xf32>
    %765 = tpu.matmul %538, %764, %cst_553 {dimension_numbers = #tpu.dot_dimension_numbers<[1], [0], [0], [1], [0, 0, 1, 1], [], []>} : vector<16x32xbf16>, vector<32x8xbf16>, vector<16x8xf32> -> vector<16x8xf32>
    %c1_554 = arith.constant 1 : index
    %c3_555 = arith.constant 3 : index
    %c0_556 = arith.constant 0 : index
    %c0_557 = arith.constant 0 : index
    %766 = vector.load %arg34[%c1_554, %c3_555, %c0_556, %c0_557] : memref<2x4x1x8xf32, #tpu.memory_space<vmem>>, vector<1x1x1x8xf32>
    %767 = vector.shape_cast %766 : vector<1x1x1x8xf32> to vector<1x8xf32>
    %768 = vector.broadcast %767 : vector<1x8xf32> to vector<16x8xf32>
    %769 = arith.addf %765, %768 : vector<16x8xf32>
    %770 = arith.mulf %762, %157 : vector<16x8xf32>
    %771 = arith.mulf %769, %158 : vector<16x8xf32>
    %772 = arith.addf %770, %771 : vector<16x8xf32>
    %773 = arith.truncf %772 : vector<16x8xf32> to vector<16x8xbf16>
    %c1_558 = arith.constant 1 : index
    %c3_559 = arith.constant 3 : index
    %c0_560 = arith.constant 0 : index
    %c0_561 = arith.constant 0 : index
    %774 = vector.load %arg35[%c1_558, %c3_559, %c0_560, %c0_561] : memref<2x4x32x8xbf16, #tpu.memory_space<vmem>>, vector<1x1x32x8xbf16>
    %775 = vector.shape_cast %774 : vector<1x1x32x8xbf16> to vector<32x8xbf16>
    %cst_562 = arith.constant dense<0.000000e+00> : vector<16x8xf32>
    %776 = tpu.matmul %538, %775, %cst_562 {dimension_numbers = #tpu.dot_dimension_numbers<[1], [0], [0], [1], [0, 0, 1, 1], [], []>} : vector<16x32xbf16>, vector<32x8xbf16>, vector<16x8xf32> -> vector<16x8xf32>
    %c1_563 = arith.constant 1 : index
    %c3_564 = arith.constant 3 : index
    %c0_565 = arith.constant 0 : index
    %c0_566 = arith.constant 0 : index
    %777 = vector.load %arg36[%c1_563, %c3_564, %c0_565, %c0_566] : memref<2x4x1x8xf32, #tpu.memory_space<vmem>>, vector<1x1x1x8xf32>
    %778 = vector.shape_cast %777 : vector<1x1x1x8xf32> to vector<1x8xf32>
    %779 = vector.broadcast %778 : vector<1x8xf32> to vector<16x8xf32>
    %780 = arith.addf %776, %779 : vector<16x8xf32>
    %781 = arith.truncf %780 : vector<16x8xf32> to vector<16x8xbf16>
    %cst_567 = arith.constant dense<0.000000e+00> : vector<16x16xf32>
    %782 = tpu.matmul %755, %773, %cst_567 {dimension_numbers = #tpu.dot_dimension_numbers<[1], [1], [0], [0], [0, 0, 1, 0], [], []>} : vector<16x8xbf16>, vector<16x8xbf16>, vector<16x16xf32> -> vector<16x16xf32>
    %783 = vector.broadcast %3 : vector<1x16xf32> to vector<16x16xf32>
    %784 = arith.addf %782, %783 : vector<16x16xf32>
    %cst_568 = arith.constant dense<0xFF800000> : vector<16xf32>
    %785 = vector.multi_reduction <maximumf>, %784, %cst_568 [1] : vector<16x16xf32> to vector<16xf32>
    %786 = vector.shape_cast %785 : vector<16xf32> to vector<16x1xf32>
    %787 = vector.broadcast %786 : vector<16x1xf32> to vector<16x16xf32>
    %788 = arith.subf %784, %787 : vector<16x16xf32>
    %789 = math.exp %788 : vector<16x16xf32>
    %cst_569 = arith.constant dense<0.000000e+00> : vector<16xf32>
    %790 = vector.multi_reduction <add>, %789, %cst_569 [1] : vector<16x16xf32> to vector<16xf32>
    %791 = vector.shape_cast %790 : vector<16xf32> to vector<16x1xf32>
    %cst_570 = arith.constant 1.000000e-30 : f32
    %792 = vector.broadcast %cst_570 : f32 to vector<16x1xf32>
    %793 = arith.maximumf %791, %792 : vector<16x1xf32>
    %794 = tpu.reciprocal %793 {approx = true} : vector<16x1xf32> -> vector<16x1xf32>
    %795 = vector.broadcast %794 : vector<16x1xf32> to vector<16x16xf32>
    %796 = arith.mulf %789, %795 : vector<16x16xf32>
    %797 = arith.truncf %796 : vector<16x16xf32> to vector<16x16xbf16>
    %cst_571 = arith.constant dense<0.000000e+00> : vector<16x8xf32>
    %798 = tpu.matmul %797, %781, %cst_571 {dimension_numbers = #tpu.dot_dimension_numbers<[1], [0], [0], [1], [0, 0, 1, 1], [], []>} : vector<16x16xbf16>, vector<16x8xbf16>, vector<16x8xf32> -> vector<16x8xf32>
    %799 = arith.truncf %798 : vector<16x8xf32> to vector<16x8xbf16>
    %c1_572 = arith.constant 1 : index
    %c3_573 = arith.constant 3 : index
    %c0_574 = arith.constant 0 : index
    %c0_575 = arith.constant 0 : index
    %800 = vector.load %arg37[%c1_572, %c3_573, %c0_574, %c0_575] : memref<2x4x8x32xbf16, #tpu.memory_space<vmem>>, vector<1x1x8x32xbf16>
    %801 = vector.shape_cast %800 : vector<1x1x8x32xbf16> to vector<8x32xbf16>
    %cst_576 = arith.constant dense<0.000000e+00> : vector<16x32xf32>
    %802 = tpu.matmul %799, %801, %cst_576 {dimension_numbers = #tpu.dot_dimension_numbers<[1], [0], [0], [1], [0, 0, 1, 1], [], []>} : vector<16x8xbf16>, vector<8x32xbf16>, vector<16x32xf32> -> vector<16x32xf32>
    %803 = arith.addf %737, %802 : vector<16x32xf32>
    %804 = arith.addf %511, %803 : vector<16x32xf32>
    %c1_577 = arith.constant 1 : index
    %c0_578 = arith.constant 0 : index
    %c0_579 = arith.constant 0 : index
    %805 = vector.load %arg38[%c1_577, %c0_578, %c0_579] : memref<2x1x32xf32, #tpu.memory_space<vmem>>, vector<1x1x32xf32>
    %806 = vector.shape_cast %805 : vector<1x1x32xf32> to vector<1x32xf32>
    %807 = vector.broadcast %806 : vector<1x32xf32> to vector<16x32xf32>
    %808 = arith.addf %804, %807 : vector<16x32xf32>
    %c1_580 = arith.constant 1 : index
    %c0_581 = arith.constant 0 : index
    %c0_582 = arith.constant 0 : index
    %809 = vector.load %arg39[%c1_580, %c0_581, %c0_582] : memref<2x1x32xf32, #tpu.memory_space<vmem>>, vector<1x1x32xf32>
    %810 = vector.shape_cast %809 : vector<1x1x32xf32> to vector<1x32xf32>
    %c1_583 = arith.constant 1 : index
    %c0_584 = arith.constant 0 : index
    %c0_585 = arith.constant 0 : index
    %811 = vector.load %arg40[%c1_583, %c0_584, %c0_585] : memref<2x1x32xf32, #tpu.memory_space<vmem>>, vector<1x1x32xf32>
    %812 = vector.shape_cast %811 : vector<1x1x32xf32> to vector<1x32xf32>
    %cst_586 = arith.constant dense<0.000000e+00> : vector<16xf32>
    %813 = vector.multi_reduction <add>, %808, %cst_586 [1] : vector<16x32xf32> to vector<16xf32>
    %814 = vector.shape_cast %813 : vector<16xf32> to vector<16x1xf32>
    %cst_587 = arith.constant 3.200000e+01 : f32
    %815 = vector.broadcast %cst_587 : f32 to vector<16x1xf32>
    %816 = arith.divf %814, %815 : vector<16x1xf32>
    %817 = vector.broadcast %816 : vector<16x1xf32> to vector<16x32xf32>
    %818 = arith.subf %808, %817 : vector<16x32xf32>
    %819 = arith.mulf %818, %818 : vector<16x32xf32>
    %cst_588 = arith.constant dense<0.000000e+00> : vector<16xf32>
    %820 = vector.multi_reduction <add>, %819, %cst_588 [1] : vector<16x32xf32> to vector<16xf32>
    %821 = vector.shape_cast %820 : vector<16xf32> to vector<16x1xf32>
    %cst_589 = arith.constant 3.200000e+01 : f32
    %822 = vector.broadcast %cst_589 : f32 to vector<16x1xf32>
    %823 = arith.divf %821, %822 : vector<16x1xf32>
    %824 = vector.broadcast %816 : vector<16x1xf32> to vector<16x32xf32>
    %825 = arith.subf %808, %824 : vector<16x32xf32>
    %cst_590 = arith.constant 9.99999974E-6 : f32
    %826 = vector.broadcast %cst_590 : f32 to vector<16x1xf32>
    %827 = arith.addf %823, %826 : vector<16x1xf32>
    %828 = math.rsqrt %827 : vector<16x1xf32>
    %829 = vector.broadcast %828 : vector<16x1xf32> to vector<16x32xf32>
    %830 = arith.mulf %825, %829 : vector<16x32xf32>
    %831 = vector.broadcast %810 : vector<1x32xf32> to vector<16x32xf32>
    %832 = arith.mulf %830, %831 : vector<16x32xf32>
    %833 = vector.broadcast %812 : vector<1x32xf32> to vector<16x32xf32>
    %834 = arith.addf %832, %833 : vector<16x32xf32>
    %835 = arith.truncf %834 : vector<16x32xf32> to vector<16x32xbf16>
    %c1_591 = arith.constant 1 : index
    %c0_592 = arith.constant 0 : index
    %c0_593 = arith.constant 0 : index
    %836 = vector.load %arg41[%c1_591, %c0_592, %c0_593] : memref<2x32x64xbf16, #tpu.memory_space<vmem>>, vector<1x32x64xbf16>
    %837 = vector.shape_cast %836 : vector<1x32x64xbf16> to vector<32x64xbf16>
    %cst_594 = arith.constant dense<0.000000e+00> : vector<16x64xf32>
    %838 = tpu.matmul %835, %837, %cst_594 {dimension_numbers = #tpu.dot_dimension_numbers<[1], [0], [0], [1], [0, 0, 1, 1], [], []>} : vector<16x32xbf16>, vector<32x64xbf16>, vector<16x64xf32> -> vector<16x64xf32>
    %c1_595 = arith.constant 1 : index
    %c0_596 = arith.constant 0 : index
    %c0_597 = arith.constant 0 : index
    %839 = vector.load %arg42[%c1_595, %c0_596, %c0_597] : memref<2x1x64xf32, #tpu.memory_space<vmem>>, vector<1x1x64xf32>
    %840 = vector.shape_cast %839 : vector<1x1x64xf32> to vector<1x64xf32>
    %841 = vector.broadcast %840 : vector<1x64xf32> to vector<16x64xf32>
    %842 = arith.addf %838, %841 : vector<16x64xf32>
    %cst_598 = arith.constant 5.000000e-01 : f32
    %843 = vector.broadcast %cst_598 : f32 to vector<16x64xf32>
    %844 = arith.mulf %843, %842 : vector<16x64xf32>
    %cst_599 = arith.constant 4.471500e-02 : f32
    %845 = vector.broadcast %cst_599 : f32 to vector<16x64xf32>
    %846 = arith.mulf %845, %842 : vector<16x64xf32>
    %847 = arith.mulf %846, %842 : vector<16x64xf32>
    %848 = arith.mulf %847, %842 : vector<16x64xf32>
    %849 = arith.addf %842, %848 : vector<16x64xf32>
    %cst_600 = arith.constant 0.797884583 : f32
    %850 = vector.broadcast %cst_600 : f32 to vector<16x64xf32>
    %851 = arith.mulf %850, %849 : vector<16x64xf32>
    %852 = math.tanh %851 : vector<16x64xf32>
    %cst_601 = arith.constant 1.000000e+00 : f32
    %853 = vector.broadcast %cst_601 : f32 to vector<16x64xf32>
    %854 = arith.addf %853, %852 : vector<16x64xf32>
    %855 = arith.mulf %844, %854 : vector<16x64xf32>
    %856 = arith.truncf %855 : vector<16x64xf32> to vector<16x64xbf16>
    %c1_602 = arith.constant 1 : index
    %c0_603 = arith.constant 0 : index
    %c0_604 = arith.constant 0 : index
    %857 = vector.load %arg43[%c1_602, %c0_603, %c0_604] : memref<2x64x32xbf16, #tpu.memory_space<vmem>>, vector<1x64x32xbf16>
    %858 = vector.shape_cast %857 : vector<1x64x32xbf16> to vector<64x32xbf16>
    %cst_605 = arith.constant dense<0.000000e+00> : vector<16x32xf32>
    %859 = tpu.matmul %856, %858, %cst_605 {dimension_numbers = #tpu.dot_dimension_numbers<[1], [0], [0], [1], [0, 0, 1, 1], [], []>} : vector<16x64xbf16>, vector<64x32xbf16>, vector<16x32xf32> -> vector<16x32xf32>
    %860 = arith.addf %808, %859 : vector<16x32xf32>
    %c1_606 = arith.constant 1 : index
    %c0_607 = arith.constant 0 : index
    %c0_608 = arith.constant 0 : index
    %861 = vector.load %arg44[%c1_606, %c0_607, %c0_608] : memref<2x1x32xf32, #tpu.memory_space<vmem>>, vector<1x1x32xf32>
    %862 = vector.shape_cast %861 : vector<1x1x32xf32> to vector<1x32xf32>
    %863 = vector.broadcast %862 : vector<1x32xf32> to vector<16x32xf32>
    %864 = arith.addf %860, %863 : vector<16x32xf32>
    %865 = arith.truncf %864 : vector<16x32xf32> to vector<16x32xbf16>
    %c0_609 = arith.constant 0 : index
    %c0_610 = arith.constant 0 : index
    %866 = vector.load %arg45[%c0_609, %c0_610] : memref<32x64xbf16, #tpu.memory_space<vmem>>, vector<32x64xbf16>
    %cst_611 = arith.constant dense<0.000000e+00> : vector<16x64xf32>
    %867 = tpu.matmul %865, %866, %cst_611 {dimension_numbers = #tpu.dot_dimension_numbers<[1], [0], [0], [1], [0, 0, 1, 1], [], []>} : vector<16x32xbf16>, vector<32x64xbf16>, vector<16x64xf32> -> vector<16x64xf32>
    %c0_612 = arith.constant 0 : index
    %c0_613 = arith.constant 0 : index
    %868 = vector.load %arg46[%c0_612, %c0_613] : memref<1x64xf32, #tpu.memory_space<vmem>>, vector<1x64xf32>
    %869 = vector.broadcast %868 : vector<1x64xf32> to vector<16x64xf32>
    %870 = arith.addf %867, %869 : vector<16x64xf32>
    %871 = arith.truncf %870 : vector<16x64xf32> to vector<16x64xbf16>
    %c0_614 = arith.constant 0 : index
    %c0_615 = arith.constant 0 : index
    %872 = vector.load %arg47[%c0_614, %c0_615] : memref<8x64xf32, #tpu.memory_space<vmem>>, vector<8x64xf32>
    %cst_616 = arith.constant 0.000000e+00 : f32
    %873 = vector.broadcast %cst_616 : f32 to vector<8x64xf32>
    %c0_617 = arith.constant 0 : index
    %c0_618 = arith.constant 0 : index
    %c0_619 = arith.constant 0 : index
    %874 = vector.load %arg49[%c0_617, %c0_618, %c0_619] : memref<4x64x16xbf16, #tpu.memory_space<vmem>>, vector<1x64x16xbf16>
    %875 = vector.shape_cast %874 : vector<1x64x16xbf16> to vector<64x16xbf16>
    %cst_620 = arith.constant dense<0.000000e+00> : vector<16x16xf32>
    %876 = tpu.matmul %871, %875, %cst_620 {dimension_numbers = #tpu.dot_dimension_numbers<[1], [0], [0], [1], [0, 0, 1, 1], [], []>} : vector<16x64xbf16>, vector<64x16xbf16>, vector<16x16xf32> -> vector<16x16xf32>
    %c0_621 = arith.constant 0 : index
    %c0_622 = arith.constant 0 : index
    %c0_623 = arith.constant 0 : index
    %877 = vector.load %arg50[%c0_621, %c0_622, %c0_623] : memref<4x1x16xf32, #tpu.memory_space<vmem>>, vector<1x1x16xf32>
    %878 = vector.shape_cast %877 : vector<1x1x16xf32> to vector<1x16xf32>
    %879 = vector.broadcast %878 : vector<1x16xf32> to vector<16x16xf32>
    %880 = arith.addf %876, %879 : vector<16x16xf32>
    %881 = arith.truncf %880 : vector<16x16xf32> to vector<16x16xbf16>
    %c0_624 = arith.constant 0 : index
    %c0_625 = arith.constant 0 : index
    %c0_626 = arith.constant 0 : index
    %882 = vector.load %arg51[%c0_624, %c0_625, %c0_626] : memref<4x64x16xbf16, #tpu.memory_space<vmem>>, vector<1x64x16xbf16>
    %883 = vector.shape_cast %882 : vector<1x64x16xbf16> to vector<64x16xbf16>
    %cst_627 = arith.constant dense<0.000000e+00> : vector<16x16xf32>
    %884 = tpu.matmul %871, %883, %cst_627 {dimension_numbers = #tpu.dot_dimension_numbers<[1], [0], [0], [1], [0, 0, 1, 1], [], []>} : vector<16x64xbf16>, vector<64x16xbf16>, vector<16x16xf32> -> vector<16x16xf32>
    %c0_628 = arith.constant 0 : index
    %c0_629 = arith.constant 0 : index
    %c0_630 = arith.constant 0 : index
    %885 = vector.load %arg52[%c0_628, %c0_629, %c0_630] : memref<4x1x16xf32, #tpu.memory_space<vmem>>, vector<1x1x16xf32>
    %886 = vector.shape_cast %885 : vector<1x1x16xf32> to vector<1x16xf32>
    %887 = vector.broadcast %886 : vector<1x16xf32> to vector<16x16xf32>
    %888 = arith.addf %884, %887 : vector<16x16xf32>
    %889 = arith.truncf %888 : vector<16x16xf32> to vector<16x16xbf16>
    %c0_631 = arith.constant 0 : index
    %c0_632 = arith.constant 0 : index
    %c0_633 = arith.constant 0 : index
    %890 = vector.load %arg48[%c0_631, %c0_632, %c0_633] : memref<4x8x16xf32, #tpu.memory_space<vmem>>, vector<1x8x16xf32>
    %891 = vector.shape_cast %890 : vector<1x8x16xf32> to vector<8x16xf32>
    %892 = arith.truncf %891 : vector<8x16xf32> to vector<8x16xbf16>
    %cst_634 = arith.constant dense<0.000000e+00> : vector<8x16xf32>
    %893 = tpu.matmul %892, %881, %cst_634 {dimension_numbers = #tpu.dot_dimension_numbers<[1], [1], [0], [0], [0, 0, 1, 0], [], []>} : vector<8x16xbf16>, vector<16x16xbf16>, vector<8x16xf32> -> vector<8x16xf32>
    %894 = vector.broadcast %3 : vector<1x16xf32> to vector<8x16xf32>
    %895 = arith.addf %893, %894 : vector<8x16xf32>
    %cst_635 = arith.constant dense<0xFF800000> : vector<8xf32>
    %896 = vector.multi_reduction <maximumf>, %895, %cst_635 [1] : vector<8x16xf32> to vector<8xf32>
    %897 = vector.shape_cast %896 : vector<8xf32> to vector<8x1xf32>
    %898 = vector.broadcast %897 : vector<8x1xf32> to vector<8x16xf32>
    %899 = arith.subf %895, %898 : vector<8x16xf32>
    %900 = math.exp %899 : vector<8x16xf32>
    %cst_636 = arith.constant dense<0.000000e+00> : vector<8xf32>
    %901 = vector.multi_reduction <add>, %900, %cst_636 [1] : vector<8x16xf32> to vector<8xf32>
    %902 = vector.shape_cast %901 : vector<8xf32> to vector<8x1xf32>
    %cst_637 = arith.constant 1.000000e-30 : f32
    %903 = vector.broadcast %cst_637 : f32 to vector<8x1xf32>
    %904 = arith.maximumf %902, %903 : vector<8x1xf32>
    %905 = tpu.reciprocal %904 {approx = true} : vector<8x1xf32> -> vector<8x1xf32>
    %906 = vector.broadcast %905 : vector<8x1xf32> to vector<8x16xf32>
    %907 = arith.mulf %900, %906 : vector<8x16xf32>
    %908 = arith.truncf %907 : vector<8x16xf32> to vector<8x16xbf16>
    %cst_638 = arith.constant dense<0.000000e+00> : vector<8x16xf32>
    %909 = tpu.matmul %908, %889, %cst_638 {dimension_numbers = #tpu.dot_dimension_numbers<[1], [0], [0], [1], [0, 0, 1, 1], [], []>} : vector<8x16xbf16>, vector<16x16xbf16>, vector<8x16xf32> -> vector<8x16xf32>
    %910 = arith.truncf %909 : vector<8x16xf32> to vector<8x16xbf16>
    %c0_639 = arith.constant 0 : index
    %c0_640 = arith.constant 0 : index
    %c0_641 = arith.constant 0 : index
    %911 = vector.load %arg53[%c0_639, %c0_640, %c0_641] : memref<4x16x64xbf16, #tpu.memory_space<vmem>>, vector<1x16x64xbf16>
    %912 = vector.shape_cast %911 : vector<1x16x64xbf16> to vector<16x64xbf16>
    %cst_642 = arith.constant dense<0.000000e+00> : vector<8x64xf32>
    %913 = tpu.matmul %910, %912, %cst_642 {dimension_numbers = #tpu.dot_dimension_numbers<[1], [0], [0], [1], [0, 0, 1, 1], [], []>} : vector<8x16xbf16>, vector<16x64xbf16>, vector<8x64xf32> -> vector<8x64xf32>
    %914 = arith.addf %873, %913 : vector<8x64xf32>
    %c1_643 = arith.constant 1 : index
    %c0_644 = arith.constant 0 : index
    %c0_645 = arith.constant 0 : index
    %915 = vector.load %arg49[%c1_643, %c0_644, %c0_645] : memref<4x64x16xbf16, #tpu.memory_space<vmem>>, vector<1x64x16xbf16>
    %916 = vector.shape_cast %915 : vector<1x64x16xbf16> to vector<64x16xbf16>
    %cst_646 = arith.constant dense<0.000000e+00> : vector<16x16xf32>
    %917 = tpu.matmul %871, %916, %cst_646 {dimension_numbers = #tpu.dot_dimension_numbers<[1], [0], [0], [1], [0, 0, 1, 1], [], []>} : vector<16x64xbf16>, vector<64x16xbf16>, vector<16x16xf32> -> vector<16x16xf32>
    %c1_647 = arith.constant 1 : index
    %c0_648 = arith.constant 0 : index
    %c0_649 = arith.constant 0 : index
    %918 = vector.load %arg50[%c1_647, %c0_648, %c0_649] : memref<4x1x16xf32, #tpu.memory_space<vmem>>, vector<1x1x16xf32>
    %919 = vector.shape_cast %918 : vector<1x1x16xf32> to vector<1x16xf32>
    %920 = vector.broadcast %919 : vector<1x16xf32> to vector<16x16xf32>
    %921 = arith.addf %917, %920 : vector<16x16xf32>
    %922 = arith.truncf %921 : vector<16x16xf32> to vector<16x16xbf16>
    %c1_650 = arith.constant 1 : index
    %c0_651 = arith.constant 0 : index
    %c0_652 = arith.constant 0 : index
    %923 = vector.load %arg51[%c1_650, %c0_651, %c0_652] : memref<4x64x16xbf16, #tpu.memory_space<vmem>>, vector<1x64x16xbf16>
    %924 = vector.shape_cast %923 : vector<1x64x16xbf16> to vector<64x16xbf16>
    %cst_653 = arith.constant dense<0.000000e+00> : vector<16x16xf32>
    %925 = tpu.matmul %871, %924, %cst_653 {dimension_numbers = #tpu.dot_dimension_numbers<[1], [0], [0], [1], [0, 0, 1, 1], [], []>} : vector<16x64xbf16>, vector<64x16xbf16>, vector<16x16xf32> -> vector<16x16xf32>
    %c1_654 = arith.constant 1 : index
    %c0_655 = arith.constant 0 : index
    %c0_656 = arith.constant 0 : index
    %926 = vector.load %arg52[%c1_654, %c0_655, %c0_656] : memref<4x1x16xf32, #tpu.memory_space<vmem>>, vector<1x1x16xf32>
    %927 = vector.shape_cast %926 : vector<1x1x16xf32> to vector<1x16xf32>
    %928 = vector.broadcast %927 : vector<1x16xf32> to vector<16x16xf32>
    %929 = arith.addf %925, %928 : vector<16x16xf32>
    %930 = arith.truncf %929 : vector<16x16xf32> to vector<16x16xbf16>
    %c1_657 = arith.constant 1 : index
    %c0_658 = arith.constant 0 : index
    %c0_659 = arith.constant 0 : index
    %931 = vector.load %arg48[%c1_657, %c0_658, %c0_659] : memref<4x8x16xf32, #tpu.memory_space<vmem>>, vector<1x8x16xf32>
    %932 = vector.shape_cast %931 : vector<1x8x16xf32> to vector<8x16xf32>
    %933 = arith.truncf %932 : vector<8x16xf32> to vector<8x16xbf16>
    %cst_660 = arith.constant dense<0.000000e+00> : vector<8x16xf32>
    %934 = tpu.matmul %933, %922, %cst_660 {dimension_numbers = #tpu.dot_dimension_numbers<[1], [1], [0], [0], [0, 0, 1, 0], [], []>} : vector<8x16xbf16>, vector<16x16xbf16>, vector<8x16xf32> -> vector<8x16xf32>
    %935 = vector.broadcast %3 : vector<1x16xf32> to vector<8x16xf32>
    %936 = arith.addf %934, %935 : vector<8x16xf32>
    %cst_661 = arith.constant dense<0xFF800000> : vector<8xf32>
    %937 = vector.multi_reduction <maximumf>, %936, %cst_661 [1] : vector<8x16xf32> to vector<8xf32>
    %938 = vector.shape_cast %937 : vector<8xf32> to vector<8x1xf32>
    %939 = vector.broadcast %938 : vector<8x1xf32> to vector<8x16xf32>
    %940 = arith.subf %936, %939 : vector<8x16xf32>
    %941 = math.exp %940 : vector<8x16xf32>
    %cst_662 = arith.constant dense<0.000000e+00> : vector<8xf32>
    %942 = vector.multi_reduction <add>, %941, %cst_662 [1] : vector<8x16xf32> to vector<8xf32>
    %943 = vector.shape_cast %942 : vector<8xf32> to vector<8x1xf32>
    %cst_663 = arith.constant 1.000000e-30 : f32
    %944 = vector.broadcast %cst_663 : f32 to vector<8x1xf32>
    %945 = arith.maximumf %943, %944 : vector<8x1xf32>
    %946 = tpu.reciprocal %945 {approx = true} : vector<8x1xf32> -> vector<8x1xf32>
    %947 = vector.broadcast %946 : vector<8x1xf32> to vector<8x16xf32>
    %948 = arith.mulf %941, %947 : vector<8x16xf32>
    %949 = arith.truncf %948 : vector<8x16xf32> to vector<8x16xbf16>
    %cst_664 = arith.constant dense<0.000000e+00> : vector<8x16xf32>
    %950 = tpu.matmul %949, %930, %cst_664 {dimension_numbers = #tpu.dot_dimension_numbers<[1], [0], [0], [1], [0, 0, 1, 1], [], []>} : vector<8x16xbf16>, vector<16x16xbf16>, vector<8x16xf32> -> vector<8x16xf32>
    %951 = arith.truncf %950 : vector<8x16xf32> to vector<8x16xbf16>
    %c1_665 = arith.constant 1 : index
    %c0_666 = arith.constant 0 : index
    %c0_667 = arith.constant 0 : index
    %952 = vector.load %arg53[%c1_665, %c0_666, %c0_667] : memref<4x16x64xbf16, #tpu.memory_space<vmem>>, vector<1x16x64xbf16>
    %953 = vector.shape_cast %952 : vector<1x16x64xbf16> to vector<16x64xbf16>
    %cst_668 = arith.constant dense<0.000000e+00> : vector<8x64xf32>
    %954 = tpu.matmul %951, %953, %cst_668 {dimension_numbers = #tpu.dot_dimension_numbers<[1], [0], [0], [1], [0, 0, 1, 1], [], []>} : vector<8x16xbf16>, vector<16x64xbf16>, vector<8x64xf32> -> vector<8x64xf32>
    %955 = arith.addf %914, %954 : vector<8x64xf32>
    %c2_669 = arith.constant 2 : index
    %c0_670 = arith.constant 0 : index
    %c0_671 = arith.constant 0 : index
    %956 = vector.load %arg49[%c2_669, %c0_670, %c0_671] : memref<4x64x16xbf16, #tpu.memory_space<vmem>>, vector<1x64x16xbf16>
    %957 = vector.shape_cast %956 : vector<1x64x16xbf16> to vector<64x16xbf16>
    %cst_672 = arith.constant dense<0.000000e+00> : vector<16x16xf32>
    %958 = tpu.matmul %871, %957, %cst_672 {dimension_numbers = #tpu.dot_dimension_numbers<[1], [0], [0], [1], [0, 0, 1, 1], [], []>} : vector<16x64xbf16>, vector<64x16xbf16>, vector<16x16xf32> -> vector<16x16xf32>
    %c2_673 = arith.constant 2 : index
    %c0_674 = arith.constant 0 : index
    %c0_675 = arith.constant 0 : index
    %959 = vector.load %arg50[%c2_673, %c0_674, %c0_675] : memref<4x1x16xf32, #tpu.memory_space<vmem>>, vector<1x1x16xf32>
    %960 = vector.shape_cast %959 : vector<1x1x16xf32> to vector<1x16xf32>
    %961 = vector.broadcast %960 : vector<1x16xf32> to vector<16x16xf32>
    %962 = arith.addf %958, %961 : vector<16x16xf32>
    %963 = arith.truncf %962 : vector<16x16xf32> to vector<16x16xbf16>
    %c2_676 = arith.constant 2 : index
    %c0_677 = arith.constant 0 : index
    %c0_678 = arith.constant 0 : index
    %964 = vector.load %arg51[%c2_676, %c0_677, %c0_678] : memref<4x64x16xbf16, #tpu.memory_space<vmem>>, vector<1x64x16xbf16>
    %965 = vector.shape_cast %964 : vector<1x64x16xbf16> to vector<64x16xbf16>
    %cst_679 = arith.constant dense<0.000000e+00> : vector<16x16xf32>
    %966 = tpu.matmul %871, %965, %cst_679 {dimension_numbers = #tpu.dot_dimension_numbers<[1], [0], [0], [1], [0, 0, 1, 1], [], []>} : vector<16x64xbf16>, vector<64x16xbf16>, vector<16x16xf32> -> vector<16x16xf32>
    %c2_680 = arith.constant 2 : index
    %c0_681 = arith.constant 0 : index
    %c0_682 = arith.constant 0 : index
    %967 = vector.load %arg52[%c2_680, %c0_681, %c0_682] : memref<4x1x16xf32, #tpu.memory_space<vmem>>, vector<1x1x16xf32>
    %968 = vector.shape_cast %967 : vector<1x1x16xf32> to vector<1x16xf32>
    %969 = vector.broadcast %968 : vector<1x16xf32> to vector<16x16xf32>
    %970 = arith.addf %966, %969 : vector<16x16xf32>
    %971 = arith.truncf %970 : vector<16x16xf32> to vector<16x16xbf16>
    %c2_683 = arith.constant 2 : index
    %c0_684 = arith.constant 0 : index
    %c0_685 = arith.constant 0 : index
    %972 = vector.load %arg48[%c2_683, %c0_684, %c0_685] : memref<4x8x16xf32, #tpu.memory_space<vmem>>, vector<1x8x16xf32>
    %973 = vector.shape_cast %972 : vector<1x8x16xf32> to vector<8x16xf32>
    %974 = arith.truncf %973 : vector<8x16xf32> to vector<8x16xbf16>
    %cst_686 = arith.constant dense<0.000000e+00> : vector<8x16xf32>
    %975 = tpu.matmul %974, %963, %cst_686 {dimension_numbers = #tpu.dot_dimension_numbers<[1], [1], [0], [0], [0, 0, 1, 0], [], []>} : vector<8x16xbf16>, vector<16x16xbf16>, vector<8x16xf32> -> vector<8x16xf32>
    %976 = vector.broadcast %3 : vector<1x16xf32> to vector<8x16xf32>
    %977 = arith.addf %975, %976 : vector<8x16xf32>
    %cst_687 = arith.constant dense<0xFF800000> : vector<8xf32>
    %978 = vector.multi_reduction <maximumf>, %977, %cst_687 [1] : vector<8x16xf32> to vector<8xf32>
    %979 = vector.shape_cast %978 : vector<8xf32> to vector<8x1xf32>
    %980 = vector.broadcast %979 : vector<8x1xf32> to vector<8x16xf32>
    %981 = arith.subf %977, %980 : vector<8x16xf32>
    %982 = math.exp %981 : vector<8x16xf32>
    %cst_688 = arith.constant dense<0.000000e+00> : vector<8xf32>
    %983 = vector.multi_reduction <add>, %982, %cst_688 [1] : vector<8x16xf32> to vector<8xf32>
    %984 = vector.shape_cast %983 : vector<8xf32> to vector<8x1xf32>
    %cst_689 = arith.constant 1.000000e-30 : f32
    %985 = vector.broadcast %cst_689 : f32 to vector<8x1xf32>
    %986 = arith.maximumf %984, %985 : vector<8x1xf32>
    %987 = tpu.reciprocal %986 {approx = true} : vector<8x1xf32> -> vector<8x1xf32>
    %988 = vector.broadcast %987 : vector<8x1xf32> to vector<8x16xf32>
    %989 = arith.mulf %982, %988 : vector<8x16xf32>
    %990 = arith.truncf %989 : vector<8x16xf32> to vector<8x16xbf16>
    %cst_690 = arith.constant dense<0.000000e+00> : vector<8x16xf32>
    %991 = tpu.matmul %990, %971, %cst_690 {dimension_numbers = #tpu.dot_dimension_numbers<[1], [0], [0], [1], [0, 0, 1, 1], [], []>} : vector<8x16xbf16>, vector<16x16xbf16>, vector<8x16xf32> -> vector<8x16xf32>
    %992 = arith.truncf %991 : vector<8x16xf32> to vector<8x16xbf16>
    %c2_691 = arith.constant 2 : index
    %c0_692 = arith.constant 0 : index
    %c0_693 = arith.constant 0 : index
    %993 = vector.load %arg53[%c2_691, %c0_692, %c0_693] : memref<4x16x64xbf16, #tpu.memory_space<vmem>>, vector<1x16x64xbf16>
    %994 = vector.shape_cast %993 : vector<1x16x64xbf16> to vector<16x64xbf16>
    %cst_694 = arith.constant dense<0.000000e+00> : vector<8x64xf32>
    %995 = tpu.matmul %992, %994, %cst_694 {dimension_numbers = #tpu.dot_dimension_numbers<[1], [0], [0], [1], [0, 0, 1, 1], [], []>} : vector<8x16xbf16>, vector<16x64xbf16>, vector<8x64xf32> -> vector<8x64xf32>
    %996 = arith.addf %955, %995 : vector<8x64xf32>
    %c3_695 = arith.constant 3 : index
    %c0_696 = arith.constant 0 : index
    %c0_697 = arith.constant 0 : index
    %997 = vector.load %arg49[%c3_695, %c0_696, %c0_697] : memref<4x64x16xbf16, #tpu.memory_space<vmem>>, vector<1x64x16xbf16>
    %998 = vector.shape_cast %997 : vector<1x64x16xbf16> to vector<64x16xbf16>
    %cst_698 = arith.constant dense<0.000000e+00> : vector<16x16xf32>
    %999 = tpu.matmul %871, %998, %cst_698 {dimension_numbers = #tpu.dot_dimension_numbers<[1], [0], [0], [1], [0, 0, 1, 1], [], []>} : vector<16x64xbf16>, vector<64x16xbf16>, vector<16x16xf32> -> vector<16x16xf32>
    %c3_699 = arith.constant 3 : index
    %c0_700 = arith.constant 0 : index
    %c0_701 = arith.constant 0 : index
    %1000 = vector.load %arg50[%c3_699, %c0_700, %c0_701] : memref<4x1x16xf32, #tpu.memory_space<vmem>>, vector<1x1x16xf32>
    %1001 = vector.shape_cast %1000 : vector<1x1x16xf32> to vector<1x16xf32>
    %1002 = vector.broadcast %1001 : vector<1x16xf32> to vector<16x16xf32>
    %1003 = arith.addf %999, %1002 : vector<16x16xf32>
    %1004 = arith.truncf %1003 : vector<16x16xf32> to vector<16x16xbf16>
    %c3_702 = arith.constant 3 : index
    %c0_703 = arith.constant 0 : index
    %c0_704 = arith.constant 0 : index
    %1005 = vector.load %arg51[%c3_702, %c0_703, %c0_704] : memref<4x64x16xbf16, #tpu.memory_space<vmem>>, vector<1x64x16xbf16>
    %1006 = vector.shape_cast %1005 : vector<1x64x16xbf16> to vector<64x16xbf16>
    %cst_705 = arith.constant dense<0.000000e+00> : vector<16x16xf32>
    %1007 = tpu.matmul %871, %1006, %cst_705 {dimension_numbers = #tpu.dot_dimension_numbers<[1], [0], [0], [1], [0, 0, 1, 1], [], []>} : vector<16x64xbf16>, vector<64x16xbf16>, vector<16x16xf32> -> vector<16x16xf32>
    %c3_706 = arith.constant 3 : index
    %c0_707 = arith.constant 0 : index
    %c0_708 = arith.constant 0 : index
    %1008 = vector.load %arg52[%c3_706, %c0_707, %c0_708] : memref<4x1x16xf32, #tpu.memory_space<vmem>>, vector<1x1x16xf32>
    %1009 = vector.shape_cast %1008 : vector<1x1x16xf32> to vector<1x16xf32>
    %1010 = vector.broadcast %1009 : vector<1x16xf32> to vector<16x16xf32>
    %1011 = arith.addf %1007, %1010 : vector<16x16xf32>
    %1012 = arith.truncf %1011 : vector<16x16xf32> to vector<16x16xbf16>
    %c3_709 = arith.constant 3 : index
    %c0_710 = arith.constant 0 : index
    %c0_711 = arith.constant 0 : index
    %1013 = vector.load %arg48[%c3_709, %c0_710, %c0_711] : memref<4x8x16xf32, #tpu.memory_space<vmem>>, vector<1x8x16xf32>
    %1014 = vector.shape_cast %1013 : vector<1x8x16xf32> to vector<8x16xf32>
    %1015 = arith.truncf %1014 : vector<8x16xf32> to vector<8x16xbf16>
    %cst_712 = arith.constant dense<0.000000e+00> : vector<8x16xf32>
    %1016 = tpu.matmul %1015, %1004, %cst_712 {dimension_numbers = #tpu.dot_dimension_numbers<[1], [1], [0], [0], [0, 0, 1, 0], [], []>} : vector<8x16xbf16>, vector<16x16xbf16>, vector<8x16xf32> -> vector<8x16xf32>
    %1017 = vector.broadcast %3 : vector<1x16xf32> to vector<8x16xf32>
    %1018 = arith.addf %1016, %1017 : vector<8x16xf32>
    %cst_713 = arith.constant dense<0xFF800000> : vector<8xf32>
    %1019 = vector.multi_reduction <maximumf>, %1018, %cst_713 [1] : vector<8x16xf32> to vector<8xf32>
    %1020 = vector.shape_cast %1019 : vector<8xf32> to vector<8x1xf32>
    %1021 = vector.broadcast %1020 : vector<8x1xf32> to vector<8x16xf32>
    %1022 = arith.subf %1018, %1021 : vector<8x16xf32>
    %1023 = math.exp %1022 : vector<8x16xf32>
    %cst_714 = arith.constant dense<0.000000e+00> : vector<8xf32>
    %1024 = vector.multi_reduction <add>, %1023, %cst_714 [1] : vector<8x16xf32> to vector<8xf32>
    %1025 = vector.shape_cast %1024 : vector<8xf32> to vector<8x1xf32>
    %cst_715 = arith.constant 1.000000e-30 : f32
    %1026 = vector.broadcast %cst_715 : f32 to vector<8x1xf32>
    %1027 = arith.maximumf %1025, %1026 : vector<8x1xf32>
    %1028 = tpu.reciprocal %1027 {approx = true} : vector<8x1xf32> -> vector<8x1xf32>
    %1029 = vector.broadcast %1028 : vector<8x1xf32> to vector<8x16xf32>
    %1030 = arith.mulf %1023, %1029 : vector<8x16xf32>
    %1031 = arith.truncf %1030 : vector<8x16xf32> to vector<8x16xbf16>
    %cst_716 = arith.constant dense<0.000000e+00> : vector<8x16xf32>
    %1032 = tpu.matmul %1031, %1012, %cst_716 {dimension_numbers = #tpu.dot_dimension_numbers<[1], [0], [0], [1], [0, 0, 1, 1], [], []>} : vector<8x16xbf16>, vector<16x16xbf16>, vector<8x16xf32> -> vector<8x16xf32>
    %1033 = arith.truncf %1032 : vector<8x16xf32> to vector<8x16xbf16>
    %c3_717 = arith.constant 3 : index
    %c0_718 = arith.constant 0 : index
    %c0_719 = arith.constant 0 : index
    %1034 = vector.load %arg53[%c3_717, %c0_718, %c0_719] : memref<4x16x64xbf16, #tpu.memory_space<vmem>>, vector<1x16x64xbf16>
    %1035 = vector.shape_cast %1034 : vector<1x16x64xbf16> to vector<16x64xbf16>
    %cst_720 = arith.constant dense<0.000000e+00> : vector<8x64xf32>
    %1036 = tpu.matmul %1033, %1035, %cst_720 {dimension_numbers = #tpu.dot_dimension_numbers<[1], [0], [0], [1], [0, 0, 1, 1], [], []>} : vector<8x16xbf16>, vector<16x64xbf16>, vector<8x64xf32> -> vector<8x64xf32>
    %1037 = arith.addf %996, %1036 : vector<8x64xf32>
    %1038 = arith.addf %872, %1037 : vector<8x64xf32>
    %c0_721 = arith.constant 0 : index
    %c0_722 = arith.constant 0 : index
    %1039 = vector.load %arg54[%c0_721, %c0_722] : memref<1x64xf32, #tpu.memory_space<vmem>>, vector<1x64xf32>
    %1040 = vector.broadcast %1039 : vector<1x64xf32> to vector<8x64xf32>
    %1041 = arith.addf %1038, %1040 : vector<8x64xf32>
    %c0_723 = arith.constant 0 : index
    %c0_724 = arith.constant 0 : index
    %1042 = vector.load %arg55[%c0_723, %c0_724] : memref<1x64xf32, #tpu.memory_space<vmem>>, vector<1x64xf32>
    %c0_725 = arith.constant 0 : index
    %c0_726 = arith.constant 0 : index
    %1043 = vector.load %arg56[%c0_725, %c0_726] : memref<1x64xf32, #tpu.memory_space<vmem>>, vector<1x64xf32>
    %cst_727 = arith.constant dense<0.000000e+00> : vector<8xf32>
    %1044 = vector.multi_reduction <add>, %1041, %cst_727 [1] : vector<8x64xf32> to vector<8xf32>
    %1045 = vector.shape_cast %1044 : vector<8xf32> to vector<8x1xf32>
    %cst_728 = arith.constant 6.400000e+01 : f32
    %1046 = vector.broadcast %cst_728 : f32 to vector<8x1xf32>
    %1047 = arith.divf %1045, %1046 : vector<8x1xf32>
    %1048 = vector.broadcast %1047 : vector<8x1xf32> to vector<8x64xf32>
    %1049 = arith.subf %1041, %1048 : vector<8x64xf32>
    %1050 = arith.mulf %1049, %1049 : vector<8x64xf32>
    %cst_729 = arith.constant dense<0.000000e+00> : vector<8xf32>
    %1051 = vector.multi_reduction <add>, %1050, %cst_729 [1] : vector<8x64xf32> to vector<8xf32>
    %1052 = vector.shape_cast %1051 : vector<8xf32> to vector<8x1xf32>
    %cst_730 = arith.constant 6.400000e+01 : f32
    %1053 = vector.broadcast %cst_730 : f32 to vector<8x1xf32>
    %1054 = arith.divf %1052, %1053 : vector<8x1xf32>
    %1055 = vector.broadcast %1047 : vector<8x1xf32> to vector<8x64xf32>
    %1056 = arith.subf %1041, %1055 : vector<8x64xf32>
    %cst_731 = arith.constant 9.99999974E-6 : f32
    %1057 = vector.broadcast %cst_731 : f32 to vector<8x1xf32>
    %1058 = arith.addf %1054, %1057 : vector<8x1xf32>
    %1059 = math.rsqrt %1058 : vector<8x1xf32>
    %1060 = vector.broadcast %1059 : vector<8x1xf32> to vector<8x64xf32>
    %1061 = arith.mulf %1056, %1060 : vector<8x64xf32>
    %1062 = vector.broadcast %1042 : vector<1x64xf32> to vector<8x64xf32>
    %1063 = arith.mulf %1061, %1062 : vector<8x64xf32>
    %1064 = vector.broadcast %1043 : vector<1x64xf32> to vector<8x64xf32>
    %1065 = arith.addf %1063, %1064 : vector<8x64xf32>
    %1066 = vector.shape_cast %1065 : vector<8x64xf32> to vector<1x8x64xf32>
    %c0_732 = arith.constant 0 : index
    %c0_733 = arith.constant 0 : index
    %c0_734 = arith.constant 0 : index
    %1067 = vector.load %arg57[%c0_732, %c0_733, %c0_734] : memref<1x8x64xf32, #tpu.memory_space<vmem>>, vector<1x8x64xf32>
    tpu.vector_store %arg57[%c0_732, %c0_733, %c0_734], %1066 {strides = array<i32>} : memref<1x8x64xf32, #tpu.memory_space<vmem>>, vector<1x8x64xf32>,
    return
  }
  func.func @transform_0(%arg0: i32) -> (i32, i32, i32) {
    %c0_i32 = arith.constant 0 : i32
    %c0_i32_0 = arith.constant 0 : i32
    %c0_i32_1 = arith.constant 0 : i32
    return %arg0, %c0_i32, %c0_i32_0 : i32, i32, i32
  }
  func.func @transform_1(%arg0: i32) -> (i32, i32, i32) {
    %c0_i32 = arith.constant 0 : i32
    %c0_i32_0 = arith.constant 0 : i32
    %c0_i32_1 = arith.constant 0 : i32
    return %arg0, %c0_i32, %c0_i32_0 : i32, i32, i32
  }
  func.func @transform_2(%arg0: i32) -> (i32, i32) {
    %c0_i32 = arith.constant 0 : i32
    %c0_i32_0 = arith.constant 0 : i32
    %c0_i32_1 = arith.constant 0 : i32
    return %c0_i32, %c0_i32_0 : i32, i32
  }
  func.func @transform_3(%arg0: i32) -> (i32, i32) {
    %c0_i32 = arith.constant 0 : i32
    %c0_i32_0 = arith.constant 0 : i32
    %c0_i32_1 = arith.constant 0 : i32
    return %c0_i32, %c0_i32_0 : i32, i32
  }
  func.func @transform_4(%arg0: i32) -> (i32, i32) {
    %c0_i32 = arith.constant 0 : i32
    %c0_i32_0 = arith.constant 0 : i32
    %c0_i32_1 = arith.constant 0 : i32
    return %c0_i32, %c0_i32_0 : i32, i32
  }
  func.func @transform_5(%arg0: i32) -> (i32, i32) {
    %c0_i32 = arith.constant 0 : i32
    %c0_i32_0 = arith.constant 0 : i32
    %c0_i32_1 = arith.constant 0 : i32
    return %c0_i32, %c0_i32_0 : i32, i32
  }
  func.func @transform_6(%arg0: i32) -> (i32, i32) {
    %c0_i32 = arith.constant 0 : i32
    %c0_i32_0 = arith.constant 0 : i32
    %c0_i32_1 = arith.constant 0 : i32
    return %c0_i32, %c0_i32_0 : i32, i32
  }
  func.func @transform_7(%arg0: i32) -> (i32, i32) {
    %c0_i32 = arith.constant 0 : i32
    %c0_i32_0 = arith.constant 0 : i32
    %c0_i32_1 = arith.constant 0 : i32
    return %c0_i32, %c0_i32_0 : i32, i32
  }
  func.func @transform_8(%arg0: i32) -> (i32, i32) {
    %c0_i32 = arith.constant 0 : i32
    %c0_i32_0 = arith.constant 0 : i32
    %c0_i32_1 = arith.constant 0 : i32
    return %c0_i32, %c0_i32_0 : i32, i32
  }
  func.func @transform_9(%arg0: i32) -> (i32, i32) {
    %c0_i32 = arith.constant 0 : i32
    %c0_i32_0 = arith.constant 0 : i32
    %c0_i32_1 = arith.constant 0 : i32
    return %c0_i32, %c0_i32_0 : i32, i32
  }
  func.func @transform_10(%arg0: i32) -> (i32, i32) {
    %c0_i32 = arith.constant 0 : i32
    %c0_i32_0 = arith.constant 0 : i32
    %c0_i32_1 = arith.constant 0 : i32
    return %c0_i32, %c0_i32_0 : i32, i32
  }
  func.func @transform_11(%arg0: i32) -> (i32, i32) {
    %c0_i32 = arith.constant 0 : i32
    %c0_i32_0 = arith.constant 0 : i32
    %c0_i32_1 = arith.constant 0 : i32
    return %c0_i32, %c0_i32_0 : i32, i32
  }
  func.func @transform_12(%arg0: i32) -> (i32, i32) {
    %c0_i32 = arith.constant 0 : i32
    %c0_i32_0 = arith.constant 0 : i32
    %c0_i32_1 = arith.constant 0 : i32
    return %c0_i32, %c0_i32_0 : i32, i32
  }
  func.func @transform_13(%arg0: i32) -> (i32, i32) {
    %c0_i32 = arith.constant 0 : i32
    %c0_i32_0 = arith.constant 0 : i32
    %c0_i32_1 = arith.constant 0 : i32
    return %c0_i32, %c0_i32_0 : i32, i32
  }
  func.func @transform_14(%arg0: i32) -> (i32, i32) {
    %c0_i32 = arith.constant 0 : i32
    %c0_i32_0 = arith.constant 0 : i32
    %c0_i32_1 = arith.constant 0 : i32
    return %c0_i32, %c0_i32_0 : i32, i32
  }
  func.func @transform_15(%arg0: i32) -> (i32, i32) {
    %c0_i32 = arith.constant 0 : i32
    %c0_i32_0 = arith.constant 0 : i32
    %c0_i32_1 = arith.constant 0 : i32
    return %c0_i32, %c0_i32_0 : i32, i32
  }
  func.func @transform_16(%arg0: i32) -> (i32, i32) {
    %c0_i32 = arith.constant 0 : i32
    %c0_i32_0 = arith.constant 0 : i32
    %c0_i32_1 = arith.constant 0 : i32
    return %c0_i32, %c0_i32_0 : i32, i32
  }
  func.func @transform_17(%arg0: i32) -> (i32, i32) {
    %c0_i32 = arith.constant 0 : i32
    %c0_i32_0 = arith.constant 0 : i32
    %c0_i32_1 = arith.constant 0 : i32
    return %c0_i32, %c0_i32_0 : i32, i32
  }
  func.func @transform_18(%arg0: i32) -> (i32, i32) {
    %c0_i32 = arith.constant 0 : i32
    %c0_i32_0 = arith.constant 0 : i32
    %c0_i32_1 = arith.constant 0 : i32
    return %c0_i32, %c0_i32_0 : i32, i32
  }
  func.func @transform_19(%arg0: i32) -> (i32, i32) {
    %c0_i32 = arith.constant 0 : i32
    %c0_i32_0 = arith.constant 0 : i32
    %c0_i32_1 = arith.constant 0 : i32
    return %c0_i32, %c0_i32_0 : i32, i32
  }
  func.func @transform_20(%arg0: i32) -> (i32, i32) {
    %c0_i32 = arith.constant 0 : i32
    %c0_i32_0 = arith.constant 0 : i32
    %c0_i32_1 = arith.constant 0 : i32
    return %c0_i32, %c0_i32_0 : i32, i32
  }
  func.func @transform_21(%arg0: i32) -> (i32, i32) {
    %c0_i32 = arith.constant 0 : i32
    %c0_i32_0 = arith.constant 0 : i32
    %c0_i32_1 = arith.constant 0 : i32
    return %c0_i32, %c0_i32_0 : i32, i32
  }
  func.func @transform_22(%arg0: i32) -> (i32, i32) {
    %c0_i32 = arith.constant 0 : i32
    %c0_i32_0 = arith.constant 0 : i32
    %c0_i32_1 = arith.constant 0 : i32
    return %c0_i32, %c0_i32_0 : i32, i32
  }
  func.func @transform_23(%arg0: i32) -> (i32, i32) {
    %c0_i32 = arith.constant 0 : i32
    %c0_i32_0 = arith.constant 0 : i32
    %c0_i32_1 = arith.constant 0 : i32
    return %c0_i32, %c0_i32_0 : i32, i32
  }
  func.func @transform_24(%arg0: i32) -> (i32, i32, i32) {
    %c0_i32 = arith.constant 0 : i32
    %c0_i32_0 = arith.constant 0 : i32
    %c0_i32_1 = arith.constant 0 : i32
    %c0_i32_2 = arith.constant 0 : i32
    return %c0_i32, %c0_i32_0, %c0_i32_1 : i32, i32, i32
  }
  func.func @transform_25(%arg0: i32) -> (i32, i32, i32) {
    %c0_i32 = arith.constant 0 : i32
    %c0_i32_0 = arith.constant 0 : i32
    %c0_i32_1 = arith.constant 0 : i32
    %c0_i32_2 = arith.constant 0 : i32
    return %c0_i32, %c0_i32_0, %c0_i32_1 : i32, i32, i32
  }
  func.func @transform_26(%arg0: i32) -> (i32, i32, i32, i32) {
    %c0_i32 = arith.constant 0 : i32
    %c0_i32_0 = arith.constant 0 : i32
    %c0_i32_1 = arith.constant 0 : i32
    %c0_i32_2 = arith.constant 0 : i32
    %c0_i32_3 = arith.constant 0 : i32
    return %c0_i32, %c0_i32_0, %c0_i32_1, %c0_i32_2 : i32, i32, i32, i32
  }
  func.func @transform_27(%arg0: i32) -> (i32, i32, i32, i32) {
    %c0_i32 = arith.constant 0 : i32
    %c0_i32_0 = arith.constant 0 : i32
    %c0_i32_1 = arith.constant 0 : i32
    %c0_i32_2 = arith.constant 0 : i32
    %c0_i32_3 = arith.constant 0 : i32
    return %c0_i32, %c0_i32_0, %c0_i32_1, %c0_i32_2 : i32, i32, i32, i32
  }
  func.func @transform_28(%arg0: i32) -> (i32, i32, i32, i32) {
    %c0_i32 = arith.constant 0 : i32
    %c0_i32_0 = arith.constant 0 : i32
    %c0_i32_1 = arith.constant 0 : i32
    %c0_i32_2 = arith.constant 0 : i32
    %c0_i32_3 = arith.constant 0 : i32
    return %c0_i32, %c0_i32_0, %c0_i32_1, %c0_i32_2 : i32, i32, i32, i32
  }
  func.func @transform_29(%arg0: i32) -> (i32, i32, i32, i32) {
    %c0_i32 = arith.constant 0 : i32
    %c0_i32_0 = arith.constant 0 : i32
    %c0_i32_1 = arith.constant 0 : i32
    %c0_i32_2 = arith.constant 0 : i32
    %c0_i32_3 = arith.constant 0 : i32
    return %c0_i32, %c0_i32_0, %c0_i32_1, %c0_i32_2 : i32, i32, i32, i32
  }
  func.func @transform_30(%arg0: i32) -> (i32, i32, i32, i32) {
    %c0_i32 = arith.constant 0 : i32
    %c0_i32_0 = arith.constant 0 : i32
    %c0_i32_1 = arith.constant 0 : i32
    %c0_i32_2 = arith.constant 0 : i32
    %c0_i32_3 = arith.constant 0 : i32
    return %c0_i32, %c0_i32_0, %c0_i32_1, %c0_i32_2 : i32, i32, i32, i32
  }
  func.func @transform_31(%arg0: i32) -> (i32, i32, i32, i32) {
    %c0_i32 = arith.constant 0 : i32
    %c0_i32_0 = arith.constant 0 : i32
    %c0_i32_1 = arith.constant 0 : i32
    %c0_i32_2 = arith.constant 0 : i32
    %c0_i32_3 = arith.constant 0 : i32
    return %c0_i32, %c0_i32_0, %c0_i32_1, %c0_i32_2 : i32, i32, i32, i32
  }
  func.func @transform_32(%arg0: i32) -> (i32, i32, i32, i32) {
    %c0_i32 = arith.constant 0 : i32
    %c0_i32_0 = arith.constant 0 : i32
    %c0_i32_1 = arith.constant 0 : i32
    %c0_i32_2 = arith.constant 0 : i32
    %c0_i32_3 = arith.constant 0 : i32
    return %c0_i32, %c0_i32_0, %c0_i32_1, %c0_i32_2 : i32, i32, i32, i32
  }
  func.func @transform_33(%arg0: i32) -> (i32, i32, i32, i32) {
    %c0_i32 = arith.constant 0 : i32
    %c0_i32_0 = arith.constant 0 : i32
    %c0_i32_1 = arith.constant 0 : i32
    %c0_i32_2 = arith.constant 0 : i32
    %c0_i32_3 = arith.constant 0 : i32
    return %c0_i32, %c0_i32_0, %c0_i32_1, %c0_i32_2 : i32, i32, i32, i32
  }
  func.func @transform_34(%arg0: i32) -> (i32, i32, i32, i32) {
    %c0_i32 = arith.constant 0 : i32
    %c0_i32_0 = arith.constant 0 : i32
    %c0_i32_1 = arith.constant 0 : i32
    %c0_i32_2 = arith.constant 0 : i32
    %c0_i32_3 = arith.constant 0 : i32
    return %c0_i32, %c0_i32_0, %c0_i32_1, %c0_i32_2 : i32, i32, i32, i32
  }
  func.func @transform_35(%arg0: i32) -> (i32, i32, i32, i32) {
    %c0_i32 = arith.constant 0 : i32
    %c0_i32_0 = arith.constant 0 : i32
    %c0_i32_1 = arith.constant 0 : i32
    %c0_i32_2 = arith.constant 0 : i32
    %c0_i32_3 = arith.constant 0 : i32
    return %c0_i32, %c0_i32_0, %c0_i32_1, %c0_i32_2 : i32, i32, i32, i32
  }
  func.func @transform_36(%arg0: i32) -> (i32, i32, i32, i32) {
    %c0_i32 = arith.constant 0 : i32
    %c0_i32_0 = arith.constant 0 : i32
    %c0_i32_1 = arith.constant 0 : i32
    %c0_i32_2 = arith.constant 0 : i32
    %c0_i32_3 = arith.constant 0 : i32
    return %c0_i32, %c0_i32_0, %c0_i32_1, %c0_i32_2 : i32, i32, i32, i32
  }
  func.func @transform_37(%arg0: i32) -> (i32, i32, i32) {
    %c0_i32 = arith.constant 0 : i32
    %c0_i32_0 = arith.constant 0 : i32
    %c0_i32_1 = arith.constant 0 : i32
    %c0_i32_2 = arith.constant 0 : i32
    return %c0_i32, %c0_i32_0, %c0_i32_1 : i32, i32, i32
  }
  func.func @transform_38(%arg0: i32) -> (i32, i32, i32) {
    %c0_i32 = arith.constant 0 : i32
    %c0_i32_0 = arith.constant 0 : i32
    %c0_i32_1 = arith.constant 0 : i32
    %c0_i32_2 = arith.constant 0 : i32
    return %c0_i32, %c0_i32_0, %c0_i32_1 : i32, i32, i32
  }
  func.func @transform_39(%arg0: i32) -> (i32, i32, i32) {
    %c0_i32 = arith.constant 0 : i32
    %c0_i32_0 = arith.constant 0 : i32
    %c0_i32_1 = arith.constant 0 : i32
    %c0_i32_2 = arith.constant 0 : i32
    return %c0_i32, %c0_i32_0, %c0_i32_1 : i32, i32, i32
  }
  func.func @transform_40(%arg0: i32) -> (i32, i32, i32) {
    %c0_i32 = arith.constant 0 : i32
    %c0_i32_0 = arith.constant 0 : i32
    %c0_i32_1 = arith.constant 0 : i32
    %c0_i32_2 = arith.constant 0 : i32
    return %c0_i32, %c0_i32_0, %c0_i32_1 : i32, i32, i32
  }
  func.func @transform_41(%arg0: i32) -> (i32, i32, i32) {
    %c0_i32 = arith.constant 0 : i32
    %c0_i32_0 = arith.constant 0 : i32
    %c0_i32_1 = arith.constant 0 : i32
    %c0_i32_2 = arith.constant 0 : i32
    return %c0_i32, %c0_i32_0, %c0_i32_1 : i32, i32, i32
  }
  func.func @transform_42(%arg0: i32) -> (i32, i32, i32) {
    %c0_i32 = arith.constant 0 : i32
    %c0_i32_0 = arith.constant 0 : i32
    %c0_i32_1 = arith.constant 0 : i32
    %c0_i32_2 = arith.constant 0 : i32
    return %c0_i32, %c0_i32_0, %c0_i32_1 : i32, i32, i32
  }
  func.func @transform_43(%arg0: i32) -> (i32, i32, i32) {
    %c0_i32 = arith.constant 0 : i32
    %c0_i32_0 = arith.constant 0 : i32
    %c0_i32_1 = arith.constant 0 : i32
    %c0_i32_2 = arith.constant 0 : i32
    return %c0_i32, %c0_i32_0, %c0_i32_1 : i32, i32, i32
  }
  func.func @transform_44(%arg0: i32) -> (i32, i32) {
    %c0_i32 = arith.constant 0 : i32
    %c0_i32_0 = arith.constant 0 : i32
    %c0_i32_1 = arith.constant 0 : i32
    return %c0_i32, %c0_i32_0 : i32, i32
  }
  func.func @transform_45(%arg0: i32) -> (i32, i32) {
    %c0_i32 = arith.constant 0 : i32
    %c0_i32_0 = arith.constant 0 : i32
    %c0_i32_1 = arith.constant 0 : i32
    return %c0_i32, %c0_i32_0 : i32, i32
  }
  func.func @transform_46(%arg0: i32) -> (i32, i32) {
    %c0_i32 = arith.constant 0 : i32
    %c0_i32_0 = arith.constant 0 : i32
    %c0_i32_1 = arith.constant 0 : i32
    return %c0_i32, %c0_i32_0 : i32, i32
  }
  func.func @transform_47(%arg0: i32) -> (i32, i32, i32) {
    %c0_i32 = arith.constant 0 : i32
    %c0_i32_0 = arith.constant 0 : i32
    %c0_i32_1 = arith.constant 0 : i32
    %c0_i32_2 = arith.constant 0 : i32
    return %c0_i32, %c0_i32_0, %c0_i32_1 : i32, i32, i32
  }
  func.func @transform_48(%arg0: i32) -> (i32, i32, i32) {
    %c0_i32 = arith.constant 0 : i32
    %c0_i32_0 = arith.constant 0 : i32
    %c0_i32_1 = arith.constant 0 : i32
    %c0_i32_2 = arith.constant 0 : i32
    return %c0_i32, %c0_i32_0, %c0_i32_1 : i32, i32, i32
  }
  func.func @transform_49(%arg0: i32) -> (i32, i32, i32) {
    %c0_i32 = arith.constant 0 : i32
    %c0_i32_0 = arith.constant 0 : i32
    %c0_i32_1 = arith.constant 0 : i32
    %c0_i32_2 = arith.constant 0 : i32
    return %c0_i32, %c0_i32_0, %c0_i32_1 : i32, i32, i32
  }
  func.func @transform_50(%arg0: i32) -> (i32, i32, i32) {
    %c0_i32 = arith.constant 0 : i32
    %c0_i32_0 = arith.constant 0 : i32
    %c0_i32_1 = arith.constant 0 : i32
    %c0_i32_2 = arith.constant 0 : i32
    return %c0_i32, %c0_i32_0, %c0_i32_1 : i32, i32, i32
  }
  func.func @transform_51(%arg0: i32) -> (i32, i32, i32) {
    %c0_i32 = arith.constant 0 : i32
    %c0_i32_0 = arith.constant 0 : i32
    %c0_i32_1 = arith.constant 0 : i32
    %c0_i32_2 = arith.constant 0 : i32
    return %c0_i32, %c0_i32_0, %c0_i32_1 : i32, i32, i32
  }
  func.func @transform_52(%arg0: i32) -> (i32, i32, i32) {
    %c0_i32 = arith.constant 0 : i32
    %c0_i32_0 = arith.constant 0 : i32
    %c0_i32_1 = arith.constant 0 : i32
    %c0_i32_2 = arith.constant 0 : i32
    return %c0_i32, %c0_i32_0, %c0_i32_1 : i32, i32, i32
  }
  func.func @transform_53(%arg0: i32) -> (i32, i32) {
    %c0_i32 = arith.constant 0 : i32
    %c0_i32_0 = arith.constant 0 : i32
    %c0_i32_1 = arith.constant 0 : i32
    return %c0_i32, %c0_i32_0 : i32, i32
  }
  func.func @transform_54(%arg0: i32) -> (i32, i32) {
    %c0_i32 = arith.constant 0 : i32
    %c0_i32_0 = arith.constant 0 : i32
    %c0_i32_1 = arith.constant 0 : i32
    return %c0_i32, %c0_i32_0 : i32, i32
  }
  func.func @transform_55(%arg0: i32) -> (i32, i32) {
    %c0_i32 = arith.constant 0 : i32
    %c0_i32_0 = arith.constant 0 : i32
    %c0_i32_1 = arith.constant 0 : i32
    return %c0_i32, %c0_i32_0 : i32, i32
  }
  func.func @transform_56(%arg0: i32) -> (i32, i32, i32) {
    %c0_i32 = arith.constant 0 : i32
    %c0_i32_0 = arith.constant 0 : i32
    %c0_i32_1 = arith.constant 0 : i32
    return %arg0, %c0_i32, %c0_i32_0 : i32, i32, i32
  }
}

</mosaic_0001>

<llo_original>
// kernel: imitator_forward.1
$region0: #{imitator_forward.1}
  #allocation0 [shape = 'u32[]', space=smem, size = 0x4, offset = 0x4, fixed_abs, tag = 'smem constant byte address 0x4 - core index']
  #allocation1 [shape = 'u32[72,128]{1,0:T(1,128)}', space=vmem, size = 0x9000, scoped, tag = 'internal scratch']
  %s0 = inlined_call_operand.smem [shape: u32[57], index: -1, kind: input, shape index: {}]
  %s1 = sld [smem:[%s0]]
  %s2 = scalar_lea.smem %s0, 1
  %s3 = sld [smem:[%s2]]
  %s4 = scalar_lea.smem %s0, 2
  %s5 = sld [smem:[%s4]]
  %s6 = scalar_lea.smem %s0, 3
  %s7 = sld [smem:[%s6]]
  %s8 = scalar_lea.smem %s0, 4
  %s9 = sld [smem:[%s8]]
  %s10 = scalar_lea.smem %s0, 5
  %s11 = sld [smem:[%s10]]
  %s12 = scalar_lea.smem %s0, 6
  %s13 = sld [smem:[%s12]]
  %s14 = scalar_lea.smem %s0, 7
  %s15 = sld [smem:[%s14]]
  %s16 = scalar_lea.smem %s0, 8
  %s17 = sld [smem:[%s16]]
  %s18 = scalar_lea.smem %s0, 9
  %s19 = sld [smem:[%s18]]
  %s20 = scalar_lea.smem %s0, 10
  %s21 = sld [smem:[%s20]]
  %s22 = scalar_lea.smem %s0, 11
  %s23 = sld [smem:[%s22]]
  %s24 = scalar_lea.smem %s0, 12
  %s25 = sld [smem:[%s24]]
  %s26 = scalar_lea.smem %s0, 13
  %s27 = sld [smem:[%s26]]
  %s28 = scalar_lea.smem %s0, 14
  %s29 = sld [smem:[%s28]]
  %s30 = scalar_lea.smem %s0, 15
  %s31 = sld [smem:[%s30]]
  %s32 = scalar_lea.smem %s0, 16
  %s33 = sld [smem:[%s32]]
  %s34 = scalar_lea.smem %s0, 17
  %s35 = sld [smem:[%s34]]
  %s36 = scalar_lea.smem %s0, 18
  %s37 = sld [smem:[%s36]]
  %s38 = scalar_lea.smem %s0, 19
  %s39 = sld [smem:[%s38]]
  %s40 = scalar_lea.smem %s0, 20
  %s41 = sld [smem:[%s40]]
  %s42 = scalar_lea.smem %s0, 21
  %s43 = sld [smem:[%s42]]
  %s44 = scalar_lea.smem %s0, 22
  %s45 = sld [smem:[%s44]]
  %s46 = scalar_lea.smem %s0, 23
  %s47 = sld [smem:[%s46]]
  %s48 = scalar_lea.smem %s0, 24
  %s49 = sld [smem:[%s48]]
  %s50 = scalar_lea.smem %s0, 25
  %s51 = sld [smem:[%s50]]
  %s52 = scalar_lea.smem %s0, 26
  %s53 = sld [smem:[%s52]]
  %s54 = scalar_lea.smem %s0, 27
  %s55 = sld [smem:[%s54]]
  %s56 = scalar_lea.smem %s0, 28
  %s57 = sld [smem:[%s56]]
  %s58 = scalar_lea.smem %s0, 29
  %s59 = sld [smem:[%s58]]
  %s60 = scalar_lea.smem %s0, 30
  %s61 = sld [smem:[%s60]]
  %s62 = scalar_lea.smem %s0, 31
  %s63 = sld [smem:[%s62]]
  %s64 = scalar_lea.smem %s0, 32
  %s65 = sld [smem:[%s64]]
  %s66 = scalar_lea.smem %s0, 33
  %s67 = sld [smem:[%s66]]
  %s68 = scalar_lea.smem %s0, 34
  %s69 = sld [smem:[%s68]]
  %s70 = scalar_lea.smem %s0, 35
  %s71 = sld [smem:[%s70]]
  %s72 = scalar_lea.smem %s0, 36
  %s73 = sld [smem:[%s72]]
  %s74 = scalar_lea.smem %s0, 37
  %s75 = sld [smem:[%s74]]
  %s76 = scalar_lea.smem %s0, 38
  %s77 = sld [smem:[%s76]]
  %s78 = scalar_lea.smem %s0, 39
  %s79 = sld [smem:[%s78]]
  %s80 = scalar_lea.smem %s0, 40
  %s81 = sld [smem:[%s80]]
  %s82 = scalar_lea.smem %s0, 41
  %s83 = sld [smem:[%s82]]
  %s84 = scalar_lea.smem %s0, 42
  %s85 = sld [smem:[%s84]]
  %s86 = scalar_lea.smem %s0, 43
  %s87 = sld [smem:[%s86]]
  %s88 = scalar_lea.smem %s0, 44
  %s89 = sld [smem:[%s88]]
  %s90 = scalar_lea.smem %s0, 45
  %s91 = sld [smem:[%s90]]
  %s92 = scalar_lea.smem %s0, 46
  %s93 = sld [smem:[%s92]]
  %s94 = scalar_lea.smem %s0, 47
  %s95 = sld [smem:[%s94]]
  %s96 = scalar_lea.smem %s0, 48
  %s97 = sld [smem:[%s96]]
  %s98 = scalar_lea.smem %s0, 49
  %s99 = sld [smem:[%s98]]
  %s100 = scalar_lea.smem %s0, 50
  %s101 = sld [smem:[%s100]]
  %s102 = scalar_lea.smem %s0, 51
  %s103 = sld [smem:[%s102]]
  %s104 = scalar_lea.smem %s0, 52
  %s105 = sld [smem:[%s104]]
  %s106 = scalar_lea.smem %s0, 53
  %s107 = sld [smem:[%s106]]
  %s108 = scalar_lea.smem %s0, 54
  %s109 = sld [smem:[%s108]]
  %s110 = scalar_lea.smem %s0, 55
  %s111 = sld [smem:[%s110]]
  %s112 = scalar_lea.smem %s0, 56
  %s113 = sld [smem:[%s112]]
  %s114 = sld [smem:[#allocation0]]
  $region285: #{imitator_forward.1} parent=0
    _
  %s116 = ssub.s32 1, %s114
  %s117 = scalar_select 0, %s116, %s114
  $region1: #{imitator_forward.1} parent=0
    #allocation2 [shape = 'u8[512]{0}', space=vmem, size = 0x400, scoped, tag = 'input window, operand 17, single buffered']
    #allocation3 [shape = 's32[2]{0}', space=sflag, size = 0x8, scoped, tag = 'scoped memory for imitator_forward.1']
    #allocation4 [shape = 's32[2]{0}', space=sflag, size = 0x8, scoped, tag = 'scoped memory for imitator_forward.1']
    #allocation5 [shape = 'u8[512]{0}', space=vmem, size = 0x400, scoped, tag = 'input window, operand 19, single buffered']
    #allocation6 [shape = 's32[1]{0}', space=sflag, size = 0x4, scoped, tag = 'scoped memory for imitator_forward.1']
    #allocation7 [shape = 'u8[512]{0}', space=vmem, size = 0x400, scoped, tag = 'input window, operand 21, single buffered']
    #allocation8 [shape = 'u8[512]{0}', space=vmem, size = 0x400, scoped, tag = 'input window, operand 45, single buffered']
    #allocation9 [shape = 's32[1]{0}', space=sflag, size = 0x4, scoped, tag = 'scoped memory for imitator_forward.1']
    #allocation10 [shape = 'u8[512]{0}', space=vmem, size = 0x400, scoped, tag = 'input window, operand 53, single buffered']
    #allocation11 [shape = 'u8[512]{0}', space=vmem, size = 0x400, scoped, tag = 'input window, operand 54, single buffered']
    #allocation12 [shape = 's32[1]{0}', space=sflag, size = 0x4, scoped, tag = 'scoped memory for imitator_forward.1']
    #allocation13 [shape = 'u8[512]{0}', space=vmem, size = 0x400, scoped, tag = 'input window, operand 55, single buffered']
    #allocation14 [shape = 'u8[8192]{0}', space=vmem, size = 0x2000, scoped, tag = 'output window, operand 0']
    %118 = vsyncpa [#allocation3], 0
    %119 = vsyncpa [#allocation6], 0
    %120 = vsyncpa [#allocation9], 0
    %121 = vsyncpa [#allocation12], 0
    %122 = vsyncpa [#allocation4], 0
    %s123 = scalar_lea.sflag [#allocation4], 1
    %124 = vsyncpa %s123, 0
    loop: start=0, step=1, limit=4
    $region2: #{imitator_forward.1} parent=1 // loop_pre_header
      _
    $region3: #{imitator_forward.1} parent=1 // loop_header
      %s126 = sphi 0, %s130
      %p127 = scmp.ge.s32.totalorder %s126, 4
      %s136 = sphi 0, %s138
      %s139 = sphi 0, %s136
      %s140 = sphi 0, %s139
      %s156 = sphi 0, %s140
      %s162 = sphi 0, %s164
      %s165 = sphi 0, %s162
      %s166 = sphi 0, %s165
      %s182 = sphi 0, %s166
      %s186 = sphi 0, %s186
      %s188 = sphi 0, %s186
      %s189 = sphi 0, %s188
      %s203 = sphi 0, %s189
      %s207 = sphi 0, %s207
      %s209 = sphi 0, %s207
      %s210 = sphi 0, %s209
      %s224 = sphi 0, %s210
      %s228 = sphi 0, %s228
      %s230 = sphi 0, %s228
      %s231 = sphi 0, %s230
      %s245 = sphi 0, %s231
      %s249 = sphi 0, %s249
      %s251 = sphi 0, %s249
      %s252 = sphi 0, %s251
      %s266 = sphi 0, %s252
      %s270 = sphi 0, %s270
      %s272 = sphi 0, %s270
      %s273 = sphi 0, %s272
      %s287 = sphi 0, %s273
      %s291 = sphi 0, %s291
      %s293 = sphi 0, %s291
      %s294 = sphi 0, %s293
      %s308 = sphi 0, %s294
      %s312 = sphi 0, %s312
      %s314 = sphi 0, %s312
      %s315 = sphi 0, %s314
      %s329 = sphi 0, %s315
      %s333 = sphi 0, %s333
      %s335 = sphi 0, %s333
      %s336 = sphi 0, %s335
      %s350 = sphi 0, %s336
      %s354 = sphi 0, %s354
      %s356 = sphi 0, %s354
      %s357 = sphi 0, %s356
      %s371 = sphi 0, %s357
      %s375 = sphi 0, %s375
      %s377 = sphi 0, %s375
      %s378 = sphi 0, %s377
      %s392 = sphi 0, %s378
      %s396 = sphi 0, %s396
      %s398 = sphi 0, %s396
      %s399 = sphi 0, %s398
      %s413 = sphi 0, %s399
      %s417 = sphi 0, %s417
      %s419 = sphi 0, %s417
      %s420 = sphi 0, %s419
      %s434 = sphi 0, %s420
      %s438 = sphi 0, %s438
      %s440 = sphi 0, %s438
      %s441 = sphi 0, %s440
      %s455 = sphi 0, %s441
      %s459 = sphi 0, %s459
      %s461 = sphi 0, %s459
      %s462 = sphi 0, %s461
      %s476 = sphi 0, %s462
      %s480 = sphi 0, %s480
      %s482 = sphi 0, %s480
      %s483 = sphi 0, %s482
      %s497 = sphi 0, %s483
      %s501 = sphi 0, %s501
      %s503 = sphi 0, %s501
      %s504 = sphi 0, %s503
      %s518 = sphi 0, %s504
      %s522 = sphi 0, %s522
      %s524 = sphi 0, %s522
      %s525 = sphi 0, %s524
      %s539 = sphi 0, %s525
      %s543 = sphi 0, %s543
      %s545 = sphi 0, %s543
      %s546 = sphi 0, %s545
      %s560 = sphi 0, %s546
      %s564 = sphi 0, %s564
      %s566 = sphi 0, %s564
      %s567 = sphi 0, %s566
      %s581 = sphi 0, %s567
      %s585 = sphi 0, %s585
      %s587 = sphi 0, %s585
      %s588 = sphi 0, %s587
      %s602 = sphi 0, %s588
      %s606 = sphi 0, %s606
      %s608 = sphi 0, %s606
      %s609 = sphi 0, %s608
      %s623 = sphi 0, %s609
      %s627 = sphi 0, %s627
      %s629 = sphi 0, %s627
      %s630 = sphi 0, %s629
      %s644 = sphi 0, %s630
      %s648 = sphi 0, %s648
      %s650 = sphi 0, %s648
      %s651 = sphi 0, %s650
      %s665 = sphi 0, %s651
      %s669 = sphi 0, %s669
      %s671 = sphi 0, %s669
      %s672 = sphi 0, %s671
      %s686 = sphi 0, %s672
      %s690 = sphi 0, %s690
      %s692 = sphi 0, %s690
      %s693 = sphi 0, %s692
      %s707 = sphi 0, %s693
      %s711 = sphi 0, %s711
      %s713 = sphi 0, %s711
      %s714 = sphi 0, %s713
      %s728 = sphi 0, %s714
      %s732 = sphi 0, %s732
      %s734 = sphi 0, %s732
      %s735 = sphi 0, %s734
      %s749 = sphi 0, %s735
      %s753 = sphi 0, %s753
      %s755 = sphi 0, %s753
      %s756 = sphi 0, %s755
      %s770 = sphi 0, %s756
      %s774 = sphi 0, %s774
      %s776 = sphi 0, %s774
      %s777 = sphi 0, %s776
      %s791 = sphi 0, %s777
      %s795 = sphi 0, %s795
      %s797 = sphi 0, %s795
      %s798 = sphi 0, %s797
      %s812 = sphi 0, %s798
      %s816 = sphi 0, %s816
      %s818 = sphi 0, %s816
      %s819 = sphi 0, %s818
      %s833 = sphi 0, %s819
      %s837 = sphi 0, %s837
      %s839 = sphi 0, %s837
      %s840 = sphi 0, %s839
      %s854 = sphi 0, %s840
      %s858 = sphi 0, %s858
      %s860 = sphi 0, %s858
      %s861 = sphi 0, %s860
      %s875 = sphi 0, %s861
      %s879 = sphi 0, %s879
      %s881 = sphi 0, %s879
      %s882 = sphi 0, %s881
      %s896 = sphi 0, %s882
      %s900 = sphi 0, %s900
      %s902 = sphi 0, %s900
      %s903 = sphi 0, %s902
      %s917 = sphi 0, %s903
      %s921 = sphi 0, %s921
      %s923 = sphi 0, %s921
      %s924 = sphi 0, %s923
      %s938 = sphi 0, %s924
      %s942 = sphi 0, %s942
      %s944 = sphi 0, %s942
      %s945 = sphi 0, %s944
      %s959 = sphi 0, %s945
      %s963 = sphi 0, %s963
      %s965 = sphi 0, %s963
      %s966 = sphi 0, %s965
      %s980 = sphi 0, %s966
      %s984 = sphi 0, %s984
      %s986 = sphi 0, %s984
      %s987 = sphi 0, %s986
      %s1001 = sphi 0, %s987
      %s1005 = sphi 0, %s1005
      %s1007 = sphi 0, %s1005
      %s1008 = sphi 0, %s1007
      %s1022 = sphi 0, %s1008
      %s1026 = sphi 0, %s1026
      %s1028 = sphi 0, %s1026
      %s1029 = sphi 0, %s1028
      %s1043 = sphi 0, %s1029
      %s1047 = sphi 0, %s1047
      %s1049 = sphi 0, %s1047
      %s1050 = sphi 0, %s1049
      %s1064 = sphi 0, %s1050
      %s1068 = sphi 0, %s1068
      %s1070 = sphi 0, %s1068
      %s1071 = sphi 0, %s1070
      %s1085 = sphi 0, %s1071
      %s1089 = sphi 0, %s1089
      %s1091 = sphi 0, %s1089
      %s1092 = sphi 0, %s1091
      %s1106 = sphi 0, %s1092
      %s1110 = sphi 0, %s1110
      %s1112 = sphi 0, %s1110
      %s1113 = sphi 0, %s1112
      %s1127 = sphi 0, %s1113
      %s1131 = sphi 0, %s1131
      %s1133 = sphi 0, %s1131
      %s1134 = sphi 0, %s1133
      %s1148 = sphi 0, %s1134
      %s1152 = sphi 0, %s1152
      %s1154 = sphi 0, %s1152
      %s1155 = sphi 0, %s1154
      %s1169 = sphi 0, %s1155
      %s1173 = sphi 0, %s1173
      %s1175 = sphi 0, %s1173
      %s1176 = sphi 0, %s1175
      %s1190 = sphi 0, %s1176
      %s1194 = sphi 0, %s1194
      %s1196 = sphi 0, %s1194
      %s1197 = sphi 0, %s1196
      %s1211 = sphi 0, %s1197
      %s1215 = sphi 0, %s1215
      %s1217 = sphi 0, %s1215
      %s1218 = sphi 0, %s1217
      %s1232 = sphi 0, %s1218
      %s1236 = sphi 0, %s1236
      %s1238 = sphi 0, %s1236
      %s1239 = sphi 0, %s1238
      %s1253 = sphi 0, %s1239
      %s1257 = sphi 0, %s1257
      %s1259 = sphi 0, %s1257
      %s1260 = sphi 0, %s1259
      %s1274 = sphi 0, %s1260
      %s1278 = sphi 0, %s1278
      %s1280 = sphi 0, %s1278
      %s1281 = sphi 0, %s1280
      %s1295 = sphi 0, %s1281
      %s1299 = sphi 0, %s1299
      %s1301 = sphi 0, %s1299
      %s1302 = sphi 0, %s1301
      %s1316 = sphi 0, %s1302
      %s1322 = sphi 0, %s1324
      %s1325 = sphi 0, %s1322
      %s1326 = sphi 0, %s1325
      %s1342 = sphi 0, %s1326
    $region4: #{imitator_forward.1} parent=1 // loop_header_branch
      %129 = sbr.rel (%p127) target = $region8
    $region5: #{imitator_forward.1} parent=1 // loop_body
      %s131 = ssub.s32 %s126, 1
      %s132 = ssub.s32 %s126, 2
      %s133 = sadd.s32 %s126, 1
      %s134 = ssub.s32 %s126, %s133
      %p135 = scmp.eq.s32.totalorder %s134, 0
      %s137 = sadd.s32 %s136, 1
      %s138 = scalar_select %p135, %s136, %s137
      %p141 = pneg %p135
      %p142 = scmp.eq.s32.totalorder %s126, 1
      %p143 = por %p141, %p142
      %p144 = scmp.ne.s32.totalorder %s136, %s139
      %p145 = scmp.eq.s32.totalorder %s126, 0
      %p146 = por %p144, %p145
      %p147 = scmp.ne.s32.totalorder %s136, %s139
      %p148 = scmp.eq.s32.totalorder %s131, 1
      %p149 = por %p147, %p148
      %p150 = scmp.ne.s32.totalorder %s139, %s140
      %p151 = scmp.eq.s32.totalorder %s131, 0
      %p152 = por %p150, %p151
      %p153 = scmp.ne.s32.totalorder %s139, %s140
      %p154 = scmp.eq.s32.totalorder %s132, 1
      %p155 = por %p153, %p154
      %p157 = scmp.ne.s32.totalorder %s140, %s156
      %p158 = scmp.eq.s32.totalorder %s132, 0
      %p159 = por %p157, %p158
      %s160 = ssub.s32 %s126, %s133
      %p161 = scmp.eq.s32.totalorder %s160, 0
      %s163 = sadd.s32 %s162, 1
      %s164 = scalar_select %p161, %s162, %s163
      %p167 = pneg %p161
      %p168 = scmp.eq.s32.totalorder %s126, 1
      %p169 = por %p167, %p168
      %p170 = scmp.ne.s32.totalorder %s162, %s165
      %p171 = scmp.eq.s32.totalorder %s126, 0
      %p172 = por %p170, %p171
      %p173 = scmp.ne.s32.totalorder %s162, %s165
      %p174 = scmp.eq.s32.totalorder %s131, 1
      %p175 = por %p173, %p174
      %p176 = scmp.ne.s32.totalorder %s165, %s166
      %p177 = scmp.eq.s32.totalorder %s131, 0
      %p178 = por %p176, %p177
      %p179 = scmp.ne.s32.totalorder %s165, %s166
      %p180 = scmp.eq.s32.totalorder %s132, 1
      %p181 = por %p179, %p180
      %p183 = scmp.ne.s32.totalorder %s166, %s182
      %p184 = scmp.eq.s32.totalorder %s132, 0
      %p185 = por %p183, %p184
      %s187 = sadd.s32 %s186, 1
      %p190 = scmp.eq.s32.totalorder %s126, 1
      %p191 = scmp.ne.s32.totalorder %s186, %s188
      %p192 = scmp.eq.s32.totalorder %s126, 0
      %p193 = por %p191, %p192
      %p194 = scmp.ne.s32.totalorder %s186, %s188
      %p195 = scmp.eq.s32.totalorder %s131, 1
      %p196 = por %p194, %p195
      %p197 = scmp.ne.s32.totalorder %s188, %s189
      %p198 = scmp.eq.s32.totalorder %s131, 0
      %p199 = por %p197, %p198
      %p200 = scmp.ne.s32.totalorder %s188, %s189
      %p201 = scmp.eq.s32.totalorder %s132, 1
      %p202 = por %p200, %p201
      %p204 = scmp.ne.s32.totalorder %s189, %s203
      %p205 = scmp.eq.s32.totalorder %s132, 0
      %p206 = por %p204, %p205
      %s208 = sadd.s32 %s207, 1
      %p211 = scmp.eq.s32.totalorder %s126, 1
      %p212 = scmp.ne.s32.totalorder %s207, %s209
      %p213 = scmp.eq.s32.totalorder %s126, 0
      %p214 = por %p212, %p213
      %p215 = scmp.ne.s32.totalorder %s207, %s209
      %p216 = scmp.eq.s32.totalorder %s131, 1
      %p217 = por %p215, %p216
      %p218 = scmp.ne.s32.totalorder %s209, %s210
      %p219 = scmp.eq.s32.totalorder %s131, 0
      %p220 = por %p218, %p219
      %p221 = scmp.ne.s32.totalorder %s209, %s210
      %p222 = scmp.eq.s32.totalorder %s132, 1
      %p223 = por %p221, %p222
      %p225 = scmp.ne.s32.totalorder %s210, %s224
      %p226 = scmp.eq.s32.totalorder %s132, 0
      %p227 = por %p225, %p226
      %s229 = sadd.s32 %s228, 1
      %p232 = scmp.eq.s32.totalorder %s126, 1
      %p233 = scmp.ne.s32.totalorder %s228, %s230
      %p234 = scmp.eq.s32.totalorder %s126, 0
      %p235 = por %p233, %p234
      %p236 = scmp.ne.s32.totalorder %s228, %s230
      %p237 = scmp.eq.s32.totalorder %s131, 1
      %p238 = por %p236, %p237
      %p239 = scmp.ne.s32.totalorder %s230, %s231
      %p240 = scmp.eq.s32.totalorder %s131, 0
      %p241 = por %p239, %p240
      %p242 = scmp.ne.s32.totalorder %s230, %s231
      %p243 = scmp.eq.s32.totalorder %s132, 1
      %p244 = por %p242, %p243
      %p246 = scmp.ne.s32.totalorder %s231, %s245
      %p247 = scmp.eq.s32.totalorder %s132, 0
      %p248 = por %p246, %p247
      %s250 = sadd.s32 %s249, 1
      %p253 = scmp.eq.s32.totalorder %s126, 1
      %p254 = scmp.ne.s32.totalorder %s249, %s251
      %p255 = scmp.eq.s32.totalorder %s126, 0
      %p256 = por %p254, %p255
      %p257 = scmp.ne.s32.totalorder %s249, %s251
      %p258 = scmp.eq.s32.totalorder %s131, 1
      %p259 = por %p257, %p258
      %p260 = scmp.ne.s32.totalorder %s251, %s252
      %p261 = scmp.eq.s32.totalorder %s131, 0
      %p262 = por %p260, %p261
      %p263 = scmp.ne.s32.totalorder %s251, %s252
      %p264 = scmp.eq.s32.totalorder %s132, 1
      %p265 = por %p263, %p264
      %p267 = scmp.ne.s32.totalorder %s252, %s266
      %p268 = scmp.eq.s32.totalorder %s132, 0
      %p269 = por %p267, %p268
      %s271 = sadd.s32 %s270, 1
      %p274 = scmp.eq.s32.totalorder %s126, 1
      %p275 = scmp.ne.s32.totalorder %s270, %s272
      %p276 = scmp.eq.s32.totalorder %s126, 0
      %p277 = por %p275, %p276
      %p278 = scmp.ne.s32.totalorder %s270, %s272
      %p279 = scmp.eq.s32.totalorder %s131, 1
      %p280 = por %p278, %p279
      %p281 = scmp.ne.s32.totalorder %s272, %s273
      %p282 = scmp.eq.s32.totalorder %s131, 0
      %p283 = por %p281, %p282
      %p284 = scmp.ne.s32.totalorder %s272, %s273
      %p285 = scmp.eq.s32.totalorder %s132, 1
      %p286 = por %p284, %p285
      %p288 = scmp.ne.s32.totalorder %s273, %s287
      %p289 = scmp.eq.s32.totalorder %s132, 0
      %p290 = por %p288, %p289
      %s292 = sadd.s32 %s291, 1
      %p295 = scmp.eq.s32.totalorder %s126, 1
      %p296 = scmp.ne.s32.totalorder %s291, %s293
      %p297 = scmp.eq.s32.totalorder %s126, 0
      %p298 = por %p296, %p297
      %p299 = scmp.ne.s32.totalorder %s291, %s293
      %p300 = scmp.eq.s32.totalorder %s131, 1
      %p301 = por %p299, %p300
      %p302 = scmp.ne.s32.totalorder %s293, %s294
      %p303 = scmp.eq.s32.totalorder %s131, 0
      %p304 = por %p302, %p303
      %p305 = scmp.ne.s32.totalorder %s293, %s294
      %p306 = scmp.eq.s32.totalorder %s132, 1
      %p307 = por %p305, %p306
      %p309 = scmp.ne.s32.totalorder %s294, %s308
      %p310 = scmp.eq.s32.totalorder %s132, 0
      %p311 = por %p309, %p310
      %s313 = sadd.s32 %s312, 1
      %p316 = scmp.eq.s32.totalorder %s126, 1
      %p317 = scmp.ne.s32.totalorder %s312, %s314
      %p318 = scmp.eq.s32.totalorder %s126, 0
      %p319 = por %p317, %p318
      %p320 = scmp.ne.s32.totalorder %s312, %s314
      %p321 = scmp.eq.s32.totalorder %s131, 1
      %p322 = por %p320, %p321
      %p323 = scmp.ne.s32.totalorder %s314, %s315
      %p324 = scmp.eq.s32.totalorder %s131, 0
      %p325 = por %p323, %p324
      %p326 = scmp.ne.s32.totalorder %s314, %s315
      %p327 = scmp.eq.s32.totalorder %s132, 1
      %p328 = por %p326, %p327
      %p330 = scmp.ne.s32.totalorder %s315, %s329
      %p331 = scmp.eq.s32.totalorder %s132, 0
      %p332 = por %p330, %p331
      %s334 = sadd.s32 %s333, 1
      %p337 = scmp.eq.s32.totalorder %s126, 1
      %p338 = scmp.ne.s32.totalorder %s333, %s335
      %p339 = scmp.eq.s32.totalorder %s126, 0
      %p340 = por %p338, %p339
      %p341 = scmp.ne.s32.totalorder %s333, %s335
      %p342 = scmp.eq.s32.totalorder %s131, 1
      %p343 = por %p341, %p342
      %p344 = scmp.ne.s32.totalorder %s335, %s336
      %p345 = scmp.eq.s32.totalorder %s131, 0
      %p346 = por %p344, %p345
      %p347 = scmp.ne.s32.totalorder %s335, %s336
      %p348 = scmp.eq.s32.totalorder %s132, 1
      %p349 = por %p347, %p348
      %p351 = scmp.ne.s32.totalorder %s336, %s350
      %p352 = scmp.eq.s32.totalorder %s132, 0
      %p353 = por %p351, %p352
      %s355 = sadd.s32 %s354, 1
      %p358 = scmp.eq.s32.totalorder %s126, 1
      %p359 = scmp.ne.s32.totalorder %s354, %s356
      %p360 = scmp.eq.s32.totalorder %s126, 0
      %p361 = por %p359, %p360
      %p362 = scmp.ne.s32.totalorder %s354, %s356
      %p363 = scmp.eq.s32.totalorder %s131, 1
      %p364 = por %p362, %p363
      %p365 = scmp.ne.s32.totalorder %s356, %s357
      %p366 = scmp.eq.s32.totalorder %s131, 0
      %p367 = por %p365, %p366
      %p368 = scmp.ne.s32.totalorder %s356, %s357
      %p369 = scmp.eq.s32.totalorder %s132, 1
      %p370 = por %p368, %p369
      %p372 = scmp.ne.s32.totalorder %s357, %s371
      %p373 = scmp.eq.s32.totalorder %s132, 0
      %p374 = por %p372, %p373
      %s376 = sadd.s32 %s375, 1
      %p379 = scmp.eq.s32.totalorder %s126, 1
      %p380 = scmp.ne.s32.totalorder %s375, %s377
      %p381 = scmp.eq.s32.totalorder %s126, 0
      %p382 = por %p380, %p381
      %p383 = scmp.ne.s32.totalorder %s375, %s377
      %p384 = scmp.eq.s32.totalorder %s131, 1
      %p385 = por %p383, %p384
      %p386 = scmp.ne.s32.totalorder %s377, %s378
      %p387 = scmp.eq.s32.totalorder %s131, 0
      %p388 = por %p386, %p387
      %p389 = scmp.ne.s32.totalorder %s377, %s378
      %p390 = scmp.eq.s32.totalorder %s132, 1
      %p391 = por %p389, %p390
      %p393 = scmp.ne.s32.totalorder %s378, %s392
      %p394 = scmp.eq.s32.totalorder %s132, 0
      %p395 = por %p393, %p394
      %s397 = sadd.s32 %s396, 1
      %p400 = scmp.eq.s32.totalorder %s126, 1
      %p401 = scmp.ne.s32.totalorder %s396, %s398
      %p402 = scmp.eq.s32.totalorder %s126, 0
      %p403 = por %p401, %p402
      %p404 = scmp.ne.s32.totalorder %s396, %s398
      %p405 = scmp.eq.s32.totalorder %s131, 1
      %p406 = por %p404, %p405
      %p407 = scmp.ne.s32.totalorder %s398, %s399
      %p408 = scmp.eq.s32.totalorder %s131, 0
      %p409 = por %p407, %p408
      %p410 = scmp.ne.s32.totalorder %s398, %s399
      %p411 = scmp.eq.s32.totalorder %s132, 1
      %p412 = por %p410, %p411
      %p414 = scmp.ne.s32.totalorder %s399, %s413
      %p415 = scmp.eq.s32.totalorder %s132, 0
      %p416 = por %p414, %p415
      %s418 = sadd.s32 %s417, 1
      %p421 = scmp.eq.s32.totalorder %s126, 1
      %p422 = scmp.ne.s32.totalorder %s417, %s419
      %p423 = scmp.eq.s32.totalorder %s126, 0
      %p424 = por %p422, %p423
      %p425 = scmp.ne.s32.totalorder %s417, %s419
      %p426 = scmp.eq.s32.totalorder %s131, 1
      %p427 = por %p425, %p426
      %p428 = scmp.ne.s32.totalorder %s419, %s420
      %p429 = scmp.eq.s32.totalorder %s131, 0
      %p430 = por %p428, %p429
      %p431 = scmp.ne.s32.totalorder %s419, %s420
      %p432 = scmp.eq.s32.totalorder %s132, 1
      %p433 = por %p431, %p432
      %p435 = scmp.ne.s32.totalorder %s420, %s434
      %p436 = scmp.eq.s32.totalorder %s132, 0
      %p437 = por %p435, %p436
      %s439 = sadd.s32 %s438, 1
      %p442 = scmp.eq.s32.totalorder %s126, 1
      %p443 = scmp.ne.s32.totalorder %s438, %s440
      %p444 = scmp.eq.s32.totalorder %s126, 0
      %p445 = por %p443, %p444
      %p446 = scmp.ne.s32.totalorder %s438, %s440
      %p447 = scmp.eq.s32.totalorder %s131, 1
      %p448 = por %p446, %p447
      %p449 = scmp.ne.s32.totalorder %s440, %s441
      %p450 = scmp.eq.s32.totalorder %s131, 0
      %p451 = por %p449, %p450
      %p452 = scmp.ne.s32.totalorder %s440, %s441
      %p453 = scmp.eq.s32.totalorder %s132, 1
      %p454 = por %p452, %p453
      %p456 = scmp.ne.s32.totalorder %s441, %s455
      %p457 = scmp.eq.s32.totalorder %s132, 0
      %p458 = por %p456, %p457
      %s460 = sadd.s32 %s459, 1
      %p463 = scmp.eq.s32.totalorder %s126, 1
      %p464 = scmp.ne.s32.totalorder %s459, %s461
      %p465 = scmp.eq.s32.totalorder %s126, 0
      %p466 = por %p464, %p465
      %p467 = scmp.ne.s32.totalorder %s459, %s461
      %p468 = scmp.eq.s32.totalorder %s131, 1
      %p469 = por %p467, %p468
      %p470 = scmp.ne.s32.totalorder %s461, %s462
      %p471 = scmp.eq.s32.totalorder %s131, 0
      %p472 = por %p470, %p471
      %p473 = scmp.ne.s32.totalorder %s461, %s462
      %p474 = scmp.eq.s32.totalorder %s132, 1
      %p475 = por %p473, %p474
      %p477 = scmp.ne.s32.totalorder %s462, %s476
      %p478 = scmp.eq.s32.totalorder %s132, 0
      %p479 = por %p477, %p478
      %s481 = sadd.s32 %s480, 1
      %p484 = scmp.eq.s32.totalorder %s126, 1
      %p485 = scmp.ne.s32.totalorder %s480, %s482
      %p486 = scmp.eq.s32.totalorder %s126, 0
      %p487 = por %p485, %p486
      %p488 = scmp.ne.s32.totalorder %s480, %s482
      %p489 = scmp.eq.s32.totalorder %s131, 1
      %p490 = por %p488, %p489
      %p491 = scmp.ne.s32.totalorder %s482, %s483
      %p492 = scmp.eq.s32.totalorder %s131, 0
      %p493 = por %p491, %p492
      %p494 = scmp.ne.s32.totalorder %s482, %s483
      %p495 = scmp.eq.s32.totalorder %s132, 1
      %p496 = por %p494, %p495
      %p498 = scmp.ne.s32.totalorder %s483, %s497
      %p499 = scmp.eq.s32.totalorder %s132, 0
      %p500 = por %p498, %p499
      %s502 = sadd.s32 %s501, 1
      %p505 = scmp.eq.s32.totalorder %s126, 1
      %p506 = scmp.ne.s32.totalorder %s501, %s503
      %p507 = scmp.eq.s32.totalorder %s126, 0
      %p508 = por %p506, %p507
      %p509 = scmp.ne.s32.totalorder %s501, %s503
      %p510 = scmp.eq.s32.totalorder %s131, 1
      %p511 = por %p509, %p510
      %p512 = scmp.ne.s32.totalorder %s503, %s504
      %p513 = scmp.eq.s32.totalorder %s131, 0
      %p514 = por %p512, %p513
      %p515 = scmp.ne.s32.totalorder %s503, %s504
      %p516 = scmp.eq.s32.totalorder %s132, 1
      %p517 = por %p515, %p516
      %p519 = scmp.ne.s32.totalorder %s504, %s518
      %p520 = scmp.eq.s32.totalorder %s132, 0
      %p521 = por %p519, %p520
      %s523 = sadd.s32 %s522, 1
      %p526 = scmp.eq.s32.totalorder %s126, 1
      %p527 = scmp.ne.s32.totalorder %s522, %s524
      %p528 = scmp.eq.s32.totalorder %s126, 0
      %p529 = por %p527, %p528
      %p530 = scmp.ne.s32.totalorder %s522, %s524
      %p531 = scmp.eq.s32.totalorder %s131, 1
      %p532 = por %p530, %p531
      %p533 = scmp.ne.s32.totalorder %s524, %s525
      %p534 = scmp.eq.s32.totalorder %s131, 0
      %p535 = por %p533, %p534
      %p536 = scmp.ne.s32.totalorder %s524, %s525
      %p537 = scmp.eq.s32.totalorder %s132, 1
      %p538 = por %p536, %p537
      %p540 = scmp.ne.s32.totalorder %s525, %s539
      %p541 = scmp.eq.s32.totalorder %s132, 0
      %p542 = por %p540, %p541
      %s544 = sadd.s32 %s543, 1
      %p547 = scmp.eq.s32.totalorder %s126, 1
      %p548 = scmp.ne.s32.totalorder %s543, %s545
      %p549 = scmp.eq.s32.totalorder %s126, 0
      %p550 = por %p548, %p549
      %p551 = scmp.ne.s32.totalorder %s543, %s545
      %p552 = scmp.eq.s32.totalorder %s131, 1
      %p553 = por %p551, %p552
      %p554 = scmp.ne.s32.totalorder %s545, %s546
      %p555 = scmp.eq.s32.totalorder %s131, 0
      %p556 = por %p554, %p555
      %p557 = scmp.ne.s32.totalorder %s545, %s546
      %p558 = scmp.eq.s32.totalorder %s132, 1
      %p559 = por %p557, %p558
      %p561 = scmp.ne.s32.totalorder %s546, %s560
      %p562 = scmp.eq.s32.totalorder %s132, 0
      %p563 = por %p561, %p562
      %s565 = sadd.s32 %s564, 1
      %p568 = scmp.eq.s32.totalorder %s126, 1
      %p569 = scmp.ne.s32.totalorder %s564, %s566
      %p570 = scmp.eq.s32.totalorder %s126, 0
      %p571 = por %p569, %p570
      %p572 = scmp.ne.s32.totalorder %s564, %s566
      %p573 = scmp.eq.s32.totalorder %s131, 1
      %p574 = por %p572, %p573
      %p575 = scmp.ne.s32.totalorder %s566, %s567
      %p576 = scmp.eq.s32.totalorder %s131, 0
      %p577 = por %p575, %p576
      %p578 = scmp.ne.s32.totalorder %s566, %s567
      %p579 = scmp.eq.s32.totalorder %s132, 1
      %p580 = por %p578, %p579
      %p582 = scmp.ne.s32.totalorder %s567, %s581
      %p583 = scmp.eq.s32.totalorder %s132, 0
      %p584 = por %p582, %p583
      %s586 = sadd.s32 %s585, 1
      %p589 = scmp.eq.s32.totalorder %s126, 1
      %p590 = scmp.ne.s32.totalorder %s585, %s587
      %p591 = scmp.eq.s32.totalorder %s126, 0
      %p592 = por %p590, %p591
      %p593 = scmp.ne.s32.totalorder %s585, %s587
      %p594 = scmp.eq.s32.totalorder %s131, 1
      %p595 = por %p593, %p594
      %p596 = scmp.ne.s32.totalorder %s587, %s588
      %p597 = scmp.eq.s32.totalorder %s131, 0
      %p598 = por %p596, %p597
      %p599 = scmp.ne.s32.totalorder %s587, %s588
      %p600 = scmp.eq.s32.totalorder %s132, 1
      %p601 = por %p599, %p600
      %p603 = scmp.ne.s32.totalorder %s588, %s602
      %p604 = scmp.eq.s32.totalorder %s132, 0
      %p605 = por %p603, %p604
      %s607 = sadd.s32 %s606, 1
      %p610 = scmp.eq.s32.totalorder %s126, 1
      %p611 = scmp.ne.s32.totalorder %s606, %s608
      %p612 = scmp.eq.s32.totalorder %s126, 0
      %p613 = por %p611, %p612
      %p614 = scmp.ne.s32.totalorder %s606, %s608
      %p615 = scmp.eq.s32.totalorder %s131, 1
      %p616 = por %p614, %p615
      %p617 = scmp.ne.s32.totalorder %s608, %s609
      %p618 = scmp.eq.s32.totalorder %s131, 0
      %p619 = por %p617, %p618
      %p620 = scmp.ne.s32.totalorder %s608, %s609
      %p621 = scmp.eq.s32.totalorder %s132, 1
      %p622 = por %p620, %p621
      %p624 = scmp.ne.s32.totalorder %s609, %s623
      %p625 = scmp.eq.s32.totalorder %s132, 0
      %p626 = por %p624, %p625
      %s628 = sadd.s32 %s627, 1
      %p631 = scmp.eq.s32.totalorder %s126, 1
      %p632 = scmp.ne.s32.totalorder %s627, %s629
      %p633 = scmp.eq.s32.totalorder %s126, 0
      %p634 = por %p632, %p633
      %p635 = scmp.ne.s32.totalorder %s627, %s629
      %p636 = scmp.eq.s32.totalorder %s131, 1
      %p637 = por %p635, %p636
      %p638 = scmp.ne.s32.totalorder %s629, %s630
      %p639 = scmp.eq.s32.totalorder %s131, 0
      %p640 = por %p638, %p639
      %p641 = scmp.ne.s32.totalorder %s629, %s630
      %p642 = scmp.eq.s32.totalorder %s132, 1
      %p643 = por %p641, %p642
      %p645 = scmp.ne.s32.totalorder %s630, %s644
      %p646 = scmp.eq.s32.totalorder %s132, 0
      %p647 = por %p645, %p646
      %s649 = sadd.s32 %s648, 1
      %p652 = scmp.eq.s32.totalorder %s126, 1
      %p653 = scmp.ne.s32.totalorder %s648, %s650
      %p654 = scmp.eq.s32.totalorder %s126, 0
      %p655 = por %p653, %p654
      %p656 = scmp.ne.s32.totalorder %s648, %s650
      %p657 = scmp.eq.s32.totalorder %s131, 1
      %p658 = por %p656, %p657
      %p659 = scmp.ne.s32.totalorder %s650, %s651
      %p660 = scmp.eq.s32.totalorder %s131, 0
      %p661 = por %p659, %p660
      %p662 = scmp.ne.s32.totalorder %s650, %s651
      %p663 = scmp.eq.s32.totalorder %s132, 1
      %p664 = por %p662, %p663
      %p666 = scmp.ne.s32.totalorder %s651, %s665
      %p667 = scmp.eq.s32.totalorder %s132, 0
      %p668 = por %p666, %p667
      %s670 = sadd.s32 %s669, 1
      %p673 = scmp.eq.s32.totalorder %s126, 1
      %p674 = scmp.ne.s32.totalorder %s669, %s671
      %p675 = scmp.eq.s32.totalorder %s126, 0
      %p676 = por %p674, %p675
      %p677 = scmp.ne.s32.totalorder %s669, %s671
      %p678 = scmp.eq.s32.totalorder %s131, 1
      %p679 = por %p677, %p678
      %p680 = scmp.ne.s32.totalorder %s671, %s672
      %p681 = scmp.eq.s32.totalorder %s131, 0
      %p682 = por %p680, %p681
      %p683 = scmp.ne.s32.totalorder %s671, %s672
      %p684 = scmp.eq.s32.totalorder %s132, 1
      %p685 = por %p683, %p684
      %p687 = scmp.ne.s32.totalorder %s672, %s686
      %p688 = scmp.eq.s32.totalorder %s132, 0
      %p689 = por %p687, %p688
      %s691 = sadd.s32 %s690, 1
      %p694 = scmp.eq.s32.totalorder %s126, 1
      %p695 = scmp.ne.s32.totalorder %s690, %s692
      %p696 = scmp.eq.s32.totalorder %s126, 0
      %p697 = por %p695, %p696
      %p698 = scmp.ne.s32.totalorder %s690, %s692
      %p699 = scmp.eq.s32.totalorder %s131, 1
      %p700 = por %p698, %p699
      %p701 = scmp.ne.s32.totalorder %s692, %s693
      %p702 = scmp.eq.s32.totalorder %s131, 0
      %p703 = por %p701, %p702
      %p704 = scmp.ne.s32.totalorder %s692, %s693
      %p705 = scmp.eq.s32.totalorder %s132, 1
      %p706 = por %p704, %p705
      %p708 = scmp.ne.s32.totalorder %s693, %s707
      %p709 = scmp.eq.s32.totalorder %s132, 0
      %p710 = por %p708, %p709
      %s712 = sadd.s32 %s711, 1
      %p715 = scmp.eq.s32.totalorder %s126, 1
      %p716 = scmp.ne.s32.totalorder %s711, %s713
      %p717 = scmp.eq.s32.totalorder %s126, 0
      %p718 = por %p716, %p717
      %p719 = scmp.ne.s32.totalorder %s711, %s713
      %p720 = scmp.eq.s32.totalorder %s131, 1
      %p721 = por %p719, %p720
      %p722 = scmp.ne.s32.totalorder %s713, %s714
      %p723 = scmp.eq.s32.totalorder %s131, 0
      %p724 = por %p722, %p723
      %p725 = scmp.ne.s32.totalorder %s713, %s714
      %p726 = scmp.eq.s32.totalorder %s132, 1
      %p727 = por %p725, %p726
      %p729 = scmp.ne.s32.totalorder %s714, %s728
      %p730 = scmp.eq.s32.totalorder %s132, 0
      %p731 = por %p729, %p730
      %s733 = sadd.s32 %s732, 1
      %p736 = scmp.eq.s32.totalorder %s126, 1
      %p737 = scmp.ne.s32.totalorder %s732, %s734
      %p738 = scmp.eq.s32.totalorder %s126, 0
      %p739 = por %p737, %p738
      %p740 = scmp.ne.s32.totalorder %s732, %s734
      %p741 = scmp.eq.s32.totalorder %s131, 1
      %p742 = por %p740, %p741
      %p743 = scmp.ne.s32.totalorder %s734, %s735
      %p744 = scmp.eq.s32.totalorder %s131, 0
      %p745 = por %p743, %p744
      %p746 = scmp.ne.s32.totalorder %s734, %s735
      %p747 = scmp.eq.s32.totalorder %s132, 1
      %p748 = por %p746, %p747
      %p750 = scmp.ne.s32.totalorder %s735, %s749
      %p751 = scmp.eq.s32.totalorder %s132, 0
      %p752 = por %p750, %p751
      %s754 = sadd.s32 %s753, 1
      %p757 = scmp.eq.s32.totalorder %s126, 1
      %p758 = scmp.ne.s32.totalorder %s753, %s755
      %p759 = scmp.eq.s32.totalorder %s126, 0
      %p760 = por %p758, %p759
      %p761 = scmp.ne.s32.totalorder %s753, %s755
      %p762 = scmp.eq.s32.totalorder %s131, 1
      %p763 = por %p761, %p762
      %p764 = scmp.ne.s32.totalorder %s755, %s756
      %p765 = scmp.eq.s32.totalorder %s131, 0
      %p766 = por %p764, %p765
      %p767 = scmp.ne.s32.totalorder %s755, %s756
      %p768 = scmp.eq.s32.totalorder %s132, 1
      %p769 = por %p767, %p768
      %p771 = scmp.ne.s32.totalorder %s756, %s770
      %p772 = scmp.eq.s32.totalorder %s132, 0
      %p773 = por %p771, %p772
      %s775 = sadd.s32 %s774, 1
      %p778 = scmp.eq.s32.totalorder %s126, 1
      %p779 = scmp.ne.s32.totalorder %s774, %s776
      %p780 = scmp.eq.s32.totalorder %s126, 0
      %p781 = por %p779, %p780
      %p782 = scmp.ne.s32.totalorder %s774, %s776
      %p783 = scmp.eq.s32.totalorder %s131, 1
      %p784 = por %p782, %p783
      %p785 = scmp.ne.s32.totalorder %s776, %s777
      %p786 = scmp.eq.s32.totalorder %s131, 0
      %p787 = por %p785, %p786
      %p788 = scmp.ne.s32.totalorder %s776, %s777
      %p789 = scmp.eq.s32.totalorder %s132, 1
      %p790 = por %p788, %p789
      %p792 = scmp.ne.s32.totalorder %s777, %s791
      %p793 = scmp.eq.s32.totalorder %s132, 0
      %p794 = por %p792, %p793
      %s796 = sadd.s32 %s795, 1
      %p799 = scmp.eq.s32.totalorder %s126, 1
      %p800 = scmp.ne.s32.totalorder %s795, %s797
      %p801 = scmp.eq.s32.totalorder %s126, 0
      %p802 = por %p800, %p801
      %p803 = scmp.ne.s32.totalorder %s795, %s797
      %p804 = scmp.eq.s32.totalorder %s131, 1
      %p805 = por %p803, %p804
      %p806 = scmp.ne.s32.totalorder %s797, %s798
      %p807 = scmp.eq.s32.totalorder %s131, 0
      %p808 = por %p806, %p807
      %p809 = scmp.ne.s32.totalorder %s797, %s798
      %p810 = scmp.eq.s32.totalorder %s132, 1
      %p811 = por %p809, %p810
      %p813 = scmp.ne.s32.totalorder %s798, %s812
      %p814 = scmp.eq.s32.totalorder %s132, 0
      %p815 = por %p813, %p814
      %s817 = sadd.s32 %s816, 1
      %p820 = scmp.eq.s32.totalorder %s126, 1
      %p821 = scmp.ne.s32.totalorder %s816, %s818
      %p822 = scmp.eq.s32.totalorder %s126, 0
      %p823 = por %p821, %p822
      %p824 = scmp.ne.s32.totalorder %s816, %s818
      %p825 = scmp.eq.s32.totalorder %s131, 1
      %p826 = por %p824, %p825
      %p827 = scmp.ne.s32.totalorder %s818, %s819
      %p828 = scmp.eq.s32.totalorder %s131, 0
      %p829 = por %p827, %p828
      %p830 = scmp.ne.s32.totalorder %s818, %s819
      %p831 = scmp.eq.s32.totalorder %s132, 1
      %p832 = por %p830, %p831
      %p834 = scmp.ne.s32.totalorder %s819, %s833
      %p835 = scmp.eq.s32.totalorder %s132, 0
      %p836 = por %p834, %p835
      %s838 = sadd.s32 %s837, 1
      %p841 = scmp.eq.s32.totalorder %s126, 1
      %p842 = scmp.ne.s32.totalorder %s837, %s839
      %p843 = scmp.eq.s32.totalorder %s126, 0
      %p844 = por %p842, %p843
      %p845 = scmp.ne.s32.totalorder %s837, %s839
      %p846 = scmp.eq.s32.totalorder %s131, 1
      %p847 = por %p845, %p846
      %p848 = scmp.ne.s32.totalorder %s839, %s840
      %p849 = scmp.eq.s32.totalorder %s131, 0
      %p850 = por %p848, %p849
      %p851 = scmp.ne.s32.totalorder %s839, %s840
      %p852 = scmp.eq.s32.totalorder %s132, 1
      %p853 = por %p851, %p852
      %p855 = scmp.ne.s32.totalorder %s840, %s854
      %p856 = scmp.eq.s32.totalorder %s132, 0
      %p857 = por %p855, %p856
      %s859 = sadd.s32 %s858, 1
      %p862 = scmp.eq.s32.totalorder %s126, 1
      %p863 = scmp.ne.s32.totalorder %s858, %s860
      %p864 = scmp.eq.s32.totalorder %s126, 0
      %p865 = por %p863, %p864
      %p866 = scmp.ne.s32.totalorder %s858, %s860
      %p867 = scmp.eq.s32.totalorder %s131, 1
      %p868 = por %p866, %p867
      %p869 = scmp.ne.s32.totalorder %s860, %s861
      %p870 = scmp.eq.s32.totalorder %s131, 0
      %p871 = por %p869, %p870
      %p872 = scmp.ne.s32.totalorder %s860, %s861
      %p873 = scmp.eq.s32.totalorder %s132, 1
      %p874 = por %p872, %p873
      %p876 = scmp.ne.s32.totalorder %s861, %s875
      %p877 = scmp.eq.s32.totalorder %s132, 0
      %p878 = por %p876, %p877
      %s880 = sadd.s32 %s879, 1
      %p883 = scmp.eq.s32.totalorder %s126, 1
      %p884 = scmp.ne.s32.totalorder %s879, %s881
      %p885 = scmp.eq.s32.totalorder %s126, 0
      %p886 = por %p884, %p885
      %p887 = scmp.ne.s32.totalorder %s879, %s881
      %p888 = scmp.eq.s32.totalorder %s131, 1
      %p889 = por %p887, %p888
      %p890 = scmp.ne.s32.totalorder %s881, %s882
      %p891 = scmp.eq.s32.totalorder %s131, 0
      %p892 = por %p890, %p891
      %p893 = scmp.ne.s32.totalorder %s881, %s882
      %p894 = scmp.eq.s32.totalorder %s132, 1
      %p895 = por %p893, %p894
      %p897 = scmp.ne.s32.totalorder %s882, %s896
      %p898 = scmp.eq.s32.totalorder %s132, 0
      %p899 = por %p897, %p898
      %s901 = sadd.s32 %s900, 1
      %p904 = scmp.eq.s32.totalorder %s126, 1
      %p905 = scmp.ne.s32.totalorder %s900, %s902
      %p906 = scmp.eq.s32.totalorder %s126, 0
      %p907 = por %p905, %p906
      %p908 = scmp.ne.s32.totalorder %s900, %s902
      %p909 = scmp.eq.s32.totalorder %s131, 1
      %p910 = por %p908, %p909
      %p911 = scmp.ne.s32.totalorder %s902, %s903
      %p912 = scmp.eq.s32.totalorder %s131, 0
      %p913 = por %p911, %p912
      %p914 = scmp.ne.s32.totalorder %s902, %s903
      %p915 = scmp.eq.s32.totalorder %s132, 1
      %p916 = por %p914, %p915
      %p918 = scmp.ne.s32.totalorder %s903, %s917
      %p919 = scmp.eq.s32.totalorder %s132, 0
      %p920 = por %p918, %p919
      %s922 = sadd.s32 %s921, 1
      %p925 = scmp.eq.s32.totalorder %s126, 1
      %p926 = scmp.ne.s32.totalorder %s921, %s923
      %p927 = scmp.eq.s32.totalorder %s126, 0
      %p928 = por %p926, %p927
      %p929 = scmp.ne.s32.totalorder %s921, %s923
      %p930 = scmp.eq.s32.totalorder %s131, 1
      %p931 = por %p929, %p930
      %p932 = scmp.ne.s32.totalorder %s923, %s924
      %p933 = scmp.eq.s32.totalorder %s131, 0
      %p934 = por %p932, %p933
      %p935 = scmp.ne.s32.totalorder %s923, %s924
      %p936 = scmp.eq.s32.totalorder %s132, 1
      %p937 = por %p935, %p936
      %p939 = scmp.ne.s32.totalorder %s924, %s938
      %p940 = scmp.eq.s32.totalorder %s132, 0
      %p941 = por %p939, %p940
      %s943 = sadd.s32 %s942, 1
      %p946 = scmp.eq.s32.totalorder %s126, 1
      %p947 = scmp.ne.s32.totalorder %s942, %s944
      %p948 = scmp.eq.s32.totalorder %s126, 0
      %p949 = por %p947, %p948
      %p950 = scmp.ne.s32.totalorder %s942, %s944
      %p951 = scmp.eq.s32.totalorder %s131, 1
      %p952 = por %p950, %p951
      %p953 = scmp.ne.s32.totalorder %s944, %s945
      %p954 = scmp.eq.s32.totalorder %s131, 0
      %p955 = por %p953, %p954
      %p956 = scmp.ne.s32.totalorder %s944, %s945
      %p957 = scmp.eq.s32.totalorder %s132, 1
      %p958 = por %p956, %p957
      %p960 = scmp.ne.s32.totalorder %s945, %s959
      %p961 = scmp.eq.s32.totalorder %s132, 0
      %p962 = por %p960, %p961
      %s964 = sadd.s32 %s963, 1
      %p967 = scmp.eq.s32.totalorder %s126, 1
      %p968 = scmp.ne.s32.totalorder %s963, %s965
      %p969 = scmp.eq.s32.totalorder %s126, 0
      %p970 = por %p968, %p969
      %p971 = scmp.ne.s32.totalorder %s963, %s965
      %p972 = scmp.eq.s32.totalorder %s131, 1
      %p973 = por %p971, %p972
      %p974 = scmp.ne.s32.totalorder %s965, %s966
      %p975 = scmp.eq.s32.totalorder %s131, 0
      %p976 = por %p974, %p975
      %p977 = scmp.ne.s32.totalorder %s965, %s966
      %p978 = scmp.eq.s32.totalorder %s132, 1
      %p979 = por %p977, %p978
      %p981 = scmp.ne.s32.totalorder %s966, %s980
      %p982 = scmp.eq.s32.totalorder %s132, 0
      %p983 = por %p981, %p982
      %s985 = sadd.s32 %s984, 1
      %p988 = scmp.eq.s32.totalorder %s126, 1
      %p989 = scmp.ne.s32.totalorder %s984, %s986
      %p990 = scmp.eq.s32.totalorder %s126, 0
      %p991 = por %p989, %p990
      %p992 = scmp.ne.s32.totalorder %s984, %s986
      %p993 = scmp.eq.s32.totalorder %s131, 1
      %p994 = por %p992, %p993
      %p995 = scmp.ne.s32.totalorder %s986, %s987
      %p996 = scmp.eq.s32.totalorder %s131, 0
      %p997 = por %p995, %p996
      %p998 = scmp.ne.s32.totalorder %s986, %s987
      %p999 = scmp.eq.s32.totalorder %s132, 1
      %p1000 = por %p998, %p999
      %p1002 = scmp.ne.s32.totalorder %s987, %s1001
      %p1003 = scmp.eq.s32.totalorder %s132, 0
      %p1004 = por %p1002, %p1003
      %s1006 = sadd.s32 %s1005, 1
      %p1009 = scmp.eq.s32.totalorder %s126, 1
      %p1010 = scmp.ne.s32.totalorder %s1005, %s1007
      %p1011 = scmp.eq.s32.totalorder %s126, 0
      %p1012 = por %p1010, %p1011
      %p1013 = scmp.ne.s32.totalorder %s1005, %s1007
      %p1014 = scmp.eq.s32.totalorder %s131, 1
      %p1015 = por %p1013, %p1014
      %p1016 = scmp.ne.s32.totalorder %s1007, %s1008
      %p1017 = scmp.eq.s32.totalorder %s131, 0
      %p1018 = por %p1016, %p1017
      %p1019 = scmp.ne.s32.totalorder %s1007, %s1008
      %p1020 = scmp.eq.s32.totalorder %s132, 1
      %p1021 = por %p1019, %p1020
      %p1023 = scmp.ne.s32.totalorder %s1008, %s1022
      %p1024 = scmp.eq.s32.totalorder %s132, 0
      %p1025 = por %p1023, %p1024
      %s1027 = sadd.s32 %s1026, 1
      %p1030 = scmp.eq.s32.totalorder %s126, 1
      %p1031 = scmp.ne.s32.totalorder %s1026, %s1028
      %p1032 = scmp.eq.s32.totalorder %s126, 0
      %p1033 = por %p1031, %p1032
      %p1034 = scmp.ne.s32.totalorder %s1026, %s1028
      %p1035 = scmp.eq.s32.totalorder %s131, 1
      %p1036 = por %p1034, %p1035
      %p1037 = scmp.ne.s32.totalorder %s1028, %s1029
      %p1038 = scmp.eq.s32.totalorder %s131, 0
      %p1039 = por %p1037, %p1038
      %p1040 = scmp.ne.s32.totalorder %s1028, %s1029
      %p1041 = scmp.eq.s32.totalorder %s132, 1
      %p1042 = por %p1040, %p1041
      %p1044 = scmp.ne.s32.totalorder %s1029, %s1043
      %p1045 = scmp.eq.s32.totalorder %s132, 0
      %p1046 = por %p1044, %p1045
      %s1048 = sadd.s32 %s1047, 1
      %p1051 = scmp.eq.s32.totalorder %s126, 1
      %p1052 = scmp.ne.s32.totalorder %s1047, %s1049
      %p1053 = scmp.eq.s32.totalorder %s126, 0
      %p1054 = por %p1052, %p1053
      %p1055 = scmp.ne.s32.totalorder %s1047, %s1049
      %p1056 = scmp.eq.s32.totalorder %s131, 1
      %p1057 = por %p1055, %p1056
      %p1058 = scmp.ne.s32.totalorder %s1049, %s1050
      %p1059 = scmp.eq.s32.totalorder %s131, 0
      %p1060 = por %p1058, %p1059
      %p1061 = scmp.ne.s32.totalorder %s1049, %s1050
      %p1062 = scmp.eq.s32.totalorder %s132, 1
      %p1063 = por %p1061, %p1062
      %p1065 = scmp.ne.s32.totalorder %s1050, %s1064
      %p1066 = scmp.eq.s32.totalorder %s132, 0
      %p1067 = por %p1065, %p1066
      %s1069 = sadd.s32 %s1068, 1
      %p1072 = scmp.eq.s32.totalorder %s126, 1
      %p1073 = scmp.ne.s32.totalorder %s1068, %s1070
      %p1074 = scmp.eq.s32.totalorder %s126, 0
      %p1075 = por %p1073, %p1074
      %p1076 = scmp.ne.s32.totalorder %s1068, %s1070
      %p1077 = scmp.eq.s32.totalorder %s131, 1
      %p1078 = por %p1076, %p1077
      %p1079 = scmp.ne.s32.totalorder %s1070, %s1071
      %p1080 = scmp.eq.s32.totalorder %s131, 0
      %p1081 = por %p1079, %p1080
      %p1082 = scmp.ne.s32.totalorder %s1070, %s1071
      %p1083 = scmp.eq.s32.totalorder %s132, 1
      %p1084 = por %p1082, %p1083
      %p1086 = scmp.ne.s32.totalorder %s1071, %s1085
      %p1087 = scmp.eq.s32.totalorder %s132, 0
      %p1088 = por %p1086, %p1087
      %s1090 = sadd.s32 %s1089, 1
      %p1093 = scmp.eq.s32.totalorder %s126, 1
      %p1094 = scmp.ne.s32.totalorder %s1089, %s1091
      %p1095 = scmp.eq.s32.totalorder %s126, 0
      %p1096 = por %p1094, %p1095
      %p1097 = scmp.ne.s32.totalorder %s1089, %s1091
      %p1098 = scmp.eq.s32.totalorder %s131, 1
      %p1099 = por %p1097, %p1098
      %p1100 = scmp.ne.s32.totalorder %s1091, %s1092
      %p1101 = scmp.eq.s32.totalorder %s131, 0
      %p1102 = por %p1100, %p1101
      %p1103 = scmp.ne.s32.totalorder %s1091, %s1092
      %p1104 = scmp.eq.s32.totalorder %s132, 1
      %p1105 = por %p1103, %p1104
      %p1107 = scmp.ne.s32.totalorder %s1092, %s1106
      %p1108 = scmp.eq.s32.totalorder %s132, 0
      %p1109 = por %p1107, %p1108
      %s1111 = sadd.s32 %s1110, 1
      %p1114 = scmp.eq.s32.totalorder %s126, 1
      %p1115 = scmp.ne.s32.totalorder %s1110, %s1112
      %p1116 = scmp.eq.s32.totalorder %s126, 0
      %p1117 = por %p1115, %p1116
      %p1118 = scmp.ne.s32.totalorder %s1110, %s1112
      %p1119 = scmp.eq.s32.totalorder %s131, 1
      %p1120 = por %p1118, %p1119
      %p1121 = scmp.ne.s32.totalorder %s1112, %s1113
      %p1122 = scmp.eq.s32.totalorder %s131, 0
      %p1123 = por %p1121, %p1122
      %p1124 = scmp.ne.s32.totalorder %s1112, %s1113
      %p1125 = scmp.eq.s32.totalorder %s132, 1
      %p1126 = por %p1124, %p1125
      %p1128 = scmp.ne.s32.totalorder %s1113, %s1127
      %p1129 = scmp.eq.s32.totalorder %s132, 0
      %p1130 = por %p1128, %p1129
      %s1132 = sadd.s32 %s1131, 1
      %p1135 = scmp.eq.s32.totalorder %s126, 1
      %p1136 = scmp.ne.s32.totalorder %s1131, %s1133
      %p1137 = scmp.eq.s32.totalorder %s126, 0
      %p1138 = por %p1136, %p1137
      %p1139 = scmp.ne.s32.totalorder %s1131, %s1133
      %p1140 = scmp.eq.s32.totalorder %s131, 1
      %p1141 = por %p1139, %p1140
      %p1142 = scmp.ne.s32.totalorder %s1133, %s1134
      %p1143 = scmp.eq.s32.totalorder %s131, 0
      %p1144 = por %p1142, %p1143
      %p1145 = scmp.ne.s32.totalorder %s1133, %s1134
      %p1146 = scmp.eq.s32.totalorder %s132, 1
      %p1147 = por %p1145, %p1146
      %p1149 = scmp.ne.s32.totalorder %s1134, %s1148
      %p1150 = scmp.eq.s32.totalorder %s132, 0
      %p1151 = por %p1149, %p1150
      %s1153 = sadd.s32 %s1152, 1
      %p1156 = scmp.eq.s32.totalorder %s126, 1
      %p1157 = scmp.ne.s32.totalorder %s1152, %s1154
      %p1158 = scmp.eq.s32.totalorder %s126, 0
      %p1159 = por %p1157, %p1158
      %p1160 = scmp.ne.s32.totalorder %s1152, %s1154
      %p1161 = scmp.eq.s32.totalorder %s131, 1
      %p1162 = por %p1160, %p1161
      %p1163 = scmp.ne.s32.totalorder %s1154, %s1155
      %p1164 = scmp.eq.s32.totalorder %s131, 0
      %p1165 = por %p1163, %p1164
      %p1166 = scmp.ne.s32.totalorder %s1154, %s1155
      %p1167 = scmp.eq.s32.totalorder %s132, 1
      %p1168 = por %p1166, %p1167
      %p1170 = scmp.ne.s32.totalorder %s1155, %s1169
      %p1171 = scmp.eq.s32.totalorder %s132, 0
      %p1172 = por %p1170, %p1171
      %s1174 = sadd.s32 %s1173, 1
      %p1177 = scmp.eq.s32.totalorder %s126, 1
      %p1178 = scmp.ne.s32.totalorder %s1173, %s1175
      %p1179 = scmp.eq.s32.totalorder %s126, 0
      %p1180 = por %p1178, %p1179
      %p1181 = scmp.ne.s32.totalorder %s1173, %s1175
      %p1182 = scmp.eq.s32.totalorder %s131, 1
      %p1183 = por %p1181, %p1182
      %p1184 = scmp.ne.s32.totalorder %s1175, %s1176
      %p1185 = scmp.eq.s32.totalorder %s131, 0
      %p1186 = por %p1184, %p1185
      %p1187 = scmp.ne.s32.totalorder %s1175, %s1176
      %p1188 = scmp.eq.s32.totalorder %s132, 1
      %p1189 = por %p1187, %p1188
      %p1191 = scmp.ne.s32.totalorder %s1176, %s1190
      %p1192 = scmp.eq.s32.totalorder %s132, 0
      %p1193 = por %p1191, %p1192
      %s1195 = sadd.s32 %s1194, 1
      %p1198 = scmp.eq.s32.totalorder %s126, 1
      %p1199 = scmp.ne.s32.totalorder %s1194, %s1196
      %p1200 = scmp.eq.s32.totalorder %s126, 0
      %p1201 = por %p1199, %p1200
      %p1202 = scmp.ne.s32.totalorder %s1194, %s1196
      %p1203 = scmp.eq.s32.totalorder %s131, 1
      %p1204 = por %p1202, %p1203
      %p1205 = scmp.ne.s32.totalorder %s1196, %s1197
      %p1206 = scmp.eq.s32.totalorder %s131, 0
      %p1207 = por %p1205, %p1206
      %p1208 = scmp.ne.s32.totalorder %s1196, %s1197
      %p1209 = scmp.eq.s32.totalorder %s132, 1
      %p1210 = por %p1208, %p1209
      %p1212 = scmp.ne.s32.totalorder %s1197, %s1211
      %p1213 = scmp.eq.s32.totalorder %s132, 0
      %p1214 = por %p1212, %p1213
      %s1216 = sadd.s32 %s1215, 1
      %p1219 = scmp.eq.s32.totalorder %s126, 1
      %p1220 = scmp.ne.s32.totalorder %s1215, %s1217
      %p1221 = scmp.eq.s32.totalorder %s126, 0
      %p1222 = por %p1220, %p1221
      %p1223 = scmp.ne.s32.totalorder %s1215, %s1217
      %p1224 = scmp.eq.s32.totalorder %s131, 1
      %p1225 = por %p1223, %p1224
      %p1226 = scmp.ne.s32.totalorder %s1217, %s1218
      %p1227 = scmp.eq.s32.totalorder %s131, 0
      %p1228 = por %p1226, %p1227
      %p1229 = scmp.ne.s32.totalorder %s1217, %s1218
      %p1230 = scmp.eq.s32.totalorder %s132, 1
      %p1231 = por %p1229, %p1230
      %p1233 = scmp.ne.s32.totalorder %s1218, %s1232
      %p1234 = scmp.eq.s32.totalorder %s132, 0
      %p1235 = por %p1233, %p1234
      %s1237 = sadd.s32 %s1236, 1
      %p1240 = scmp.eq.s32.totalorder %s126, 1
      %p1241 = scmp.ne.s32.totalorder %s1236, %s1238
      %p1242 = scmp.eq.s32.totalorder %s126, 0
      %p1243 = por %p1241, %p1242
      %p1244 = scmp.ne.s32.totalorder %s1236, %s1238
      %p1245 = scmp.eq.s32.totalorder %s131, 1
      %p1246 = por %p1244, %p1245
      %p1247 = scmp.ne.s32.totalorder %s1238, %s1239
      %p1248 = scmp.eq.s32.totalorder %s131, 0
      %p1249 = por %p1247, %p1248
      %p1250 = scmp.ne.s32.totalorder %s1238, %s1239
      %p1251 = scmp.eq.s32.totalorder %s132, 1
      %p1252 = por %p1250, %p1251
      %p1254 = scmp.ne.s32.totalorder %s1239, %s1253
      %p1255 = scmp.eq.s32.totalorder %s132, 0
      %p1256 = por %p1254, %p1255
      %s1258 = sadd.s32 %s1257, 1
      %p1261 = scmp.eq.s32.totalorder %s126, 1
      %p1262 = scmp.ne.s32.totalorder %s1257, %s1259
      %p1263 = scmp.eq.s32.totalorder %s126, 0
      %p1264 = por %p1262, %p1263
      %p1265 = scmp.ne.s32.totalorder %s1257, %s1259
      %p1266 = scmp.eq.s32.totalorder %s131, 1
      %p1267 = por %p1265, %p1266
      %p1268 = scmp.ne.s32.totalorder %s1259, %s1260
      %p1269 = scmp.eq.s32.totalorder %s131, 0
      %p1270 = por %p1268, %p1269
      %p1271 = scmp.ne.s32.totalorder %s1259, %s1260
      %p1272 = scmp.eq.s32.totalorder %s132, 1
      %p1273 = por %p1271, %p1272
      %p1275 = scmp.ne.s32.totalorder %s1260, %s1274
      %p1276 = scmp.eq.s32.totalorder %s132, 0
      %p1277 = por %p1275, %p1276
      %s1279 = sadd.s32 %s1278, 1
      %p1282 = scmp.eq.s32.totalorder %s126, 1
      %p1283 = scmp.ne.s32.totalorder %s1278, %s1280
      %p1284 = scmp.eq.s32.totalorder %s126, 0
      %p1285 = por %p1283, %p1284
      %p1286 = scmp.ne.s32.totalorder %s1278, %s1280
      %p1287 = scmp.eq.s32.totalorder %s131, 1
      %p1288 = por %p1286, %p1287
      %p1289 = scmp.ne.s32.totalorder %s1280, %s1281
      %p1290 = scmp.eq.s32.totalorder %s131, 0
      %p1291 = por %p1289, %p1290
      %p1292 = scmp.ne.s32.totalorder %s1280, %s1281
      %p1293 = scmp.eq.s32.totalorder %s132, 1
      %p1294 = por %p1292, %p1293
      %p1296 = scmp.ne.s32.totalorder %s1281, %s1295
      %p1297 = scmp.eq.s32.totalorder %s132, 0
      %p1298 = por %p1296, %p1297
      %s1300 = sadd.s32 %s1299, 1
      %p1303 = scmp.eq.s32.totalorder %s126, 1
      %p1304 = scmp.ne.s32.totalorder %s1299, %s1301
      %p1305 = scmp.eq.s32.totalorder %s126, 0
      %p1306 = por %p1304, %p1305
      %p1307 = scmp.ne.s32.totalorder %s1299, %s1301
      %p1308 = scmp.eq.s32.totalorder %s131, 1
      %p1309 = por %p1307, %p1308
      %p1310 = scmp.ne.s32.totalorder %s1301, %s1302
      %p1311 = scmp.eq.s32.totalorder %s131, 0
      %p1312 = por %p1310, %p1311
      %p1313 = scmp.ne.s32.totalorder %s1301, %s1302
      %p1314 = scmp.eq.s32.totalorder %s132, 1
      %p1315 = por %p1313, %p1314
      %p1317 = scmp.ne.s32.totalorder %s1302, %s1316
      %p1318 = scmp.eq.s32.totalorder %s132, 0
      %p1319 = por %p1317, %p1318
      %s1320 = ssub.s32 %s126, %s133
      %p1321 = scmp.eq.s32.totalorder %s1320, 0
      %s1323 = sadd.s32 %s1322, 1
      %s1324 = scalar_select %p1321, %s1322, %s1323
      %p1327 = pneg %p1321
      %p1328 = scmp.eq.s32.totalorder %s126, 1
      %p1329 = por %p1327, %p1328
      %p1330 = scmp.ne.s32.totalorder %s1322, %s1325
      %p1331 = scmp.eq.s32.totalorder %s126, 0
      %p1332 = por %p1330, %p1331
      %p1333 = scmp.ne.s32.totalorder %s1322, %s1325
      %p1334 = scmp.eq.s32.totalorder %s131, 1
      %p1335 = por %p1333, %p1334
      %p1336 = scmp.ne.s32.totalorder %s1325, %s1326
      %p1337 = scmp.eq.s32.totalorder %s131, 0
      %p1338 = por %p1336, %p1337
      %p1339 = scmp.ne.s32.totalorder %s1325, %s1326
      %p1340 = scmp.eq.s32.totalorder %s132, 1
      %p1341 = por %p1339, %p1340
      %p1343 = scmp.ne.s32.totalorder %s1326, %s1342
      %p1344 = scmp.eq.s32.totalorder %s132, 0
      %p1345 = por %p1343, %p1344
      %p1346 = scmp.le.s32.totalorder 1, %s126
      %p1347 = scmp.lt.s32.totalorder %s126, 3
      %p1348 = pnand %p1346, %p1347
      %p1349 = pneg %p1348
      // Predicated region
      $region9: #{imitator_forward.1} parent=5 // pred_check
        _
      $region10: #{imitator_forward.1} parent=5 // pred_check_branch
        %1351 = sbr.rel (%p1348) target = $region12
      $region11: #{imitator_forward.1} parent=5 // pred_region
        %s1352 = ssub.s32 %s126, 1
        // Predicated region
        $region13: #{imitator_forward.1} parent=11 // pred_check
          %p1353 = pneg %p199
        $region14: #{imitator_forward.1} parent=11 // pred_check_branch
          %1355 = sbr.rel (%p1353) target = $region16
        $region15: #{imitator_forward.1} parent=11 // pred_region
          _
        $region16: #{imitator_forward.1} parent=11 // pred_fallthru
          _
        // Predicated region
        $region17: #{imitator_forward.1} parent=11 // pred_check
          %p1356 = pneg %p220
        $region18: #{imitator_forward.1} parent=11 // pred_check_branch
          %1358 = sbr.rel (%p1356) target = $region20
        $region19: #{imitator_forward.1} parent=11 // pred_region
          _
        $region20: #{imitator_forward.1} parent=11 // pred_fallthru
          _
        // Predicated region
        $region21: #{imitator_forward.1} parent=11 // pred_check
          %p1359 = pneg %p241
        $region22: #{imitator_forward.1} parent=11 // pred_check_branch
          %1361 = sbr.rel (%p1359) target = $region24
        $region23: #{imitator_forward.1} parent=11 // pred_region
          _
        $region24: #{imitator_forward.1} parent=11 // pred_fallthru
          _
        // Predicated region
        $region25: #{imitator_forward.1} parent=11 // pred_check
          %p1362 = pneg %p262
        $region26: #{imitator_forward.1} parent=11 // pred_check_branch
          %1364 = sbr.rel (%p1362) target = $region28
        $region27: #{imitator_forward.1} parent=11 // pred_region
          _
        $region28: #{imitator_forward.1} parent=11 // pred_fallthru
          _
        // Predicated region
        $region29: #{imitator_forward.1} parent=11 // pred_check
          %p1365 = pneg %p283
        $region30: #{imitator_forward.1} parent=11 // pred_check_branch
          %1367 = sbr.rel (%p1365) target = $region32
        $region31: #{imitator_forward.1} parent=11 // pred_region
          _
        $region32: #{imitator_forward.1} parent=11 // pred_fallthru
          _
        // Predicated region
        $region33: #{imitator_forward.1} parent=11 // pred_check
          %p1368 = pneg %p304
        $region34: #{imitator_forward.1} parent=11 // pred_check_branch
          %1370 = sbr.rel (%p1368) target = $region36
        $region35: #{imitator_forward.1} parent=11 // pred_region
          _
        $region36: #{imitator_forward.1} parent=11 // pred_fallthru
          _
        // Predicated region
        $region37: #{imitator_forward.1} parent=11 // pred_check
          %p1371 = pneg %p325
        $region38: #{imitator_forward.1} parent=11 // pred_check_branch
          %1373 = sbr.rel (%p1371) target = $region40
        $region39: #{imitator_forward.1} parent=11 // pred_region
          _
        $region40: #{imitator_forward.1} parent=11 // pred_fallthru
          _
        // Predicated region
        $region41: #{imitator_forward.1} parent=11 // pred_check
          %p1374 = pneg %p346
        $region42: #{imitator_forward.1} parent=11 // pred_check_branch
          %1376 = sbr.rel (%p1374) target = $region44
        $region43: #{imitator_forward.1} parent=11 // pred_region
          _
        $region44: #{imitator_forward.1} parent=11 // pred_fallthru
          _
        // Predicated region
        $region45: #{imitator_forward.1} parent=11 // pred_check
          %p1377 = pneg %p367
        $region46: #{imitator_forward.1} parent=11 // pred_check_branch
          %1379 = sbr.rel (%p1377) target = $region48
        $region47: #{imitator_forward.1} parent=11 // pred_region
          _
        $region48: #{imitator_forward.1} parent=11 // pred_fallthru
          _
        // Predicated region
        $region49: #{imitator_forward.1} parent=11 // pred_check
          %p1380 = pneg %p388
        $region50: #{imitator_forward.1} parent=11 // pred_check_branch
          %1382 = sbr.rel (%p1380) target = $region52
        $region51: #{imitator_forward.1} parent=11 // pred_region
          _
        $region52: #{imitator_forward.1} parent=11 // pred_fallthru
          _
        // Predicated region
        $region53: #{imitator_forward.1} parent=11 // pred_check
          %p1383 = pneg %p409
        $region54: #{imitator_forward.1} parent=11 // pred_check_branch
          %1385 = sbr.rel (%p1383) target = $region56
        $region55: #{imitator_forward.1} parent=11 // pred_region
          _
        $region56: #{imitator_forward.1} parent=11 // pred_fallthru
          _
        // Predicated region
        $region57: #{imitator_forward.1} parent=11 // pred_check
          %p1386 = pneg %p430
        $region58: #{imitator_forward.1} parent=11 // pred_check_branch
          %1388 = sbr.rel (%p1386) target = $region60
        $region59: #{imitator_forward.1} parent=11 // pred_region
          _
        $region60: #{imitator_forward.1} parent=11 // pred_fallthru
          _
        // Predicated region
        $region61: #{imitator_forward.1} parent=11 // pred_check
          %p1389 = pneg %p451
        $region62: #{imitator_forward.1} parent=11 // pred_check_branch
          %1391 = sbr.rel (%p1389) target = $region64
        $region63: #{imitator_forward.1} parent=11 // pred_region
          _
        $region64: #{imitator_forward.1} parent=11 // pred_fallthru
          _
        // Predicated region
        $region65: #{imitator_forward.1} parent=11 // pred_check
          %p1392 = pneg %p472
        $region66: #{imitator_forward.1} parent=11 // pred_check_branch
          %1394 = sbr.rel (%p1392) target = $region68
        $region67: #{imitator_forward.1} parent=11 // pred_region
          _
        $region68: #{imitator_forward.1} parent=11 // pred_fallthru
          _
        // Predicated region
        $region69: #{imitator_forward.1} parent=11 // pred_check
          %p1395 = pneg %p493
        $region70: #{imitator_forward.1} parent=11 // pred_check_branch
          %1397 = sbr.rel (%p1395) target = $region72
        $region71: #{imitator_forward.1} parent=11 // pred_region
          _
        $region72: #{imitator_forward.1} parent=11 // pred_fallthru
          _
        // Predicated region
        $region73: #{imitator_forward.1} parent=11 // pred_check
          %p1398 = pneg %p514
        $region74: #{imitator_forward.1} parent=11 // pred_check_branch
          %1400 = sbr.rel (%p1398) target = $region76
        $region75: #{imitator_forward.1} parent=11 // pred_region
          %1402 = vsyncadd [#allocation3], 0
          %s1404 = sshll.u32 %s35, 4
          %s1405 = int_to_ptr.hbm [resolvable:$true] %s1404
          %s1406 = sshll.u32 [#allocation2], 4
          %s1407 = int_to_ptr.vmem [resolvable:$true] %s1406
          %1409 = dma.hbm_to_vmem [thread:$0]  %s1405, 16, %s1407, [#allocation3]
        $region76: #{imitator_forward.1} parent=11 // pred_fallthru
          _
        // Predicated region
        $region77: #{imitator_forward.1} parent=11 // pred_check
          %p1410 = pneg %p535
        $region78: #{imitator_forward.1} parent=11 // pred_check_branch
          %1412 = sbr.rel (%p1410) target = $region80
        $region79: #{imitator_forward.1} parent=11 // pred_region
          _
        $region80: #{imitator_forward.1} parent=11 // pred_fallthru
          _
        // Predicated region
        $region81: #{imitator_forward.1} parent=11 // pred_check
          %p1413 = pneg %p556
        $region82: #{imitator_forward.1} parent=11 // pred_check_branch
          %1415 = sbr.rel (%p1413) target = $region84
        $region83: #{imitator_forward.1} parent=11 // pred_region
          %1417 = vsyncadd [#allocation6], 0
          %s1419 = sshll.u32 %s39, 4
          %s1420 = int_to_ptr.hbm [resolvable:$true] %s1419
          %s1421 = sshll.u32 [#allocation5], 4
          %s1422 = int_to_ptr.vmem [resolvable:$true] %s1421
          %1424 = dma.hbm_to_vmem [thread:$0]  %s1420, 16, %s1422, [#allocation6]
        $region84: #{imitator_forward.1} parent=11 // pred_fallthru
          _
        // Predicated region
        $region85: #{imitator_forward.1} parent=11 // pred_check
          %p1425 = pneg %p577
        $region86: #{imitator_forward.1} parent=11 // pred_check_branch
          %1427 = sbr.rel (%p1425) target = $region88
        $region87: #{imitator_forward.1} parent=11 // pred_region
          _
        $region88: #{imitator_forward.1} parent=11 // pred_fallthru
          _
        // Predicated region
        $region89: #{imitator_forward.1} parent=11 // pred_check
          %p1428 = pneg %p598
        $region90: #{imitator_forward.1} parent=11 // pred_check_branch
          %1430 = sbr.rel (%p1428) target = $region92
        $region91: #{imitator_forward.1} parent=11 // pred_region
          %1432 = vsyncadd [#allocation6], 0
          %s1434 = sshll.u32 %s43, 4
          %s1435 = int_to_ptr.hbm [resolvable:$true] %s1434
          %s1436 = sshll.u32 [#allocation7], 4
          %s1437 = int_to_ptr.vmem [resolvable:$true] %s1436
          %1439 = dma.hbm_to_vmem [thread:$0]  %s1435, 16, %s1437, [#allocation6]
        $region92: #{imitator_forward.1} parent=11 // pred_fallthru
          _
        // Predicated region
        $region93: #{imitator_forward.1} parent=11 // pred_check
          %p1440 = pneg %p619
        $region94: #{imitator_forward.1} parent=11 // pred_check_branch
          %1442 = sbr.rel (%p1440) target = $region96
        $region95: #{imitator_forward.1} parent=11 // pred_region
          _
        $region96: #{imitator_forward.1} parent=11 // pred_fallthru
          _
        // Predicated region
        $region97: #{imitator_forward.1} parent=11 // pred_check
          %p1443 = pneg %p640
        $region98: #{imitator_forward.1} parent=11 // pred_check_branch
          %1445 = sbr.rel (%p1443) target = $region100
        $region99: #{imitator_forward.1} parent=11 // pred_region
          _
        $region100: #{imitator_forward.1} parent=11 // pred_fallthru
          _
        // Predicated region
        $region101: #{imitator_forward.1} parent=11 // pred_check
          %p1446 = pneg %p661
        $region102: #{imitator_forward.1} parent=11 // pred_check_branch
          %1448 = sbr.rel (%p1446) target = $region104
        $region103: #{imitator_forward.1} parent=11 // pred_region
          _
        $region104: #{imitator_forward.1} parent=11 // pred_fallthru
          _
        // Predicated region
        $region105: #{imitator_forward.1} parent=11 // pred_check
          %p1449 = pneg %p682
        $region106: #{imitator_forward.1} parent=11 // pred_check_branch
          %1451 = sbr.rel (%p1449) target = $region108
        $region107: #{imitator_forward.1} parent=11 // pred_region
          _
        $region108: #{imitator_forward.1} parent=11 // pred_fallthru
          _
        // Predicated region
        $region109: #{imitator_forward.1} parent=11 // pred_check
          %p1452 = pneg %p703
        $region110: #{imitator_forward.1} parent=11 // pred_check_branch
          %1454 = sbr.rel (%p1452) target = $region112
        $region111: #{imitator_forward.1} parent=11 // pred_region
          _
        $region112: #{imitator_forward.1} parent=11 // pred_fallthru
          _
        // Predicated region
        $region113: #{imitator_forward.1} parent=11 // pred_check
          %p1455 = pneg %p724
        $region114: #{imitator_forward.1} parent=11 // pred_check_branch
          %1457 = sbr.rel (%p1455) target = $region116
        $region115: #{imitator_forward.1} parent=11 // pred_region
          _
        $region116: #{imitator_forward.1} parent=11 // pred_fallthru
          _
        // Predicated region
        $region117: #{imitator_forward.1} parent=11 // pred_check
          %p1458 = pneg %p745
        $region118: #{imitator_forward.1} parent=11 // pred_check_branch
          %1460 = sbr.rel (%p1458) target = $region120
        $region119: #{imitator_forward.1} parent=11 // pred_region
          _
        $region120: #{imitator_forward.1} parent=11 // pred_fallthru
          _
        // Predicated region
        $region121: #{imitator_forward.1} parent=11 // pred_check
          %p1461 = pneg %p766
        $region122: #{imitator_forward.1} parent=11 // pred_check_branch
          %1463 = sbr.rel (%p1461) target = $region124
        $region123: #{imitator_forward.1} parent=11 // pred_region
          _
        $region124: #{imitator_forward.1} parent=11 // pred_fallthru
          _
        // Predicated region
        $region125: #{imitator_forward.1} parent=11 // pred_check
          %p1464 = pneg %p787
        $region126: #{imitator_forward.1} parent=11 // pred_check_branch
          %1466 = sbr.rel (%p1464) target = $region128
        $region127: #{imitator_forward.1} parent=11 // pred_region
          _
        $region128: #{imitator_forward.1} parent=11 // pred_fallthru
          _
        // Predicated region
        $region129: #{imitator_forward.1} parent=11 // pred_check
          %p1467 = pneg %p808
        $region130: #{imitator_forward.1} parent=11 // pred_check_branch
          %1469 = sbr.rel (%p1467) target = $region132
        $region131: #{imitator_forward.1} parent=11 // pred_region
          _
        $region132: #{imitator_forward.1} parent=11 // pred_fallthru
          _
        // Predicated region
        $region133: #{imitator_forward.1} parent=11 // pred_check
          %p1470 = pneg %p829
        $region134: #{imitator_forward.1} parent=11 // pred_check_branch
          %1472 = sbr.rel (%p1470) target = $region136
        $region135: #{imitator_forward.1} parent=11 // pred_region
          _
        $region136: #{imitator_forward.1} parent=11 // pred_fallthru
          _
        // Predicated region
        $region137: #{imitator_forward.1} parent=11 // pred_check
          %p1473 = pneg %p850
        $region138: #{imitator_forward.1} parent=11 // pred_check_branch
          %1475 = sbr.rel (%p1473) target = $region140
        $region139: #{imitator_forward.1} parent=11 // pred_region
          _
        $region140: #{imitator_forward.1} parent=11 // pred_fallthru
          _
        // Predicated region
        $region141: #{imitator_forward.1} parent=11 // pred_check
          %p1476 = pneg %p871
        $region142: #{imitator_forward.1} parent=11 // pred_check_branch
          %1478 = sbr.rel (%p1476) target = $region144
        $region143: #{imitator_forward.1} parent=11 // pred_region
          _
        $region144: #{imitator_forward.1} parent=11 // pred_fallthru
          _
        // Predicated region
        $region145: #{imitator_forward.1} parent=11 // pred_check
          %p1479 = pneg %p892
        $region146: #{imitator_forward.1} parent=11 // pred_check_branch
          %1481 = sbr.rel (%p1479) target = $region148
        $region147: #{imitator_forward.1} parent=11 // pred_region
          _
        $region148: #{imitator_forward.1} parent=11 // pred_fallthru
          _
        // Predicated region
        $region149: #{imitator_forward.1} parent=11 // pred_check
          %p1482 = pneg %p913
        $region150: #{imitator_forward.1} parent=11 // pred_check_branch
          %1484 = sbr.rel (%p1482) target = $region152
        $region151: #{imitator_forward.1} parent=11 // pred_region
          _
        $region152: #{imitator_forward.1} parent=11 // pred_fallthru
          _
        // Predicated region
        $region153: #{imitator_forward.1} parent=11 // pred_check
          %p1485 = pneg %p934
        $region154: #{imitator_forward.1} parent=11 // pred_check_branch
          %1487 = sbr.rel (%p1485) target = $region156
        $region155: #{imitator_forward.1} parent=11 // pred_region
          _
        $region156: #{imitator_forward.1} parent=11 // pred_fallthru
          _
        // Predicated region
        $region157: #{imitator_forward.1} parent=11 // pred_check
          %p1488 = pneg %p955
        $region158: #{imitator_forward.1} parent=11 // pred_check_branch
          %1490 = sbr.rel (%p1488) target = $region160
        $region159: #{imitator_forward.1} parent=11 // pred_region
          _
        $region160: #{imitator_forward.1} parent=11 // pred_fallthru
          _
        // Predicated region
        $region161: #{imitator_forward.1} parent=11 // pred_check
          %p1491 = pneg %p976
        $region162: #{imitator_forward.1} parent=11 // pred_check_branch
          %1493 = sbr.rel (%p1491) target = $region164
        $region163: #{imitator_forward.1} parent=11 // pred_region
          _
        $region164: #{imitator_forward.1} parent=11 // pred_fallthru
          _
        // Predicated region
        $region165: #{imitator_forward.1} parent=11 // pred_check
          %p1494 = pneg %p997
        $region166: #{imitator_forward.1} parent=11 // pred_check_branch
          %1496 = sbr.rel (%p1494) target = $region168
        $region167: #{imitator_forward.1} parent=11 // pred_region
          _
        $region168: #{imitator_forward.1} parent=11 // pred_fallthru
          _
        // Predicated region
        $region169: #{imitator_forward.1} parent=11 // pred_check
          %p1497 = pneg %p1018
        $region170: #{imitator_forward.1} parent=11 // pred_check_branch
          %1499 = sbr.rel (%p1497) target = $region172
        $region171: #{imitator_forward.1} parent=11 // pred_region
          _
        $region172: #{imitator_forward.1} parent=11 // pred_fallthru
          _
        // Predicated region
        $region173: #{imitator_forward.1} parent=11 // pred_check
          %p1500 = pneg %p1039
        $region174: #{imitator_forward.1} parent=11 // pred_check_branch
          %1502 = sbr.rel (%p1500) target = $region176
        $region175: #{imitator_forward.1} parent=11 // pred_region
          _
        $region176: #{imitator_forward.1} parent=11 // pred_fallthru
          _
        // Predicated region
        $region177: #{imitator_forward.1} parent=11 // pred_check
          %p1503 = pneg %p1060
        $region178: #{imitator_forward.1} parent=11 // pred_check_branch
          %1505 = sbr.rel (%p1503) target = $region180
        $region179: #{imitator_forward.1} parent=11 // pred_region
          _
        $region180: #{imitator_forward.1} parent=11 // pred_fallthru
          _
        // Predicated region
        $region181: #{imitator_forward.1} parent=11 // pred_check
          %p1506 = pneg %p1081
        $region182: #{imitator_forward.1} parent=11 // pred_check_branch
          %1508 = sbr.rel (%p1506) target = $region184
        $region183: #{imitator_forward.1} parent=11 // pred_region
          _
        $region184: #{imitator_forward.1} parent=11 // pred_fallthru
          _
        // Predicated region
        $region185: #{imitator_forward.1} parent=11 // pred_check
          %p1509 = pneg %p1102
        $region186: #{imitator_forward.1} parent=11 // pred_check_branch
          %1511 = sbr.rel (%p1509) target = $region188
        $region187: #{imitator_forward.1} parent=11 // pred_region
          %1513 = vsyncadd [#allocation9], 0
          %s1515 = sshll.u32 %s91, 4
          %s1516 = int_to_ptr.hbm [resolvable:$true] %s1515
          %s1517 = sshll.u32 [#allocation8], 4
          %s1518 = int_to_ptr.vmem [resolvable:$true] %s1517
          %1520 = dma.hbm_to_vmem [thread:$0]  %s1516, 16, %s1518, [#allocation9]
        $region188: #{imitator_forward.1} parent=11 // pred_fallthru
          _
        // Predicated region
        $region189: #{imitator_forward.1} parent=11 // pred_check
          %p1521 = pneg %p1123
        $region190: #{imitator_forward.1} parent=11 // pred_check_branch
          %1523 = sbr.rel (%p1521) target = $region192
        $region191: #{imitator_forward.1} parent=11 // pred_region
          _
        $region192: #{imitator_forward.1} parent=11 // pred_fallthru
          _
        // Predicated region
        $region193: #{imitator_forward.1} parent=11 // pred_check
          %p1524 = pneg %p1144
        $region194: #{imitator_forward.1} parent=11 // pred_check_branch
          %1526 = sbr.rel (%p1524) target = $region196
        $region195: #{imitator_forward.1} parent=11 // pred_region
          _
        $region196: #{imitator_forward.1} parent=11 // pred_fallthru
          _
        // Predicated region
        $region197: #{imitator_forward.1} parent=11 // pred_check
          %p1527 = pneg %p1165
        $region198: #{imitator_forward.1} parent=11 // pred_check_branch
          %1529 = sbr.rel (%p1527) target = $region200
        $region199: #{imitator_forward.1} parent=11 // pred_region
          _
        $region200: #{imitator_forward.1} parent=11 // pred_fallthru
          _
        // Predicated region
        $region201: #{imitator_forward.1} parent=11 // pred_check
          %p1530 = pneg %p1186
        $region202: #{imitator_forward.1} parent=11 // pred_check_branch
          %1532 = sbr.rel (%p1530) target = $region204
        $region203: #{imitator_forward.1} parent=11 // pred_region
          _
        $region204: #{imitator_forward.1} parent=11 // pred_fallthru
          _
        // Predicated region
        $region205: #{imitator_forward.1} parent=11 // pred_check
          %p1533 = pneg %p1207
        $region206: #{imitator_forward.1} parent=11 // pred_check_branch
          %1535 = sbr.rel (%p1533) target = $region208
        $region207: #{imitator_forward.1} parent=11 // pred_region
          _
        $region208: #{imitator_forward.1} parent=11 // pred_fallthru
          _
        // Predicated region
        $region209: #{imitator_forward.1} parent=11 // pred_check
          %p1536 = pneg %p1228
        $region210: #{imitator_forward.1} parent=11 // pred_check_branch
          %1538 = sbr.rel (%p1536) target = $region212
        $region211: #{imitator_forward.1} parent=11 // pred_region
          _
        $region212: #{imitator_forward.1} parent=11 // pred_fallthru
          _
        // Predicated region
        $region213: #{imitator_forward.1} parent=11 // pred_check
          %p1539 = pneg %p1249
        $region214: #{imitator_forward.1} parent=11 // pred_check_branch
          %1541 = sbr.rel (%p1539) target = $region216
        $region215: #{imitator_forward.1} parent=11 // pred_region
          _
        $region216: #{imitator_forward.1} parent=11 // pred_fallthru
          _
        // Predicated region
        $region217: #{imitator_forward.1} parent=11 // pred_check
          %p1542 = pneg %p1270
        $region218: #{imitator_forward.1} parent=11 // pred_check_branch
          %1544 = sbr.rel (%p1542) target = $region220
        $region219: #{imitator_forward.1} parent=11 // pred_region
          %1546 = vsyncadd [#allocation9], 0
          %s1548 = sshll.u32 %s107, 4
          %s1549 = int_to_ptr.hbm [resolvable:$true] %s1548
          %s1550 = sshll.u32 [#allocation10], 4
          %s1551 = int_to_ptr.vmem [resolvable:$true] %s1550
          %1553 = dma.hbm_to_vmem [thread:$0]  %s1549, 16, %s1551, [#allocation9]
        $region220: #{imitator_forward.1} parent=11 // pred_fallthru
          _
        // Predicated region
        $region221: #{imitator_forward.1} parent=11 // pred_check
          %p1554 = pneg %p1291
        $region222: #{imitator_forward.1} parent=11 // pred_check_branch
          %1556 = sbr.rel (%p1554) target = $region224
        $region223: #{imitator_forward.1} parent=11 // pred_region
          %1558 = vsyncadd [#allocation12], 0
          %s1560 = sshll.u32 %s109, 4
          %s1561 = int_to_ptr.hbm [resolvable:$true] %s1560
          %s1562 = sshll.u32 [#allocation11], 4
          %s1563 = int_to_ptr.vmem [resolvable:$true] %s1562
          %1565 = dma.hbm_to_vmem [thread:$0]  %s1561, 16, %s1563, [#allocation12]
        $region224: #{imitator_forward.1} parent=11 // pred_fallthru
          _
        // Predicated region
        $region225: #{imitator_forward.1} parent=11 // pred_check
          %p1566 = pneg %p1312
        $region226: #{imitator_forward.1} parent=11 // pred_check_branch
          %1568 = sbr.rel (%p1566) target = $region228
        $region227: #{imitator_forward.1} parent=11 // pred_region
          %1570 = vsyncadd [#allocation12], 0
          %s1572 = sshll.u32 %s111, 4
          %s1573 = int_to_ptr.hbm [resolvable:$true] %s1572
          %s1574 = sshll.u32 [#allocation13], 4
          %s1575 = int_to_ptr.vmem [resolvable:$true] %s1574
          %1577 = dma.hbm_to_vmem [thread:$0]  %s1573, 16, %s1575, [#allocation12]
        $region228: #{imitator_forward.1} parent=11 // pred_fallthru
          _
      $region12: #{imitator_forward.1} parent=5 // pred_fallthru
        _
      %p1578 = scmp.lt.s32.totalorder %s126, 2
      // Predicated region
      $region229: #{imitator_forward.1} parent=5 // pred_check
        %p1579 = pneg %p1578
      $region230: #{imitator_forward.1} parent=5 // pred_check_branch
        %1581 = sbr.rel (%p1579) target = $region232
      $region231: #{imitator_forward.1} parent=5 // pred_region
        // Predicated region
        $region233: #{imitator_forward.1} parent=231 // pred_check
          %p1582 = pneg %p146
        $region234: #{imitator_forward.1} parent=231 // pred_check_branch
          %1584 = sbr.rel (%p1582) target = $region236
        $region235: #{imitator_forward.1} parent=231 // pred_region
          %p1585 = scmp.lt.s32.totalorder %s126, 1
          %s1586 = scalar_select %p1585, %s126, 1
          %s1587 = smul.addr %s1586, 2
          %s1588 = smul.addr %s1587, 8
          %s1589 = scalar_lea.vmem %s1, %s1588
        $region236: #{imitator_forward.1} parent=231 // pred_fallthru
          _
        // Predicated region
        $region237: #{imitator_forward.1} parent=231 // pred_check
          %p1590 = pneg %p172
        $region238: #{imitator_forward.1} parent=231 // pred_check_branch
          %1592 = sbr.rel (%p1590) target = $region240
        $region239: #{imitator_forward.1} parent=231 // pred_region
          %p1593 = scmp.lt.s32.totalorder %s126, 1
          %s1594 = scalar_select %p1593, %s126, 1
          %s1595 = scalar_lea.vmem %s3, %s1594
        $region240: #{imitator_forward.1} parent=231 // pred_fallthru
          _
      $region232: #{imitator_forward.1} parent=5 // pred_fallthru
        _
      %p1596 = scmp.le.s32.totalorder 1, %s126
      %p1597 = scmp.lt.s32.totalorder %s126, 3
      %p1598 = pnand %p1596, %p1597
      %p1599 = pneg %p1598
      // Predicated region
      $region241: #{imitator_forward.1} parent=5 // pred_check
        _
      $region242: #{imitator_forward.1} parent=5 // pred_check_branch
        %1601 = sbr.rel (%p1598) target = $region244
      $region243: #{imitator_forward.1} parent=5 // pred_region
        %s1602 = ssub.s32 %s126, 1
        // Predicated region
        $region245: #{imitator_forward.1} parent=243 // pred_check
          %p1603 = pneg %p514
        $region246: #{imitator_forward.1} parent=243 // pred_check_branch
          %1605 = sbr.rel (%p1603) target = $region248
        $region247: #{imitator_forward.1} parent=243 // pred_region
          %1607 = dma.done [#allocation3], 16
        $region248: #{imitator_forward.1} parent=243 // pred_fallthru
          _
        // Predicated region
        $region249: #{imitator_forward.1} parent=243 // pred_check
          %p1608 = pneg %p556
        $region250: #{imitator_forward.1} parent=243 // pred_check_branch
          %1610 = sbr.rel (%p1608) target = $region252
        $region251: #{imitator_forward.1} parent=243 // pred_region
          %1612 = dma.done [#allocation6], 16
        $region252: #{imitator_forward.1} parent=243 // pred_fallthru
          _
        // Predicated region
        $region253: #{imitator_forward.1} parent=243 // pred_check
          %p1613 = pneg %p598
        $region254: #{imitator_forward.1} parent=243 // pred_check_branch
          %1615 = sbr.rel (%p1613) target = $region256
        $region255: #{imitator_forward.1} parent=243 // pred_region
          %1617 = dma.done [#allocation6], 16
        $region256: #{imitator_forward.1} parent=243 // pred_fallthru
          _
        // Predicated region
        $region257: #{imitator_forward.1} parent=243 // pred_check
          %p1618 = pneg %p1102
        $region258: #{imitator_forward.1} parent=243 // pred_check_branch
          %1620 = sbr.rel (%p1618) target = $region260
        $region259: #{imitator_forward.1} parent=243 // pred_region
          %1622 = dma.done [#allocation9], 16
        $region260: #{imitator_forward.1} parent=243 // pred_fallthru
          _
        // Predicated region
        $region261: #{imitator_forward.1} parent=243 // pred_check
          %p1623 = pneg %p1270
        $region262: #{imitator_forward.1} parent=243 // pred_check_branch
          %1625 = sbr.rel (%p1623) target = $region264
        $region263: #{imitator_forward.1} parent=243 // pred_region
          %1627 = dma.done [#allocation9], 16
        $region264: #{imitator_forward.1} parent=243 // pred_fallthru
          _
        // Predicated region
        $region265: #{imitator_forward.1} parent=243 // pred_check
          %p1628 = pneg %p1291
        $region266: #{imitator_forward.1} parent=243 // pred_check_branch
          %1630 = sbr.rel (%p1628) target = $region268
        $region267: #{imitator_forward.1} parent=243 // pred_region
          %1632 = dma.done [#allocation12], 16
        $region268: #{imitator_forward.1} parent=243 // pred_fallthru
          _
        // Predicated region
        $region269: #{imitator_forward.1} parent=243 // pred_check
          %p1633 = pneg %p1312
        $region270: #{imitator_forward.1} parent=243 // pred_check_branch
          %1635 = sbr.rel (%p1633) target = $region272
        $region271: #{imitator_forward.1} parent=243 // pred_region
          %1637 = dma.done [#allocation12], 16
        $region272: #{imitator_forward.1} parent=243 // pred_fallthru
          _
        %p1638 = scmp.lt.s32.totalorder %s131, 1
        %s1639 = scalar_select %p1638, %s131, 1
        %s1640 = smul.addr %s1639, 2
        %s1641 = smul.addr %s1640, 8
        %s1642 = scalar_lea.vmem %s1, %s1641
        %p1643 = pneg %p152
        %p1644 = pneg %p149
        %p1645 = scmp.lt.s32.totalorder %s131, 1
        %s1646 = scalar_select %p1645, %s131, 1
        %s1647 = scalar_lea.vmem %s3, %s1646
        %p1648 = pneg %p178
        %p1649 = pneg %p175
        %p1650 = pneg %p199
        %p1651 = pneg %p196
        %p1652 = pneg %p220
        %p1653 = pneg %p217
        %p1654 = pneg %p241
        %p1655 = pneg %p238
        %p1656 = pneg %p262
        %p1657 = pneg %p259
        %p1658 = pneg %p283
        %p1659 = pneg %p280
        %p1660 = pneg %p304
        %p1661 = pneg %p301
        %p1662 = pneg %p325
        %p1663 = pneg %p322
        %p1664 = pneg %p346
        %p1665 = pneg %p343
        %p1666 = pneg %p367
        %p1667 = pneg %p364
        %p1668 = pneg %p388
        %p1669 = pneg %p385
        %p1670 = pneg %p409
        %p1671 = pneg %p406
        %p1672 = pneg %p430
        %p1673 = pneg %p427
        %p1674 = pneg %p451
        %p1675 = pneg %p448
        %p1676 = pneg %p472
        %p1677 = pneg %p469
        %p1678 = pneg %p493
        %p1679 = pneg %p490
        %p1680 = pneg %p514
        %p1681 = pneg %p511
        %p1682 = pneg %p535
        %p1683 = pneg %p532
        %p1684 = pneg %p556
        %p1685 = pneg %p553
        %p1686 = pneg %p577
        %p1687 = pneg %p574
        %p1688 = pneg %p598
        %p1689 = pneg %p595
        %p1690 = pneg %p619
        %p1691 = pneg %p616
        %p1692 = pneg %p640
        %p1693 = pneg %p637
        %p1694 = pneg %p661
        %p1695 = pneg %p658
        %p1696 = pneg %p682
        %p1697 = pneg %p679
        %p1698 = pneg %p703
        %p1699 = pneg %p700
        %p1700 = pneg %p724
        %p1701 = pneg %p721
        %p1702 = pneg %p745
        %p1703 = pneg %p742
        %p1704 = pneg %p766
        %p1705 = pneg %p763
        %p1706 = pneg %p787
        %p1707 = pneg %p784
        %p1708 = pneg %p808
        %p1709 = pneg %p805
        %p1710 = pneg %p829
        %p1711 = pneg %p826
        %p1712 = pneg %p850
        %p1713 = pneg %p847
        %p1714 = pneg %p871
        %p1715 = pneg %p868
        %p1716 = pneg %p892
        %p1717 = pneg %p889
        %p1718 = pneg %p913
        %p1719 = pneg %p910
        %p1720 = pneg %p934
        %p1721 = pneg %p931
        %p1722 = pneg %p955
        %p1723 = pneg %p952
        %p1724 = pneg %p976
        %p1725 = pneg %p973
        %p1726 = pneg %p997
        %p1727 = pneg %p994
        %p1728 = pneg %p1018
        %p1729 = pneg %p1015
        %p1730 = pneg %p1039
        %p1731 = pneg %p1036
        %p1732 = pneg %p1060
        %p1733 = pneg %p1057
        %p1734 = pneg %p1081
        %p1735 = pneg %p1078
        %p1736 = pneg %p1102
        %p1737 = pneg %p1099
        %p1738 = pneg %p1123
        %p1739 = pneg %p1120
        %p1740 = pneg %p1144
        %p1741 = pneg %p1141
        %p1742 = pneg %p1165
        %p1743 = pneg %p1162
        %p1744 = pneg %p1186
        %p1745 = pneg %p1183
        %p1746 = pneg %p1207
        %p1747 = pneg %p1204
        %p1748 = pneg %p1228
        %p1749 = pneg %p1225
        %p1750 = pneg %p1249
        %p1751 = pneg %p1246
        %p1752 = pneg %p1270
        %p1753 = pneg %p1267
        %p1754 = pneg %p1291
        %p1755 = pneg %p1288
        %p1756 = pneg %p1312
        %p1757 = pneg %p1309
        %p1758 = pneg %p1338
        %p1759 = pneg %p1335
        %s1760 = sand.u32 %s1325, 1
        %s1761 = scalar_lea.sflag [#allocation4], %s1760
        %s1762 = sand.u32 %s1325, 1
        %s1763 = smul.addr %s1762, 8
        %s1764 = scalar_lea.vmem [#allocation14], %s1763
        %p1765 = scmp.lt.s32.totalorder %s131, 1
        %s1766 = scalar_select %p1765, %s131, 1
        %s1767 = smul.addr %s1766, 2
        %s1768 = smul.addr %s1767, 8
        %s1769 = scalar_lea.vmem %s1, %s1768
        %p1770 = scmp.lt.s32.totalorder %s131, 1
        %s1771 = scalar_select %p1770, %s131, 1
        %s1772 = scalar_lea.vmem %s3, %s1771
        %v1774 = vld [vmem:[%s1769] sm:$0xff]
        %v1775 = vld [vmem:[%s1769 + $0x8] sm:$0xff]
        %v1776 = vld [vmem:[%s1772] sm:$0x1]
        %v1777 = vpack.c.bf16 %v1775, %v1774
        %v1778 = vld [vmem:[%s5] sm:$0xf]
        %v1779 = vld [vmem:[%s5 + $0x4] sm:$0xf]
        %v1780 = vld [vmem:[%s7] sm:$0x1]
        %v1782 = vperm.slane %v1780, 0
        %v1786 = vunpack.c.l.b16 %v1778
        %v1787 = vunpack.c.l.b16 %v1779
        %v1788 = vpack.c.b16 %v1787, %v1786
        %vm1790 = vcmask 130048
        %v1792 = vsel %vm1790, %v1777, 0
        %1794 = vmatpush.bf16.msra.mxu0 0
        %1795 = vmatpush.bf16.msra.mxu0 0
        %1796 = vmatpush.bf16.msra.mxu0 0
        %1797 = vmatpush.bf16.msra.mxu0 0
        %1798 = vmatpush.bf16.msra.mxu0 0
        %1799 = vmatpush.bf16.msra.mxu0 0
        %1800 = vmatpush.bf16.msra.mxu0 0
        %1801 = vmatpush.bf16.msra.mxu0 %v1788
        %1802 = vmatmul.bf16.gmra.mxu0 %v1792
        %v1803 = vpop.f32.mrf.mxu0
        %v1804 = vadd.f32 %v1782, %v1803
        %v1805 = vpop.f32.mrf.mxu0
        %v1806 = vadd.f32 %v1782, %v1805
        %1807 = vdwg.mxu0
        %v1808 = vmul.f32 %v1804, 0.5
        %v1809 = vmul.f32 %v1806, 0.5
        %v1810 = vmul.f32 %v1804, 0.044715
        %v1811 = vmul.f32 %v1806, 0.044715
        %v1812 = vmul.f32 %v1810, %v1804
        %v1813 = vmul.f32 %v1811, %v1806
        %v1814 = vmul.f32 %v1812, %v1804
        %v1815 = vmul.f32 %v1813, %v1806
        %v1816 = vadd.f32 %v1804, %v1814
        %v1817 = vadd.f32 %v1806, %v1815
        %v1818 = vmul.f32 %v1816, 0.7978846
        %v1819 = vmul.f32 %v1817, 0.7978846
        %v1820 = vtanh.pop %v1818
        %v1821 = vtanh.pop %v1819
        %v1822 = vadd.f32 %v1820, 1.0
        %v1823 = vadd.f32 %v1821, 1.0
        %v1824 = vmul.f32 %v1808, %v1822
        %v1825 = vmul.f32 %v1809, %v1823
        %v1826 = vld [vmem:[%s9] sm:$0x1]
        %v1827 = vld [vmem:[%s11] sm:$0x1]
        %vm1828 = vcmask 261120
        %v1829 = vsel %vm1828, %v1824, 0.0
        %1830 = vadd.xlane.f32.xlu0 %v1829
        %v1831 = vpop.xlane.xlu0 %1830
        %v1832 = vsel %vm1828, %v1825, 0.0
        %1833 = vadd.xlane.f32.xlu0 %v1832
        %v1834 = vpop.xlane.xlu0 %1833
        %v1835 = vrcp.pop 32.0
        %v1836 = vmul.f32 32.0, %v1835
        %v1837 = vsub.f32 1.0, %v1836
        %v1838 = vmul.f32 %v1835, %v1837
        %v1839 = vadd.f32 %v1835, %v1838
        %vm1840 = vweird.f32 %v1835
        %v1841 = vsel %vm1840, %v1835, %v1839
        %v1842 = vmul.f32 %v1831, %v1841
        %v1843 = vmul.f32 %v1834, %v1841
        %v1844 = vsub.f32 %v1824, %v1842
        %v1845 = vsub.f32 %v1825, %v1843
        %v1846 = vmul.f32 %v1844, %v1844
        %v1847 = vmul.f32 %v1845, %v1845
        %v1848 = vsel %vm1828, %v1846, 0.0
        %1849 = vadd.xlane.f32.xlu0 %v1848
        %v1850 = vpop.xlane.xlu0 %1849
        %v1851 = vsel %vm1828, %v1847, 0.0
        %1852 = vadd.xlane.f32.xlu0 %v1851
        %v1853 = vpop.xlane.xlu0 %1852
        %v1854 = vmul.f32 %v1850, %v1841
        %v1855 = vmul.f32 %v1853, %v1841
        %v1856 = vadd.f32 %v1854, 1e-05
        %v1857 = vadd.f32 %v1855, 1e-05
        %v1858 = vrsqrt.pop %v1856
        %v1859 = vmul.f32 %v1858, %v1856
        %v1860 = vmul.f32 %v1859, %v1858
        %v1861 = vmul.f32 0.5, %v1860
        %v1862 = vsub.f32 1.5, %v1861
        %v1863 = vmul.f32 %v1858, %v1862
        %vm1864 = vweird.f32 %v1856
        %vm1865 = vweird.f32 %v1858
        %vm1866 = vmor %vm1864, %vm1865
        %v1867 = vsel %vm1866, %v1858, %v1863
        %v1868 = vrsqrt.pop %v1857
        %v1869 = vmul.f32 %v1868, %v1857
        %v1870 = vmul.f32 %v1869, %v1868
        %v1871 = vmul.f32 0.5, %v1870
        %v1872 = vsub.f32 1.5, %v1871
        %v1873 = vmul.f32 %v1868, %v1872
        %vm1874 = vweird.f32 %v1857
        %vm1875 = vweird.f32 %v1868
        %vm1876 = vmor %vm1874, %vm1875
        %v1877 = vsel %vm1876, %v1868, %v1873
        %v1878 = vmul.f32 %v1844, %v1867
        %v1879 = vmul.f32 %v1845, %v1877
        %v1881 = vperm.slane %v1826, 0
        %v1883 = vmul.f32 %v1878, %v1881
        %v1884 = vmul.f32 %v1879, %v1881
        %v1886 = vperm.slane %v1827, 0
        %v1888 = vadd.f32 %v1883, %v1886
        %v1889 = vadd.f32 %v1884, %v1886
        %v1890 = vpack.c.bf16 %v1889, %v1888
        %v1891 = vld [vmem:[%s13] sm:$0xf]
        %v1892 = vld [vmem:[%s13 + $0x4] sm:$0xf]
        %v1893 = vld [vmem:[%s13 + $0x8] sm:$0xf]
        %v1894 = vld [vmem:[%s13 + $0xc] sm:$0xf]
        %v1895 = vld [vmem:[%s15] sm:$0x1]
        %v1897 = vperm.slane %v1895, 0
        %v1903 = vunpack.c.l.b16 %v1891
        %v1904 = vunpack.c.l.b16 %v1892
        %v1905 = vunpack.c.l.b16 %v1893
        %v1906 = vunpack.c.l.b16 %v1894
        %v1907 = vpack.c.b16 %v1904, %v1903
        %v1908 = vpack.c.b16 %v1906, %v1905
        %v1912 = vsel %vm1828, %v1890, 0
        %1914 = vmatpush.bf16.msra.mxu0 0
        %1915 = vmatpush.bf16.msra.mxu0 0
        %1916 = vmatpush.bf16.msra.mxu0 0
        %1917 = vmatpush.bf16.msra.mxu0 0
        %1918 = vmatpush.bf16.msra.mxu0 0
        %1919 = vmatpush.bf16.msra.mxu0 0
        %1920 = vmatpush.bf16.msra.mxu0 %v1908
        %1921 = vmatpush.bf16.msra.mxu0 %v1907
        %1922 = vmatmul.bf16.gmra.mxu0 %v1912
        %v1923 = vpop.f32.mrf.mxu0
        %v1924 = vadd.f32 %v1897, %v1923
        %v1925 = vpop.f32.mrf.mxu0
        %v1926 = vadd.f32 %v1897, %v1925
        %1927 = vdwg.mxu0
        %v1928 = vmul.f32 %v1924, 0.5
        %v1929 = vmul.f32 %v1926, 0.5
        %v1930 = vmul.f32 %v1924, 0.044715
        %v1931 = vmul.f32 %v1926, 0.044715
        %v1932 = vmul.f32 %v1930, %v1924
        %v1933 = vmul.f32 %v1931, %v1926
        %v1934 = vmul.f32 %v1932, %v1924
        %v1935 = vmul.f32 %v1933, %v1926
        %v1936 = vadd.f32 %v1924, %v1934
        %v1937 = vadd.f32 %v1926, %v1935
        %v1938 = vmul.f32 %v1936, 0.7978846
        %v1939 = vmul.f32 %v1937, 0.7978846
        %v1940 = vtanh.pop %v1938
        %v1941 = vtanh.pop %v1939
        %v1942 = vadd.f32 %v1940, 1.0
        %v1943 = vadd.f32 %v1941, 1.0
        %v1944 = vmul.f32 %v1928, %v1942
        %v1945 = vmul.f32 %v1929, %v1943
        %v1946 = vld [vmem:[%s17] sm:$0x1]
        %v1947 = vld [vmem:[%s19] sm:$0x1]
        %v1948 = vsel %vm1790, %v1944, 0.0
        %1949 = vadd.xlane.f32.xlu0 %v1948
        %v1950 = vpop.xlane.xlu0 %1949
        %v1951 = vsel %vm1790, %v1945, 0.0
        %1952 = vadd.xlane.f32.xlu0 %v1951
        %v1953 = vpop.xlane.xlu0 %1952
        %v1954 = vrcp.pop 16.0
        %v1955 = vmul.f32 16.0, %v1954
        %v1956 = vsub.f32 1.0, %v1955
        %v1957 = vmul.f32 %v1954, %v1956
        %v1958 = vadd.f32 %v1954, %v1957
        %vm1959 = vweird.f32 %v1954
        %v1960 = vsel %vm1959, %v1954, %v1958
        %v1961 = vmul.f32 %v1950, %v1960
        %v1962 = vmul.f32 %v1953, %v1960
        %v1963 = vsub.f32 %v1944, %v1961
        %v1964 = vsub.f32 %v1945, %v1962
        %v1965 = vmul.f32 %v1963, %v1963
        %v1966 = vmul.f32 %v1964, %v1964
        %v1967 = vsel %vm1790, %v1965, 0.0
        %1968 = vadd.xlane.f32.xlu0 %v1967
        %v1969 = vpop.xlane.xlu0 %1968
        %v1970 = vsel %vm1790, %v1966, 0.0
        %1971 = vadd.xlane.f32.xlu0 %v1970
        %v1972 = vpop.xlane.xlu0 %1971
        %v1973 = vmul.f32 %v1969, %v1960
        %v1974 = vmul.f32 %v1972, %v1960
        %v1975 = vadd.f32 %v1973, 1e-05
        %v1976 = vadd.f32 %v1974, 1e-05
        %v1977 = vrsqrt.pop %v1975
        %v1978 = vmul.f32 %v1977, %v1975
        %v1979 = vmul.f32 %v1978, %v1977
        %v1980 = vmul.f32 0.5, %v1979
        %v1981 = vsub.f32 1.5, %v1980
        %v1982 = vmul.f32 %v1977, %v1981
        %vm1983 = vweird.f32 %v1975
        %vm1984 = vweird.f32 %v1977
        %vm1985 = vmor %vm1983, %vm1984
        %v1986 = vsel %vm1985, %v1977, %v1982
        %v1987 = vrsqrt.pop %v1976
        %v1988 = vmul.f32 %v1987, %v1976
        %v1989 = vmul.f32 %v1988, %v1987
        %v1990 = vmul.f32 0.5, %v1989
        %v1991 = vsub.f32 1.5, %v1990
        %v1992 = vmul.f32 %v1987, %v1991
        %vm1993 = vweird.f32 %v1976
        %vm1994 = vweird.f32 %v1987
        %vm1995 = vmor %vm1993, %vm1994
        %v1996 = vsel %vm1995, %v1987, %v1992
        %v1997 = vmul.f32 %v1963, %v1986
        %v1998 = vmul.f32 %v1964, %v1996
        %v2000 = vperm.slane %v1946, 0
        %v2002 = vmul.f32 %v1997, %v2000
        %v2003 = vmul.f32 %v1998, %v2000
        %v2005 = vperm.slane %v1947, 0
        %v2007 = vadd.f32 %v2002, %v2005
        %v2008 = vadd.f32 %v2003, %v2005
        %v2009 = vpack.c.bf16 %v2008, %v2007
        %v2010 = vld [vmem:[%s21] sm:$0xf]
        %v2011 = vld [vmem:[%s21 + $0x4] sm:$0xf]
        %v2014 = vunpack.c.l.b16 %v2010
        %v2015 = vunpack.c.l.b16 %v2011
        %v2016 = vpack.c.b16 %v2015, %v2014
        %v2018 = vsel %vm1790, %v2016, 0
        %2020 = vmatpush.bf16.msra.mxu0 0
        %2021 = vmatpush.bf16.msra.mxu0 0
        %2022 = vmatpush.bf16.msra.mxu0 0
        %2023 = vmatpush.bf16.msra.mxu0 0
        %2024 = vmatpush.bf16.msra.mxu0 0
        %2025 = vmatpush.bf16.msra.mxu0 0
        %2026 = vmatpush.bf16.msra.mxu0 0
        %2027 = vmatpush.bf16.msra.mxu0 %v2009
        %2028 = vmatmul.bf16.gmra.mxu0 %v2018
        %v2029 = vpop.f32.mrf.mxu0
        %v2030 = vadd.f32 0.0, %v2029
        %v2031 = vpop.f32.mrf.mxu0
        %v2032 = vadd.f32 0.0, %v2031
        %2033 = vdwg.mxu0
        %v2034 = vpack.c.bf16 %v2032, %v2030
        %v2035 = vld [vmem:[%s23] sm:$0xf]
        %v2036 = vld [vmem:[%s23 + $0x4] sm:$0xf]
        %v2039 = vunpack.c.l.b16 %v2035
        %v2040 = vunpack.c.l.b16 %v2036
        %v2041 = vpack.c.b16 %v2040, %v2039
        %v2043 = vsel %vm1790, %v2041, 0
        %2045 = vmatpush.bf16.msra.mxu0 0
        %2046 = vmatpush.bf16.msra.mxu0 0
        %2047 = vmatpush.bf16.msra.mxu0 0
        %2048 = vmatpush.bf16.msra.mxu0 0
        %2049 = vmatpush.bf16.msra.mxu0 0
        %2050 = vmatpush.bf16.msra.mxu0 0
        %2051 = vmatpush.bf16.msra.mxu0 0
        %2052 = vmatpush.bf16.msra.mxu0 %v2009
        %2053 = vmatmul.bf16.gmra.mxu0 %v2043
        %v2054 = vpop.f32.mrf.mxu0
        %v2055 = vadd.f32 0.0, %v2054
        %v2056 = vpop.f32.mrf.mxu0
        %v2057 = vadd.f32 0.0, %v2056
        %2058 = vdwg.mxu0
        %v2059 = vpack.c.bf16 %v2057, %v2055
        %v2060 = vld [vmem:[%s25] sm:$0xf]
        %v2061 = vld [vmem:[%s25 + $0x4] sm:$0xf]
        %v2062 = vld [vmem:[%s27] sm:$0xf]
        %v2063 = vld [vmem:[%s27 + $0x4] sm:$0xf]
        %v2066 = vunpack.c.l.b16 %v2062
        %v2067 = vunpack.c.l.b16 %v2063
        %v2068 = vpack.c.b16 %v2067, %v2066
        %v2071 = vsel %vm1790, %v2009, 0
        %2073 = vmatpush.bf16.msra.mxu0 0
        %2074 = vmatpush.bf16.msra.mxu0 0
        %2075 = vmatpush.bf16.msra.mxu0 0
        %2076 = vmatpush.bf16.msra.mxu0 0
        %2077 = vmatpush.bf16.msra.mxu0 0
        %2078 = vmatpush.bf16.msra.mxu0 0
        %2079 = vmatpush.bf16.msra.mxu0 0
        %2080 = vmatpush.bf16.msra.mxu0 %v2068
        %2081 = vmatmul.bf16.gmra.mxu0 %v2071
        %v2082 = vpop.f32.mrf.mxu0
        %v2083 = vadd.f32 0.0, %v2082
        %v2084 = vpop.f32.mrf.mxu0
        %v2085 = vadd.f32 0.0, %v2084
        %2086 = vdwg.mxu0
        %v2089 = vunpack.c.l.b16 %v2060
        %v2090 = vunpack.c.l.b16 %v2061
        %v2091 = vpack.c.b16 %v2090, %v2089
        %v2094 = vsel %vm1790, %v2034, 0
        %2096 = vmatpush.bf16.msra.mxu0 0
        %2097 = vmatpush.bf16.msra.mxu0 0
        %2098 = vmatpush.bf16.msra.mxu0 0
        %2099 = vmatpush.bf16.msra.mxu0 0
        %2100 = vmatpush.bf16.msra.mxu0 0
        %2101 = vmatpush.bf16.msra.mxu0 0
        %2102 = vmatpush.bf16.msra.mxu0 0
        %2103 = vmatpush.bf16.msra.mxu0 %v2091
        %2104 = vmatmul.bf16.gmra.mxu0 %v2094
        %v2105 = vpop.f32.mrf.mxu0
        %v2106 = vadd.f32 %v2083, %v2105
        %v2107 = vpop.f32.mrf.mxu0
        %v2108 = vadd.f32 %v2085, %v2107
        %2109 = vdwg.mxu0
        %v2110 = vld [vmem:[%s29] sm:$0xf]
        %v2111 = vld [vmem:[%s29 + $0x4] sm:$0xf]
        %v2114 = vunpack.c.l.b16 %v2110
        %v2115 = vunpack.c.l.b16 %v2111
        %v2116 = vpack.c.b16 %v2115, %v2114
        %v2119 = vsel %vm1790, %v2059, 0
        %2121 = vmatpush.bf16.msra.mxu0 0
        %2122 = vmatpush.bf16.msra.mxu0 0
        %2123 = vmatpush.bf16.msra.mxu0 0
        %2124 = vmatpush.bf16.msra.mxu0 0
        %2125 = vmatpush.bf16.msra.mxu0 0
        %2126 = vmatpush.bf16.msra.mxu0 0
        %2127 = vmatpush.bf16.msra.mxu0 0
        %2128 = vmatpush.bf16.msra.mxu0 %v2116
        %2129 = vmatmul.bf16.gmra.mxu0 %v2119
        %v2130 = vpop.f32.mrf.mxu0
        %v2131 = vadd.f32 0.0, %v2130
        %v2132 = vpop.f32.mrf.mxu0
        %v2133 = vadd.f32 0.0, %v2132
        %2134 = vdwg.mxu0
        %v2135 = vadd.f32 %v2106, %v2131
        %v2136 = vadd.f32 %v2108, %v2133
        %v2137 = vld [vmem:[%s31] sm:$0x1]
        %v2139 = vperm.slane %v2137, 0
        %v2141 = vadd.f32 %v2135, %v2139
        %v2142 = vadd.f32 %v2136, %v2139
        %v2143 = vld [vmem:[%s33] sm:$0x1]
        %v2144 = vld [vmem:[#allocation2] sm:$0x1]
        %v2145 = vsel %vm1828, %v2141, 0.0
        %2146 = vadd.xlane.f32.xlu0 %v2145
        %v2147 = vpop.xlane.xlu0 %2146
        %v2148 = vsel %vm1828, %v2142, 0.0
        %2149 = vadd.xlane.f32.xlu0 %v2148
        %v2150 = vpop.xlane.xlu0 %2149
        %v2151 = vmul.f32 %v2147, %v1841
        %v2152 = vmul.f32 %v2150, %v1841
        %v2153 = vsub.f32 %v2141, %v2151
        %v2154 = vsub.f32 %v2142, %v2152
        %v2155 = vmul.f32 %v2153, %v2153
        %v2156 = vmul.f32 %v2154, %v2154
        %v2157 = vsel %vm1828, %v2155, 0.0
        %2158 = vadd.xlane.f32.xlu0 %v2157
        %v2159 = vpop.xlane.xlu0 %2158
        %v2160 = vsel %vm1828, %v2156, 0.0
        %2161 = vadd.xlane.f32.xlu0 %v2160
        %v2162 = vpop.xlane.xlu0 %2161
        %v2163 = vmul.f32 %v2159, %v1841
        %v2164 = vmul.f32 %v2162, %v1841
        %v2165 = vadd.f32 %v2163, 1e-05
        %v2166 = vadd.f32 %v2164, 1e-05
        %v2167 = vrsqrt.pop %v2165
        %v2168 = vmul.f32 %v2167, %v2165
        %v2169 = vmul.f32 %v2168, %v2167
        %v2170 = vmul.f32 0.5, %v2169
        %v2171 = vsub.f32 1.5, %v2170
        %v2172 = vmul.f32 %v2167, %v2171
        %vm2173 = vweird.f32 %v2165
        %vm2174 = vweird.f32 %v2167
        %vm2175 = vmor %vm2173, %vm2174
        %v2176 = vsel %vm2175, %v2167, %v2172
        %v2177 = vrsqrt.pop %v2166
        %v2178 = vmul.f32 %v2177, %v2166
        %v2179 = vmul.f32 %v2178, %v2177
        %v2180 = vmul.f32 0.5, %v2179
        %v2181 = vsub.f32 1.5, %v2180
        %v2182 = vmul.f32 %v2177, %v2181
        %vm2183 = vweird.f32 %v2166
        %vm2184 = vweird.f32 %v2177
        %vm2185 = vmor %vm2183, %vm2184
        %v2186 = vsel %vm2185, %v2177, %v2182
        %v2187 = vmul.f32 %v2153, %v2176
        %v2188 = vmul.f32 %v2154, %v2186
        %v2190 = vperm.slane %v2143, 0
        %v2192 = vmul.f32 %v2187, %v2190
        %v2193 = vmul.f32 %v2188, %v2190
        %v2195 = vperm.slane %v2144, 0
        %v2197 = vadd.f32 %v2192, %v2195
        %v2198 = vadd.f32 %v2193, %v2195
        %v2199 = vmul.f32 %v2197, 0.5
        %v2200 = vmul.f32 %v2198, 0.5
        %v2201 = vmul.f32 %v2197, 0.044715
        %v2202 = vmul.f32 %v2198, 0.044715
        %v2203 = vmul.f32 %v2201, %v2197
        %v2204 = vmul.f32 %v2202, %v2198
        %v2205 = vmul.f32 %v2203, %v2197
        %v2206 = vmul.f32 %v2204, %v2198
        %v2207 = vadd.f32 %v2197, %v2205
        %v2208 = vadd.f32 %v2198, %v2206
        %v2209 = vmul.f32 %v2207, 0.7978846
        %v2210 = vmul.f32 %v2208, 0.7978846
        %v2211 = vtanh.pop %v2209
        %v2212 = vtanh.pop %v2210
        %v2213 = vadd.f32 %v2211, 1.0
        %v2214 = vadd.f32 %v2212, 1.0
        %v2215 = vmul.f32 %v2199, %v2213
        %v2216 = vmul.f32 %v2200, %v2214
        %v2217 = vpack.c.bf16 %v2216, %v2215
        %v2218 = vld [vmem:[%s37] sm:$0xf]
        %v2219 = vld [vmem:[%s37 + $0x4] sm:$0xf]
        %v2220 = vld [vmem:[%s37 + $0x8] sm:$0xf]
        %v2221 = vld [vmem:[%s37 + $0xc] sm:$0xf]
        %v2222 = vld [vmem:[#allocation5] sm:$0x1]
        %v2224 = vperm.slane %v2222, 0
        %v2230 = vunpack.c.l.b16 %v2218
        %v2231 = vunpack.c.l.b16 %v2219
        %v2232 = vunpack.c.l.b16 %v2220
        %v2233 = vunpack.c.l.b16 %v2221
        %v2234 = vpack.c.b16 %v2231, %v2230
        %v2235 = vpack.c.b16 %v2233, %v2232
        %v2239 = vsel %vm1828, %v2217, 0
        %2241 = vmatpush.bf16.msra.mxu0 0
        %2242 = vmatpush.bf16.msra.mxu0 0
        %2243 = vmatpush.bf16.msra.mxu0 0
        %2244 = vmatpush.bf16.msra.mxu0 0
        %2245 = vmatpush.bf16.msra.mxu0 0
        %2246 = vmatpush.bf16.msra.mxu0 0
        %2247 = vmatpush.bf16.msra.mxu0 %v2235
        %2248 = vmatpush.bf16.msra.mxu0 %v2234
        %2249 = vmatmul.bf16.gmra.mxu0 %v2239
        %v2250 = vpop.f32.mrf.mxu0
        %v2251 = vadd.f32 %v2224, %v2250
        %v2252 = vpop.f32.mrf.mxu0
        %v2253 = vadd.f32 %v2224, %v2252
        %2254 = vdwg.mxu0
        %v2255 = vpack.c.bf16 %v2253, %v2251
        %v2256 = vld [vmem:[%s41] sm:$0xf]
        %v2257 = vld [vmem:[%s41 + $0x4] sm:$0xf]
        %v2258 = vld [vmem:[%s41 + $0x8] sm:$0xf]
        %v2259 = vld [vmem:[%s41 + $0xc] sm:$0xf]
        %v2260 = vld [vmem:[#allocation7] sm:$0x1]
        %v2262 = vperm.slane %v2260, 0
        %v2268 = vunpack.c.l.b16 %v2256
        %v2269 = vunpack.c.l.b16 %v2257
        %v2270 = vunpack.c.l.b16 %v2258
        %v2271 = vunpack.c.l.b16 %v2259
        %v2272 = vpack.c.b16 %v2269, %v2268
        %v2273 = vpack.c.b16 %v2271, %v2270
        %v2277 = vsel %vm1828, %v2255, 0
        %2279 = vmatpush.bf16.msra.mxu0 0
        %2280 = vmatpush.bf16.msra.mxu0 0
        %2281 = vmatpush.bf16.msra.mxu0 0
        %2282 = vmatpush.bf16.msra.mxu0 0
        %2283 = vmatpush.bf16.msra.mxu0 0
        %2284 = vmatpush.bf16.msra.mxu0 0
        %2285 = vmatpush.bf16.msra.mxu0 %v2273
        %2286 = vmatpush.bf16.msra.mxu0 %v2272
        %2287 = vmatmul.bf16.gmra.mxu0 %v2277
        %v2288 = vpop.f32.mrf.mxu0
        %v2289 = vadd.f32 %v2262, %v2288
        %v2290 = vpop.f32.mrf.mxu0
        %v2291 = vadd.f32 %v2262, %v2290
        %2292 = vdwg.mxu0
        %v2293 = vld [vmem:[%s45] sm:$0xff]
        %v2294 = vld [vmem:[%s45 + $0x8] sm:$0xff]
        %v2295 = vld [vmem:[%s47] sm:$0xff]
        %v2296 = vld [vmem:[%s47 + $0x8] sm:$0xff]
        %v2297 = vld [vmem:[%s49] sm:$0x1]
        %v2298 = vld [vmem:[%s51] sm:$0x1]
        %v2299 = vsel %vm1828, %v2289, 0.0
        %2300 = vadd.xlane.f32.xlu0 %v2299
        %v2301 = vpop.xlane.xlu0 %2300
        %v2302 = vsel %vm1828, %v2291, 0.0
        %2303 = vadd.xlane.f32.xlu0 %v2302
        %v2304 = vpop.xlane.xlu0 %2303
        %v2305 = vmul.f32 %v2301, %v1841
        %v2306 = vmul.f32 %v2304, %v1841
        %v2307 = vsub.f32 %v2289, %v2305
        %v2308 = vsub.f32 %v2291, %v2306
        %v2309 = vmul.f32 %v2307, %v2307
        %v2310 = vmul.f32 %v2308, %v2308
        %v2311 = vsel %vm1828, %v2309, 0.0
        %2312 = vadd.xlane.f32.xlu0 %v2311
        %v2313 = vpop.xlane.xlu0 %2312
        %v2314 = vsel %vm1828, %v2310, 0.0
        %2315 = vadd.xlane.f32.xlu0 %v2314
        %v2316 = vpop.xlane.xlu0 %2315
        %v2317 = vmul.f32 %v2313, %v1841
        %v2318 = vmul.f32 %v2316, %v1841
        %v2319 = vadd.f32 %v2317, 1e-05
        %v2320 = vadd.f32 %v2318, 1e-05
        %v2321 = vrsqrt.pop %v2319
        %v2322 = vmul.f32 %v2321, %v2319
        %v2323 = vmul.f32 %v2322, %v2321
        %v2324 = vmul.f32 0.5, %v2323
        %v2325 = vsub.f32 1.5, %v2324
        %v2326 = vmul.f32 %v2321, %v2325
        %vm2327 = vweird.f32 %v2319
        %vm2328 = vweird.f32 %v2321
        %vm2329 = vmor %vm2327, %vm2328
        %v2330 = vsel %vm2329, %v2321, %v2326
        %v2331 = vrsqrt.pop %v2320
        %v2332 = vmul.f32 %v2331, %v2320
        %v2333 = vmul.f32 %v2332, %v2331
        %v2334 = vmul.f32 0.5, %v2333
        %v2335 = vsub.f32 1.5, %v2334
        %v2336 = vmul.f32 %v2331, %v2335
        %vm2337 = vweird.f32 %v2320
        %vm2338 = vweird.f32 %v2331
        %vm2339 = vmor %vm2337, %vm2338
        %v2340 = vsel %vm2339, %v2331, %v2336
        %v2341 = vmul.f32 %v2307, %v2330
        %v2342 = vmul.f32 %v2308, %v2340
        %v2344 = vperm.slane %v2297, 0
        %v2346 = vmul.f32 %v2341, %v2344
        %v2347 = vmul.f32 %v2342, %v2344
        %v2349 = vperm.slane %v2298, 0
        %v2351 = vadd.f32 %v2346, %v2349
        %v2352 = vadd.f32 %v2347, %v2349
        %v2353 = vpack.c.bf16 %v2352, %v2351
        %v2354 = vld [vmem:[%s53] sm:$0xf]
        %v2355 = vld [vmem:[%s53 + $0x4] sm:$0xf]
        %v2356 = vld [vmem:[%s53 + $0x8] sm:$0xf]
        %v2357 = vld [vmem:[%s53 + $0xc] sm:$0xf]
        %v2358 = vld [vmem:[%s55] sm:$0x1]
        %v2360 = vperm.slane %v2358, 0
        %v2366 = vunpack.c.l.b16 %v2354
        %v2367 = vunpack.c.l.b16 %v2355
        %v2368 = vunpack.c.l.b16 %v2356
        %v2369 = vunpack.c.l.b16 %v2357
        %v2370 = vpack.c.b16 %v2367, %v2366
        %v2371 = vpack.c.b16 %v2369, %v2368
        %v2375 = vsel %vm1828, %v2353, 0
        %2377 = vmatpush.bf16.msra.mxu0 0
        %2378 = vmatpush.bf16.msra.mxu0 0
        %2379 = vmatpush.bf16.msra.mxu0 0
        %2380 = vmatpush.bf16.msra.mxu0 0
        %2381 = vmatpush.bf16.msra.mxu0 0
        %2382 = vmatpush.bf16.msra.mxu0 0
        %2383 = vmatpush.bf16.msra.mxu0 %v2371
        %2384 = vmatpush.bf16.msra.mxu0 %v2370
        %2385 = vmatmul.bf16.gmra.mxu0 %v2375
        %v2386 = vpop.f32.mrf.mxu0
        %v2387 = vadd.f32 %v2360, %v2386
        %v2388 = vpop.f32.mrf.mxu0
        %v2389 = vadd.f32 %v2360, %v2388
        %2390 = vdwg.mxu0
        %v2391 = vld [vmem:[%s57] sm:$0xf]
        %v2392 = vld [vmem:[%s57 + $0x4] sm:$0xf]
        %v2393 = vld [vmem:[%s57 + $0x8] sm:$0xf]
        %v2394 = vld [vmem:[%s57 + $0xc] sm:$0xf]
        %v2395 = vld [vmem:[%s59] sm:$0x1]
        %v2397 = vperm.slane %v2395, 0
        %v2403 = vunpack.c.l.b16 %v2391
        %v2404 = vunpack.c.l.b16 %v2392
        %v2405 = vunpack.c.l.b16 %v2393
        %v2406 = vunpack.c.l.b16 %v2394
        %v2407 = vpack.c.b16 %v2404, %v2403
        %v2408 = vpack.c.b16 %v2406, %v2405
        %2411 = vmatpush.bf16.msra.mxu0 0
        %2412 = vmatpush.bf16.msra.mxu0 0
        %2413 = vmatpush.bf16.msra.mxu0 0
        %2414 = vmatpush.bf16.msra.mxu0 0
        %2415 = vmatpush.bf16.msra.mxu0 0
        %2416 = vmatpush.bf16.msra.mxu0 0
        %2417 = vmatpush.bf16.msra.mxu0 %v2408
        %2418 = vmatpush.bf16.msra.mxu0 %v2407
        %2419 = vmatmul.bf16.gmra.mxu0 %v2375
        %v2420 = vpop.f32.mrf.mxu0
        %v2421 = vadd.f32 %v2397, %v2420
        %v2422 = vpop.f32.mrf.mxu0
        %v2423 = vadd.f32 %v2397, %v2422
        %2424 = vdwg.mxu0
        %v2425 = vmul.f32 %v2387, %v2293
        %v2426 = vmul.f32 %v2389, %v2294
        %v2427 = vmul.f32 %v2421, %v2295
        %v2428 = vmul.f32 %v2423, %v2296
        %v2429 = vadd.f32 %v2425, %v2427
        %v2430 = vadd.f32 %v2426, %v2428
        %v2431 = vpack.c.bf16 %v2430, %v2429
        %v2432 = vld [vmem:[%s61] sm:$0xf]
        %v2433 = vld [vmem:[%s61 + $0x4] sm:$0xf]
        %v2434 = vld [vmem:[%s61 + $0x8] sm:$0xf]
        %v2435 = vld [vmem:[%s61 + $0xc] sm:$0xf]
        %v2436 = vld [vmem:[%s63] sm:$0x1]
        %v2438 = vperm.slane %v2436, 0
        %v2444 = vunpack.c.l.b16 %v2432
        %v2445 = vunpack.c.l.b16 %v2433
        %v2446 = vunpack.c.l.b16 %v2434
        %v2447 = vunpack.c.l.b16 %v2435
        %v2448 = vpack.c.b16 %v2445, %v2444
        %v2449 = vpack.c.b16 %v2447, %v2446
        %2452 = vmatpush.bf16.msra.mxu0 0
        %2453 = vmatpush.bf16.msra.mxu0 0
        %2454 = vmatpush.bf16.msra.mxu0 0
        %2455 = vmatpush.bf16.msra.mxu0 0
        %2456 = vmatpush.bf16.msra.mxu0 0
        %2457 = vmatpush.bf16.msra.mxu0 0
        %2458 = vmatpush.bf16.msra.mxu0 %v2449
        %2459 = vmatpush.bf16.msra.mxu0 %v2448
        %2460 = vmatmul.bf16.gmra.mxu0 %v2375
        %v2461 = vpop.f32.mrf.mxu0
        %v2462 = vadd.f32 %v2438, %v2461
        %v2463 = vpop.f32.mrf.mxu0
        %v2464 = vadd.f32 %v2438, %v2463
        %2465 = vdwg.mxu0
        %v2466 = vld [vmem:[%s65] sm:$0xf]
        %v2467 = vld [vmem:[%s65 + $0x4] sm:$0xf]
        %v2468 = vld [vmem:[%s65 + $0x8] sm:$0xf]
        %v2469 = vld [vmem:[%s65 + $0xc] sm:$0xf]
        %v2470 = vld [vmem:[%s67] sm:$0x1]
        %v2472 = vperm.slane %v2470, 0
        %v2478 = vunpack.c.l.b16 %v2466
        %v2479 = vunpack.c.l.b16 %v2467
        %v2480 = vunpack.c.l.b16 %v2468
        %v2481 = vunpack.c.l.b16 %v2469
        %v2482 = vpack.c.b16 %v2479, %v2478
        %v2483 = vpack.c.b16 %v2481, %v2480
        %2486 = vmatpush.bf16.msra.mxu0 0
        %2487 = vmatpush.bf16.msra.mxu0 0
        %2488 = vmatpush.bf16.msra.mxu0 0
        %2489 = vmatpush.bf16.msra.mxu0 0
        %2490 = vmatpush.bf16.msra.mxu0 0
        %2491 = vmatpush.bf16.msra.mxu0 0
        %2492 = vmatpush.bf16.msra.mxu0 %v2483
        %2493 = vmatpush.bf16.msra.mxu0 %v2482
        %2494 = vmatmul.bf16.gmra.mxu0 %v2375
        %v2495 = vpop.f32.mrf.mxu0
        %v2496 = vadd.f32 %v2472, %v2495
        %v2497 = vpop.f32.mrf.mxu0
        %v2498 = vadd.f32 %v2472, %v2497
        %2499 = vdwg.mxu0
        %v2500 = vmul.f32 %v2462, %v2293
        %v2501 = vmul.f32 %v2464, %v2294
        %v2502 = vmul.f32 %v2496, %v2295
        %v2503 = vmul.f32 %v2498, %v2296
        %v2504 = vadd.f32 %v2500, %v2502
        %v2505 = vadd.f32 %v2501, %v2503
        %v2506 = vpack.c.bf16 %v2505, %v2504
        %v2507 = vld [vmem:[%s69] sm:$0xf]
        %v2508 = vld [vmem:[%s69 + $0x4] sm:$0xf]
        %v2509 = vld [vmem:[%s69 + $0x8] sm:$0xf]
        %v2510 = vld [vmem:[%s69 + $0xc] sm:$0xf]
        %v2511 = vld [vmem:[%s71] sm:$0x1]
        %v2513 = vperm.slane %v2511, 0
        %v2519 = vunpack.c.l.b16 %v2507
        %v2520 = vunpack.c.l.b16 %v2508
        %v2521 = vunpack.c.l.b16 %v2509
        %v2522 = vunpack.c.l.b16 %v2510
        %v2523 = vpack.c.b16 %v2520, %v2519
        %v2524 = vpack.c.b16 %v2522, %v2521
        %2527 = vmatpush.bf16.msra.mxu0 0
        %2528 = vmatpush.bf16.msra.mxu0 0
        %2529 = vmatpush.bf16.msra.mxu0 0
        %2530 = vmatpush.bf16.msra.mxu0 0
        %2531 = vmatpush.bf16.msra.mxu0 0
        %2532 = vmatpush.bf16.msra.mxu0 0
        %2533 = vmatpush.bf16.msra.mxu0 %v2524
        %2534 = vmatpush.bf16.msra.mxu0 %v2523
        %2535 = vmatmul.bf16.gmra.mxu0 %v2375
        %v2536 = vpop.f32.mrf.mxu0
        %v2537 = vadd.f32 %v2513, %v2536
        %v2538 = vpop.f32.mrf.mxu0
        %v2539 = vadd.f32 %v2513, %v2538
        %2540 = vdwg.mxu0
        %v2541 = vpack.c.bf16 %v2539, %v2537
        %v2543 = vperm.slane %v1776, 0
        %vm2545 = vcmask 64512
        %v2547 = vsel %vm2545, %v2431, 0
        %v2550 = vsel %vm2545, %v2506, 0
        %2552 = vmatpush.bf16.xpose.msra.mxu0 0
        %2553 = vmatpush.bf16.xpose.msra.mxu0 0
        %2554 = vmatpush.bf16.xpose.msra.mxu0 0
        %2555 = vmatpush.bf16.xpose.msra.mxu0 0
        %2556 = vmatpush.bf16.xpose.msra.mxu0 0
        %2557 = vmatpush.bf16.xpose.msra.mxu0 0
        %2558 = vmatpush.bf16.xpose.msra.mxu0 0
        %2559 = vmatpush.bf16.xpose.msra.mxu0 %v2550
        %2560 = vmatmul.bf16.gmra.mxu0 %v2547
        %v2561 = vpop.f32.mrf.mxu0
        %v2562 = vadd.f32 %v2543, %v2561
        %v2563 = vpop.f32.mrf.mxu0
        %v2564 = vadd.f32 %v2543, %v2563
        %2565 = vdwg.mxu0
        %v2566 = vsel %vm1790, %v2562, -inf
        %2567 = vmax.xlane.f32.xlu0 %v2566
        %v2568 = vpop.xlane.xlu0 %2567
        %v2569 = vsel %vm1790, %v2564, -inf
        %2570 = vmax.xlane.f32.xlu0 %v2569
        %v2571 = vpop.xlane.xlu0 %2570
        %v2572 = vsub.f32 %v2562, %v2568
        %v2573 = vsub.f32 %v2564, %v2571
        %v2574 = vmul.f32 %v2572, 1.442695
        %v2575 = vpow.pop %v2574
        %v2576 = vmul.f32 %v2573, 1.442695
        %v2577 = vpow.pop %v2576
        %v2578 = vsel %vm1790, %v2575, 0.0
        %2579 = vadd.xlane.f32.xlu0 %v2578
        %v2580 = vpop.xlane.xlu0 %2579
        %v2581 = vsel %vm1790, %v2577, 0.0
        %2582 = vadd.xlane.f32.xlu0 %v2581
        %v2583 = vpop.xlane.xlu0 %2582
        %v2584 = vmax.f32 %v2580, 1e-30
        %v2585 = vmax.f32 %v2583, 1e-30
        %v2586 = vrcp.pop %v2584
        %v2587 = vrcp.pop %v2585
        %v2588 = vmul.f32 %v2575, %v2586
        %v2589 = vmul.f32 %v2577, %v2587
        %v2590 = vpack.c.bf16 %v2589, %v2588
        %v2592 = vsel %vm1790, %v2590, 0
        %2594 = vmatpush.bf16.msra.mxu0 0
        %2595 = vmatpush.bf16.msra.mxu0 0
        %2596 = vmatpush.bf16.msra.mxu0 0
        %2597 = vmatpush.bf16.msra.mxu0 0
        %2598 = vmatpush.bf16.msra.mxu0 0
        %2599 = vmatpush.bf16.msra.mxu0 0
        %2600 = vmatpush.bf16.msra.mxu0 0
        %2601 = vmatpush.bf16.msra.mxu0 %v2541
        %2602 = vmatmul.bf16.gmra.mxu0 %v2592
        %v2603 = vpop.f32.mrf.mxu0
        %v2604 = vadd.f32 0.0, %v2603
        %v2605 = vpop.f32.mrf.mxu0
        %v2606 = vadd.f32 0.0, %v2605
        %2607 = vdwg.mxu0
        %v2608 = vpack.c.bf16 %v2606, %v2604
        %v2609 = vld [vmem:[%s73] sm:$0xf]
        %s2610 = scalar_lea.vmem %s53, 16
        %v2611 = vld [vmem:[%s2610] sm:$0xf]
        %v2612 = vld [vmem:[%s2610 + $0x4] sm:$0xf]
        %v2613 = vld [vmem:[%s2610 + $0x8] sm:$0xf]
        %v2614 = vld [vmem:[%s2610 + $0xc] sm:$0xf]
        %s2615 = scalar_lea.vmem %s55, 1
        %v2616 = vld [vmem:[%s2615] sm:$0x1]
        %v2618 = vperm.slane %v2616, 0
        %v2624 = vunpack.c.l.b16 %v2611
        %v2625 = vunpack.c.l.b16 %v2612
        %v2626 = vunpack.c.l.b16 %v2613
        %v2627 = vunpack.c.l.b16 %v2614
        %v2628 = vpack.c.b16 %v2625, %v2624
        %v2629 = vpack.c.b16 %v2627, %v2626
        %2632 = vmatpush.bf16.msra.mxu0 0
        %2633 = vmatpush.bf16.msra.mxu0 0
        %2634 = vmatpush.bf16.msra.mxu0 0
        %2635 = vmatpush.bf16.msra.mxu0 0
        %2636 = vmatpush.bf16.msra.mxu0 0
        %2637 = vmatpush.bf16.msra.mxu0 0
        %2638 = vmatpush.bf16.msra.mxu0 %v2629
        %2639 = vmatpush.bf16.msra.mxu0 %v2628
        %2640 = vmatmul.bf16.gmra.mxu0 %v2375
        %v2641 = vpop.f32.mrf.mxu0
        %v2642 = vadd.f32 %v2618, %v2641
        %v2643 = vpop.f32.mrf.mxu0
        %v2644 = vadd.f32 %v2618, %v2643
        %2645 = vdwg.mxu0
        %s2646 = scalar_lea.vmem %s57, 16
        %v2647 = vld [vmem:[%s2646] sm:$0xf]
        %v2648 = vld [vmem:[%s2646 + $0x4] sm:$0xf]
        %v2649 = vld [vmem:[%s2646 + $0x8] sm:$0xf]
        %v2650 = vld [vmem:[%s2646 + $0xc] sm:$0xf]
        %s2651 = scalar_lea.vmem %s59, 1
        %v2652 = vld [vmem:[%s2651] sm:$0x1]
        %v2654 = vperm.slane %v2652, 0
        %v2660 = vunpack.c.l.b16 %v2647
        %v2661 = vunpack.c.l.b16 %v2648
        %v2662 = vunpack.c.l.b16 %v2649
        %v2663 = vunpack.c.l.b16 %v2650
        %v2664 = vpack.c.b16 %v2661, %v2660
        %v2665 = vpack.c.b16 %v2663, %v2662
        %2668 = vmatpush.bf16.msra.mxu0 0
        %2669 = vmatpush.bf16.msra.mxu0 0
        %2670 = vmatpush.bf16.msra.mxu0 0
        %2671 = vmatpush.bf16.msra.mxu0 0
        %2672 = vmatpush.bf16.msra.mxu0 0
        %2673 = vmatpush.bf16.msra.mxu0 0
        %2674 = vmatpush.bf16.msra.mxu0 %v2665
        %2675 = vmatpush.bf16.msra.mxu0 %v2664
        %2676 = vmatmul.bf16.gmra.mxu0 %v2375
        %v2677 = vpop.f32.mrf.mxu0
        %v2678 = vadd.f32 %v2654, %v2677
        %v2679 = vpop.f32.mrf.mxu0
        %v2680 = vadd.f32 %v2654, %v2679
        %2681 = vdwg.mxu0
        %v2682 = vmul.f32 %v2642, %v2293
        %v2683 = vmul.f32 %v2644, %v2294
        %v2684 = vmul.f32 %v2678, %v2295
        %v2685 = vmul.f32 %v2680, %v2296
        %v2686 = vadd.f32 %v2682, %v2684
        %v2687 = vadd.f32 %v2683, %v2685
        %v2688 = vpack.c.bf16 %v2687, %v2686
        %s2689 = scalar_lea.vmem %s61, 16
        %v2690 = vld [vmem:[%s2689] sm:$0xf]
        %v2691 = vld [vmem:[%s2689 + $0x4] sm:$0xf]
        %v2692 = vld [vmem:[%s2689 + $0x8] sm:$0xf]
        %v2693 = vld [vmem:[%s2689 + $0xc] sm:$0xf]
        %s2694 = scalar_lea.vmem %s63, 1
        %v2695 = vld [vmem:[%s2694] sm:$0x1]
        %v2697 = vperm.slane %v2695, 0
        %v2703 = vunpack.c.l.b16 %v2690
        %v2704 = vunpack.c.l.b16 %v2691
        %v2705 = vunpack.c.l.b16 %v2692
        %v2706 = vunpack.c.l.b16 %v2693
        %v2707 = vpack.c.b16 %v2704, %v2703
        %v2708 = vpack.c.b16 %v2706, %v2705
        %2711 = vmatpush.bf16.msra.mxu0 0
        %2712 = vmatpush.bf16.msra.mxu0 0
        %2713 = vmatpush.bf16.msra.mxu0 0
        %2714 = vmatpush.bf16.msra.mxu0 0
        %2715 = vmatpush.bf16.msra.mxu0 0
        %2716 = vmatpush.bf16.msra.mxu0 0
        %2717 = vmatpush.bf16.msra.mxu0 %v2708
        %2718 = vmatpush.bf16.msra.mxu0 %v2707
        %2719 = vmatmul.bf16.gmra.mxu0 %v2375
        %v2720 = vpop.f32.mrf.mxu0
        %v2721 = vadd.f32 %v2697, %v2720
        %v2722 = vpop.f32.mrf.mxu0
        %v2723 = vadd.f32 %v2697, %v2722
        %2724 = vdwg.mxu0
        %s2725 = scalar_lea.vmem %s65, 16
        %v2726 = vld [vmem:[%s2725] sm:$0xf]
        %v2727 = vld [vmem:[%s2725 + $0x4] sm:$0xf]
        %v2728 = vld [vmem:[%s2725 + $0x8] sm:$0xf]
        %v2729 = vld [vmem:[%s2725 + $0xc] sm:$0xf]
        %s2730 = scalar_lea.vmem %s67, 1
        %v2731 = vld [vmem:[%s2730] sm:$0x1]
        %v2733 = vperm.slane %v2731, 0
        %v2739 = vunpack.c.l.b16 %v2726
        %v2740 = vunpack.c.l.b16 %v2727
        %v2741 = vunpack.c.l.b16 %v2728
        %v2742 = vunpack.c.l.b16 %v2729
        %v2743 = vpack.c.b16 %v2740, %v2739
        %v2744 = vpack.c.b16 %v2742, %v2741
        %2747 = vmatpush.bf16.msra.mxu0 0
        %2748 = vmatpush.bf16.msra.mxu0 0
        %2749 = vmatpush.bf16.msra.mxu0 0
        %2750 = vmatpush.bf16.msra.mxu0 0
        %2751 = vmatpush.bf16.msra.mxu0 0
        %2752 = vmatpush.bf16.msra.mxu0 0
        %2753 = vmatpush.bf16.msra.mxu0 %v2744
        %2754 = vmatpush.bf16.msra.mxu0 %v2743
        %2755 = vmatmul.bf16.gmra.mxu0 %v2375
        %v2756 = vpop.f32.mrf.mxu0
        %v2757 = vadd.f32 %v2733, %v2756
        %v2758 = vpop.f32.mrf.mxu0
        %v2759 = vadd.f32 %v2733, %v2758
        %2760 = vdwg.mxu0
        %v2761 = vmul.f32 %v2721, %v2293
        %v2762 = vmul.f32 %v2723, %v2294
        %v2763 = vmul.f32 %v2757, %v2295
        %v2764 = vmul.f32 %v2759, %v2296
        %v2765 = vadd.f32 %v2761, %v2763
        %v2766 = vadd.f32 %v2762, %v2764
        %v2767 = vpack.c.bf16 %v2766, %v2765
        %s2768 = scalar_lea.vmem %s69, 16
        %v2769 = vld [vmem:[%s2768] sm:$0xf]
        %v2770 = vld [vmem:[%s2768 + $0x4] sm:$0xf]
        %v2771 = vld [vmem:[%s2768 + $0x8] sm:$0xf]
        %v2772 = vld [vmem:[%s2768 + $0xc] sm:$0xf]
        %s2773 = scalar_lea.vmem %s71, 1
        %v2774 = vld [vmem:[%s2773] sm:$0x1]
        %v2776 = vperm.slane %v2774, 0
        %v2782 = vunpack.c.l.b16 %v2769
        %v2783 = vunpack.c.l.b16 %v2770
        %v2784 = vunpack.c.l.b16 %v2771
        %v2785 = vunpack.c.l.b16 %v2772
        %v2786 = vpack.c.b16 %v2783, %v2782
        %v2787 = vpack.c.b16 %v2785, %v2784
        %2790 = vmatpush.bf16.msra.mxu0 0
        %2791 = vmatpush.bf16.msra.mxu0 0
        %2792 = vmatpush.bf16.msra.mxu0 0
        %2793 = vmatpush.bf16.msra.mxu0 0
        %2794 = vmatpush.bf16.msra.mxu0 0
        %2795 = vmatpush.bf16.msra.mxu0 0
        %2796 = vmatpush.bf16.msra.mxu0 %v2787
        %2797 = vmatpush.bf16.msra.mxu0 %v2786
        %2798 = vmatmul.bf16.gmra.mxu0 %v2375
        %v2799 = vpop.f32.mrf.mxu0
        %v2800 = vadd.f32 %v2776, %v2799
        %v2801 = vpop.f32.mrf.mxu0
        %v2802 = vadd.f32 %v2776, %v2801
        %2803 = vdwg.mxu0
        %v2804 = vpack.c.bf16 %v2802, %v2800
        %v2806 = vsel %vm2545, %v2688, 0
        %v2809 = vsel %vm2545, %v2767, 0
        %2811 = vmatpush.bf16.xpose.msra.mxu0 0
        %2812 = vmatpush.bf16.xpose.msra.mxu0 0
        %2813 = vmatpush.bf16.xpose.msra.mxu0 0
        %2814 = vmatpush.bf16.xpose.msra.mxu0 0
        %2815 = vmatpush.bf16.xpose.msra.mxu0 0
        %2816 = vmatpush.bf16.xpose.msra.mxu0 0
        %2817 = vmatpush.bf16.xpose.msra.mxu0 0
        %2818 = vmatpush.bf16.xpose.msra.mxu0 %v2809
        %2819 = vmatmul.bf16.gmra.mxu0 %v2806
        %v2820 = vpop.f32.mrf.mxu0
        %v2821 = vadd.f32 %v2543, %v2820
        %v2822 = vpop.f32.mrf.mxu0
        %v2823 = vadd.f32 %v2543, %v2822
        %2824 = vdwg.mxu0
        %v2825 = vsel %vm1790, %v2821, -inf
        %2826 = vmax.xlane.f32.xlu0 %v2825
        %v2827 = vpop.xlane.xlu0 %2826
        %v2828 = vsel %vm1790, %v2823, -inf
        %2829 = vmax.xlane.f32.xlu0 %v2828
        %v2830 = vpop.xlane.xlu0 %2829
        %v2831 = vsub.f32 %v2821, %v2827
        %v2832 = vsub.f32 %v2823, %v2830
        %v2833 = vmul.f32 %v2831, 1.442695
        %v2834 = vpow.pop %v2833
        %v2835 = vmul.f32 %v2832, 1.442695
        %v2836 = vpow.pop %v2835
        %v2837 = vsel %vm1790, %v2834, 0.0
        %2838 = vadd.xlane.f32.xlu0 %v2837
        %v2839 = vpop.xlane.xlu0 %2838
        %v2840 = vsel %vm1790, %v2836, 0.0
        %2841 = vadd.xlane.f32.xlu0 %v2840
        %v2842 = vpop.xlane.xlu0 %2841
        %v2843 = vmax.f32 %v2839, 1e-30
        %v2844 = vmax.f32 %v2842, 1e-30
        %v2845 = vrcp.pop %v2843
        %v2846 = vrcp.pop %v2844
        %v2847 = vmul.f32 %v2834, %v2845
        %v2848 = vmul.f32 %v2836, %v2846
        %v2849 = vpack.c.bf16 %v2848, %v2847
        %v2851 = vsel %vm1790, %v2849, 0
        %2853 = vmatpush.bf16.msra.mxu0 0
        %2854 = vmatpush.bf16.msra.mxu0 0
        %2855 = vmatpush.bf16.msra.mxu0 0
        %2856 = vmatpush.bf16.msra.mxu0 0
        %2857 = vmatpush.bf16.msra.mxu0 0
        %2858 = vmatpush.bf16.msra.mxu0 0
        %2859 = vmatpush.bf16.msra.mxu0 0
        %2860 = vmatpush.bf16.msra.mxu0 %v2804
        %2861 = vmatmul.bf16.gmra.mxu0 %v2851
        %v2862 = vpop.f32.mrf.mxu0
        %v2863 = vadd.f32 0.0, %v2862
        %v2864 = vpop.f32.mrf.mxu0
        %v2865 = vadd.f32 0.0, %v2864
        %2866 = vdwg.mxu0
        %v2867 = vpack.c.bf16 %v2865, %v2863
        %s2868 = scalar_lea.vmem %s73, 4
        %v2869 = vld [vmem:[%s2868] sm:$0xf]
        %v2871 = vsel %vm2545, %v2867, 0
        %vm2873 = vcmask 1043456
        %v2875 = vsel %vm2873, %v2869, 0
        %2877 = vmatpush.bf16.msra.mxu0 0
        %2878 = vmatpush.bf16.msra.mxu0 0
        %2879 = vmatpush.bf16.msra.mxu0 0
        %2880 = vmatpush.bf16.msra.mxu0 0
        %2881 = vmatpush.bf16.msra.mxu0 0
        %2882 = vmatpush.bf16.msra.mxu0 0
        %2883 = vmatpush.bf16.msra.mxu0 0
        %2884 = vmatpush.bf16.msra.mxu0 %v2875
        %2885 = vmatmul.bf16.gmra.mxu0 %v2871
        %v2886 = vpop.f32.mrf.mxu0
        %v2887 = vadd.f32 0.0, %v2886
        %v2888 = vpop.f32.mrf.mxu0
        %v2889 = vadd.f32 0.0, %v2888
        %2890 = vdwg.mxu0
        %v2892 = vsel %vm2545, %v2608, 0
        %v2895 = vsel %vm2873, %v2609, 0
        %2897 = vmatpush.bf16.msra.mxu0 0
        %2898 = vmatpush.bf16.msra.mxu0 0
        %2899 = vmatpush.bf16.msra.mxu0 0
        %2900 = vmatpush.bf16.msra.mxu0 0
        %2901 = vmatpush.bf16.msra.mxu0 0
        %2902 = vmatpush.bf16.msra.mxu0 0
        %2903 = vmatpush.bf16.msra.mxu0 0
        %2904 = vmatpush.bf16.msra.mxu0 %v2895
        %2905 = vmatmul.bf16.gmra.mxu0 %v2892
        %v2906 = vpop.f32.mrf.mxu0
        %v2907 = vadd.f32 %v2887, %v2906
        %v2908 = vpop.f32.mrf.mxu0
        %v2909 = vadd.f32 %v2889, %v2908
        %2910 = vdwg.mxu0
        %s2911 = scalar_lea.vmem %s53, 32
        %v2912 = vld [vmem:[%s2911] sm:$0xf]
        %v2913 = vld [vmem:[%s2911 + $0x4] sm:$0xf]
        %v2914 = vld [vmem:[%s2911 + $0x8] sm:$0xf]
        %v2915 = vld [vmem:[%s2911 + $0xc] sm:$0xf]
        %s2916 = scalar_lea.vmem %s55, 2
        %v2917 = vld [vmem:[%s2916] sm:$0x1]
        %v2919 = vperm.slane %v2917, 0
        %v2925 = vunpack.c.l.b16 %v2912
        %v2926 = vunpack.c.l.b16 %v2913
        %v2927 = vunpack.c.l.b16 %v2914
        %v2928 = vunpack.c.l.b16 %v2915
        %v2929 = vpack.c.b16 %v2926, %v2925
        %v2930 = vpack.c.b16 %v2928, %v2927
        %2933 = vmatpush.bf16.msra.mxu0 0
        %2934 = vmatpush.bf16.msra.mxu0 0
        %2935 = vmatpush.bf16.msra.mxu0 0
        %2936 = vmatpush.bf16.msra.mxu0 0
        %2937 = vmatpush.bf16.msra.mxu0 0
        %2938 = vmatpush.bf16.msra.mxu0 0
        %2939 = vmatpush.bf16.msra.mxu0 %v2930
        %2940 = vmatpush.bf16.msra.mxu0 %v2929
        %2941 = vmatmul.bf16.gmra.mxu0 %v2375
        %v2942 = vpop.f32.mrf.mxu0
        %v2943 = vadd.f32 %v2919, %v2942
        %v2944 = vpop.f32.mrf.mxu0
        %v2945 = vadd.f32 %v2919, %v2944
        %2946 = vdwg.mxu0
        %s2947 = scalar_lea.vmem %s57, 32
        %v2948 = vld [vmem:[%s2947] sm:$0xf]
        %v2949 = vld [vmem:[%s2947 + $0x4] sm:$0xf]
        %v2950 = vld [vmem:[%s2947 + $0x8] sm:$0xf]
        %v2951 = vld [vmem:[%s2947 + $0xc] sm:$0xf]
        %s2952 = scalar_lea.vmem %s59, 2
        %v2953 = vld [vmem:[%s2952] sm:$0x1]
        %v2955 = vperm.slane %v2953, 0
        %v2961 = vunpack.c.l.b16 %v2948
        %v2962 = vunpack.c.l.b16 %v2949
        %v2963 = vunpack.c.l.b16 %v2950
        %v2964 = vunpack.c.l.b16 %v2951
        %v2965 = vpack.c.b16 %v2962, %v2961
        %v2966 = vpack.c.b16 %v2964, %v2963
        %2969 = vmatpush.bf16.msra.mxu0 0
        %2970 = vmatpush.bf16.msra.mxu0 0
        %2971 = vmatpush.bf16.msra.mxu0 0
        %2972 = vmatpush.bf16.msra.mxu0 0
        %2973 = vmatpush.bf16.msra.mxu0 0
        %2974 = vmatpush.bf16.msra.mxu0 0
        %2975 = vmatpush.bf16.msra.mxu0 %v2966
        %2976 = vmatpush.bf16.msra.mxu0 %v2965
        %2977 = vmatmul.bf16.gmra.mxu0 %v2375
        %v2978 = vpop.f32.mrf.mxu0
        %v2979 = vadd.f32 %v2955, %v2978
        %v2980 = vpop.f32.mrf.mxu0
        %v2981 = vadd.f32 %v2955, %v2980
        %2982 = vdwg.mxu0
        %v2983 = vmul.f32 %v2943, %v2293
        %v2984 = vmul.f32 %v2945, %v2294
        %v2985 = vmul.f32 %v2979, %v2295
        %v2986 = vmul.f32 %v2981, %v2296
        %v2987 = vadd.f32 %v2983, %v2985
        %v2988 = vadd.f32 %v2984, %v2986
        %v2989 = vpack.c.bf16 %v2988, %v2987
        %s2990 = scalar_lea.vmem %s61, 32
        %v2991 = vld [vmem:[%s2990] sm:$0xf]
        %v2992 = vld [vmem:[%s2990 + $0x4] sm:$0xf]
        %v2993 = vld [vmem:[%s2990 + $0x8] sm:$0xf]
        %v2994 = vld [vmem:[%s2990 + $0xc] sm:$0xf]
        %s2995 = scalar_lea.vmem %s63, 2
        %v2996 = vld [vmem:[%s2995] sm:$0x1]
        %v2998 = vperm.slane %v2996, 0
        %v3004 = vunpack.c.l.b16 %v2991
        %v3005 = vunpack.c.l.b16 %v2992
        %v3006 = vunpack.c.l.b16 %v2993
        %v3007 = vunpack.c.l.b16 %v2994
        %v3008 = vpack.c.b16 %v3005, %v3004
        %v3009 = vpack.c.b16 %v3007, %v3006
        %3012 = vmatpush.bf16.msra.mxu0 0
        %3013 = vmatpush.bf16.msra.mxu0 0
        %3014 = vmatpush.bf16.msra.mxu0 0
        %3015 = vmatpush.bf16.msra.mxu0 0
        %3016 = vmatpush.bf16.msra.mxu0 0
        %3017 = vmatpush.bf16.msra.mxu0 0
        %3018 = vmatpush.bf16.msra.mxu0 %v3009
        %3019 = vmatpush.bf16.msra.mxu0 %v3008
        %3020 = vmatmul.bf16.gmra.mxu0 %v2375
        %v3021 = vpop.f32.mrf.mxu0
        %v3022 = vadd.f32 %v2998, %v3021
        %v3023 = vpop.f32.mrf.mxu0
        %v3024 = vadd.f32 %v2998, %v3023
        %3025 = vdwg.mxu0
        %s3026 = scalar_lea.vmem %s65, 32
        %v3027 = vld [vmem:[%s3026] sm:$0xf]
        %v3028 = vld [vmem:[%s3026 + $0x4] sm:$0xf]
        %v3029 = vld [vmem:[%s3026 + $0x8] sm:$0xf]
        %v3030 = vld [vmem:[%s3026 + $0xc] sm:$0xf]
        %s3031 = scalar_lea.vmem %s67, 2
        %v3032 = vld [vmem:[%s3031] sm:$0x1]
        %v3034 = vperm.slane %v3032, 0
        %v3040 = vunpack.c.l.b16 %v3027
        %v3041 = vunpack.c.l.b16 %v3028
        %v3042 = vunpack.c.l.b16 %v3029
        %v3043 = vunpack.c.l.b16 %v3030
        %v3044 = vpack.c.b16 %v3041, %v3040
        %v3045 = vpack.c.b16 %v3043, %v3042
        %3048 = vmatpush.bf16.msra.mxu0 0
        %3049 = vmatpush.bf16.msra.mxu0 0
        %3050 = vmatpush.bf16.msra.mxu0 0
        %3051 = vmatpush.bf16.msra.mxu0 0
        %3052 = vmatpush.bf16.msra.mxu0 0
        %3053 = vmatpush.bf16.msra.mxu0 0
        %3054 = vmatpush.bf16.msra.mxu0 %v3045
        %3055 = vmatpush.bf16.msra.mxu0 %v3044
        %3056 = vmatmul.bf16.gmra.mxu0 %v2375
        %v3057 = vpop.f32.mrf.mxu0
        %v3058 = vadd.f32 %v3034, %v3057
        %v3059 = vpop.f32.mrf.mxu0
        %v3060 = vadd.f32 %v3034, %v3059
        %3061 = vdwg.mxu0
        %v3062 = vmul.f32 %v3022, %v2293
        %v3063 = vmul.f32 %v3024, %v2294
        %v3064 = vmul.f32 %v3058, %v2295
        %v3065 = vmul.f32 %v3060, %v2296
        %v3066 = vadd.f32 %v3062, %v3064
        %v3067 = vadd.f32 %v3063, %v3065
        %v3068 = vpack.c.bf16 %v3067, %v3066
        %s3069 = scalar_lea.vmem %s69, 32
        %v3070 = vld [vmem:[%s3069] sm:$0xf]
        %v3071 = vld [vmem:[%s3069 + $0x4] sm:$0xf]
        %v3072 = vld [vmem:[%s3069 + $0x8] sm:$0xf]
        %v3073 = vld [vmem:[%s3069 + $0xc] sm:$0xf]
        %s3074 = scalar_lea.vmem %s71, 2
        %v3075 = vld [vmem:[%s3074] sm:$0x1]
        %v3077 = vperm.slane %v3075, 0
        %v3083 = vunpack.c.l.b16 %v3070
        %v3084 = vunpack.c.l.b16 %v3071
        %v3085 = vunpack.c.l.b16 %v3072
        %v3086 = vunpack.c.l.b16 %v3073
        %v3087 = vpack.c.b16 %v3084, %v3083
        %v3088 = vpack.c.b16 %v3086, %v3085
        %3091 = vmatpush.bf16.msra.mxu0 0
        %3092 = vmatpush.bf16.msra.mxu0 0
        %3093 = vmatpush.bf16.msra.mxu0 0
        %3094 = vmatpush.bf16.msra.mxu0 0
        %3095 = vmatpush.bf16.msra.mxu0 0
        %3096 = vmatpush.bf16.msra.mxu0 0
        %3097 = vmatpush.bf16.msra.mxu0 %v3088
        %3098 = vmatpush.bf16.msra.mxu0 %v3087
        %3099 = vmatmul.bf16.gmra.mxu0 %v2375
        %v3100 = vpop.f32.mrf.mxu0
        %v3101 = vadd.f32 %v3077, %v3100
        %v3102 = vpop.f32.mrf.mxu0
        %v3103 = vadd.f32 %v3077, %v3102
        %3104 = vdwg.mxu0
        %v3105 = vpack.c.bf16 %v3103, %v3101
        %v3107 = vsel %vm2545, %v2989, 0
        %v3110 = vsel %vm2545, %v3068, 0
        %3112 = vmatpush.bf16.xpose.msra.mxu0 0
        %3113 = vmatpush.bf16.xpose.msra.mxu0 0
        %3114 = vmatpush.bf16.xpose.msra.mxu0 0
        %3115 = vmatpush.bf16.xpose.msra.mxu0 0
        %3116 = vmatpush.bf16.xpose.msra.mxu0 0
        %3117 = vmatpush.bf16.xpose.msra.mxu0 0
        %3118 = vmatpush.bf16.xpose.msra.mxu0 0
        %3119 = vmatpush.bf16.xpose.msra.mxu0 %v3110
        %3120 = vmatmul.bf16.gmra.mxu0 %v3107
        %v3121 = vpop.f32.mrf.mxu0
        %v3122 = vadd.f32 %v2543, %v3121
        %v3123 = vpop.f32.mrf.mxu0
        %v3124 = vadd.f32 %v2543, %v3123
        %3125 = vdwg.mxu0
        %v3126 = vsel %vm1790, %v3122, -inf
        %3127 = vmax.xlane.f32.xlu0 %v3126
        %v3128 = vpop.xlane.xlu0 %3127
        %v3129 = vsel %vm1790, %v3124, -inf
        %3130 = vmax.xlane.f32.xlu0 %v3129
        %v3131 = vpop.xlane.xlu0 %3130
        %v3132 = vsub.f32 %v3122, %v3128
        %v3133 = vsub.f32 %v3124, %v3131
        %v3134 = vmul.f32 %v3132, 1.442695
        %v3135 = vpow.pop %v3134
        %v3136 = vmul.f32 %v3133, 1.442695
        %v3137 = vpow.pop %v3136
        %v3138 = vsel %vm1790, %v3135, 0.0
        %3139 = vadd.xlane.f32.xlu0 %v3138
        %v3140 = vpop.xlane.xlu0 %3139
        %v3141 = vsel %vm1790, %v3137, 0.0
        %3142 = vadd.xlane.f32.xlu0 %v3141
        %v3143 = vpop.xlane.xlu0 %3142
        %v3144 = vmax.f32 %v3140, 1e-30
        %v3145 = vmax.f32 %v3143, 1e-30
        %v3146 = vrcp.pop %v3144
        %v3147 = vrcp.pop %v3145
        %v3148 = vmul.f32 %v3135, %v3146
        %v3149 = vmul.f32 %v3137, %v3147
        %v3150 = vpack.c.bf16 %v3149, %v3148
        %v3152 = vsel %vm1790, %v3150, 0
        %3154 = vmatpush.bf16.msra.mxu0 0
        %3155 = vmatpush.bf16.msra.mxu0 0
        %3156 = vmatpush.bf16.msra.mxu0 0
        %3157 = vmatpush.bf16.msra.mxu0 0
        %3158 = vmatpush.bf16.msra.mxu0 0
        %3159 = vmatpush.bf16.msra.mxu0 0
        %3160 = vmatpush.bf16.msra.mxu0 0
        %3161 = vmatpush.bf16.msra.mxu0 %v3105
        %3162 = vmatmul.bf16.gmra.mxu0 %v3152
        %v3163 = vpop.f32.mrf.mxu0
        %v3164 = vadd.f32 0.0, %v3163
        %v3165 = vpop.f32.mrf.mxu0
        %v3166 = vadd.f32 0.0, %v3165
        %3167 = vdwg.mxu0
        %v3168 = vpack.c.bf16 %v3166, %v3164
        %s3169 = scalar_lea.vmem %s73, 8
        %v3170 = vld [vmem:[%s3169] sm:$0xf]
        %v3172 = vsel %vm2545, %v3168, 0
        %v3175 = vsel %vm2873, %v3170, 0
        %3177 = vmatpush.bf16.msra.mxu0 0
        %3178 = vmatpush.bf16.msra.mxu0 0
        %3179 = vmatpush.bf16.msra.mxu0 0
        %3180 = vmatpush.bf16.msra.mxu0 0
        %3181 = vmatpush.bf16.msra.mxu0 0
        %3182 = vmatpush.bf16.msra.mxu0 0
        %3183 = vmatpush.bf16.msra.mxu0 0
        %3184 = vmatpush.bf16.msra.mxu0 %v3175
        %3185 = vmatmul.bf16.gmra.mxu0 %v3172
        %v3186 = vpop.f32.mrf.mxu0
        %v3187 = vadd.f32 0.0, %v3186
        %v3188 = vpop.f32.mrf.mxu0
        %v3189 = vadd.f32 0.0, %v3188
        %3190 = vdwg.mxu0
        %v3191 = vadd.f32 %v2907, %v3187
        %v3192 = vadd.f32 %v2909, %v3189
        %s3193 = scalar_lea.vmem %s53, 48
        %v3194 = vld [vmem:[%s3193] sm:$0xf]
        %v3195 = vld [vmem:[%s3193 + $0x4] sm:$0xf]
        %v3196 = vld [vmem:[%s3193 + $0x8] sm:$0xf]
        %v3197 = vld [vmem:[%s3193 + $0xc] sm:$0xf]
        %s3198 = scalar_lea.vmem %s55, 3
        %v3199 = vld [vmem:[%s3198] sm:$0x1]
        %v3201 = vperm.slane %v3199, 0
        %v3207 = vunpack.c.l.b16 %v3194
        %v3208 = vunpack.c.l.b16 %v3195
        %v3209 = vunpack.c.l.b16 %v3196
        %v3210 = vunpack.c.l.b16 %v3197
        %v3211 = vpack.c.b16 %v3208, %v3207
        %v3212 = vpack.c.b16 %v3210, %v3209
        %3215 = vmatpush.bf16.msra.mxu0 0
        %3216 = vmatpush.bf16.msra.mxu0 0
        %3217 = vmatpush.bf16.msra.mxu0 0
        %3218 = vmatpush.bf16.msra.mxu0 0
        %3219 = vmatpush.bf16.msra.mxu0 0
        %3220 = vmatpush.bf16.msra.mxu0 0
        %3221 = vmatpush.bf16.msra.mxu0 %v3212
        %3222 = vmatpush.bf16.msra.mxu0 %v3211
        %3223 = vmatmul.bf16.gmra.mxu0 %v2375
        %v3224 = vpop.f32.mrf.mxu0
        %v3225 = vadd.f32 %v3201, %v3224
        %v3226 = vpop.f32.mrf.mxu0
        %v3227 = vadd.f32 %v3201, %v3226
        %3228 = vdwg.mxu0
        %s3229 = scalar_lea.vmem %s57, 48
        %v3230 = vld [vmem:[%s3229] sm:$0xf]
        %v3231 = vld [vmem:[%s3229 + $0x4] sm:$0xf]
        %v3232 = vld [vmem:[%s3229 + $0x8] sm:$0xf]
        %v3233 = vld [vmem:[%s3229 + $0xc] sm:$0xf]
        %s3234 = scalar_lea.vmem %s59, 3
        %v3235 = vld [vmem:[%s3234] sm:$0x1]
        %v3237 = vperm.slane %v3235, 0
        %v3243 = vunpack.c.l.b16 %v3230
        %v3244 = vunpack.c.l.b16 %v3231
        %v3245 = vunpack.c.l.b16 %v3232
        %v3246 = vunpack.c.l.b16 %v3233
        %v3247 = vpack.c.b16 %v3244, %v3243
        %v3248 = vpack.c.b16 %v3246, %v3245
        %3251 = vmatpush.bf16.msra.mxu0 0
        %3252 = vmatpush.bf16.msra.mxu0 0
        %3253 = vmatpush.bf16.msra.mxu0 0
        %3254 = vmatpush.bf16.msra.mxu0 0
        %3255 = vmatpush.bf16.msra.mxu0 0
        %3256 = vmatpush.bf16.msra.mxu0 0
        %3257 = vmatpush.bf16.msra.mxu0 %v3248
        %3258 = vmatpush.bf16.msra.mxu0 %v3247
        %3259 = vmatmul.bf16.gmra.mxu0 %v2375
        %v3260 = vpop.f32.mrf.mxu0
        %v3261 = vadd.f32 %v3237, %v3260
        %v3262 = vpop.f32.mrf.mxu0
        %v3263 = vadd.f32 %v3237, %v3262
        %3264 = vdwg.mxu0
        %v3265 = vmul.f32 %v3225, %v2293
        %v3266 = vmul.f32 %v3227, %v2294
        %v3267 = vmul.f32 %v3261, %v2295
        %v3268 = vmul.f32 %v3263, %v2296
        %v3269 = vadd.f32 %v3265, %v3267
        %v3270 = vadd.f32 %v3266, %v3268
        %v3271 = vpack.c.bf16 %v3270, %v3269
        %s3272 = scalar_lea.vmem %s61, 48
        %v3273 = vld [vmem:[%s3272] sm:$0xf]
        %v3274 = vld [vmem:[%s3272 + $0x4] sm:$0xf]
        %v3275 = vld [vmem:[%s3272 + $0x8] sm:$0xf]
        %v3276 = vld [vmem:[%s3272 + $0xc] sm:$0xf]
        %s3277 = scalar_lea.vmem %s63, 3
        %v3278 = vld [vmem:[%s3277] sm:$0x1]
        %v3280 = vperm.slane %v3278, 0
        %v3286 = vunpack.c.l.b16 %v3273
        %v3287 = vunpack.c.l.b16 %v3274
        %v3288 = vunpack.c.l.b16 %v3275
        %v3289 = vunpack.c.l.b16 %v3276
        %v3290 = vpack.c.b16 %v3287, %v3286
        %v3291 = vpack.c.b16 %v3289, %v3288
        %3294 = vmatpush.bf16.msra.mxu0 0
        %3295 = vmatpush.bf16.msra.mxu0 0
        %3296 = vmatpush.bf16.msra.mxu0 0
        %3297 = vmatpush.bf16.msra.mxu0 0
        %3298 = vmatpush.bf16.msra.mxu0 0
        %3299 = vmatpush.bf16.msra.mxu0 0
        %3300 = vmatpush.bf16.msra.mxu0 %v3291
        %3301 = vmatpush.bf16.msra.mxu0 %v3290
        %3302 = vmatmul.bf16.gmra.mxu0 %v2375
        %v3303 = vpop.f32.mrf.mxu0
        %v3304 = vadd.f32 %v3280, %v3303
        %v3305 = vpop.f32.mrf.mxu0
        %v3306 = vadd.f32 %v3280, %v3305
        %3307 = vdwg.mxu0
        %s3308 = scalar_lea.vmem %s65, 48
        %v3309 = vld [vmem:[%s3308] sm:$0xf]
        %v3310 = vld [vmem:[%s3308 + $0x4] sm:$0xf]
        %v3311 = vld [vmem:[%s3308 + $0x8] sm:$0xf]
        %v3312 = vld [vmem:[%s3308 + $0xc] sm:$0xf]
        %s3313 = scalar_lea.vmem %s67, 3
        %v3314 = vld [vmem:[%s3313] sm:$0x1]
        %v3316 = vperm.slane %v3314, 0
        %v3322 = vunpack.c.l.b16 %v3309
        %v3323 = vunpack.c.l.b16 %v3310
        %v3324 = vunpack.c.l.b16 %v3311
        %v3325 = vunpack.c.l.b16 %v3312
        %v3326 = vpack.c.b16 %v3323, %v3322
        %v3327 = vpack.c.b16 %v3325, %v3324
        %3330 = vmatpush.bf16.msra.mxu0 0
        %3331 = vmatpush.bf16.msra.mxu0 0
        %3332 = vmatpush.bf16.msra.mxu0 0
        %3333 = vmatpush.bf16.msra.mxu0 0
        %3334 = vmatpush.bf16.msra.mxu0 0
        %3335 = vmatpush.bf16.msra.mxu0 0
        %3336 = vmatpush.bf16.msra.mxu0 %v3327
        %3337 = vmatpush.bf16.msra.mxu0 %v3326
        %3338 = vmatmul.bf16.gmra.mxu0 %v2375
        %v3339 = vpop.f32.mrf.mxu0
        %v3340 = vadd.f32 %v3316, %v3339
        %v3341 = vpop.f32.mrf.mxu0
        %v3342 = vadd.f32 %v3316, %v3341
        %3343 = vdwg.mxu0
        %v3344 = vmul.f32 %v3304, %v2293
        %v3345 = vmul.f32 %v3306, %v2294
        %v3346 = vmul.f32 %v3340, %v2295
        %v3347 = vmul.f32 %v3342, %v2296
        %v3348 = vadd.f32 %v3344, %v3346
        %v3349 = vadd.f32 %v3345, %v3347
        %v3350 = vpack.c.bf16 %v3349, %v3348
        %s3351 = scalar_lea.vmem %s69, 48
        %v3352 = vld [vmem:[%s3351] sm:$0xf]
        %v3353 = vld [vmem:[%s3351 + $0x4] sm:$0xf]
        %v3354 = vld [vmem:[%s3351 + $0x8] sm:$0xf]
        %v3355 = vld [vmem:[%s3351 + $0xc] sm:$0xf]
        %s3356 = scalar_lea.vmem %s71, 3
        %v3357 = vld [vmem:[%s3356] sm:$0x1]
        %v3359 = vperm.slane %v3357, 0
        %v3365 = vunpack.c.l.b16 %v3352
        %v3366 = vunpack.c.l.b16 %v3353
        %v3367 = vunpack.c.l.b16 %v3354
        %v3368 = vunpack.c.l.b16 %v3355
        %v3369 = vpack.c.b16 %v3366, %v3365
        %v3370 = vpack.c.b16 %v3368, %v3367
        %3373 = vmatpush.bf16.msra.mxu0 0
        %3374 = vmatpush.bf16.msra.mxu0 0
        %3375 = vmatpush.bf16.msra.mxu0 0
        %3376 = vmatpush.bf16.msra.mxu0 0
        %3377 = vmatpush.bf16.msra.mxu0 0
        %3378 = vmatpush.bf16.msra.mxu0 0
        %3379 = vmatpush.bf16.msra.mxu0 %v3370
        %3380 = vmatpush.bf16.msra.mxu0 %v3369
        %3381 = vmatmul.bf16.gmra.mxu0 %v2375
        %v3382 = vpop.f32.mrf.mxu0
        %v3383 = vadd.f32 %v3359, %v3382
        %v3384 = vpop.f32.mrf.mxu0
        %v3385 = vadd.f32 %v3359, %v3384
        %3386 = vdwg.mxu0
        %v3387 = vpack.c.bf16 %v3385, %v3383
        %v3389 = vsel %vm2545, %v3271, 0
        %v3392 = vsel %vm2545, %v3350, 0
        %3394 = vmatpush.bf16.xpose.msra.mxu0 0
        %3395 = vmatpush.bf16.xpose.msra.mxu0 0
        %3396 = vmatpush.bf16.xpose.msra.mxu0 0
        %3397 = vmatpush.bf16.xpose.msra.mxu0 0
        %3398 = vmatpush.bf16.xpose.msra.mxu0 0
        %3399 = vmatpush.bf16.xpose.msra.mxu0 0
        %3400 = vmatpush.bf16.xpose.msra.mxu0 0
        %3401 = vmatpush.bf16.xpose.msra.mxu0 %v3392
        %3402 = vmatmul.bf16.gmra.mxu0 %v3389
        %v3403 = vpop.f32.mrf.mxu0
        %v3404 = vadd.f32 %v2543, %v3403
        %v3405 = vpop.f32.mrf.mxu0
        %v3406 = vadd.f32 %v2543, %v3405
        %3407 = vdwg.mxu0
        %v3408 = vsel %vm1790, %v3404, -inf
        %3409 = vmax.xlane.f32.xlu0 %v3408
        %v3410 = vpop.xlane.xlu0 %3409
        %v3411 = vsel %vm1790, %v3406, -inf
        %3412 = vmax.xlane.f32.xlu0 %v3411
        %v3413 = vpop.xlane.xlu0 %3412
        %v3414 = vsub.f32 %v3404, %v3410
        %v3415 = vsub.f32 %v3406, %v3413
        %v3416 = vmul.f32 %v3414, 1.442695
        %v3417 = vpow.pop %v3416
        %v3418 = vmul.f32 %v3415, 1.442695
        %v3419 = vpow.pop %v3418
        %v3420 = vsel %vm1790, %v3417, 0.0
        %3421 = vadd.xlane.f32.xlu0 %v3420
        %v3422 = vpop.xlane.xlu0 %3421
        %v3423 = vsel %vm1790, %v3419, 0.0
        %3424 = vadd.xlane.f32.xlu0 %v3423
        %v3425 = vpop.xlane.xlu0 %3424
        %v3426 = vmax.f32 %v3422, 1e-30
        %v3427 = vmax.f32 %v3425, 1e-30
        %v3428 = vrcp.pop %v3426
        %v3429 = vrcp.pop %v3427
        %v3430 = vmul.f32 %v3417, %v3428
        %v3431 = vmul.f32 %v3419, %v3429
        %v3432 = vpack.c.bf16 %v3431, %v3430
        %v3434 = vsel %vm1790, %v3432, 0
        %3436 = vmatpush.bf16.msra.mxu0 0
        %3437 = vmatpush.bf16.msra.mxu0 0
        %3438 = vmatpush.bf16.msra.mxu0 0
        %3439 = vmatpush.bf16.msra.mxu0 0
        %3440 = vmatpush.bf16.msra.mxu0 0
        %3441 = vmatpush.bf16.msra.mxu0 0
        %3442 = vmatpush.bf16.msra.mxu0 0
        %3443 = vmatpush.bf16.msra.mxu0 %v3387
        %3444 = vmatmul.bf16.gmra.mxu0 %v3434
        %v3445 = vpop.f32.mrf.mxu0
        %v3446 = vadd.f32 0.0, %v3445
        %v3447 = vpop.f32.mrf.mxu0
        %v3448 = vadd.f32 0.0, %v3447
        %3449 = vdwg.mxu0
        %v3450 = vpack.c.bf16 %v3448, %v3446
        %s3451 = scalar_lea.vmem %s73, 12
        %v3452 = vld [vmem:[%s3451] sm:$0xf]
        %v3454 = vsel %vm2545, %v3450, 0
        %v3457 = vsel %vm2873, %v3452, 0
        %3459 = vmatpush.bf16.msra.mxu0 0
        %3460 = vmatpush.bf16.msra.mxu0 0
        %3461 = vmatpush.bf16.msra.mxu0 0
        %3462 = vmatpush.bf16.msra.mxu0 0
        %3463 = vmatpush.bf16.msra.mxu0 0
        %3464 = vmatpush.bf16.msra.mxu0 0
        %3465 = vmatpush.bf16.msra.mxu0 0
        %3466 = vmatpush.bf16.msra.mxu0 %v3457
        %3467 = vmatmul.bf16.gmra.mxu0 %v3454
        %v3468 = vpop.f32.mrf.mxu0
        %v3469 = vadd.f32 0.0, %v3468
        %v3470 = vpop.f32.mrf.mxu0
        %v3471 = vadd.f32 0.0, %v3470
        %3472 = vdwg.mxu0
        %v3473 = vadd.f32 %v3191, %v3469
        %v3474 = vadd.f32 %v3192, %v3471
        %v3475 = vadd.f32 %v2289, %v3473
        %v3476 = vadd.f32 %v2291, %v3474
        %v3477 = vld [vmem:[%s75] sm:$0x1]
        %v3479 = vperm.slane %v3477, 0
        %v3481 = vadd.f32 %v3475, %v3479
        %v3482 = vadd.f32 %v3476, %v3479
        %v3483 = vld [vmem:[%s77] sm:$0x1]
        %v3484 = vld [vmem:[%s79] sm:$0x1]
        %v3485 = vsel %vm1828, %v3481, 0.0
        %3486 = vadd.xlane.f32.xlu0 %v3485
        %v3487 = vpop.xlane.xlu0 %3486
        %v3488 = vsel %vm1828, %v3482, 0.0
        %3489 = vadd.xlane.f32.xlu0 %v3488
        %v3490 = vpop.xlane.xlu0 %3489
        %v3491 = vmul.f32 %v3487, %v1841
        %v3492 = vmul.f32 %v3490, %v1841
        %v3493 = vsub.f32 %v3481, %v3491
        %v3494 = vsub.f32 %v3482, %v3492
        %v3495 = vmul.f32 %v3493, %v3493
        %v3496 = vmul.f32 %v3494, %v3494
        %v3497 = vsel %vm1828, %v3495, 0.0
        %3498 = vadd.xlane.f32.xlu0 %v3497
        %v3499 = vpop.xlane.xlu0 %3498
        %v3500 = vsel %vm1828, %v3496, 0.0
        %3501 = vadd.xlane.f32.xlu0 %v3500
        %v3502 = vpop.xlane.xlu0 %3501
        %v3503 = vmul.f32 %v3499, %v1841
        %v3504 = vmul.f32 %v3502, %v1841
        %v3505 = vadd.f32 %v3503, 1e-05
        %v3506 = vadd.f32 %v3504, 1e-05
        %v3507 = vrsqrt.pop %v3505
        %v3508 = vmul.f32 %v3507, %v3505
        %v3509 = vmul.f32 %v3508, %v3507
        %v3510 = vmul.f32 0.5, %v3509
        %v3511 = vsub.f32 1.5, %v3510
        %v3512 = vmul.f32 %v3507, %v3511
        %vm3513 = vweird.f32 %v3505
        %vm3514 = vweird.f32 %v3507
        %vm3515 = vmor %vm3513, %vm3514
        %v3516 = vsel %vm3515, %v3507, %v3512
        %v3517 = vrsqrt.pop %v3506
        %v3518 = vmul.f32 %v3517, %v3506
        %v3519 = vmul.f32 %v3518, %v3517
        %v3520 = vmul.f32 0.5, %v3519
        %v3521 = vsub.f32 1.5, %v3520
        %v3522 = vmul.f32 %v3517, %v3521
        %vm3523 = vweird.f32 %v3506
        %vm3524 = vweird.f32 %v3517
        %vm3525 = vmor %vm3523, %vm3524
        %v3526 = vsel %vm3525, %v3517, %v3522
        %v3527 = vmul.f32 %v3493, %v3516
        %v3528 = vmul.f32 %v3494, %v3526
        %v3530 = vperm.slane %v3483, 0
        %v3532 = vmul.f32 %v3527, %v3530
        %v3533 = vmul.f32 %v3528, %v3530
        %v3535 = vperm.slane %v3484, 0
        %v3537 = vadd.f32 %v3532, %v3535
        %v3538 = vadd.f32 %v3533, %v3535
        %v3539 = vpack.c.bf16 %v3538, %v3537
        %v3540 = vld [vmem:[%s81] sm:$0xf]
        %v3541 = vld [vmem:[%s81 + $0x4] sm:$0xf]
        %v3542 = vld [vmem:[%s81 + $0x8] sm:$0xf]
        %v3543 = vld [vmem:[%s81 + $0xc] sm:$0xf]
        %v3544 = vld [vmem:[%s83] sm:$0x1]
        %v3546 = vperm.slane %v3544, 0
        %v3552 = vunpack.c.l.b16 %v3540
        %v3553 = vunpack.c.l.b16 %v3541
        %v3554 = vunpack.c.l.b16 %v3542
        %v3555 = vunpack.c.l.b16 %v3543
        %v3556 = vpack.c.b16 %v3553, %v3552
        %v3557 = vpack.c.b16 %v3555, %v3554
        %v3561 = vsel %vm1828, %v3539, 0
        %3563 = vmatpush.bf16.msra.mxu0 0
        %3564 = vmatpush.bf16.msra.mxu0 0
        %3565 = vmatpush.bf16.msra.mxu0 0
        %3566 = vmatpush.bf16.msra.mxu0 0
        %3567 = vmatpush.bf16.msra.mxu0 0
        %3568 = vmatpush.bf16.msra.mxu0 0
        %3569 = vmatpush.bf16.msra.mxu0 %v3557
        %3570 = vmatpush.bf16.msra.mxu0 %v3556
        %3571 = vmatmul.bf16.gmra.mxu0 %v3561
        %v3572 = vpop.f32.mrf.mxu0
        %v3573 = vadd.f32 %v3546, %v3572
        %v3574 = vpop.f32.mrf.mxu0
        %v3575 = vadd.f32 %v3546, %v3574
        %3576 = vdwg.mxu0
        %v3577 = vmul.f32 %v3573, 0.5
        %v3578 = vmul.f32 %v3575, 0.5
        %v3579 = vmul.f32 %v3573, 0.044715
        %v3580 = vmul.f32 %v3575, 0.044715
        %v3581 = vmul.f32 %v3579, %v3573
        %v3582 = vmul.f32 %v3580, %v3575
        %v3583 = vmul.f32 %v3581, %v3573
        %v3584 = vmul.f32 %v3582, %v3575
        %v3585 = vadd.f32 %v3573, %v3583
        %v3586 = vadd.f32 %v3575, %v3584
        %v3587 = vmul.f32 %v3585, 0.7978846
        %v3588 = vmul.f32 %v3586, 0.7978846
        %v3589 = vtanh.pop %v3587
        %v3590 = vtanh.pop %v3588
        %v3591 = vadd.f32 %v3589, 1.0
        %v3592 = vadd.f32 %v3590, 1.0
        %v3593 = vmul.f32 %v3577, %v3591
        %v3594 = vmul.f32 %v3578, %v3592
        %v3595 = vpack.c.bf16 %v3594, %v3593
        %v3596 = vld [vmem:[%s85] sm:$0xf]
        %v3597 = vld [vmem:[%s85 + $0x4] sm:$0xf]
        %v3598 = vld [vmem:[%s85 + $0x8] sm:$0xf]
        %v3599 = vld [vmem:[%s85 + $0xc] sm:$0xf]
        %v3600 = vld [vmem:[%s85 + $0x10] sm:$0xf]
        %v3601 = vld [vmem:[%s85 + $0x14] sm:$0xf]
        %v3602 = vld [vmem:[%s85 + $0x18] sm:$0xf]
        %v3603 = vld [vmem:[%s85 + $0x1c] sm:$0xf]
        %v3612 = vunpack.c.l.b16 %v3596
        %v3613 = vunpack.c.l.b16 %v3597
        %v3614 = vunpack.c.l.b16 %v3598
        %v3615 = vunpack.c.l.b16 %v3599
        %v3616 = vunpack.c.l.b16 %v3600
        %v3617 = vunpack.c.l.b16 %v3601
        %v3618 = vunpack.c.l.b16 %v3602
        %v3619 = vunpack.c.l.b16 %v3603
        %v3620 = vpack.c.b16 %v3613, %v3612
        %v3621 = vpack.c.b16 %v3615, %v3614
        %v3622 = vpack.c.b16 %v3617, %v3616
        %v3623 = vpack.c.b16 %v3619, %v3618
        %vm3628 = vcmask 523264
        %v3630 = vsel %vm3628, %v3595, 0
        %3632 = vmatpush.bf16.msra.mxu0 0
        %3633 = vmatpush.bf16.msra.mxu0 0
        %3634 = vmatpush.bf16.msra.mxu0 0
        %3635 = vmatpush.bf16.msra.mxu0 0
        %3636 = vmatpush.bf16.msra.mxu0 %v3623
        %3637 = vmatpush.bf16.msra.mxu0 %v3622
        %3638 = vmatpush.bf16.msra.mxu0 %v3621
        %3639 = vmatpush.bf16.msra.mxu0 %v3620
        %3640 = vmatmul.bf16.gmra.mxu0 %v3630
        %v3641 = vpop.f32.mrf.mxu0
        %v3642 = vadd.f32 0.0, %v3641
        %v3643 = vpop.f32.mrf.mxu0
        %v3644 = vadd.f32 0.0, %v3643
        %3645 = vdwg.mxu0
        %v3646 = vadd.f32 %v3481, %v3642
        %v3647 = vadd.f32 %v3482, %v3644
        %v3648 = vld [vmem:[%s87] sm:$0x1]
        %v3650 = vperm.slane %v3648, 0
        %v3652 = vadd.f32 %v3646, %v3650
        %v3653 = vadd.f32 %v3647, %v3650
        %s3654 = scalar_lea.vmem %s49, 1
        %v3655 = vld [vmem:[%s3654] sm:$0x1]
        %s3656 = scalar_lea.vmem %s51, 1
        %v3657 = vld [vmem:[%s3656] sm:$0x1]
        %v3658 = vsel %vm1828, %v3652, 0.0
        %3659 = vadd.xlane.f32.xlu0 %v3658
        %v3660 = vpop.xlane.xlu0 %3659
        %v3661 = vsel %vm1828, %v3653, 0.0
        %3662 = vadd.xlane.f32.xlu0 %v3661
        %v3663 = vpop.xlane.xlu0 %3662
        %v3664 = vmul.f32 %v3660, %v1841
        %v3665 = vmul.f32 %v3663, %v1841
        %v3666 = vsub.f32 %v3652, %v3664
        %v3667 = vsub.f32 %v3653, %v3665
        %v3668 = vmul.f32 %v3666, %v3666
        %v3669 = vmul.f32 %v3667, %v3667
        %v3670 = vsel %vm1828, %v3668, 0.0
        %3671 = vadd.xlane.f32.xlu0 %v3670
        %v3672 = vpop.xlane.xlu0 %3671
        %v3673 = vsel %vm1828, %v3669, 0.0
        %3674 = vadd.xlane.f32.xlu0 %v3673
        %v3675 = vpop.xlane.xlu0 %3674
        %v3676 = vmul.f32 %v3672, %v1841
        %v3677 = vmul.f32 %v3675, %v1841
        %v3678 = vadd.f32 %v3676, 1e-05
        %v3679 = vadd.f32 %v3677, 1e-05
        %v3680 = vrsqrt.pop %v3678
        %v3681 = vmul.f32 %v3680, %v3678
        %v3682 = vmul.f32 %v3681, %v3680
        %v3683 = vmul.f32 0.5, %v3682
        %v3684 = vsub.f32 1.5, %v3683
        %v3685 = vmul.f32 %v3680, %v3684
        %vm3686 = vweird.f32 %v3678
        %vm3687 = vweird.f32 %v3680
        %vm3688 = vmor %vm3686, %vm3687
        %v3689 = vsel %vm3688, %v3680, %v3685
        %v3690 = vrsqrt.pop %v3679
        %v3691 = vmul.f32 %v3690, %v3679
        %v3692 = vmul.f32 %v3691, %v3690
        %v3693 = vmul.f32 0.5, %v3692
        %v3694 = vsub.f32 1.5, %v3693
        %v3695 = vmul.f32 %v3690, %v3694
        %vm3696 = vweird.f32 %v3679
        %vm3697 = vweird.f32 %v3690
        %vm3698 = vmor %vm3696, %vm3697
        %v3699 = vsel %vm3698, %v3690, %v3695
        %v3700 = vmul.f32 %v3666, %v3689
        %v3701 = vmul.f32 %v3667, %v3699
        %v3703 = vperm.slane %v3655, 0
        %v3705 = vmul.f32 %v3700, %v3703
        %v3706 = vmul.f32 %v3701, %v3703
        %v3708 = vperm.slane %v3657, 0
        %v3710 = vadd.f32 %v3705, %v3708
        %v3711 = vadd.f32 %v3706, %v3708
        %v3712 = vpack.c.bf16 %v3711, %v3710
        %s3713 = scalar_lea.vmem %s53, 64
        %v3714 = vld [vmem:[%s3713] sm:$0xf]
        %v3715 = vld [vmem:[%s3713 + $0x4] sm:$0xf]
        %v3716 = vld [vmem:[%s3713 + $0x8] sm:$0xf]
        %v3717 = vld [vmem:[%s3713 + $0xc] sm:$0xf]
        %s3718 = scalar_lea.vmem %s55, 4
        %v3719 = vld [vmem:[%s3718] sm:$0x1]
        %v3721 = vperm.slane %v3719, 0
        %v3727 = vunpack.c.l.b16 %v3714
        %v3728 = vunpack.c.l.b16 %v3715
        %v3729 = vunpack.c.l.b16 %v3716
        %v3730 = vunpack.c.l.b16 %v3717
        %v3731 = vpack.c.b16 %v3728, %v3727
        %v3732 = vpack.c.b16 %v3730, %v3729
        %v3736 = vsel %vm1828, %v3712, 0
        %3738 = vmatpush.bf16.msra.mxu0 0
        %3739 = vmatpush.bf16.msra.mxu0 0
        %3740 = vmatpush.bf16.msra.mxu0 0
        %3741 = vmatpush.bf16.msra.mxu0 0
        %3742 = vmatpush.bf16.msra.mxu0 0
        %3743 = vmatpush.bf16.msra.mxu0 0
        %3744 = vmatpush.bf16.msra.mxu0 %v3732
        %3745 = vmatpush.bf16.msra.mxu0 %v3731
        %3746 = vmatmul.bf16.gmra.mxu0 %v3736
        %v3747 = vpop.f32.mrf.mxu0
        %v3748 = vadd.f32 %v3721, %v3747
        %v3749 = vpop.f32.mrf.mxu0
        %v3750 = vadd.f32 %v3721, %v3749
        %3751 = vdwg.mxu0
        %s3752 = scalar_lea.vmem %s57, 64
        %v3753 = vld [vmem:[%s3752] sm:$0xf]
        %v3754 = vld [vmem:[%s3752 + $0x4] sm:$0xf]
        %v3755 = vld [vmem:[%s3752 + $0x8] sm:$0xf]
        %v3756 = vld [vmem:[%s3752 + $0xc] sm:$0xf]
        %s3757 = scalar_lea.vmem %s59, 4
        %v3758 = vld [vmem:[%s3757] sm:$0x1]
        %v3760 = vperm.slane %v3758, 0
        %v3766 = vunpack.c.l.b16 %v3753
        %v3767 = vunpack.c.l.b16 %v3754
        %v3768 = vunpack.c.l.b16 %v3755
        %v3769 = vunpack.c.l.b16 %v3756
        %v3770 = vpack.c.b16 %v3767, %v3766
        %v3771 = vpack.c.b16 %v3769, %v3768
        %3774 = vmatpush.bf16.msra.mxu0 0
        %3775 = vmatpush.bf16.msra.mxu0 0
        %3776 = vmatpush.bf16.msra.mxu0 0
        %3777 = vmatpush.bf16.msra.mxu0 0
        %3778 = vmatpush.bf16.msra.mxu0 0
        %3779 = vmatpush.bf16.msra.mxu0 0
        %3780 = vmatpush.bf16.msra.mxu0 %v3771
        %3781 = vmatpush.bf16.msra.mxu0 %v3770
        %3782 = vmatmul.bf16.gmra.mxu0 %v3736
        %v3783 = vpop.f32.mrf.mxu0
        %v3784 = vadd.f32 %v3760, %v3783
        %v3785 = vpop.f32.mrf.mxu0
        %v3786 = vadd.f32 %v3760, %v3785
        %3787 = vdwg.mxu0
        %v3788 = vmul.f32 %v3748, %v2293
        %v3789 = vmul.f32 %v3750, %v2294
        %v3790 = vmul.f32 %v3784, %v2295
        %v3791 = vmul.f32 %v3786, %v2296
        %v3792 = vadd.f32 %v3788, %v3790
        %v3793 = vadd.f32 %v3789, %v3791
        %v3794 = vpack.c.bf16 %v3793, %v3792
        %s3795 = scalar_lea.vmem %s61, 64
        %v3796 = vld [vmem:[%s3795] sm:$0xf]
        %v3797 = vld [vmem:[%s3795 + $0x4] sm:$0xf]
        %v3798 = vld [vmem:[%s3795 + $0x8] sm:$0xf]
        %v3799 = vld [vmem:[%s3795 + $0xc] sm:$0xf]
        %s3800 = scalar_lea.vmem %s63, 4
        %v3801 = vld [vmem:[%s3800] sm:$0x1]
        %v3803 = vperm.slane %v3801, 0
        %v3809 = vunpack.c.l.b16 %v3796
        %v3810 = vunpack.c.l.b16 %v3797
        %v3811 = vunpack.c.l.b16 %v3798
        %v3812 = vunpack.c.l.b16 %v3799
        %v3813 = vpack.c.b16 %v3810, %v3809
        %v3814 = vpack.c.b16 %v3812, %v3811
        %3817 = vmatpush.bf16.msra.mxu0 0
        %3818 = vmatpush.bf16.msra.mxu0 0
        %3819 = vmatpush.bf16.msra.mxu0 0
        %3820 = vmatpush.bf16.msra.mxu0 0
        %3821 = vmatpush.bf16.msra.mxu0 0
        %3822 = vmatpush.bf16.msra.mxu0 0
        %3823 = vmatpush.bf16.msra.mxu0 %v3814
        %3824 = vmatpush.bf16.msra.mxu0 %v3813
        %3825 = vmatmul.bf16.gmra.mxu0 %v3736
        %v3826 = vpop.f32.mrf.mxu0
        %v3827 = vadd.f32 %v3803, %v3826
        %v3828 = vpop.f32.mrf.mxu0
        %v3829 = vadd.f32 %v3803, %v3828
        %3830 = vdwg.mxu0
        %s3831 = scalar_lea.vmem %s65, 64
        %v3832 = vld [vmem:[%s3831] sm:$0xf]
        %v3833 = vld [vmem:[%s3831 + $0x4] sm:$0xf]
        %v3834 = vld [vmem:[%s3831 + $0x8] sm:$0xf]
        %v3835 = vld [vmem:[%s3831 + $0xc] sm:$0xf]
        %s3836 = scalar_lea.vmem %s67, 4
        %v3837 = vld [vmem:[%s3836] sm:$0x1]
        %v3839 = vperm.slane %v3837, 0
        %v3845 = vunpack.c.l.b16 %v3832
        %v3846 = vunpack.c.l.b16 %v3833
        %v3847 = vunpack.c.l.b16 %v3834
        %v3848 = vunpack.c.l.b16 %v3835
        %v3849 = vpack.c.b16 %v3846, %v3845
        %v3850 = vpack.c.b16 %v3848, %v3847
        %3853 = vmatpush.bf16.msra.mxu0 0
        %3854 = vmatpush.bf16.msra.mxu0 0
        %3855 = vmatpush.bf16.msra.mxu0 0
        %3856 = vmatpush.bf16.msra.mxu0 0
        %3857 = vmatpush.bf16.msra.mxu0 0
        %3858 = vmatpush.bf16.msra.mxu0 0
        %3859 = vmatpush.bf16.msra.mxu0 %v3850
        %3860 = vmatpush.bf16.msra.mxu0 %v3849
        %3861 = vmatmul.bf16.gmra.mxu0 %v3736
        %v3862 = vpop.f32.mrf.mxu0
        %v3863 = vadd.f32 %v3839, %v3862
        %v3864 = vpop.f32.mrf.mxu0
        %v3865 = vadd.f32 %v3839, %v3864
        %3866 = vdwg.mxu0
        %v3867 = vmul.f32 %v3827, %v2293
        %v3868 = vmul.f32 %v3829, %v2294
        %v3869 = vmul.f32 %v3863, %v2295
        %v3870 = vmul.f32 %v3865, %v2296
        %v3871 = vadd.f32 %v3867, %v3869
        %v3872 = vadd.f32 %v3868, %v3870
        %v3873 = vpack.c.bf16 %v3872, %v3871
        %s3874 = scalar_lea.vmem %s69, 64
        %v3875 = vld [vmem:[%s3874] sm:$0xf]
        %v3876 = vld [vmem:[%s3874 + $0x4] sm:$0xf]
        %v3877 = vld [vmem:[%s3874 + $0x8] sm:$0xf]
        %v3878 = vld [vmem:[%s3874 + $0xc] sm:$0xf]
        %s3879 = scalar_lea.vmem %s71, 4
        %v3880 = vld [vmem:[%s3879] sm:$0x1]
        %v3882 = vperm.slane %v3880, 0
        %v3888 = vunpack.c.l.b16 %v3875
        %v3889 = vunpack.c.l.b16 %v3876
        %v3890 = vunpack.c.l.b16 %v3877
        %v3891 = vunpack.c.l.b16 %v3878
        %v3892 = vpack.c.b16 %v3889, %v3888
        %v3893 = vpack.c.b16 %v3891, %v3890
        %3896 = vmatpush.bf16.msra.mxu0 0
        %3897 = vmatpush.bf16.msra.mxu0 0
        %3898 = vmatpush.bf16.msra.mxu0 0
        %3899 = vmatpush.bf16.msra.mxu0 0
        %3900 = vmatpush.bf16.msra.mxu0 0
        %3901 = vmatpush.bf16.msra.mxu0 0
        %3902 = vmatpush.bf16.msra.mxu0 %v3893
        %3903 = vmatpush.bf16.msra.mxu0 %v3892
        %3904 = vmatmul.bf16.gmra.mxu0 %v3736
        %v3905 = vpop.f32.mrf.mxu0
        %v3906 = vadd.f32 %v3882, %v3905
        %v3907 = vpop.f32.mrf.mxu0
        %v3908 = vadd.f32 %v3882, %v3907
        %3909 = vdwg.mxu0
        %v3910 = vpack.c.bf16 %v3908, %v3906
        %v3912 = vsel %vm2545, %v3794, 0
        %v3915 = vsel %vm2545, %v3873, 0
        %3917 = vmatpush.bf16.xpose.msra.mxu0 0
        %3918 = vmatpush.bf16.xpose.msra.mxu0 0
        %3919 = vmatpush.bf16.xpose.msra.mxu0 0
        %3920 = vmatpush.bf16.xpose.msra.mxu0 0
        %3921 = vmatpush.bf16.xpose.msra.mxu0 0
        %3922 = vmatpush.bf16.xpose.msra.mxu0 0
        %3923 = vmatpush.bf16.xpose.msra.mxu0 0
        %3924 = vmatpush.bf16.xpose.msra.mxu0 %v3915
        %3925 = vmatmul.bf16.gmra.mxu0 %v3912
        %v3926 = vpop.f32.mrf.mxu0
        %v3927 = vadd.f32 %v2543, %v3926
        %v3928 = vpop.f32.mrf.mxu0
        %v3929 = vadd.f32 %v2543, %v3928
        %3930 = vdwg.mxu0
        %v3931 = vsel %vm1790, %v3927, -inf
        %3932 = vmax.xlane.f32.xlu0 %v3931
        %v3933 = vpop.xlane.xlu0 %3932
        %v3934 = vsel %vm1790, %v3929, -inf
        %3935 = vmax.xlane.f32.xlu0 %v3934
        %v3936 = vpop.xlane.xlu0 %3935
        %v3937 = vsub.f32 %v3927, %v3933
        %v3938 = vsub.f32 %v3929, %v3936
        %v3939 = vmul.f32 %v3937, 1.442695
        %v3940 = vpow.pop %v3939
        %v3941 = vmul.f32 %v3938, 1.442695
        %v3942 = vpow.pop %v3941
        %v3943 = vsel %vm1790, %v3940, 0.0
        %3944 = vadd.xlane.f32.xlu0 %v3943
        %v3945 = vpop.xlane.xlu0 %3944
        %v3946 = vsel %vm1790, %v3942, 0.0
        %3947 = vadd.xlane.f32.xlu0 %v3946
        %v3948 = vpop.xlane.xlu0 %3947
        %v3949 = vmax.f32 %v3945, 1e-30
        %v3950 = vmax.f32 %v3948, 1e-30
        %v3951 = vrcp.pop %v3949
        %v3952 = vrcp.pop %v3950
        %v3953 = vmul.f32 %v3940, %v3951
        %v3954 = vmul.f32 %v3942, %v3952
        %v3955 = vpack.c.bf16 %v3954, %v3953
        %v3957 = vsel %vm1790, %v3955, 0
        %3959 = vmatpush.bf16.msra.mxu0 0
        %3960 = vmatpush.bf16.msra.mxu0 0
        %3961 = vmatpush.bf16.msra.mxu0 0
        %3962 = vmatpush.bf16.msra.mxu0 0
        %3963 = vmatpush.bf16.msra.mxu0 0
        %3964 = vmatpush.bf16.msra.mxu0 0
        %3965 = vmatpush.bf16.msra.mxu0 0
        %3966 = vmatpush.bf16.msra.mxu0 %v3910
        %3967 = vmatmul.bf16.gmra.mxu0 %v3957
        %v3968 = vpop.f32.mrf.mxu0
        %v3969 = vadd.f32 0.0, %v3968
        %v3970 = vpop.f32.mrf.mxu0
        %v3971 = vadd.f32 0.0, %v3970
        %3972 = vdwg.mxu0
        %v3973 = vpack.c.bf16 %v3971, %v3969
        %s3974 = scalar_lea.vmem %s73, 16
        %v3975 = vld [vmem:[%s3974] sm:$0xf]
        %s3976 = scalar_lea.vmem %s53, 80
        %v3977 = vld [vmem:[%s3976] sm:$0xf]
        %v3978 = vld [vmem:[%s3976 + $0x4] sm:$0xf]
        %v3979 = vld [vmem:[%s3976 + $0x8] sm:$0xf]
        %v3980 = vld [vmem:[%s3976 + $0xc] sm:$0xf]
        %s3981 = scalar_lea.vmem %s55, 5
        %v3982 = vld [vmem:[%s3981] sm:$0x1]
        %v3984 = vperm.slane %v3982, 0
        %v3990 = vunpack.c.l.b16 %v3977
        %v3991 = vunpack.c.l.b16 %v3978
        %v3992 = vunpack.c.l.b16 %v3979
        %v3993 = vunpack.c.l.b16 %v3980
        %v3994 = vpack.c.b16 %v3991, %v3990
        %v3995 = vpack.c.b16 %v3993, %v3992
        %3998 = vmatpush.bf16.msra.mxu0 0
        %3999 = vmatpush.bf16.msra.mxu0 0
        %4000 = vmatpush.bf16.msra.mxu0 0
        %4001 = vmatpush.bf16.msra.mxu0 0
        %4002 = vmatpush.bf16.msra.mxu0 0
        %4003 = vmatpush.bf16.msra.mxu0 0
        %4004 = vmatpush.bf16.msra.mxu0 %v3995
        %4005 = vmatpush.bf16.msra.mxu0 %v3994
        %4006 = vmatmul.bf16.gmra.mxu0 %v3736
        %v4007 = vpop.f32.mrf.mxu0
        %v4008 = vadd.f32 %v3984, %v4007
        %v4009 = vpop.f32.mrf.mxu0
        %v4010 = vadd.f32 %v3984, %v4009
        %4011 = vdwg.mxu0
        %s4012 = scalar_lea.vmem %s57, 80
        %v4013 = vld [vmem:[%s4012] sm:$0xf]
        %v4014 = vld [vmem:[%s4012 + $0x4] sm:$0xf]
        %v4015 = vld [vmem:[%s4012 + $0x8] sm:$0xf]
        %v4016 = vld [vmem:[%s4012 + $0xc] sm:$0xf]
        %s4017 = scalar_lea.vmem %s59, 5
        %v4018 = vld [vmem:[%s4017] sm:$0x1]
        %v4020 = vperm.slane %v4018, 0
        %v4026 = vunpack.c.l.b16 %v4013
        %v4027 = vunpack.c.l.b16 %v4014
        %v4028 = vunpack.c.l.b16 %v4015
        %v4029 = vunpack.c.l.b16 %v4016
        %v4030 = vpack.c.b16 %v4027, %v4026
        %v4031 = vpack.c.b16 %v4029, %v4028
        %4034 = vmatpush.bf16.msra.mxu0 0
        %4035 = vmatpush.bf16.msra.mxu0 0
        %4036 = vmatpush.bf16.msra.mxu0 0
        %4037 = vmatpush.bf16.msra.mxu0 0
        %4038 = vmatpush.bf16.msra.mxu0 0
        %4039 = vmatpush.bf16.msra.mxu0 0
        %4040 = vmatpush.bf16.msra.mxu0 %v4031
        %4041 = vmatpush.bf16.msra.mxu0 %v4030
        %4042 = vmatmul.bf16.gmra.mxu0 %v3736
        %v4043 = vpop.f32.mrf.mxu0
        %v4044 = vadd.f32 %v4020, %v4043
        %v4045 = vpop.f32.mrf.mxu0
        %v4046 = vadd.f32 %v4020, %v4045
        %4047 = vdwg.mxu0
        %v4048 = vmul.f32 %v4008, %v2293
        %v4049 = vmul.f32 %v4010, %v2294
        %v4050 = vmul.f32 %v4044, %v2295
        %v4051 = vmul.f32 %v4046, %v2296
        %v4052 = vadd.f32 %v4048, %v4050
        %v4053 = vadd.f32 %v4049, %v4051
        %v4054 = vpack.c.bf16 %v4053, %v4052
        %s4055 = scalar_lea.vmem %s61, 80
        %v4056 = vld [vmem:[%s4055] sm:$0xf]
        %v4057 = vld [vmem:[%s4055 + $0x4] sm:$0xf]
        %v4058 = vld [vmem:[%s4055 + $0x8] sm:$0xf]
        %v4059 = vld [vmem:[%s4055 + $0xc] sm:$0xf]
        %s4060 = scalar_lea.vmem %s63, 5
        %v4061 = vld [vmem:[%s4060] sm:$0x1]
        %v4063 = vperm.slane %v4061, 0
        %v4069 = vunpack.c.l.b16 %v4056
        %v4070 = vunpack.c.l.b16 %v4057
        %v4071 = vunpack.c.l.b16 %v4058
        %v4072 = vunpack.c.l.b16 %v4059
        %v4073 = vpack.c.b16 %v4070, %v4069
        %v4074 = vpack.c.b16 %v4072, %v4071
        %4077 = vmatpush.bf16.msra.mxu0 0
        %4078 = vmatpush.bf16.msra.mxu0 0
        %4079 = vmatpush.bf16.msra.mxu0 0
        %4080 = vmatpush.bf16.msra.mxu0 0
        %4081 = vmatpush.bf16.msra.mxu0 0
        %4082 = vmatpush.bf16.msra.mxu0 0
        %4083 = vmatpush.bf16.msra.mxu0 %v4074
        %4084 = vmatpush.bf16.msra.mxu0 %v4073
        %4085 = vmatmul.bf16.gmra.mxu0 %v3736
        %v4086 = vpop.f32.mrf.mxu0
        %v4087 = vadd.f32 %v4063, %v4086
        %v4088 = vpop.f32.mrf.mxu0
        %v4089 = vadd.f32 %v4063, %v4088
        %4090 = vdwg.mxu0
        %s4091 = scalar_lea.vmem %s65, 80
        %v4092 = vld [vmem:[%s4091] sm:$0xf]
        %v4093 = vld [vmem:[%s4091 + $0x4] sm:$0xf]
        %v4094 = vld [vmem:[%s4091 + $0x8] sm:$0xf]
        %v4095 = vld [vmem:[%s4091 + $0xc] sm:$0xf]
        %s4096 = scalar_lea.vmem %s67, 5
        %v4097 = vld [vmem:[%s4096] sm:$0x1]
        %v4099 = vperm.slane %v4097, 0
        %v4105 = vunpack.c.l.b16 %v4092
        %v4106 = vunpack.c.l.b16 %v4093
        %v4107 = vunpack.c.l.b16 %v4094
        %v4108 = vunpack.c.l.b16 %v4095
        %v4109 = vpack.c.b16 %v4106, %v4105
        %v4110 = vpack.c.b16 %v4108, %v4107
        %4113 = vmatpush.bf16.msra.mxu0 0
        %4114 = vmatpush.bf16.msra.mxu0 0
        %4115 = vmatpush.bf16.msra.mxu0 0
        %4116 = vmatpush.bf16.msra.mxu0 0
        %4117 = vmatpush.bf16.msra.mxu0 0
        %4118 = vmatpush.bf16.msra.mxu0 0
        %4119 = vmatpush.bf16.msra.mxu0 %v4110
        %4120 = vmatpush.bf16.msra.mxu0 %v4109
        %4121 = vmatmul.bf16.gmra.mxu0 %v3736
        %v4122 = vpop.f32.mrf.mxu0
        %v4123 = vadd.f32 %v4099, %v4122
        %v4124 = vpop.f32.mrf.mxu0
        %v4125 = vadd.f32 %v4099, %v4124
        %4126 = vdwg.mxu0
        %v4127 = vmul.f32 %v4087, %v2293
        %v4128 = vmul.f32 %v4089, %v2294
        %v4129 = vmul.f32 %v4123, %v2295
        %v4130 = vmul.f32 %v4125, %v2296
        %v4131 = vadd.f32 %v4127, %v4129
        %v4132 = vadd.f32 %v4128, %v4130
        %v4133 = vpack.c.bf16 %v4132, %v4131
        %s4134 = scalar_lea.vmem %s69, 80
        %v4135 = vld [vmem:[%s4134] sm:$0xf]
        %v4136 = vld [vmem:[%s4134 + $0x4] sm:$0xf]
        %v4137 = vld [vmem:[%s4134 + $0x8] sm:$0xf]
        %v4138 = vld [vmem:[%s4134 + $0xc] sm:$0xf]
        %s4139 = scalar_lea.vmem %s71, 5
        %v4140 = vld [vmem:[%s4139] sm:$0x1]
        %v4142 = vperm.slane %v4140, 0
        %v4148 = vunpack.c.l.b16 %v4135
        %v4149 = vunpack.c.l.b16 %v4136
        %v4150 = vunpack.c.l.b16 %v4137
        %v4151 = vunpack.c.l.b16 %v4138
        %v4152 = vpack.c.b16 %v4149, %v4148
        %v4153 = vpack.c.b16 %v4151, %v4150
        %4156 = vmatpush.bf16.msra.mxu0 0
        %4157 = vmatpush.bf16.msra.mxu0 0
        %4158 = vmatpush.bf16.msra.mxu0 0
        %4159 = vmatpush.bf16.msra.mxu0 0
        %4160 = vmatpush.bf16.msra.mxu0 0
        %4161 = vmatpush.bf16.msra.mxu0 0
        %4162 = vmatpush.bf16.msra.mxu0 %v4153
        %4163 = vmatpush.bf16.msra.mxu0 %v4152
        %4164 = vmatmul.bf16.gmra.mxu0 %v3736
        %v4165 = vpop.f32.mrf.mxu0
        %v4166 = vadd.f32 %v4142, %v4165
        %v4167 = vpop.f32.mrf.mxu0
        %v4168 = vadd.f32 %v4142, %v4167
        %4169 = vdwg.mxu0
        %v4170 = vpack.c.bf16 %v4168, %v4166
        %v4172 = vsel %vm2545, %v4054, 0
        %v4175 = vsel %vm2545, %v4133, 0
        %4177 = vmatpush.bf16.xpose.msra.mxu0 0
        %4178 = vmatpush.bf16.xpose.msra.mxu0 0
        %4179 = vmatpush.bf16.xpose.msra.mxu0 0
        %4180 = vmatpush.bf16.xpose.msra.mxu0 0
        %4181 = vmatpush.bf16.xpose.msra.mxu0 0
        %4182 = vmatpush.bf16.xpose.msra.mxu0 0
        %4183 = vmatpush.bf16.xpose.msra.mxu0 0
        %4184 = vmatpush.bf16.xpose.msra.mxu0 %v4175
        %4185 = vmatmul.bf16.gmra.mxu0 %v4172
        %v4186 = vpop.f32.mrf.mxu0
        %v4187 = vadd.f32 %v2543, %v4186
        %v4188 = vpop.f32.mrf.mxu0
        %v4189 = vadd.f32 %v2543, %v4188
        %4190 = vdwg.mxu0
        %v4191 = vsel %vm1790, %v4187, -inf
        %4192 = vmax.xlane.f32.xlu0 %v4191
        %v4193 = vpop.xlane.xlu0 %4192
        %v4194 = vsel %vm1790, %v4189, -inf
        %4195 = vmax.xlane.f32.xlu0 %v4194
        %v4196 = vpop.xlane.xlu0 %4195
        %v4197 = vsub.f32 %v4187, %v4193
        %v4198 = vsub.f32 %v4189, %v4196
        %v4199 = vmul.f32 %v4197, 1.442695
        %v4200 = vpow.pop %v4199
        %v4201 = vmul.f32 %v4198, 1.442695
        %v4202 = vpow.pop %v4201
        %v4203 = vsel %vm1790, %v4200, 0.0
        %4204 = vadd.xlane.f32.xlu0 %v4203
        %v4205 = vpop.xlane.xlu0 %4204
        %v4206 = vsel %vm1790, %v4202, 0.0
        %4207 = vadd.xlane.f32.xlu0 %v4206
        %v4208 = vpop.xlane.xlu0 %4207
        %v4209 = vmax.f32 %v4205, 1e-30
        %v4210 = vmax.f32 %v4208, 1e-30
        %v4211 = vrcp.pop %v4209
        %v4212 = vrcp.pop %v4210
        %v4213 = vmul.f32 %v4200, %v4211
        %v4214 = vmul.f32 %v4202, %v4212
        %v4215 = vpack.c.bf16 %v4214, %v4213
        %v4217 = vsel %vm1790, %v4215, 0
        %4219 = vmatpush.bf16.msra.mxu0 0
        %4220 = vmatpush.bf16.msra.mxu0 0
        %4221 = vmatpush.bf16.msra.mxu0 0
        %4222 = vmatpush.bf16.msra.mxu0 0
        %4223 = vmatpush.bf16.msra.mxu0 0
        %4224 = vmatpush.bf16.msra.mxu0 0
        %4225 = vmatpush.bf16.msra.mxu0 0
        %4226 = vmatpush.bf16.msra.mxu0 %v4170
        %4227 = vmatmul.bf16.gmra.mxu0 %v4217
        %v4228 = vpop.f32.mrf.mxu0
        %v4229 = vadd.f32 0.0, %v4228
        %v4230 = vpop.f32.mrf.mxu0
        %v4231 = vadd.f32 0.0, %v4230
        %4232 = vdwg.mxu0
        %v4233 = vpack.c.bf16 %v4231, %v4229
        %s4234 = scalar_lea.vmem %s73, 20
        %v4235 = vld [vmem:[%s4234] sm:$0xf]
        %v4237 = vsel %vm2545, %v4233, 0
        %v4240 = vsel %vm2873, %v4235, 0
        %4242 = vmatpush.bf16.msra.mxu0 0
        %4243 = vmatpush.bf16.msra.mxu0 0
        %4244 = vmatpush.bf16.msra.mxu0 0
        %4245 = vmatpush.bf16.msra.mxu0 0
        %4246 = vmatpush.bf16.msra.mxu0 0
        %4247 = vmatpush.bf16.msra.mxu0 0
        %4248 = vmatpush.bf16.msra.mxu0 0
        %4249 = vmatpush.bf16.msra.mxu0 %v4240
        %4250 = vmatmul.bf16.gmra.mxu0 %v4237
        %v4251 = vpop.f32.mrf.mxu0
        %v4252 = vadd.f32 0.0, %v4251
        %v4253 = vpop.f32.mrf.mxu0
        %v4254 = vadd.f32 0.0, %v4253
        %4255 = vdwg.mxu0
        %v4257 = vsel %vm2545, %v3973, 0
        %v4260 = vsel %vm2873, %v3975, 0
        %4262 = vmatpush.bf16.msra.mxu0 0
        %4263 = vmatpush.bf16.msra.mxu0 0
        %4264 = vmatpush.bf16.msra.mxu0 0
        %4265 = vmatpush.bf16.msra.mxu0 0
        %4266 = vmatpush.bf16.msra.mxu0 0
        %4267 = vmatpush.bf16.msra.mxu0 0
        %4268 = vmatpush.bf16.msra.mxu0 0
        %4269 = vmatpush.bf16.msra.mxu0 %v4260
        %4270 = vmatmul.bf16.gmra.mxu0 %v4257
        %v4271 = vpop.f32.mrf.mxu0
        %v4272 = vadd.f32 %v4252, %v4271
        %v4273 = vpop.f32.mrf.mxu0
        %v4274 = vadd.f32 %v4254, %v4273
        %4275 = vdwg.mxu0
        %s4276 = scalar_lea.vmem %s53, 96
        %v4277 = vld [vmem:[%s4276] sm:$0xf]
        %v4278 = vld [vmem:[%s4276 + $0x4] sm:$0xf]
        %v4279 = vld [vmem:[%s4276 + $0x8] sm:$0xf]
        %v4280 = vld [vmem:[%s4276 + $0xc] sm:$0xf]
        %s4281 = scalar_lea.vmem %s55, 6
        %v4282 = vld [vmem:[%s4281] sm:$0x1]
        %v4284 = vperm.slane %v4282, 0
        %v4290 = vunpack.c.l.b16 %v4277
        %v4291 = vunpack.c.l.b16 %v4278
        %v4292 = vunpack.c.l.b16 %v4279
        %v4293 = vunpack.c.l.b16 %v4280
        %v4294 = vpack.c.b16 %v4291, %v4290
        %v4295 = vpack.c.b16 %v4293, %v4292
        %4298 = vmatpush.bf16.msra.mxu0 0
        %4299 = vmatpush.bf16.msra.mxu0 0
        %4300 = vmatpush.bf16.msra.mxu0 0
        %4301 = vmatpush.bf16.msra.mxu0 0
        %4302 = vmatpush.bf16.msra.mxu0 0
        %4303 = vmatpush.bf16.msra.mxu0 0
        %4304 = vmatpush.bf16.msra.mxu0 %v4295
        %4305 = vmatpush.bf16.msra.mxu0 %v4294
        %4306 = vmatmul.bf16.gmra.mxu0 %v3736
        %v4307 = vpop.f32.mrf.mxu0
        %v4308 = vadd.f32 %v4284, %v4307
        %v4309 = vpop.f32.mrf.mxu0
        %v4310 = vadd.f32 %v4284, %v4309
        %4311 = vdwg.mxu0
        %s4312 = scalar_lea.vmem %s57, 96
        %v4313 = vld [vmem:[%s4312] sm:$0xf]
        %v4314 = vld [vmem:[%s4312 + $0x4] sm:$0xf]
        %v4315 = vld [vmem:[%s4312 + $0x8] sm:$0xf]
        %v4316 = vld [vmem:[%s4312 + $0xc] sm:$0xf]
        %s4317 = scalar_lea.vmem %s59, 6
        %v4318 = vld [vmem:[%s4317] sm:$0x1]
        %v4320 = vperm.slane %v4318, 0
        %v4326 = vunpack.c.l.b16 %v4313
        %v4327 = vunpack.c.l.b16 %v4314
        %v4328 = vunpack.c.l.b16 %v4315
        %v4329 = vunpack.c.l.b16 %v4316
        %v4330 = vpack.c.b16 %v4327, %v4326
        %v4331 = vpack.c.b16 %v4329, %v4328
        %4334 = vmatpush.bf16.msra.mxu0 0
        %4335 = vmatpush.bf16.msra.mxu0 0
        %4336 = vmatpush.bf16.msra.mxu0 0
        %4337 = vmatpush.bf16.msra.mxu0 0
        %4338 = vmatpush.bf16.msra.mxu0 0
        %4339 = vmatpush.bf16.msra.mxu0 0
        %4340 = vmatpush.bf16.msra.mxu0 %v4331
        %4341 = vmatpush.bf16.msra.mxu0 %v4330
        %4342 = vmatmul.bf16.gmra.mxu0 %v3736
        %v4343 = vpop.f32.mrf.mxu0
        %v4344 = vadd.f32 %v4320, %v4343
        %v4345 = vpop.f32.mrf.mxu0
        %v4346 = vadd.f32 %v4320, %v4345
        %4347 = vdwg.mxu0
        %v4348 = vmul.f32 %v4308, %v2293
        %v4349 = vmul.f32 %v4310, %v2294
        %v4350 = vmul.f32 %v4344, %v2295
        %v4351 = vmul.f32 %v4346, %v2296
        %v4352 = vadd.f32 %v4348, %v4350
        %v4353 = vadd.f32 %v4349, %v4351
        %v4354 = vpack.c.bf16 %v4353, %v4352
        %s4355 = scalar_lea.vmem %s61, 96
        %v4356 = vld [vmem:[%s4355] sm:$0xf]
        %v4357 = vld [vmem:[%s4355 + $0x4] sm:$0xf]
        %v4358 = vld [vmem:[%s4355 + $0x8] sm:$0xf]
        %v4359 = vld [vmem:[%s4355 + $0xc] sm:$0xf]
        %s4360 = scalar_lea.vmem %s63, 6
        %v4361 = vld [vmem:[%s4360] sm:$0x1]
        %v4363 = vperm.slane %v4361, 0
        %v4369 = vunpack.c.l.b16 %v4356
        %v4370 = vunpack.c.l.b16 %v4357
        %v4371 = vunpack.c.l.b16 %v4358
        %v4372 = vunpack.c.l.b16 %v4359
        %v4373 = vpack.c.b16 %v4370, %v4369
        %v4374 = vpack.c.b16 %v4372, %v4371
        %4377 = vmatpush.bf16.msra.mxu0 0
        %4378 = vmatpush.bf16.msra.mxu0 0
        %4379 = vmatpush.bf16.msra.mxu0 0
        %4380 = vmatpush.bf16.msra.mxu0 0
        %4381 = vmatpush.bf16.msra.mxu0 0
        %4382 = vmatpush.bf16.msra.mxu0 0
        %4383 = vmatpush.bf16.msra.mxu0 %v4374
        %4384 = vmatpush.bf16.msra.mxu0 %v4373
        %4385 = vmatmul.bf16.gmra.mxu0 %v3736
        %v4386 = vpop.f32.mrf.mxu0
        %v4387 = vadd.f32 %v4363, %v4386
        %v4388 = vpop.f32.mrf.mxu0
        %v4389 = vadd.f32 %v4363, %v4388
        %4390 = vdwg.mxu0
        %s4391 = scalar_lea.vmem %s65, 96
        %v4392 = vld [vmem:[%s4391] sm:$0xf]
        %v4393 = vld [vmem:[%s4391 + $0x4] sm:$0xf]
        %v4394 = vld [vmem:[%s4391 + $0x8] sm:$0xf]
        %v4395 = vld [vmem:[%s4391 + $0xc] sm:$0xf]
        %s4396 = scalar_lea.vmem %s67, 6
        %v4397 = vld [vmem:[%s4396] sm:$0x1]
        %v4399 = vperm.slane %v4397, 0
        %v4405 = vunpack.c.l.b16 %v4392
        %v4406 = vunpack.c.l.b16 %v4393
        %v4407 = vunpack.c.l.b16 %v4394
        %v4408 = vunpack.c.l.b16 %v4395
        %v4409 = vpack.c.b16 %v4406, %v4405
        %v4410 = vpack.c.b16 %v4408, %v4407
        %4413 = vmatpush.bf16.msra.mxu0 0
        %4414 = vmatpush.bf16.msra.mxu0 0
        %4415 = vmatpush.bf16.msra.mxu0 0
        %4416 = vmatpush.bf16.msra.mxu0 0
        %4417 = vmatpush.bf16.msra.mxu0 0
        %4418 = vmatpush.bf16.msra.mxu0 0
        %4419 = vmatpush.bf16.msra.mxu0 %v4410
        %4420 = vmatpush.bf16.msra.mxu0 %v4409
        %4421 = vmatmul.bf16.gmra.mxu0 %v3736
        %v4422 = vpop.f32.mrf.mxu0
        %v4423 = vadd.f32 %v4399, %v4422
        %v4424 = vpop.f32.mrf.mxu0
        %v4425 = vadd.f32 %v4399, %v4424
        %4426 = vdwg.mxu0
        %v4427 = vmul.f32 %v4387, %v2293
        %v4428 = vmul.f32 %v4389, %v2294
        %v4429 = vmul.f32 %v4423, %v2295
        %v4430 = vmul.f32 %v4425, %v2296
        %v4431 = vadd.f32 %v4427, %v4429
        %v4432 = vadd.f32 %v4428, %v4430
        %v4433 = vpack.c.bf16 %v4432, %v4431
        %s4434 = scalar_lea.vmem %s69, 96
        %v4435 = vld [vmem:[%s4434] sm:$0xf]
        %v4436 = vld [vmem:[%s4434 + $0x4] sm:$0xf]
        %v4437 = vld [vmem:[%s4434 + $0x8] sm:$0xf]
        %v4438 = vld [vmem:[%s4434 + $0xc] sm:$0xf]
        %s4439 = scalar_lea.vmem %s71, 6
        %v4440 = vld [vmem:[%s4439] sm:$0x1]
        %v4442 = vperm.slane %v4440, 0
        %v4448 = vunpack.c.l.b16 %v4435
        %v4449 = vunpack.c.l.b16 %v4436
        %v4450 = vunpack.c.l.b16 %v4437
        %v4451 = vunpack.c.l.b16 %v4438
        %v4452 = vpack.c.b16 %v4449, %v4448
        %v4453 = vpack.c.b16 %v4451, %v4450
        %4456 = vmatpush.bf16.msra.mxu0 0
        %4457 = vmatpush.bf16.msra.mxu0 0
        %4458 = vmatpush.bf16.msra.mxu0 0
        %4459 = vmatpush.bf16.msra.mxu0 0
        %4460 = vmatpush.bf16.msra.mxu0 0
        %4461 = vmatpush.bf16.msra.mxu0 0
        %4462 = vmatpush.bf16.msra.mxu0 %v4453
        %4463 = vmatpush.bf16.msra.mxu0 %v4452
        %4464 = vmatmul.bf16.gmra.mxu0 %v3736
        %v4465 = vpop.f32.mrf.mxu0
        %v4466 = vadd.f32 %v4442, %v4465
        %v4467 = vpop.f32.mrf.mxu0
        %v4468 = vadd.f32 %v4442, %v4467
        %4469 = vdwg.mxu0
        %v4470 = vpack.c.bf16 %v4468, %v4466
        %v4472 = vsel %vm2545, %v4354, 0
        %v4475 = vsel %vm2545, %v4433, 0
        %4477 = vmatpush.bf16.xpose.msra.mxu0 0
        %4478 = vmatpush.bf16.xpose.msra.mxu0 0
        %4479 = vmatpush.bf16.xpose.msra.mxu0 0
        %4480 = vmatpush.bf16.xpose.msra.mxu0 0
        %4481 = vmatpush.bf16.xpose.msra.mxu0 0
        %4482 = vmatpush.bf16.xpose.msra.mxu0 0
        %4483 = vmatpush.bf16.xpose.msra.mxu0 0
        %4484 = vmatpush.bf16.xpose.msra.mxu0 %v4475
        %4485 = vmatmul.bf16.gmra.mxu0 %v4472
        %v4486 = vpop.f32.mrf.mxu0
        %v4487 = vadd.f32 %v2543, %v4486
        %v4488 = vpop.f32.mrf.mxu0
        %v4489 = vadd.f32 %v2543, %v4488
        %4490 = vdwg.mxu0
        %v4491 = vsel %vm1790, %v4487, -inf
        %4492 = vmax.xlane.f32.xlu0 %v4491
        %v4493 = vpop.xlane.xlu0 %4492
        %v4494 = vsel %vm1790, %v4489, -inf
        %4495 = vmax.xlane.f32.xlu0 %v4494
        %v4496 = vpop.xlane.xlu0 %4495
        %v4497 = vsub.f32 %v4487, %v4493
        %v4498 = vsub.f32 %v4489, %v4496
        %v4499 = vmul.f32 %v4497, 1.442695
        %v4500 = vpow.pop %v4499
        %v4501 = vmul.f32 %v4498, 1.442695
        %v4502 = vpow.pop %v4501
        %v4503 = vsel %vm1790, %v4500, 0.0
        %4504 = vadd.xlane.f32.xlu0 %v4503
        %v4505 = vpop.xlane.xlu0 %4504
        %v4506 = vsel %vm1790, %v4502, 0.0
        %4507 = vadd.xlane.f32.xlu0 %v4506
        %v4508 = vpop.xlane.xlu0 %4507
        %v4509 = vmax.f32 %v4505, 1e-30
        %v4510 = vmax.f32 %v4508, 1e-30
        %v4511 = vrcp.pop %v4509
        %v4512 = vrcp.pop %v4510
        %v4513 = vmul.f32 %v4500, %v4511
        %v4514 = vmul.f32 %v4502, %v4512
        %v4515 = vpack.c.bf16 %v4514, %v4513
        %v4517 = vsel %vm1790, %v4515, 0
        %4519 = vmatpush.bf16.msra.mxu0 0
        %4520 = vmatpush.bf16.msra.mxu0 0
        %4521 = vmatpush.bf16.msra.mxu0 0
        %4522 = vmatpush.bf16.msra.mxu0 0
        %4523 = vmatpush.bf16.msra.mxu0 0
        %4524 = vmatpush.bf16.msra.mxu0 0
        %4525 = vmatpush.bf16.msra.mxu0 0
        %4526 = vmatpush.bf16.msra.mxu0 %v4470
        %4527 = vmatmul.bf16.gmra.mxu0 %v4517
        %v4528 = vpop.f32.mrf.mxu0
        %v4529 = vadd.f32 0.0, %v4528
        %v4530 = vpop.f32.mrf.mxu0
        %v4531 = vadd.f32 0.0, %v4530
        %4532 = vdwg.mxu0
        %v4533 = vpack.c.bf16 %v4531, %v4529
        %s4534 = scalar_lea.vmem %s73, 24
        %v4535 = vld [vmem:[%s4534] sm:$0xf]
        %v4537 = vsel %vm2545, %v4533, 0
        %v4540 = vsel %vm2873, %v4535, 0
        %4542 = vmatpush.bf16.msra.mxu0 0
        %4543 = vmatpush.bf16.msra.mxu0 0
        %4544 = vmatpush.bf16.msra.mxu0 0
        %4545 = vmatpush.bf16.msra.mxu0 0
        %4546 = vmatpush.bf16.msra.mxu0 0
        %4547 = vmatpush.bf16.msra.mxu0 0
        %4548 = vmatpush.bf16.msra.mxu0 0
        %4549 = vmatpush.bf16.msra.mxu0 %v4540
        %4550 = vmatmul.bf16.gmra.mxu0 %v4537
        %v4551 = vpop.f32.mrf.mxu0
        %v4552 = vadd.f32 0.0, %v4551
        %v4553 = vpop.f32.mrf.mxu0
        %v4554 = vadd.f32 0.0, %v4553
        %4555 = vdwg.mxu0
        %v4556 = vadd.f32 %v4272, %v4552
        %v4557 = vadd.f32 %v4274, %v4554
        %s4558 = scalar_lea.vmem %s53, 112
        %v4559 = vld [vmem:[%s4558] sm:$0xf]
        %v4560 = vld [vmem:[%s4558 + $0x4] sm:$0xf]
        %v4561 = vld [vmem:[%s4558 + $0x8] sm:$0xf]
        %v4562 = vld [vmem:[%s4558 + $0xc] sm:$0xf]
        %s4563 = scalar_lea.vmem %s55, 7
        %v4564 = vld [vmem:[%s4563] sm:$0x1]
        %v4566 = vperm.slane %v4564, 0
        %v4572 = vunpack.c.l.b16 %v4559
        %v4573 = vunpack.c.l.b16 %v4560
        %v4574 = vunpack.c.l.b16 %v4561
        %v4575 = vunpack.c.l.b16 %v4562
        %v4576 = vpack.c.b16 %v4573, %v4572
        %v4577 = vpack.c.b16 %v4575, %v4574
        %4580 = vmatpush.bf16.msra.mxu0 0
        %4581 = vmatpush.bf16.msra.mxu0 0
        %4582 = vmatpush.bf16.msra.mxu0 0
        %4583 = vmatpush.bf16.msra.mxu0 0
        %4584 = vmatpush.bf16.msra.mxu0 0
        %4585 = vmatpush.bf16.msra.mxu0 0
        %4586 = vmatpush.bf16.msra.mxu0 %v4577
        %4587 = vmatpush.bf16.msra.mxu0 %v4576
        %4588 = vmatmul.bf16.gmra.mxu0 %v3736
        %v4589 = vpop.f32.mrf.mxu0
        %v4590 = vadd.f32 %v4566, %v4589
        %v4591 = vpop.f32.mrf.mxu0
        %v4592 = vadd.f32 %v4566, %v4591
        %4593 = vdwg.mxu0
        %s4594 = scalar_lea.vmem %s57, 112
        %v4595 = vld [vmem:[%s4594] sm:$0xf]
        %v4596 = vld [vmem:[%s4594 + $0x4] sm:$0xf]
        %v4597 = vld [vmem:[%s4594 + $0x8] sm:$0xf]
        %v4598 = vld [vmem:[%s4594 + $0xc] sm:$0xf]
        %s4599 = scalar_lea.vmem %s59, 7
        %v4600 = vld [vmem:[%s4599] sm:$0x1]
        %v4602 = vperm.slane %v4600, 0
        %v4608 = vunpack.c.l.b16 %v4595
        %v4609 = vunpack.c.l.b16 %v4596
        %v4610 = vunpack.c.l.b16 %v4597
        %v4611 = vunpack.c.l.b16 %v4598
        %v4612 = vpack.c.b16 %v4609, %v4608
        %v4613 = vpack.c.b16 %v4611, %v4610
        %4616 = vmatpush.bf16.msra.mxu0 0
        %4617 = vmatpush.bf16.msra.mxu0 0
        %4618 = vmatpush.bf16.msra.mxu0 0
        %4619 = vmatpush.bf16.msra.mxu0 0
        %4620 = vmatpush.bf16.msra.mxu0 0
        %4621 = vmatpush.bf16.msra.mxu0 0
        %4622 = vmatpush.bf16.msra.mxu0 %v4613
        %4623 = vmatpush.bf16.msra.mxu0 %v4612
        %4624 = vmatmul.bf16.gmra.mxu0 %v3736
        %v4625 = vpop.f32.mrf.mxu0
        %v4626 = vadd.f32 %v4602, %v4625
        %v4627 = vpop.f32.mrf.mxu0
        %v4628 = vadd.f32 %v4602, %v4627
        %4629 = vdwg.mxu0
        %v4630 = vmul.f32 %v4590, %v2293
        %v4631 = vmul.f32 %v4592, %v2294
        %v4632 = vmul.f32 %v4626, %v2295
        %v4633 = vmul.f32 %v4628, %v2296
        %v4634 = vadd.f32 %v4630, %v4632
        %v4635 = vadd.f32 %v4631, %v4633
        %v4636 = vpack.c.bf16 %v4635, %v4634
        %s4637 = scalar_lea.vmem %s61, 112
        %v4638 = vld [vmem:[%s4637] sm:$0xf]
        %v4639 = vld [vmem:[%s4637 + $0x4] sm:$0xf]
        %v4640 = vld [vmem:[%s4637 + $0x8] sm:$0xf]
        %v4641 = vld [vmem:[%s4637 + $0xc] sm:$0xf]
        %s4642 = scalar_lea.vmem %s63, 7
        %v4643 = vld [vmem:[%s4642] sm:$0x1]
        %v4645 = vperm.slane %v4643, 0
        %v4651 = vunpack.c.l.b16 %v4638
        %v4652 = vunpack.c.l.b16 %v4639
        %v4653 = vunpack.c.l.b16 %v4640
        %v4654 = vunpack.c.l.b16 %v4641
        %v4655 = vpack.c.b16 %v4652, %v4651
        %v4656 = vpack.c.b16 %v4654, %v4653
        %4659 = vmatpush.bf16.msra.mxu0 0
        %4660 = vmatpush.bf16.msra.mxu0 0
        %4661 = vmatpush.bf16.msra.mxu0 0
        %4662 = vmatpush.bf16.msra.mxu0 0
        %4663 = vmatpush.bf16.msra.mxu0 0
        %4664 = vmatpush.bf16.msra.mxu0 0
        %4665 = vmatpush.bf16.msra.mxu0 %v4656
        %4666 = vmatpush.bf16.msra.mxu0 %v4655
        %4667 = vmatmul.bf16.gmra.mxu0 %v3736
        %v4668 = vpop.f32.mrf.mxu0
        %v4669 = vadd.f32 %v4645, %v4668
        %v4670 = vpop.f32.mrf.mxu0
        %v4671 = vadd.f32 %v4645, %v4670
        %4672 = vdwg.mxu0
        %s4673 = scalar_lea.vmem %s65, 112
        %v4674 = vld [vmem:[%s4673] sm:$0xf]
        %v4675 = vld [vmem:[%s4673 + $0x4] sm:$0xf]
        %v4676 = vld [vmem:[%s4673 + $0x8] sm:$0xf]
        %v4677 = vld [vmem:[%s4673 + $0xc] sm:$0xf]
        %s4678 = scalar_lea.vmem %s67, 7
        %v4679 = vld [vmem:[%s4678] sm:$0x1]
        %v4681 = vperm.slane %v4679, 0
        %v4687 = vunpack.c.l.b16 %v4674
        %v4688 = vunpack.c.l.b16 %v4675
        %v4689 = vunpack.c.l.b16 %v4676
        %v4690 = vunpack.c.l.b16 %v4677
        %v4691 = vpack.c.b16 %v4688, %v4687
        %v4692 = vpack.c.b16 %v4690, %v4689
        %4695 = vmatpush.bf16.msra.mxu0 0
        %4696 = vmatpush.bf16.msra.mxu0 0
        %4697 = vmatpush.bf16.msra.mxu0 0
        %4698 = vmatpush.bf16.msra.mxu0 0
        %4699 = vmatpush.bf16.msra.mxu0 0
        %4700 = vmatpush.bf16.msra.mxu0 0
        %4701 = vmatpush.bf16.msra.mxu0 %v4692
        %4702 = vmatpush.bf16.msra.mxu0 %v4691
        %4703 = vmatmul.bf16.gmra.mxu0 %v3736
        %v4704 = vpop.f32.mrf.mxu0
        %v4705 = vadd.f32 %v4681, %v4704
        %v4706 = vpop.f32.mrf.mxu0
        %v4707 = vadd.f32 %v4681, %v4706
        %4708 = vdwg.mxu0
        %v4709 = vmul.f32 %v4669, %v2293
        %v4710 = vmul.f32 %v4671, %v2294
        %v4711 = vmul.f32 %v4705, %v2295
        %v4712 = vmul.f32 %v4707, %v2296
        %v4713 = vadd.f32 %v4709, %v4711
        %v4714 = vadd.f32 %v4710, %v4712
        %v4715 = vpack.c.bf16 %v4714, %v4713
        %s4716 = scalar_lea.vmem %s69, 112
        %v4717 = vld [vmem:[%s4716] sm:$0xf]
        %v4718 = vld [vmem:[%s4716 + $0x4] sm:$0xf]
        %v4719 = vld [vmem:[%s4716 + $0x8] sm:$0xf]
        %v4720 = vld [vmem:[%s4716 + $0xc] sm:$0xf]
        %s4721 = scalar_lea.vmem %s71, 7
        %v4722 = vld [vmem:[%s4721] sm:$0x1]
        %v4724 = vperm.slane %v4722, 0
        %v4730 = vunpack.c.l.b16 %v4717
        %v4731 = vunpack.c.l.b16 %v4718
        %v4732 = vunpack.c.l.b16 %v4719
        %v4733 = vunpack.c.l.b16 %v4720
        %v4734 = vpack.c.b16 %v4731, %v4730
        %v4735 = vpack.c.b16 %v4733, %v4732
        %4738 = vmatpush.bf16.msra.mxu0 0
        %4739 = vmatpush.bf16.msra.mxu0 0
        %4740 = vmatpush.bf16.msra.mxu0 0
        %4741 = vmatpush.bf16.msra.mxu0 0
        %4742 = vmatpush.bf16.msra.mxu0 0
        %4743 = vmatpush.bf16.msra.mxu0 0
        %4744 = vmatpush.bf16.msra.mxu0 %v4735
        %4745 = vmatpush.bf16.msra.mxu0 %v4734
        %4746 = vmatmul.bf16.gmra.mxu0 %v3736
        %v4747 = vpop.f32.mrf.mxu0
        %v4748 = vadd.f32 %v4724, %v4747
        %v4749 = vpop.f32.mrf.mxu0
        %v4750 = vadd.f32 %v4724, %v4749
        %4751 = vdwg.mxu0
        %v4752 = vpack.c.bf16 %v4750, %v4748
        %v4754 = vsel %vm2545, %v4636, 0
        %v4757 = vsel %vm2545, %v4715, 0
        %4759 = vmatpush.bf16.xpose.msra.mxu0 0
        %4760 = vmatpush.bf16.xpose.msra.mxu0 0
        %4761 = vmatpush.bf16.xpose.msra.mxu0 0
        %4762 = vmatpush.bf16.xpose.msra.mxu0 0
        %4763 = vmatpush.bf16.xpose.msra.mxu0 0
        %4764 = vmatpush.bf16.xpose.msra.mxu0 0
        %4765 = vmatpush.bf16.xpose.msra.mxu0 0
        %4766 = vmatpush.bf16.xpose.msra.mxu0 %v4757
        %4767 = vmatmul.bf16.gmra.mxu0 %v4754
        %v4768 = vpop.f32.mrf.mxu0
        %v4769 = vadd.f32 %v2543, %v4768
        %v4770 = vpop.f32.mrf.mxu0
        %v4771 = vadd.f32 %v2543, %v4770
        %4772 = vdwg.mxu0
        %v4773 = vsel %vm1790, %v4769, -inf
        %4774 = vmax.xlane.f32.xlu0 %v4773
        %v4775 = vpop.xlane.xlu0 %4774
        %v4776 = vsel %vm1790, %v4771, -inf
        %4777 = vmax.xlane.f32.xlu0 %v4776
        %v4778 = vpop.xlane.xlu0 %4777
        %v4779 = vsub.f32 %v4769, %v4775
        %v4780 = vsub.f32 %v4771, %v4778
        %v4781 = vmul.f32 %v4779, 1.442695
        %v4782 = vpow.pop %v4781
        %v4783 = vmul.f32 %v4780, 1.442695
        %v4784 = vpow.pop %v4783
        %v4785 = vsel %vm1790, %v4782, 0.0
        %4786 = vadd.xlane.f32.xlu0 %v4785
        %v4787 = vpop.xlane.xlu0 %4786
        %v4788 = vsel %vm1790, %v4784, 0.0
        %4789 = vadd.xlane.f32.xlu0 %v4788
        %v4790 = vpop.xlane.xlu0 %4789
        %v4791 = vmax.f32 %v4787, 1e-30
        %v4792 = vmax.f32 %v4790, 1e-30
        %v4793 = vrcp.pop %v4791
        %v4794 = vrcp.pop %v4792
        %v4795 = vmul.f32 %v4782, %v4793
        %v4796 = vmul.f32 %v4784, %v4794
        %v4797 = vpack.c.bf16 %v4796, %v4795
        %v4799 = vsel %vm1790, %v4797, 0
        %4801 = vmatpush.bf16.msra.mxu0 0
        %4802 = vmatpush.bf16.msra.mxu0 0
        %4803 = vmatpush.bf16.msra.mxu0 0
        %4804 = vmatpush.bf16.msra.mxu0 0
        %4805 = vmatpush.bf16.msra.mxu0 0
        %4806 = vmatpush.bf16.msra.mxu0 0
        %4807 = vmatpush.bf16.msra.mxu0 0
        %4808 = vmatpush.bf16.msra.mxu0 %v4752
        %4809 = vmatmul.bf16.gmra.mxu0 %v4799
        %v4810 = vpop.f32.mrf.mxu0
        %v4811 = vadd.f32 0.0, %v4810
        %v4812 = vpop.f32.mrf.mxu0
        %v4813 = vadd.f32 0.0, %v4812
        %4814 = vdwg.mxu0
        %v4815 = vpack.c.bf16 %v4813, %v4811
        %s4816 = scalar_lea.vmem %s73, 28
        %v4817 = vld [vmem:[%s4816] sm:$0xf]
        %v4819 = vsel %vm2545, %v4815, 0
        %v4822 = vsel %vm2873, %v4817, 0
        %4824 = vmatpush.bf16.msra.mxu0 0
        %4825 = vmatpush.bf16.msra.mxu0 0
        %4826 = vmatpush.bf16.msra.mxu0 0
        %4827 = vmatpush.bf16.msra.mxu0 0
        %4828 = vmatpush.bf16.msra.mxu0 0
        %4829 = vmatpush.bf16.msra.mxu0 0
        %4830 = vmatpush.bf16.msra.mxu0 0
        %4831 = vmatpush.bf16.msra.mxu0 %v4822
        %4832 = vmatmul.bf16.gmra.mxu0 %v4819
        %v4833 = vpop.f32.mrf.mxu0
        %v4834 = vadd.f32 0.0, %v4833
        %v4835 = vpop.f32.mrf.mxu0
        %v4836 = vadd.f32 0.0, %v4835
        %4837 = vdwg.mxu0
        %v4838 = vadd.f32 %v4556, %v4834
        %v4839 = vadd.f32 %v4557, %v4836
        %v4840 = vadd.f32 %v3652, %v4838
        %v4841 = vadd.f32 %v3653, %v4839
        %s4842 = scalar_lea.vmem %s75, 1
        %v4843 = vld [vmem:[%s4842] sm:$0x1]
        %v4845 = vperm.slane %v4843, 0
        %v4847 = vadd.f32 %v4840, %v4845
        %v4848 = vadd.f32 %v4841, %v4845
        %s4849 = scalar_lea.vmem %s77, 1
        %v4850 = vld [vmem:[%s4849] sm:$0x1]
        %s4851 = scalar_lea.vmem %s79, 1
        %v4852 = vld [vmem:[%s4851] sm:$0x1]
        %v4853 = vsel %vm1828, %v4847, 0.0
        %4854 = vadd.xlane.f32.xlu0 %v4853
        %v4855 = vpop.xlane.xlu0 %4854
        %v4856 = vsel %vm1828, %v4848, 0.0
        %4857 = vadd.xlane.f32.xlu0 %v4856
        %v4858 = vpop.xlane.xlu0 %4857
        %v4859 = vmul.f32 %v4855, %v1841
        %v4860 = vmul.f32 %v4858, %v1841
        %v4861 = vsub.f32 %v4847, %v4859
        %v4862 = vsub.f32 %v4848, %v4860
        %v4863 = vmul.f32 %v4861, %v4861
        %v4864 = vmul.f32 %v4862, %v4862
        %v4865 = vsel %vm1828, %v4863, 0.0
        %4866 = vadd.xlane.f32.xlu0 %v4865
        %v4867 = vpop.xlane.xlu0 %4866
        %v4868 = vsel %vm1828, %v4864, 0.0
        %4869 = vadd.xlane.f32.xlu0 %v4868
        %v4870 = vpop.xlane.xlu0 %4869
        %v4871 = vmul.f32 %v4867, %v1841
        %v4872 = vmul.f32 %v4870, %v1841
        %v4873 = vadd.f32 %v4871, 1e-05
        %v4874 = vadd.f32 %v4872, 1e-05
        %v4875 = vrsqrt.pop %v4873
        %v4876 = vmul.f32 %v4875, %v4873
        %v4877 = vmul.f32 %v4876, %v4875
        %v4878 = vmul.f32 0.5, %v4877
        %v4879 = vsub.f32 1.5, %v4878
        %v4880 = vmul.f32 %v4875, %v4879
        %vm4881 = vweird.f32 %v4873
        %vm4882 = vweird.f32 %v4875
        %vm4883 = vmor %vm4881, %vm4882
        %v4884 = vsel %vm4883, %v4875, %v4880
        %v4885 = vrsqrt.pop %v4874
        %v4886 = vmul.f32 %v4885, %v4874
        %v4887 = vmul.f32 %v4886, %v4885
        %v4888 = vmul.f32 0.5, %v4887
        %v4889 = vsub.f32 1.5, %v4888
        %v4890 = vmul.f32 %v4885, %v4889
        %vm4891 = vweird.f32 %v4874
        %vm4892 = vweird.f32 %v4885
        %vm4893 = vmor %vm4891, %vm4892
        %v4894 = vsel %vm4893, %v4885, %v4890
        %v4895 = vmul.f32 %v4861, %v4884
        %v4896 = vmul.f32 %v4862, %v4894
        %v4898 = vperm.slane %v4850, 0
        %v4900 = vmul.f32 %v4895, %v4898
        %v4901 = vmul.f32 %v4896, %v4898
        %v4903 = vperm.slane %v4852, 0
        %v4905 = vadd.f32 %v4900, %v4903
        %v4906 = vadd.f32 %v4901, %v4903
        %v4907 = vpack.c.bf16 %v4906, %v4905
        %s4908 = scalar_lea.vmem %s81, 16
        %v4909 = vld [vmem:[%s4908] sm:$0xf]
        %v4910 = vld [vmem:[%s4908 + $0x4] sm:$0xf]
        %v4911 = vld [vmem:[%s4908 + $0x8] sm:$0xf]
        %v4912 = vld [vmem:[%s4908 + $0xc] sm:$0xf]
        %s4913 = scalar_lea.vmem %s83, 1
        %v4914 = vld [vmem:[%s4913] sm:$0x1]
        %v4916 = vperm.slane %v4914, 0
        %v4922 = vunpack.c.l.b16 %v4909
        %v4923 = vunpack.c.l.b16 %v4910
        %v4924 = vunpack.c.l.b16 %v4911
        %v4925 = vunpack.c.l.b16 %v4912
        %v4926 = vpack.c.b16 %v4923, %v4922
        %v4927 = vpack.c.b16 %v4925, %v4924
        %v4931 = vsel %vm1828, %v4907, 0
        %4933 = vmatpush.bf16.msra.mxu0 0
        %4934 = vmatpush.bf16.msra.mxu0 0
        %4935 = vmatpush.bf16.msra.mxu0 0
        %4936 = vmatpush.bf16.msra.mxu0 0
        %4937 = vmatpush.bf16.msra.mxu0 0
        %4938 = vmatpush.bf16.msra.mxu0 0
        %4939 = vmatpush.bf16.msra.mxu0 %v4927
        %4940 = vmatpush.bf16.msra.mxu0 %v4926
        %4941 = vmatmul.bf16.gmra.mxu0 %v4931
        %v4942 = vpop.f32.mrf.mxu0
        %v4943 = vadd.f32 %v4916, %v4942
        %v4944 = vpop.f32.mrf.mxu0
        %v4945 = vadd.f32 %v4916, %v4944
        %4946 = vdwg.mxu0
        %v4947 = vmul.f32 %v4943, 0.5
        %v4948 = vmul.f32 %v4945, 0.5
        %v4949 = vmul.f32 %v4943, 0.044715
        %v4950 = vmul.f32 %v4945, 0.044715
        %v4951 = vmul.f32 %v4949, %v4943
        %v4952 = vmul.f32 %v4950, %v4945
        %v4953 = vmul.f32 %v4951, %v4943
        %v4954 = vmul.f32 %v4952, %v4945
        %v4955 = vadd.f32 %v4943, %v4953
        %v4956 = vadd.f32 %v4945, %v4954
        %v4957 = vmul.f32 %v4955, 0.7978846
        %v4958 = vmul.f32 %v4956, 0.7978846
        %v4959 = vtanh.pop %v4957
        %v4960 = vtanh.pop %v4958
        %v4961 = vadd.f32 %v4959, 1.0
        %v4962 = vadd.f32 %v4960, 1.0
        %v4963 = vmul.f32 %v4947, %v4961
        %v4964 = vmul.f32 %v4948, %v4962
        %v4965 = vpack.c.bf16 %v4964, %v4963
        %s4966 = scalar_lea.vmem %s85, 32
        %v4967 = vld [vmem:[%s4966] sm:$0xf]
        %v4968 = vld [vmem:[%s4966 + $0x4] sm:$0xf]
        %v4969 = vld [vmem:[%s4966 + $0x8] sm:$0xf]
        %v4970 = vld [vmem:[%s4966 + $0xc] sm:$0xf]
        %v4971 = vld [vmem:[%s4966 + $0x10] sm:$0xf]
        %v4972 = vld [vmem:[%s4966 + $0x14] sm:$0xf]
        %v4973 = vld [vmem:[%s4966 + $0x18] sm:$0xf]
        %v4974 = vld [vmem:[%s4966 + $0x1c] sm:$0xf]
        %v4983 = vunpack.c.l.b16 %v4967
        %v4984 = vunpack.c.l.b16 %v4968
        %v4985 = vunpack.c.l.b16 %v4969
        %v4986 = vunpack.c.l.b16 %v4970
        %v4987 = vunpack.c.l.b16 %v4971
        %v4988 = vunpack.c.l.b16 %v4972
        %v4989 = vunpack.c.l.b16 %v4973
        %v4990 = vunpack.c.l.b16 %v4974
        %v4991 = vpack.c.b16 %v4984, %v4983
        %v4992 = vpack.c.b16 %v4986, %v4985
        %v4993 = vpack.c.b16 %v4988, %v4987
        %v4994 = vpack.c.b16 %v4990, %v4989
        %v5000 = vsel %vm3628, %v4965, 0
        %5002 = vmatpush.bf16.msra.mxu0 0
        %5003 = vmatpush.bf16.msra.mxu0 0
        %5004 = vmatpush.bf16.msra.mxu0 0
        %5005 = vmatpush.bf16.msra.mxu0 0
        %5006 = vmatpush.bf16.msra.mxu0 %v4994
        %5007 = vmatpush.bf16.msra.mxu0 %v4993
        %5008 = vmatpush.bf16.msra.mxu0 %v4992
        %5009 = vmatpush.bf16.msra.mxu0 %v4991
        %5010 = vmatmul.bf16.gmra.mxu0 %v5000
        %v5011 = vpop.f32.mrf.mxu0
        %v5012 = vadd.f32 0.0, %v5011
        %v5013 = vpop.f32.mrf.mxu0
        %v5014 = vadd.f32 0.0, %v5013
        %5015 = vdwg.mxu0
        %v5016 = vadd.f32 %v4847, %v5012
        %v5017 = vadd.f32 %v4848, %v5014
        %s5018 = scalar_lea.vmem %s87, 1
        %v5019 = vld [vmem:[%s5018] sm:$0x1]
        %v5021 = vperm.slane %v5019, 0
        %v5023 = vadd.f32 %v5016, %v5021
        %v5024 = vadd.f32 %v5017, %v5021
        %v5025 = vpack.c.bf16 %v5024, %v5023
        %v5026 = vld [vmem:[%s89] sm:$0xf]
        %v5027 = vld [vmem:[%s89 + $0x4] sm:$0xf]
        %v5028 = vld [vmem:[%s89 + $0x8] sm:$0xf]
        %v5029 = vld [vmem:[%s89 + $0xc] sm:$0xf]
        %v5030 = vld [vmem:[#allocation8] sm:$0x1]
        %v5032 = vperm.slane %v5030, 0
        %v5038 = vunpack.c.l.b16 %v5026
        %v5039 = vunpack.c.l.b16 %v5027
        %v5040 = vunpack.c.l.b16 %v5028
        %v5041 = vunpack.c.l.b16 %v5029
        %v5042 = vpack.c.b16 %v5039, %v5038
        %v5043 = vpack.c.b16 %v5041, %v5040
        %v5047 = vsel %vm1828, %v5025, 0
        %5049 = vmatpush.bf16.msra.mxu0 0
        %5050 = vmatpush.bf16.msra.mxu0 0
        %5051 = vmatpush.bf16.msra.mxu0 0
        %5052 = vmatpush.bf16.msra.mxu0 0
        %5053 = vmatpush.bf16.msra.mxu0 0
        %5054 = vmatpush.bf16.msra.mxu0 0
        %5055 = vmatpush.bf16.msra.mxu0 %v5043
        %5056 = vmatpush.bf16.msra.mxu0 %v5042
        %5057 = vmatmul.bf16.gmra.mxu0 %v5047
        %v5058 = vpop.f32.mrf.mxu0
        %v5059 = vadd.f32 %v5032, %v5058
        %v5060 = vpop.f32.mrf.mxu0
        %v5061 = vadd.f32 %v5032, %v5060
        %5062 = vdwg.mxu0
        %v5063 = vpack.c.bf16 %v5061, %v5059
        %v5064 = vld [vmem:[%s93] sm:$0xff]
        %v5065 = vld [vmem:[%s97] sm:$0xf]
        %v5066 = vld [vmem:[%s97 + $0x4] sm:$0xf]
        %v5067 = vld [vmem:[%s97 + $0x8] sm:$0xf]
        %v5068 = vld [vmem:[%s97 + $0xc] sm:$0xf]
        %v5069 = vld [vmem:[%s97 + $0x10] sm:$0xf]
        %v5070 = vld [vmem:[%s97 + $0x14] sm:$0xf]
        %v5071 = vld [vmem:[%s97 + $0x18] sm:$0xf]
        %v5072 = vld [vmem:[%s97 + $0x1c] sm:$0xf]
        %v5073 = vld [vmem:[%s99] sm:$0x1]
        %v5075 = vperm.slane %v5073, 0
        %v5085 = vunpack.c.l.b16 %v5065
        %v5086 = vunpack.c.l.b16 %v5066
        %v5087 = vunpack.c.l.b16 %v5067
        %v5088 = vunpack.c.l.b16 %v5068
        %v5089 = vunpack.c.l.b16 %v5069
        %v5090 = vunpack.c.l.b16 %v5070
        %v5091 = vunpack.c.l.b16 %v5071
        %v5092 = vunpack.c.l.b16 %v5072
        %v5093 = vpack.c.b16 %v5086, %v5085
        %v5094 = vpack.c.b16 %v5088, %v5087
        %v5095 = vpack.c.b16 %v5090, %v5089
        %v5096 = vpack.c.b16 %v5092, %v5091
        %v5102 = vsel %vm3628, %v5063, 0
        %5104 = vmatpush.bf16.msra.mxu0 0
        %5105 = vmatpush.bf16.msra.mxu0 0
        %5106 = vmatpush.bf16.msra.mxu0 0
        %5107 = vmatpush.bf16.msra.mxu0 0
        %5108 = vmatpush.bf16.msra.mxu0 %v5096
        %5109 = vmatpush.bf16.msra.mxu0 %v5095
        %5110 = vmatpush.bf16.msra.mxu0 %v5094
        %5111 = vmatpush.bf16.msra.mxu0 %v5093
        %5112 = vmatmul.bf16.gmra.mxu0 %v5102
        %v5113 = vpop.f32.mrf.mxu0
        %v5114 = vadd.f32 %v5075, %v5113
        %v5115 = vpop.f32.mrf.mxu0
        %v5116 = vadd.f32 %v5075, %v5115
        %5117 = vdwg.mxu0
        %v5118 = vpack.c.bf16 %v5116, %v5114
        %v5119 = vld [vmem:[%s101] sm:$0xf]
        %v5120 = vld [vmem:[%s101 + $0x4] sm:$0xf]
        %v5121 = vld [vmem:[%s101 + $0x8] sm:$0xf]
        %v5122 = vld [vmem:[%s101 + $0xc] sm:$0xf]
        %v5123 = vld [vmem:[%s101 + $0x10] sm:$0xf]
        %v5124 = vld [vmem:[%s101 + $0x14] sm:$0xf]
        %v5125 = vld [vmem:[%s101 + $0x18] sm:$0xf]
        %v5126 = vld [vmem:[%s101 + $0x1c] sm:$0xf]
        %v5127 = vld [vmem:[%s103] sm:$0x1]
        %v5129 = vperm.slane %v5127, 0
        %v5139 = vunpack.c.l.b16 %v5119
        %v5140 = vunpack.c.l.b16 %v5120
        %v5141 = vunpack.c.l.b16 %v5121
        %v5142 = vunpack.c.l.b16 %v5122
        %v5143 = vunpack.c.l.b16 %v5123
        %v5144 = vunpack.c.l.b16 %v5124
        %v5145 = vunpack.c.l.b16 %v5125
        %v5146 = vunpack.c.l.b16 %v5126
        %v5147 = vpack.c.b16 %v5140, %v5139
        %v5148 = vpack.c.b16 %v5142, %v5141
        %v5149 = vpack.c.b16 %v5144, %v5143
        %v5150 = vpack.c.b16 %v5146, %v5145
        %5155 = vmatpush.bf16.msra.mxu0 0
        %5156 = vmatpush.bf16.msra.mxu0 0
        %5157 = vmatpush.bf16.msra.mxu0 0
        %5158 = vmatpush.bf16.msra.mxu0 0
        %5159 = vmatpush.bf16.msra.mxu0 %v5150
        %5160 = vmatpush.bf16.msra.mxu0 %v5149
        %5161 = vmatpush.bf16.msra.mxu0 %v5148
        %5162 = vmatpush.bf16.msra.mxu0 %v5147
        %5163 = vmatmul.bf16.gmra.mxu0 %v5102
        %v5164 = vpop.f32.mrf.mxu0
        %v5165 = vadd.f32 %v5129, %v5164
        %v5166 = vpop.f32.mrf.mxu0
        %v5167 = vadd.f32 %v5129, %v5166
        %5168 = vdwg.mxu0
        %v5169 = vpack.c.bf16 %v5167, %v5165
        %v5170 = vld [vmem:[%s95] sm:$0xff]
        %v5171 = vpack.c.bf16 %v5170, %v5170
        %v5173 = vsel %vm1790, %v5171, 0
        %v5176 = vsel %vm1790, %v5118, 0
        %5178 = vmatpush.bf16.xpose.msra.mxu0 0
        %5179 = vmatpush.bf16.xpose.msra.mxu0 0
        %5180 = vmatpush.bf16.xpose.msra.mxu0 0
        %5181 = vmatpush.bf16.xpose.msra.mxu0 0
        %5182 = vmatpush.bf16.xpose.msra.mxu0 0
        %5183 = vmatpush.bf16.xpose.msra.mxu0 0
        %5184 = vmatpush.bf16.xpose.msra.mxu0 0
        %5185 = vmatpush.bf16.xpose.msra.mxu0 %v5176
        %5186 = vmatmul.bf16.gmra.mxu0 %v5173
        %v5187 = vpop.f32.mrf.mxu0
        %v5188 = vadd.f32 %v2543, %v5187
        %v5189 = vpop.f32.mrf.mxu0
        %5190 = vdwg.mxu0
        %v5191 = vsel %vm1790, %v5188, -inf
        %5192 = vmax.xlane.f32.xlu0 %v5191
        %v5193 = vpop.xlane.xlu0 %5192
        %v5194 = vsub.f32 %v5188, %v5193
        %v5195 = vmul.f32 %v5194, 1.442695
        %v5196 = vpow.pop %v5195
        %v5197 = vsel %vm1790, %v5196, 0.0
        %5198 = vadd.xlane.f32.xlu0 %v5197
        %v5199 = vpop.xlane.xlu0 %5198
        %v5200 = vmax.f32 %v5199, 1e-30
        %v5201 = vrcp.pop %v5200
        %v5202 = vmul.f32 %v5196, %v5201
        %v5203 = vpack.c.bf16 %v5202, %v5202
        %v5205 = vsel %vm1790, %v5203, 0
        %5207 = vmatpush.bf16.msra.mxu0 0
        %5208 = vmatpush.bf16.msra.mxu0 0
        %5209 = vmatpush.bf16.msra.mxu0 0
        %5210 = vmatpush.bf16.msra.mxu0 0
        %5211 = vmatpush.bf16.msra.mxu0 0
        %5212 = vmatpush.bf16.msra.mxu0 0
        %5213 = vmatpush.bf16.msra.mxu0 0
        %5214 = vmatpush.bf16.msra.mxu0 %v5169
        %5215 = vmatmul.bf16.gmra.mxu0 %v5205
        %v5216 = vpop.f32.mrf.mxu0
        %v5217 = vadd.f32 0.0, %v5216
        %v5218 = vpop.f32.mrf.mxu0
        %5219 = vdwg.mxu0
        %v5220 = vpack.c.bf16 %v5217, %v5217
        %v5221 = vld [vmem:[%s105] sm:$0xf]
        %v5222 = vld [vmem:[%s105 + $0x4] sm:$0xf]
        %s5223 = scalar_lea.vmem %s97, 32
        %v5224 = vld [vmem:[%s5223] sm:$0xf]
        %v5225 = vld [vmem:[%s5223 + $0x4] sm:$0xf]
        %v5226 = vld [vmem:[%s5223 + $0x8] sm:$0xf]
        %v5227 = vld [vmem:[%s5223 + $0xc] sm:$0xf]
        %v5228 = vld [vmem:[%s5223 + $0x10] sm:$0xf]
        %v5229 = vld [vmem:[%s5223 + $0x14] sm:$0xf]
        %v5230 = vld [vmem:[%s5223 + $0x18] sm:$0xf]
        %v5231 = vld [vmem:[%s5223 + $0x1c] sm:$0xf]
        %s5232 = scalar_lea.vmem %s99, 1
        %v5233 = vld [vmem:[%s5232] sm:$0x1]
        %v5235 = vperm.slane %v5233, 0
        %v5245 = vunpack.c.l.b16 %v5224
        %v5246 = vunpack.c.l.b16 %v5225
        %v5247 = vunpack.c.l.b16 %v5226
        %v5248 = vunpack.c.l.b16 %v5227
        %v5249 = vunpack.c.l.b16 %v5228
        %v5250 = vunpack.c.l.b16 %v5229
        %v5251 = vunpack.c.l.b16 %v5230
        %v5252 = vunpack.c.l.b16 %v5231
        %v5253 = vpack.c.b16 %v5246, %v5245
        %v5254 = vpack.c.b16 %v5248, %v5247
        %v5255 = vpack.c.b16 %v5250, %v5249
        %v5256 = vpack.c.b16 %v5252, %v5251
        %5261 = vmatpush.bf16.msra.mxu0 0
        %5262 = vmatpush.bf16.msra.mxu0 0
        %5263 = vmatpush.bf16.msra.mxu0 0
        %5264 = vmatpush.bf16.msra.mxu0 0
        %5265 = vmatpush.bf16.msra.mxu0 %v5256
        %5266 = vmatpush.bf16.msra.mxu0 %v5255
        %5267 = vmatpush.bf16.msra.mxu0 %v5254
        %5268 = vmatpush.bf16.msra.mxu0 %v5253
        %5269 = vmatmul.bf16.gmra.mxu0 %v5102
        %v5270 = vpop.f32.mrf.mxu0
        %v5271 = vadd.f32 %v5235, %v5270
        %v5272 = vpop.f32.mrf.mxu0
        %v5273 = vadd.f32 %v5235, %v5272
        %5274 = vdwg.mxu0
        %v5275 = vpack.c.bf16 %v5273, %v5271
        %s5276 = scalar_lea.vmem %s101, 32
        %v5277 = vld [vmem:[%s5276] sm:$0xf]
        %v5278 = vld [vmem:[%s5276 + $0x4] sm:$0xf]
        %v5279 = vld [vmem:[%s5276 + $0x8] sm:$0xf]
        %v5280 = vld [vmem:[%s5276 + $0xc] sm:$0xf]
        %v5281 = vld [vmem:[%s5276 + $0x10] sm:$0xf]
        %v5282 = vld [vmem:[%s5276 + $0x14] sm:$0xf]
        %v5283 = vld [vmem:[%s5276 + $0x18] sm:$0xf]
        %v5284 = vld [vmem:[%s5276 + $0x1c] sm:$0xf]
        %s5285 = scalar_lea.vmem %s103, 1
        %v5286 = vld [vmem:[%s5285] sm:$0x1]
        %v5288 = vperm.slane %v5286, 0
        %v5298 = vunpack.c.l.b16 %v5277
        %v5299 = vunpack.c.l.b16 %v5278
        %v5300 = vunpack.c.l.b16 %v5279
        %v5301 = vunpack.c.l.b16 %v5280
        %v5302 = vunpack.c.l.b16 %v5281
        %v5303 = vunpack.c.l.b16 %v5282
        %v5304 = vunpack.c.l.b16 %v5283
        %v5305 = vunpack.c.l.b16 %v5284
        %v5306 = vpack.c.b16 %v5299, %v5298
        %v5307 = vpack.c.b16 %v5301, %v5300
        %v5308 = vpack.c.b16 %v5303, %v5302
        %v5309 = vpack.c.b16 %v5305, %v5304
        %5314 = vmatpush.bf16.msra.mxu0 0
        %5315 = vmatpush.bf16.msra.mxu0 0
        %5316 = vmatpush.bf16.msra.mxu0 0
        %5317 = vmatpush.bf16.msra.mxu0 0
        %5318 = vmatpush.bf16.msra.mxu0 %v5309
        %5319 = vmatpush.bf16.msra.mxu0 %v5308
        %5320 = vmatpush.bf16.msra.mxu0 %v5307
        %5321 = vmatpush.bf16.msra.mxu0 %v5306
        %5322 = vmatmul.bf16.gmra.mxu0 %v5102
        %v5323 = vpop.f32.mrf.mxu0
        %v5324 = vadd.f32 %v5288, %v5323
        %v5325 = vpop.f32.mrf.mxu0
        %v5326 = vadd.f32 %v5288, %v5325
        %5327 = vdwg.mxu0
        %v5328 = vpack.c.bf16 %v5326, %v5324
        %s5329 = scalar_lea.vmem %s95, 8
        %v5330 = vld [vmem:[%s5329] sm:$0xff]
        %v5331 = vpack.c.bf16 %v5330, %v5330
        %v5333 = vsel %vm1790, %v5331, 0
        %v5336 = vsel %vm1790, %v5275, 0
        %5338 = vmatpush.bf16.xpose.msra.mxu0 0
        %5339 = vmatpush.bf16.xpose.msra.mxu0 0
        %5340 = vmatpush.bf16.xpose.msra.mxu0 0
        %5341 = vmatpush.bf16.xpose.msra.mxu0 0
        %5342 = vmatpush.bf16.xpose.msra.mxu0 0
        %5343 = vmatpush.bf16.xpose.msra.mxu0 0
        %5344 = vmatpush.bf16.xpose.msra.mxu0 0
        %5345 = vmatpush.bf16.xpose.msra.mxu0 %v5336
        %5346 = vmatmul.bf16.gmra.mxu0 %v5333
        %v5347 = vpop.f32.mrf.mxu0
        %v5348 = vadd.f32 %v2543, %v5347
        %v5349 = vpop.f32.mrf.mxu0
        %5350 = vdwg.mxu0
        %v5351 = vsel %vm1790, %v5348, -inf
        %5352 = vmax.xlane.f32.xlu0 %v5351
        %v5353 = vpop.xlane.xlu0 %5352
        %v5354 = vsub.f32 %v5348, %v5353
        %v5355 = vmul.f32 %v5354, 1.442695
        %v5356 = vpow.pop %v5355
        %v5357 = vsel %vm1790, %v5356, 0.0
        %5358 = vadd.xlane.f32.xlu0 %v5357
        %v5359 = vpop.xlane.xlu0 %5358
        %v5360 = vmax.f32 %v5359, 1e-30
        %v5361 = vrcp.pop %v5360
        %v5362 = vmul.f32 %v5356, %v5361
        %v5363 = vpack.c.bf16 %v5362, %v5362
        %v5365 = vsel %vm1790, %v5363, 0
        %5367 = vmatpush.bf16.msra.mxu0 0
        %5368 = vmatpush.bf16.msra.mxu0 0
        %5369 = vmatpush.bf16.msra.mxu0 0
        %5370 = vmatpush.bf16.msra.mxu0 0
        %5371 = vmatpush.bf16.msra.mxu0 0
        %5372 = vmatpush.bf16.msra.mxu0 0
        %5373 = vmatpush.bf16.msra.mxu0 0
        %5374 = vmatpush.bf16.msra.mxu0 %v5328
        %5375 = vmatmul.bf16.gmra.mxu0 %v5365
        %v5376 = vpop.f32.mrf.mxu0
        %v5377 = vadd.f32 0.0, %v5376
        %v5378 = vpop.f32.mrf.mxu0
        %5379 = vdwg.mxu0
        %v5380 = vpack.c.bf16 %v5377, %v5377
        %s5381 = scalar_lea.vmem %s105, 8
        %v5382 = vld [vmem:[%s5381] sm:$0xf]
        %v5383 = vld [vmem:[%s5381 + $0x4] sm:$0xf]
        %v5386 = vunpack.c.l.b16 %v5382
        %v5387 = vunpack.c.l.b16 %v5383
        %v5388 = vpack.c.b16 %v5387, %v5386
        %v5391 = vsel %vm1790, %v5380, 0
        %5393 = vmatpush.bf16.msra.mxu0 0
        %5394 = vmatpush.bf16.msra.mxu0 0
        %5395 = vmatpush.bf16.msra.mxu0 0
        %5396 = vmatpush.bf16.msra.mxu0 0
        %5397 = vmatpush.bf16.msra.mxu0 0
        %5398 = vmatpush.bf16.msra.mxu0 0
        %5399 = vmatpush.bf16.msra.mxu0 0
        %5400 = vmatpush.bf16.msra.mxu0 %v5388
        %5401 = vmatmul.bf16.gmra.mxu0 %v5391
        %v5402 = vpop.f32.mrf.mxu0
        %v5403 = vadd.f32 0.0, %v5402
        %v5404 = vpop.f32.mrf.mxu0
        %5405 = vdwg.mxu0
        %v5408 = vunpack.c.l.b16 %v5221
        %v5409 = vunpack.c.l.b16 %v5222
        %v5410 = vpack.c.b16 %v5409, %v5408
        %v5413 = vsel %vm1790, %v5220, 0
        %5415 = vmatpush.bf16.msra.mxu0 0
        %5416 = vmatpush.bf16.msra.mxu0 0
        %5417 = vmatpush.bf16.msra.mxu0 0
        %5418 = vmatpush.bf16.msra.mxu0 0
        %5419 = vmatpush.bf16.msra.mxu0 0
        %5420 = vmatpush.bf16.msra.mxu0 0
        %5421 = vmatpush.bf16.msra.mxu0 0
        %5422 = vmatpush.bf16.msra.mxu0 %v5410
        %5423 = vmatmul.bf16.gmra.mxu0 %v5413
        %v5424 = vpop.f32.mrf.mxu0
        %v5425 = vadd.f32 %v5403, %v5424
        %v5426 = vpop.f32.mrf.mxu0
        %5427 = vdwg.mxu0
        %s5428 = scalar_lea.vmem %s97, 64
        %v5429 = vld [vmem:[%s5428] sm:$0xf]
        %v5430 = vld [vmem:[%s5428 + $0x4] sm:$0xf]
        %v5431 = vld [vmem:[%s5428 + $0x8] sm:$0xf]
        %v5432 = vld [vmem:[%s5428 + $0xc] sm:$0xf]
        %v5433 = vld [vmem:[%s5428 + $0x10] sm:$0xf]
        %v5434 = vld [vmem:[%s5428 + $0x14] sm:$0xf]
        %v5435 = vld [vmem:[%s5428 + $0x18] sm:$0xf]
        %v5436 = vld [vmem:[%s5428 + $0x1c] sm:$0xf]
        %s5437 = scalar_lea.vmem %s99, 2
        %v5438 = vld [vmem:[%s5437] sm:$0x1]
        %v5440 = vperm.slane %v5438, 0
        %v5450 = vunpack.c.l.b16 %v5429
        %v5451 = vunpack.c.l.b16 %v5430
        %v5452 = vunpack.c.l.b16 %v5431
        %v5453 = vunpack.c.l.b16 %v5432
        %v5454 = vunpack.c.l.b16 %v5433
        %v5455 = vunpack.c.l.b16 %v5434
        %v5456 = vunpack.c.l.b16 %v5435
        %v5457 = vunpack.c.l.b16 %v5436
        %v5458 = vpack.c.b16 %v5451, %v5450
        %v5459 = vpack.c.b16 %v5453, %v5452
        %v5460 = vpack.c.b16 %v5455, %v5454
        %v5461 = vpack.c.b16 %v5457, %v5456
        %5466 = vmatpush.bf16.msra.mxu0 0
        %5467 = vmatpush.bf16.msra.mxu0 0
        %5468 = vmatpush.bf16.msra.mxu0 0
        %5469 = vmatpush.bf16.msra.mxu0 0
        %5470 = vmatpush.bf16.msra.mxu0 %v5461
        %5471 = vmatpush.bf16.msra.mxu0 %v5460
        %5472 = vmatpush.bf16.msra.mxu0 %v5459
        %5473 = vmatpush.bf16.msra.mxu0 %v5458
        %5474 = vmatmul.bf16.gmra.mxu0 %v5102
        %v5475 = vpop.f32.mrf.mxu0
        %v5476 = vadd.f32 %v5440, %v5475
        %v5477 = vpop.f32.mrf.mxu0
        %v5478 = vadd.f32 %v5440, %v5477
        %5479 = vdwg.mxu0
        %v5480 = vpack.c.bf16 %v5478, %v5476
        %s5481 = scalar_lea.vmem %s101, 64
        %v5482 = vld [vmem:[%s5481] sm:$0xf]
        %v5483 = vld [vmem:[%s5481 + $0x4] sm:$0xf]
        %v5484 = vld [vmem:[%s5481 + $0x8] sm:$0xf]
        %v5485 = vld [vmem:[%s5481 + $0xc] sm:$0xf]
        %v5486 = vld [vmem:[%s5481 + $0x10] sm:$0xf]
        %v5487 = vld [vmem:[%s5481 + $0x14] sm:$0xf]
        %v5488 = vld [vmem:[%s5481 + $0x18] sm:$0xf]
        %v5489 = vld [vmem:[%s5481 + $0x1c] sm:$0xf]
        %s5490 = scalar_lea.vmem %s103, 2
        %v5491 = vld [vmem:[%s5490] sm:$0x1]
        %v5493 = vperm.slane %v5491, 0
        %v5503 = vunpack.c.l.b16 %v5482
        %v5504 = vunpack.c.l.b16 %v5483
        %v5505 = vunpack.c.l.b16 %v5484
        %v5506 = vunpack.c.l.b16 %v5485
        %v5507 = vunpack.c.l.b16 %v5486
        %v5508 = vunpack.c.l.b16 %v5487
        %v5509 = vunpack.c.l.b16 %v5488
        %v5510 = vunpack.c.l.b16 %v5489
        %v5511 = vpack.c.b16 %v5504, %v5503
        %v5512 = vpack.c.b16 %v5506, %v5505
        %v5513 = vpack.c.b16 %v5508, %v5507
        %v5514 = vpack.c.b16 %v5510, %v5509
        %5519 = vmatpush.bf16.msra.mxu0 0
        %5520 = vmatpush.bf16.msra.mxu0 0
        %5521 = vmatpush.bf16.msra.mxu0 0
        %5522 = vmatpush.bf16.msra.mxu0 0
        %5523 = vmatpush.bf16.msra.mxu0 %v5514
        %5524 = vmatpush.bf16.msra.mxu0 %v5513
        %5525 = vmatpush.bf16.msra.mxu0 %v5512
        %5526 = vmatpush.bf16.msra.mxu0 %v5511
        %5527 = vmatmul.bf16.gmra.mxu0 %v5102
        %v5528 = vpop.f32.mrf.mxu0
        %v5529 = vadd.f32 %v5493, %v5528
        %v5530 = vpop.f32.mrf.mxu0
        %v5531 = vadd.f32 %v5493, %v5530
        %5532 = vdwg.mxu0
        %v5533 = vpack.c.bf16 %v5531, %v5529
        %s5534 = scalar_lea.vmem %s95, 16
        %v5535 = vld [vmem:[%s5534] sm:$0xff]
        %v5536 = vpack.c.bf16 %v5535, %v5535
        %v5538 = vsel %vm1790, %v5536, 0
        %v5541 = vsel %vm1790, %v5480, 0
        %5543 = vmatpush.bf16.xpose.msra.mxu0 0
        %5544 = vmatpush.bf16.xpose.msra.mxu0 0
        %5545 = vmatpush.bf16.xpose.msra.mxu0 0
        %5546 = vmatpush.bf16.xpose.msra.mxu0 0
        %5547 = vmatpush.bf16.xpose.msra.mxu0 0
        %5548 = vmatpush.bf16.xpose.msra.mxu0 0
        %5549 = vmatpush.bf16.xpose.msra.mxu0 0
        %5550 = vmatpush.bf16.xpose.msra.mxu0 %v5541
        %5551 = vmatmul.bf16.gmra.mxu0 %v5538
        %v5552 = vpop.f32.mrf.mxu0
        %v5553 = vadd.f32 %v2543, %v5552
        %v5554 = vpop.f32.mrf.mxu0
        %5555 = vdwg.mxu0
        %v5556 = vsel %vm1790, %v5553, -inf
        %5557 = vmax.xlane.f32.xlu0 %v5556
        %v5558 = vpop.xlane.xlu0 %5557
        %v5559 = vsub.f32 %v5553, %v5558
        %v5560 = vmul.f32 %v5559, 1.442695
        %v5561 = vpow.pop %v5560
        %v5562 = vsel %vm1790, %v5561, 0.0
        %5563 = vadd.xlane.f32.xlu0 %v5562
        %v5564 = vpop.xlane.xlu0 %5563
        %v5565 = vmax.f32 %v5564, 1e-30
        %v5566 = vrcp.pop %v5565
        %v5567 = vmul.f32 %v5561, %v5566
        %v5568 = vpack.c.bf16 %v5567, %v5567
        %v5570 = vsel %vm1790, %v5568, 0
        %5572 = vmatpush.bf16.msra.mxu0 0
        %5573 = vmatpush.bf16.msra.mxu0 0
        %5574 = vmatpush.bf16.msra.mxu0 0
        %5575 = vmatpush.bf16.msra.mxu0 0
        %5576 = vmatpush.bf16.msra.mxu0 0
        %5577 = vmatpush.bf16.msra.mxu0 0
        %5578 = vmatpush.bf16.msra.mxu0 0
        %5579 = vmatpush.bf16.msra.mxu0 %v5533
        %5580 = vmatmul.bf16.gmra.mxu0 %v5570
        %v5581 = vpop.f32.mrf.mxu0
        %v5582 = vadd.f32 0.0, %v5581
        %v5583 = vpop.f32.mrf.mxu0
        %5584 = vdwg.mxu0
        %v5585 = vpack.c.bf16 %v5582, %v5582
        %s5586 = scalar_lea.vmem %s105, 16
        %v5587 = vld [vmem:[%s5586] sm:$0xf]
        %v5588 = vld [vmem:[%s5586 + $0x4] sm:$0xf]
        %v5591 = vunpack.c.l.b16 %v5587
        %v5592 = vunpack.c.l.b16 %v5588
        %v5593 = vpack.c.b16 %v5592, %v5591
        %v5596 = vsel %vm1790, %v5585, 0
        %5598 = vmatpush.bf16.msra.mxu0 0
        %5599 = vmatpush.bf16.msra.mxu0 0
        %5600 = vmatpush.bf16.msra.mxu0 0
        %5601 = vmatpush.bf16.msra.mxu0 0
        %5602 = vmatpush.bf16.msra.mxu0 0
        %5603 = vmatpush.bf16.msra.mxu0 0
        %5604 = vmatpush.bf16.msra.mxu0 0
        %5605 = vmatpush.bf16.msra.mxu0 %v5593
        %5606 = vmatmul.bf16.gmra.mxu0 %v5596
        %v5607 = vpop.f32.mrf.mxu0
        %v5608 = vadd.f32 0.0, %v5607
        %v5609 = vpop.f32.mrf.mxu0
        %5610 = vdwg.mxu0
        %v5611 = vadd.f32 %v5425, %v5608
        %s5612 = scalar_lea.vmem %s97, 96
        %v5613 = vld [vmem:[%s5612] sm:$0xf]
        %v5614 = vld [vmem:[%s5612 + $0x4] sm:$0xf]
        %v5615 = vld [vmem:[%s5612 + $0x8] sm:$0xf]
        %v5616 = vld [vmem:[%s5612 + $0xc] sm:$0xf]
        %v5617 = vld [vmem:[%s5612 + $0x10] sm:$0xf]
        %v5618 = vld [vmem:[%s5612 + $0x14] sm:$0xf]
        %v5619 = vld [vmem:[%s5612 + $0x18] sm:$0xf]
        %v5620 = vld [vmem:[%s5612 + $0x1c] sm:$0xf]
        %s5621 = scalar_lea.vmem %s99, 3
        %v5622 = vld [vmem:[%s5621] sm:$0x1]
        %v5624 = vperm.slane %v5622, 0
        %v5634 = vunpack.c.l.b16 %v5613
        %v5635 = vunpack.c.l.b16 %v5614
        %v5636 = vunpack.c.l.b16 %v5615
        %v5637 = vunpack.c.l.b16 %v5616
        %v5638 = vunpack.c.l.b16 %v5617
        %v5639 = vunpack.c.l.b16 %v5618
        %v5640 = vunpack.c.l.b16 %v5619
        %v5641 = vunpack.c.l.b16 %v5620
        %v5642 = vpack.c.b16 %v5635, %v5634
        %v5643 = vpack.c.b16 %v5637, %v5636
        %v5644 = vpack.c.b16 %v5639, %v5638
        %v5645 = vpack.c.b16 %v5641, %v5640
        %5650 = vmatpush.bf16.msra.mxu0 0
        %5651 = vmatpush.bf16.msra.mxu0 0
        %5652 = vmatpush.bf16.msra.mxu0 0
        %5653 = vmatpush.bf16.msra.mxu0 0
        %5654 = vmatpush.bf16.msra.mxu0 %v5645
        %5655 = vmatpush.bf16.msra.mxu0 %v5644
        %5656 = vmatpush.bf16.msra.mxu0 %v5643
        %5657 = vmatpush.bf16.msra.mxu0 %v5642
        %5658 = vmatmul.bf16.gmra.mxu0 %v5102
        %v5659 = vpop.f32.mrf.mxu0
        %v5660 = vadd.f32 %v5624, %v5659
        %v5661 = vpop.f32.mrf.mxu0
        %v5662 = vadd.f32 %v5624, %v5661
        %5663 = vdwg.mxu0
        %v5664 = vpack.c.bf16 %v5662, %v5660
        %s5665 = scalar_lea.vmem %s101, 96
        %v5666 = vld [vmem:[%s5665] sm:$0xf]
        %v5667 = vld [vmem:[%s5665 + $0x4] sm:$0xf]
        %v5668 = vld [vmem:[%s5665 + $0x8] sm:$0xf]
        %v5669 = vld [vmem:[%s5665 + $0xc] sm:$0xf]
        %v5670 = vld [vmem:[%s5665 + $0x10] sm:$0xf]
        %v5671 = vld [vmem:[%s5665 + $0x14] sm:$0xf]
        %v5672 = vld [vmem:[%s5665 + $0x18] sm:$0xf]
        %v5673 = vld [vmem:[%s5665 + $0x1c] sm:$0xf]
        %s5674 = scalar_lea.vmem %s103, 3
        %v5675 = vld [vmem:[%s5674] sm:$0x1]
        %v5677 = vperm.slane %v5675, 0
        %v5687 = vunpack.c.l.b16 %v5666
        %v5688 = vunpack.c.l.b16 %v5667
        %v5689 = vunpack.c.l.b16 %v5668
        %v5690 = vunpack.c.l.b16 %v5669
        %v5691 = vunpack.c.l.b16 %v5670
        %v5692 = vunpack.c.l.b16 %v5671
        %v5693 = vunpack.c.l.b16 %v5672
        %v5694 = vunpack.c.l.b16 %v5673
        %v5695 = vpack.c.b16 %v5688, %v5687
        %v5696 = vpack.c.b16 %v5690, %v5689
        %v5697 = vpack.c.b16 %v5692, %v5691
        %v5698 = vpack.c.b16 %v5694, %v5693
        %5703 = vmatpush.bf16.msra.mxu0 0
        %5704 = vmatpush.bf16.msra.mxu0 0
        %5705 = vmatpush.bf16.msra.mxu0 0
        %5706 = vmatpush.bf16.msra.mxu0 0
        %5707 = vmatpush.bf16.msra.mxu0 %v5698
        %5708 = vmatpush.bf16.msra.mxu0 %v5697
        %5709 = vmatpush.bf16.msra.mxu0 %v5696
        %5710 = vmatpush.bf16.msra.mxu0 %v5695
        %5711 = vmatmul.bf16.gmra.mxu0 %v5102
        %v5712 = vpop.f32.mrf.mxu0
        %v5713 = vadd.f32 %v5677, %v5712
        %v5714 = vpop.f32.mrf.mxu0
        %v5715 = vadd.f32 %v5677, %v5714
        %5716 = vdwg.mxu0
        %v5717 = vpack.c.bf16 %v5715, %v5713
        %s5718 = scalar_lea.vmem %s95, 24
        %v5719 = vld [vmem:[%s5718] sm:$0xff]
        %v5720 = vpack.c.bf16 %v5719, %v5719
        %v5722 = vsel %vm1790, %v5720, 0
        %v5725 = vsel %vm1790, %v5664, 0
        %5727 = vmatpush.bf16.xpose.msra.mxu0 0
        %5728 = vmatpush.bf16.xpose.msra.mxu0 0
        %5729 = vmatpush.bf16.xpose.msra.mxu0 0
        %5730 = vmatpush.bf16.xpose.msra.mxu0 0
        %5731 = vmatpush.bf16.xpose.msra.mxu0 0
        %5732 = vmatpush.bf16.xpose.msra.mxu0 0
        %5733 = vmatpush.bf16.xpose.msra.mxu0 0
        %5734 = vmatpush.bf16.xpose.msra.mxu0 %v5725
        %5735 = vmatmul.bf16.gmra.mxu0 %v5722
        %v5736 = vpop.f32.mrf.mxu0
        %v5737 = vadd.f32 %v2543, %v5736
        %v5738 = vpop.f32.mrf.mxu0
        %5739 = vdwg.mxu0
        %v5740 = vsel %vm1790, %v5737, -inf
        %5741 = vmax.xlane.f32.xlu0 %v5740
        %v5742 = vpop.xlane.xlu0 %5741
        %v5743 = vsub.f32 %v5737, %v5742
        %v5744 = vmul.f32 %v5743, 1.442695
        %v5745 = vpow.pop %v5744
        %v5746 = vsel %vm1790, %v5745, 0.0
        %5747 = vadd.xlane.f32.xlu0 %v5746
        %v5748 = vpop.xlane.xlu0 %5747
        %v5749 = vmax.f32 %v5748, 1e-30
        %v5750 = vrcp.pop %v5749
        %v5751 = vmul.f32 %v5745, %v5750
        %v5752 = vpack.c.bf16 %v5751, %v5751
        %v5754 = vsel %vm1790, %v5752, 0
        %5756 = vmatpush.bf16.msra.mxu0 0
        %5757 = vmatpush.bf16.msra.mxu0 0
        %5758 = vmatpush.bf16.msra.mxu0 0
        %5759 = vmatpush.bf16.msra.mxu0 0
        %5760 = vmatpush.bf16.msra.mxu0 0
        %5761 = vmatpush.bf16.msra.mxu0 0
        %5762 = vmatpush.bf16.msra.mxu0 0
        %5763 = vmatpush.bf16.msra.mxu0 %v5717
        %5764 = vmatmul.bf16.gmra.mxu0 %v5754
        %v5765 = vpop.f32.mrf.mxu0
        %v5766 = vadd.f32 0.0, %v5765
        %v5767 = vpop.f32.mrf.mxu0
        %5768 = vdwg.mxu0
        %v5769 = vpack.c.bf16 %v5766, %v5766
        %s5770 = scalar_lea.vmem %s105, 24
        %v5771 = vld [vmem:[%s5770] sm:$0xf]
        %v5772 = vld [vmem:[%s5770 + $0x4] sm:$0xf]
        %v5775 = vunpack.c.l.b16 %v5771
        %v5776 = vunpack.c.l.b16 %v5772
        %v5777 = vpack.c.b16 %v5776, %v5775
        %v5780 = vsel %vm1790, %v5769, 0
        %5782 = vmatpush.bf16.msra.mxu0 0
        %5783 = vmatpush.bf16.msra.mxu0 0
        %5784 = vmatpush.bf16.msra.mxu0 0
        %5785 = vmatpush.bf16.msra.mxu0 0
        %5786 = vmatpush.bf16.msra.mxu0 0
        %5787 = vmatpush.bf16.msra.mxu0 0
        %5788 = vmatpush.bf16.msra.mxu0 0
        %5789 = vmatpush.bf16.msra.mxu0 %v5777
        %5790 = vmatmul.bf16.gmra.mxu0 %v5780
        %v5791 = vpop.f32.mrf.mxu0
        %v5792 = vadd.f32 0.0, %v5791
        %v5793 = vpop.f32.mrf.mxu0
        %5794 = vdwg.mxu0
        %v5795 = vadd.f32 %v5611, %v5792
        %v5796 = vadd.f32 %v5064, %v5795
        %v5797 = vld [vmem:[#allocation10] sm:$0x1]
        %v5799 = vperm.slane %v5797, 0
        %v5801 = vadd.f32 %v5796, %v5799
        %v5802 = vld [vmem:[#allocation11] sm:$0x1]
        %v5803 = vld [vmem:[#allocation13] sm:$0x1]
        %v5804 = vsel %vm3628, %v5801, 0.0
        %5805 = vadd.xlane.f32.xlu0 %v5804
        %v5806 = vpop.xlane.xlu0 %5805
        %v5807 = vrcp.pop 64.0
        %v5808 = vmul.f32 64.0, %v5807
        %v5809 = vsub.f32 1.0, %v5808
        %v5810 = vmul.f32 %v5807, %v5809
        %v5811 = vadd.f32 %v5807, %v5810
        %vm5812 = vweird.f32 %v5807
        %v5813 = vsel %vm5812, %v5807, %v5811
        %v5814 = vmul.f32 %v5806, %v5813
        %v5815 = vsub.f32 %v5801, %v5814
        %v5816 = vmul.f32 %v5815, %v5815
        %v5817 = vsel %vm3628, %v5816, 0.0
        %5818 = vadd.xlane.f32.xlu0 %v5817
        %v5819 = vpop.xlane.xlu0 %5818
        %v5820 = vmul.f32 %v5819, %v5813
        %v5821 = vadd.f32 %v5820, 1e-05
        %v5822 = vrsqrt.pop %v5821
        %v5823 = vmul.f32 %v5822, %v5821
        %v5824 = vmul.f32 %v5823, %v5822
        %v5825 = vmul.f32 0.5, %v5824
        %v5826 = vsub.f32 1.5, %v5825
        %v5827 = vmul.f32 %v5822, %v5826
        %vm5828 = vweird.f32 %v5821
        %vm5829 = vweird.f32 %v5822
        %vm5830 = vmor %vm5828, %vm5829
        %v5831 = vsel %vm5830, %v5822, %v5827
        %v5832 = vmul.f32 %v5815, %v5831
        %v5834 = vperm.slane %v5802, 0
        %v5836 = vmul.f32 %v5832, %v5834
        %v5838 = vperm.slane %v5803, 0
        %v5840 = vadd.f32 %v5836, %v5838
        %5841 = vst.msk [vmem:[%s1764] sm:$0xff] %vm3628, %v5840
        %s5842 = sand.u32 %s1325, 1
        %s5843 = scalar_lea.sflag [#allocation4], %s5842
        %s5844 = sand.u32 %s1325, 1
        %s5845 = smul.addr %s5844, 8
        %s5846 = scalar_lea.vmem [#allocation14], %s5845
        // Predicated region
        $region273: #{imitator_forward.1} parent=243 // pred_check
          %p5847 = pneg %p1335
        $region274: #{imitator_forward.1} parent=243 // pred_check_branch
          %5849 = sbr.rel (%p5847) target = $region276
        $region275: #{imitator_forward.1} parent=243 // pred_region
          %5851 = vsyncadd %s5843, 0
          %s5852 = smul.addr %s131, 8
          %s5853 = scalar_lea.hbm %s113, %s5852
          %s5855 = sshll.u32 %s5846, 4
          %s5856 = int_to_ptr.vmem [resolvable:$true] %s5855
          %s5857 = sshll.u32 %s5853, 4
          %s5858 = int_to_ptr.hbm [resolvable:$true] %s5857
          %5860 = dma.vmem_to_hbm [thread:$0]  %s5856, 128, %s5858, %s5843
        $region276: #{imitator_forward.1} parent=243 // pred_fallthru
          _
      $region244: #{imitator_forward.1} parent=5 // pred_fallthru
        _
      %p5861 = scmp.le.s32.totalorder 2, %s126
      // Predicated region
      $region277: #{imitator_forward.1} parent=5 // pred_check
        %p5862 = pneg %p5861
      $region278: #{imitator_forward.1} parent=5 // pred_check_branch
        %5864 = sbr.rel (%p5862) target = $region280
      $region279: #{imitator_forward.1} parent=5 // pred_region
        %s5865 = ssub.s32 %s126, 2
        // Predicated region
        $region281: #{imitator_forward.1} parent=279 // pred_check
          %p5866 = pneg %p1341
        $region282: #{imitator_forward.1} parent=279 // pred_check_branch
          %5868 = sbr.rel (%p5866) target = $region284
        $region283: #{imitator_forward.1} parent=279 // pred_region
          %s5869 = sand.u32 %s1326, 1
          %s5870 = scalar_lea.sflag [#allocation4], %s5869
          %s5871 = sand.u32 %s1326, 1
          %s5872 = smul.addr %s5871, 8
          %s5873 = scalar_lea.vmem [#allocation14], %s5872
          %5875 = dma.done %s5870, 128
        $region284: #{imitator_forward.1} parent=279 // pred_fallthru
          _
      $region280: #{imitator_forward.1} parent=5 // pred_fallthru
        _
    $region6: #{imitator_forward.1} parent=1 // loop_footer
      %s130 = sadd.s32 1, %s126
    $region7: #{imitator_forward.1} parent=1 // loop_footer_branch
      %125 = sbr.rel target = $region3
    $region8: #{imitator_forward.1} parent=1 // loop_exit
      _
    %5876 = vsyncpa [#allocation3], 1
    %s5877 = scalar_lea.sflag [#allocation3], 1
    %5878 = vsyncpa %s5877, 1
    %5879 = vsyncpa [#allocation6], 1
    %5880 = vsyncpa [#allocation9], 1
    %5881 = vsyncpa [#allocation12], 1
    %5882 = vsyncpa [#allocation4], 1
    %s5883 = scalar_lea.sflag [#allocation4], 1
    %5884 = vsyncpa %s5883, 1

</llo_original>
